<compile_context>
chip_gen: v7x
topology: tpu7x:2x2x1
jax: 0.10.0
libtpu: 0.0.40
codegen_flags: <defaults>
</compile_context>

<pallas_src>
import functools

import jax
import jax.numpy as jnp
from jax import lax
from jax.experimental import pallas as pl
from jax.experimental.pallas import tpu as pltpu


def _round_up(n, m):
    return ((n + m - 1) // m) * m


def _pick_tile_m(m):
    """Row-tile for the (M, *) kernels: big, multiple of 16 (bf16), >=2 grid steps."""
    for tm in (512, 256, 128, 64, 32):
        if m % tm == 0 and m // tm >= 2:
            return tm
    if m <= 32:
        return 32
    return min(512, _round_up((m + 1) // 2, 32))


# ----------------------------- Pallas kernels ------------------------------

def _linear_kernel(x_ref, w_ref, b_ref, s_ref, o_ref, *, act):
    # bf16 x bf16 matmul, f32 accumulation + epilogue.
    y = jnp.dot(x_ref[...], w_ref[...], preferred_element_type=jnp.float32)
    y = y + b_ref[...]
    if act == "prelu":
        y = jnp.where(y >= 0.0, y, y * s_ref[...])
    elif act == "relu":
        y = jnp.maximum(y, 0.0)
    elif act == "sigmoid":
        y = jax.nn.sigmoid(y)
    o_ref[...] = y.astype(o_ref.dtype)


def linear_act(x2d, w, b, act="none", slope=None, out_dtype=jnp.bfloat16):
    """y = x2d @ w + b (+ activation).  x2d/w bf16, accumulation f32."""
    M, K = x2d.shape
    N = w.shape[1]
    tm = _pick_tile_m(M)
    Mp = _round_up(M, tm)
    if Mp != M:
        x2d = jnp.pad(x2d, ((0, Mp - M), (0, 0)))
    if slope is None:
        slope = jnp.zeros((N,), jnp.float32)
    out = pl.pallas_call(
        functools.partial(_linear_kernel, act=act),
        out_shape=jax.ShapeDtypeStruct((Mp, N), out_dtype),
        grid=(Mp // tm,),
        in_specs=[
            pl.BlockSpec((tm, K), lambda i: (i, 0)),
            pl.BlockSpec((K, N), lambda i: (0, 0)),
            pl.BlockSpec((1, N), lambda i: (0, 0)),
            pl.BlockSpec((1, N), lambda i: (0, 0)),
        ],
        out_specs=pl.BlockSpec((tm, N), lambda i: (i, 0)),
        compiler_params=pltpu.CompilerParams(dimension_semantics=("parallel",)),
    )(x2d, w, b.reshape(1, N).astype(jnp.float32),
      slope.reshape(1, N).astype(jnp.float32))
    return out[:M] if Mp != M else out


def _conv3x3_kernel(x_ref, w_ref, b_ref, s_ref, o_ref, *, H, W, act):
    # Direct 3x3 conv on a padded image resident in VMEM: 9 shifted dots, f32 acc.
    xb = x_ref[0]                               # (H+2, W+2, Cin), bf16
    cin = xb.shape[-1]
    cout = w_ref.shape[-1]
    acc = None
    for ky in range(3):
        for kx in range(3):
            win = xb[ky:ky + H, kx:kx + W, :].reshape(H * W, cin)
            d = jnp.dot(win, w_ref[3 * ky + kx], preferred_element_type=jnp.float32)
            acc = d if acc is None else acc + d
    y = acc + b_ref[...]
    if act == "prelu":
        y = jnp.where(y >= 0.0, y, y * s_ref[...])
    o_ref[0] = y.reshape(H, W, cout).astype(o_ref.dtype)


def conv3x3_prelu(x, w9, b, slope, act="prelu"):
    """Zero-pad-1 3x3 conv + fused PReLU.  x: (B,H,W,Cin) bf16, w9: (9,Cin,Cout) bf16."""
    B, H, W, Cin = x.shape
    Cout = w9.shape[-1]
    xpad = jnp.pad(x, ((0, 0), (1, 1), (1, 1), (0, 0)))
    return pl.pallas_call(
        functools.partial(_conv3x3_kernel, H=H, W=W, act=act),
        out_shape=jax.ShapeDtypeStruct((B, H, W, Cout), jnp.bfloat16),
        grid=(B,),
        in_specs=[
            pl.BlockSpec((1, H + 2, W + 2, Cin), lambda bi: (bi, 0, 0, 0)),
            pl.BlockSpec((9, Cin, Cout), lambda bi: (0, 0, 0)),
            pl.BlockSpec((1, Cout), lambda bi: (0, 0)),
            pl.BlockSpec((1, Cout), lambda bi: (0, 0)),
        ],
        out_specs=pl.BlockSpec((1, H, W, Cout), lambda bi: (bi, 0, 0, 0)),
        compiler_params=pltpu.CompilerParams(dimension_semantics=("parallel",)),
    )(xpad, w9, b.reshape(1, Cout).astype(jnp.float32),
      slope.reshape(1, Cout).astype(jnp.float32))


def _fuse4_esa_head_kernel(x0, x1, x2, x3, w_ref, b_ref, w1_ref, b1_ref,
                           wf_ref, bf_ref, fo_ref, c1_ref, cf_ref):
    # fused = sum_i x_i @ W_i + b  (folded branch+fuse 1x1 convs), then
    # c1 = fused @ c1_w + c1_b  and  cf = c1 @ cf_w + cf_b  (ESA head) in one pass.
    acc = jnp.dot(x0[...], w_ref[0], preferred_element_type=jnp.float32)
    acc = acc + jnp.dot(x1[...], w_ref[1], preferred_element_type=jnp.float32)
    acc = acc + jnp.dot(x2[...], w_ref[2], preferred_element_type=jnp.float32)
    acc = acc + jnp.dot(x3[...], w_ref[3], preferred_element_type=jnp.float32)
    fused_bf = (acc + b_ref[...]).astype(jnp.bfloat16)
    fo_ref[...] = fused_bf
    c1 = jnp.dot(fused_bf, w1_ref[...], preferred_element_type=jnp.float32) + b1_ref[...]
    c1_ref[...] = c1.astype(c1_ref.dtype)
    cf = jnp.dot(c1.astype(jnp.bfloat16), wf_ref[...],
                 preferred_element_type=jnp.float32) + bf_ref[...]
    cf_ref[...] = cf.astype(cf_ref.dtype)


def fuse4_esa_head(x0, x1, x2, x3, wstack, b, c1_w, c1_b, cf_w, cf_b):
    M, C = x0.shape
    f = c1_w.shape[1]
    tm = _pick_tile_m(M)
    Mp = _round_up(M, tm)

    def pad(t):
        return jnp.pad(t, ((0, Mp - M), (0, 0))) if Mp != M else t

    fused, c1, cf = pl.pallas_call(
        _fuse4_esa_head_kernel,
        out_shape=(jax.ShapeDtypeStruct((Mp, C), jnp.bfloat16),
                   jax.ShapeDtypeStruct((Mp, f), jnp.bfloat16),
                   jax.ShapeDtypeStruct((Mp, f), jnp.float32)),
        grid=(Mp // tm,),
        in_specs=[pl.BlockSpec((tm, C), lambda i: (i, 0)) for _ in range(4)]
        + [pl.BlockSpec((4, C, C), lambda i: (0, 0, 0)),
           pl.BlockSpec((1, C), lambda i: (0, 0)),
           pl.BlockSpec((C, f), lambda i: (0, 0)),
           pl.BlockSpec((1, f), lambda i: (0, 0)),
           pl.BlockSpec((f, f), lambda i: (0, 0)),
           pl.BlockSpec((1, f), lambda i: (0, 0))],
        out_specs=(pl.BlockSpec((tm, C), lambda i: (i, 0)),
                   pl.BlockSpec((tm, f), lambda i: (i, 0)),
                   pl.BlockSpec((tm, f), lambda i: (i, 0))),
        compiler_params=pltpu.CompilerParams(dimension_semantics=("parallel",)),
    )(pad(x0), pad(x1), pad(x2), pad(x3), wstack,
      b.reshape(1, C).astype(jnp.float32),
      c1_w, c1_b.reshape(1, f).astype(jnp.float32),
      cf_w, cf_b.reshape(1, f).astype(jnp.float32))
    if Mp != M:
        fused, c1, cf = fused[:M], c1[:M], cf[:M]
    return fused, c1, cf


def _esa_gate_kernel(c3_ref, cf_ref, w_ref, b_ref, a_ref, x_ref, o_ref):
    # m = sigmoid((c3 + cf) @ w + b);  out = fused * m + x   (all in one pass)
    z = c3_ref[...] + cf_ref[...]
    m = jax.nn.sigmoid(
        jnp.dot(z, w_ref[...], preferred_element_type=jnp.float32) + b_ref[...])
    o_ref[...] = (a_ref[...].astype(jnp.float32) * m + x_ref[...]).astype(o_ref.dtype)


def esa_gate_residual_op(c3u, cf, w, b, fused2, x2):
    M, f = cf.shape
    C = w.shape[1]
    tm = _pick_tile_m(M)
    Mp = _round_up(M, tm)

    def pad(t):
        return jnp.pad(t, ((0, Mp - M), (0, 0))) if Mp != M else t

    out = pl.pallas_call(
        _esa_gate_kernel,
        out_shape=jax.ShapeDtypeStruct((Mp, C), jnp.float32),
        grid=(Mp // tm,),
        in_specs=[
            pl.BlockSpec((tm, f), lambda i: (i, 0)),
            pl.BlockSpec((tm, f), lambda i: (i, 0)),
            pl.BlockSpec((f, C), lambda i: (0, 0)),
            pl.BlockSpec((1, C), lambda i: (0, 0)),
            pl.BlockSpec((tm, C), lambda i: (i, 0)),
            pl.BlockSpec((tm, C), lambda i: (i, 0)),
        ],
        out_specs=pl.BlockSpec((tm, C), lambda i: (i, 0)),
        compiler_params=pltpu.CompilerParams(dimension_semantics=("parallel",)),
    )(pad(c3u.astype(jnp.float32)), pad(cf.astype(jnp.float32)),
      w.astype(jnp.float32), b.reshape(1, C).astype(jnp.float32),
      pad(fused2), pad(x2.astype(jnp.float32)))
    return out[:M] if Mp != M else out


# ----------------------------- small-map glue (ESA) --------------------------

def _im2col3(xpad, stride=1):
    B, Hp, Wp, C = xpad.shape
    Ho = (Hp - 3) // stride + 1
    Wo = (Wp - 3) // stride + 1
    cols = []
    for ky in range(3):
        for kx in range(3):
            cols.append(
                xpad[:, ky:ky + stride * (Ho - 1) + 1:stride,
                        kx:kx + stride * (Wo - 1) + 1:stride, :])
    return jnp.concatenate(cols, axis=-1), Ho, Wo


# ----------------------------- EFDB forward ----------------------------------

def efdb_forward(x, pp):
    """x: (B,H,W,C) f32, pp: prepared (folded, bf16) parameters."""
    B, H, W, C = x.shape
    M = B * H * W
    ep = pp["esa"]
    f = ep["c1_w"].shape[1]
    x_bf = x.astype(jnp.bfloat16)
    # out1 = PReLU(conv1(x))  -- matmul with fused PReLU epilogue
    out1 = linear_act(x_bf.reshape(M, C), pp["conv1_w"], pp["conv1_b"],
                      act="prelu", slope=pp["act_slope"]).reshape(B, H, W, C)
    # EDBBs re-parameterized to a single dense 3x3 conv + PReLU each (same math as
    # the module's switch_to_deploy), run as direct halo convs in VMEM.
    out2 = conv3x3_prelu(out1, pp["edbb2"]["w"], pp["edbb2"]["b"], pp["edbb2"]["prelu"])
    out3 = conv3x3_prelu(out2, pp["edbb3"]["w"], pp["edbb3"]["b"], pp["edbb3"]["prelu"])
    # branch[0..3] 1x1 + fuse 1x1 (folded) + ESA conv1/conv_f head, one kernel.
    fused2, c1_flat, cf = fuse4_esa_head(
        x_bf.reshape(M, C), out1.reshape(M, C), out2.reshape(M, C),
        out3.reshape(M, C), pp["fuse_w"], pp["fuse_b"],
        ep["c1_w"], ep["c1_b"], ep["cf_w"], ep["cf_b"])
    c1_ = c1_flat.reshape(B, H, W, f)
    # ESA downsample path (tiny f-channel maps; im2col + matmul kernels).
    cols, Ho, Wo = _im2col3(c1_, stride=2)
    c2 = linear_act(cols.reshape(B * Ho * Wo, 9 * f),
                    ep["c2_w"], ep["c2_b"]).reshape(B, Ho, Wo, f)
    # TODO(synk): 7x7/3 max-pool and bilinear resize stay in plain JAX (tiny, non-hot-path).
    v_max = lax.reduce_window(c2.astype(jnp.float32), -jnp.inf, lax.max,
                              (1, 7, 7, 1), (1, 3, 3, 1), "VALID")
    vpad = jnp.pad(v_max, ((0, 0), (1, 1), (1, 1), (0, 0))).astype(jnp.bfloat16)
    cols3, H3, W3 = _im2col3(vpad, stride=1)
    c3 = linear_act(cols3.reshape(B * H3 * W3, 9 * f), ep["c3_w"], ep["c3_b"],
                    out_dtype=jnp.float32).reshape(B, H3, W3, f)
    c3u = jax.image.resize(c3, (B, H, W, f), method="bilinear").reshape(M, f)
    # ESA gate (1x1 + sigmoid), attention multiply and block residual, fused.
    out = esa_gate_residual_op(c3u, cf, ep["c4_w"], ep["c4_b"], fused2,
                               x.reshape(M, C))
    return out.reshape(B, H, W, C)


# ----------------------------- parameter init (mimics the torch module) ------

SOBEL_X = jnp.array([[1., 0., -1.], [2., 0., -2.], [1., 0., -1.]], jnp.float32)
SOBEL_Y = jnp.array([[1., 2., 1.], [0., 0., 0.], [-1., -2., -1.]], jnp.float32)
LAPLACIAN = jnp.array([[0., 1., 0.], [1., -4., 1.], [0., 1., 0.]], jnp.float32)


def _w(key, shape, scale=0.05):
    return jax.random.normal(key, shape, jnp.float32) * scale


def init_seq_conv13(key, C):
    k = jax.random.split(key, 4)
    return dict(k0=_w(k[0], (C, C)), b0=_w(k[1], (C,)),
                k1=_w(k[2], (3, 3, C, C)), b1=_w(k[3], (C,)))


def init_seq_edge(key, C, mask2d):
    k = jax.random.split(key, 4)
    return dict(k0=_w(k[0], (C, C)), b0=_w(k[1], (C,)),
                scale=jax.random.normal(k[2], (C,), jnp.float32) * 0.001,
                bias=jax.random.normal(k[3], (C,), jnp.float32) * 0.001,
                mask=jnp.broadcast_to(mask2d, (C, 3, 3)))


def init_edbb(key, C):
    k = jax.random.split(key, 8)
    return dict(
        rep_w=_w(k[0], (3, 3, C, C)), rep_b=_w(k[1], (C,)),
        c1_w=_w(k[2], (C, C)), c1_b=_w(k[3], (C,)),
        s13=init_seq_conv13(k[4], C),
        sbx=init_seq_edge(k[5], C, SOBEL_X),
        sby=init_seq_edge(k[6], C, SOBEL_Y),
        lpl=init_seq_edge(k[7], C, LAPLACIAN),
        prelu=jnp.full((C,), 0.25, jnp.float32),
    )


def init_esa(key, C):
    f = C // 4
    k = jax.random.split(key, 10)
    return dict(
        c1_w=_w(k[0], (C, f)), c1_b=_w(k[1], (f,)),
        cf_w=_w(k[2], (f, f)), cf_b=_w(k[3], (f,)),
        c2_w=_w(k[4], (3, 3, f, f)), c2_b=_w(k[5], (f,)),
        c3_w=_w(k[6], (3, 3, f, f)), c3_b=_w(k[7], (f,)),
        c4_w=_w(k[8], (f, C)), c4_b=_w(k[9], (C,)),
    )


def init_efdb(key, C):
    k = jax.random.split(key, 16)
    p = dict(
        conv1_w=_w(k[0], (C, C)), conv1_b=_w(k[1], (C,)),
        act_slope=jnp.full((C,), 0.25, jnp.float32),
        edbb2=init_edbb(k[2], C),
        edbb3=init_edbb(k[3], C),
        fuse_w=_w(k[4], (2 * C, C)), fuse_b=_w(k[5], (C,)),
        esa=init_esa(k[6], C),
    )
    for i in range(4):
        p[f"br{i}_w"] = _w(k[7 + 2 * i], (C, C // 2))
        p[f"br{i}_b"] = _w(k[8 + 2 * i], (C // 2,))
    return p


# ----------------------------- weight folding (EDBB rep + branch/fuse) -------

def fold_edbb(p):
    """Fold all EDBB branches into one dense 3x3 kernel + bias (== switch_to_deploy)."""
    C = p["c1_w"].shape[0]
    RK = p["rep_w"]
    RB = p["rep_b"]
    # conv1x1 -> conv3x3 branch:  RK += k1 o k0 ;  RB += sum(k1 * b0) + b1
    s = p["s13"]
    RK = RK + jnp.einsum("im,yxmo->yxio", s["k0"], s["k1"])
    RB = RB + jnp.einsum("yxmo,m->o", s["k1"], s["b0"]) + s["b1"]
    # conv1x1 -> depthwise edge branches (sobel-x/y, laplacian)
    for name in ("sbx", "sby", "lpl"):
        e = p[name]
        dw = e["scale"][:, None, None] * e["mask"]          # (C, 3, 3)
        RK = RK + jnp.einsum("io,oyx->yxio", e["k0"], dw)
        RB = RB + e["b0"] * dw.sum(axis=(1, 2)) + e["bias"]
    # plain 1x1 branch at the kernel center + identity branch
    RK = RK.at[1, 1].add(p["c1_w"])
    RB = RB + p["c1_b"]
    RK = RK.at[1, 1].add(jnp.eye(C, dtype=RK.dtype))
    return RK, RB, p["prelu"]


def prepare_efdb_params(p):
    """One-time weight-space prep: EDBB folding, branch+fuse folding, bf16 casts."""
    bf = jnp.bfloat16
    C = p["conv1_w"].shape[0]
    out = dict(
        conv1_w=p["conv1_w"].astype(bf),
        conv1_b=p["conv1_b"].astype(jnp.float32),
        act_slope=p["act_slope"].astype(jnp.float32),
    )
    for name in ("edbb2", "edbb3"):
        RK, RB, slope = fold_edbb(p[name])
        out[name] = dict(w=RK.reshape(9, C, C).astype(bf),
                         b=RB.astype(jnp.float32),
                         prelu=slope.astype(jnp.float32))
    # concat(br_i(inp_i)) @ fuse_w == sum_i inp_i @ (br_i_w @ fuse_w_slice_i)
    half = C // 2
    ws = []
    bacc = p["fuse_b"].astype(jnp.float32)
    for i in range(4):
        fw = p["fuse_w"][i * half:(i + 1) * half, :]
        ws.append(p[f"br{i}_w"] @ fw)
        bacc = bacc + p[f"br{i}_b"] @ fw
    out["fuse_w"] = jnp.stack(ws, axis=0).astype(bf)        # (4, C, C)
    out["fuse_b"] = bacc
    e = p["esa"]
    f = e["c1_w"].shape[1]
    out["esa"] = dict(
        c1_w=e["c1_w"].astype(bf), c1_b=e["c1_b"].astype(jnp.float32),
        cf_w=e["cf_w"].astype(bf), cf_b=e["cf_b"].astype(jnp.float32),
        c2_w=e["c2_w"].reshape(9 * f, f).astype(bf), c2_b=e["c2_b"].astype(jnp.float32),
        c3_w=e["c3_w"].reshape(9 * f, f).astype(bf), c3_b=e["c3_b"].astype(jnp.float32),
        c4_w=e["c4_w"].astype(jnp.float32), c4_b=e["c4_b"].astype(jnp.float32),
    )
    return out


# ----------------------------- main -------------------------------------------

if __name__ == "__main__":
    n_feats, B, H, W = 16, 2, 16, 16          # small synthetic config (module default is 48)
    key = jax.random.PRNGKey(0)
    kx_, kp = jax.random.split(key)
    x = jax.random.normal(kx_, (B, H, W, n_feats), jnp.float32)   # NHWC
    params = init_efdb(kp, n_feats)
    pp = prepare_efdb_params(params)          # weight-space folding (done once)

    out = jax.jit(efdb_forward)(x, pp)
    out = jax.block_until_ready(out)

    assert out.shape == (B, H, W, n_feats)
    assert bool(jnp.all(jnp.isfinite(out)))
    print("KERNEL_OK")
</pallas_src>

<mosaic_0001>
module attributes {stable_mosaic.version = 11 : i64} {
  func.func @_conv3x3_kernel(%arg0: i32, %arg1: memref<1x18x18x16xbf16, #tpu.memory_space<vmem>>, %arg2: memref<9x16x16xbf16, #tpu.memory_space<vmem>>, %arg3: memref<1x16xf32, #tpu.memory_space<vmem>>, %arg4: memref<1x16xf32, #tpu.memory_space<vmem>>, %arg5: memref<1x16x16x16xbf16, #tpu.memory_space<vmem>>) attributes {dimension_semantics = [#tpu.dimension_semantics<parallel>], iteration_bounds = array<i64: 2>, scalar_prefetch = 0 : i64, scratch_operands = 0 : i64, tpu.core_type = #tpu.core_type<tc>, window_params = [{transform_indices = @transform_0, window_bounds = array<i64: 1, 18, 18, 16>}, {pipeline_mode = #tpu.pipeline_mode<synchronous>, transform_indices = @transform_1, window_bounds = array<i64: 9, 16, 16>}, {pipeline_mode = #tpu.pipeline_mode<synchronous>, transform_indices = @transform_2, window_bounds = array<i64: 1, 16>}, {pipeline_mode = #tpu.pipeline_mode<synchronous>, transform_indices = @transform_3, window_bounds = array<i64: 1, 16>}, {transform_indices = @transform_4, window_bounds = array<i64: 1, 16, 16, 16>}]} {
    %c0 = arith.constant 0 : index
    %c0_0 = arith.constant 0 : index
    %c0_1 = arith.constant 0 : index
    %c0_2 = arith.constant 0 : index
    %0 = vector.load %arg1[%c0, %c0_0, %c0_1, %c0_2] : memref<1x18x18x16xbf16, #tpu.memory_space<vmem>>, vector<1x18x18x16xbf16>
    %1 = vector.shape_cast %0 : vector<1x18x18x16xbf16> to vector<18x18x16xbf16>
    %2 = vector.extract_strided_slice %1 {offsets = [0, 0, 0], sizes = [16, 16, 16], strides = [1, 1, 1]} : vector<18x18x16xbf16> to vector<16x16x16xbf16>
    %3 = vector.shape_cast %2 : vector<16x16x16xbf16> to vector<256x16xbf16>
    %c0_3 = arith.constant 0 : index
    %c0_4 = arith.constant 0 : index
    %c0_5 = arith.constant 0 : index
    %4 = vector.load %arg2[%c0_3, %c0_4, %c0_5] : memref<9x16x16xbf16, #tpu.memory_space<vmem>>, vector<1x16x16xbf16>
    %5 = vector.shape_cast %4 : vector<1x16x16xbf16> to vector<16x16xbf16>
    %cst = arith.constant dense<0.000000e+00> : vector<256x16xf32>
    %6 = tpu.matmul %3, %5, %cst {dimension_numbers = #tpu.dot_dimension_numbers<[1], [0], [0], [1], [0, 0, 1, 1], [], []>} : vector<256x16xbf16>, vector<16x16xbf16>, vector<256x16xf32> -> vector<256x16xf32>
    %7 = vector.extract_strided_slice %1 {offsets = [0, 1, 0], sizes = [16, 16, 16], strides = [1, 1, 1]} : vector<18x18x16xbf16> to vector<16x16x16xbf16>
    %8 = vector.shape_cast %7 : vector<16x16x16xbf16> to vector<256x16xbf16>
    %c1 = arith.constant 1 : index
    %c0_6 = arith.constant 0 : index
    %c0_7 = arith.constant 0 : index
    %9 = vector.load %arg2[%c1, %c0_6, %c0_7] : memref<9x16x16xbf16, #tpu.memory_space<vmem>>, vector<1x16x16xbf16>
    %10 = vector.shape_cast %9 : vector<1x16x16xbf16> to vector<16x16xbf16>
    %cst_8 = arith.constant dense<0.000000e+00> : vector<256x16xf32>
    %11 = tpu.matmul %8, %10, %cst_8 {dimension_numbers = #tpu.dot_dimension_numbers<[1], [0], [0], [1], [0, 0, 1, 1], [], []>} : vector<256x16xbf16>, vector<16x16xbf16>, vector<256x16xf32> -> vector<256x16xf32>
    %12 = arith.addf %6, %11 : vector<256x16xf32>
    %13 = vector.extract_strided_slice %1 {offsets = [0, 2, 0], sizes = [16, 16, 16], strides = [1, 1, 1]} : vector<18x18x16xbf16> to vector<16x16x16xbf16>
    %14 = vector.shape_cast %13 : vector<16x16x16xbf16> to vector<256x16xbf16>
    %c2 = arith.constant 2 : index
    %c0_9 = arith.constant 0 : index
    %c0_10 = arith.constant 0 : index
    %15 = vector.load %arg2[%c2, %c0_9, %c0_10] : memref<9x16x16xbf16, #tpu.memory_space<vmem>>, vector<1x16x16xbf16>
    %16 = vector.shape_cast %15 : vector<1x16x16xbf16> to vector<16x16xbf16>
    %cst_11 = arith.constant dense<0.000000e+00> : vector<256x16xf32>
    %17 = tpu.matmul %14, %16, %cst_11 {dimension_numbers = #tpu.dot_dimension_numbers<[1], [0], [0], [1], [0, 0, 1, 1], [], []>} : vector<256x16xbf16>, vector<16x16xbf16>, vector<256x16xf32> -> vector<256x16xf32>
    %18 = arith.addf %12, %17 : vector<256x16xf32>
    %19 = vector.extract_strided_slice %1 {offsets = [1, 0, 0], sizes = [16, 16, 16], strides = [1, 1, 1]} : vector<18x18x16xbf16> to vector<16x16x16xbf16>
    %20 = vector.shape_cast %19 : vector<16x16x16xbf16> to vector<256x16xbf16>
    %c3 = arith.constant 3 : index
    %c0_12 = arith.constant 0 : index
    %c0_13 = arith.constant 0 : index
    %21 = vector.load %arg2[%c3, %c0_12, %c0_13] : memref<9x16x16xbf16, #tpu.memory_space<vmem>>, vector<1x16x16xbf16>
    %22 = vector.shape_cast %21 : vector<1x16x16xbf16> to vector<16x16xbf16>
    %cst_14 = arith.constant dense<0.000000e+00> : vector<256x16xf32>
    %23 = tpu.matmul %20, %22, %cst_14 {dimension_numbers = #tpu.dot_dimension_numbers<[1], [0], [0], [1], [0, 0, 1, 1], [], []>} : vector<256x16xbf16>, vector<16x16xbf16>, vector<256x16xf32> -> vector<256x16xf32>
    %24 = arith.addf %18, %23 : vector<256x16xf32>
    %25 = vector.extract_strided_slice %1 {offsets = [1, 1, 0], sizes = [16, 16, 16], strides = [1, 1, 1]} : vector<18x18x16xbf16> to vector<16x16x16xbf16>
    %26 = vector.shape_cast %25 : vector<16x16x16xbf16> to vector<256x16xbf16>
    %c4 = arith.constant 4 : index
    %c0_15 = arith.constant 0 : index
    %c0_16 = arith.constant 0 : index
    %27 = vector.load %arg2[%c4, %c0_15, %c0_16] : memref<9x16x16xbf16, #tpu.memory_space<vmem>>, vector<1x16x16xbf16>
    %28 = vector.shape_cast %27 : vector<1x16x16xbf16> to vector<16x16xbf16>
    %cst_17 = arith.constant dense<0.000000e+00> : vector<256x16xf32>
    %29 = tpu.matmul %26, %28, %cst_17 {dimension_numbers = #tpu.dot_dimension_numbers<[1], [0], [0], [1], [0, 0, 1, 1], [], []>} : vector<256x16xbf16>, vector<16x16xbf16>, vector<256x16xf32> -> vector<256x16xf32>
    %30 = arith.addf %24, %29 : vector<256x16xf32>
    %31 = vector.extract_strided_slice %1 {offsets = [1, 2, 0], sizes = [16, 16, 16], strides = [1, 1, 1]} : vector<18x18x16xbf16> to vector<16x16x16xbf16>
    %32 = vector.shape_cast %31 : vector<16x16x16xbf16> to vector<256x16xbf16>
    %c5 = arith.constant 5 : index
    %c0_18 = arith.constant 0 : index
    %c0_19 = arith.constant 0 : index
    %33 = vector.load %arg2[%c5, %c0_18, %c0_19] : memref<9x16x16xbf16, #tpu.memory_space<vmem>>, vector<1x16x16xbf16>
    %34 = vector.shape_cast %33 : vector<1x16x16xbf16> to vector<16x16xbf16>
    %cst_20 = arith.constant dense<0.000000e+00> : vector<256x16xf32>
    %35 = tpu.matmul %32, %34, %cst_20 {dimension_numbers = #tpu.dot_dimension_numbers<[1], [0], [0], [1], [0, 0, 1, 1], [], []>} : vector<256x16xbf16>, vector<16x16xbf16>, vector<256x16xf32> -> vector<256x16xf32>
    %36 = arith.addf %30, %35 : vector<256x16xf32>
    %37 = vector.extract_strided_slice %1 {offsets = [2, 0, 0], sizes = [16, 16, 16], strides = [1, 1, 1]} : vector<18x18x16xbf16> to vector<16x16x16xbf16>
    %38 = vector.shape_cast %37 : vector<16x16x16xbf16> to vector<256x16xbf16>
    %c6 = arith.constant 6 : index
    %c0_21 = arith.constant 0 : index
    %c0_22 = arith.constant 0 : index
    %39 = vector.load %arg2[%c6, %c0_21, %c0_22] : memref<9x16x16xbf16, #tpu.memory_space<vmem>>, vector<1x16x16xbf16>
    %40 = vector.shape_cast %39 : vector<1x16x16xbf16> to vector<16x16xbf16>
    %cst_23 = arith.constant dense<0.000000e+00> : vector<256x16xf32>
    %41 = tpu.matmul %38, %40, %cst_23 {dimension_numbers = #tpu.dot_dimension_numbers<[1], [0], [0], [1], [0, 0, 1, 1], [], []>} : vector<256x16xbf16>, vector<16x16xbf16>, vector<256x16xf32> -> vector<256x16xf32>
    %42 = arith.addf %36, %41 : vector<256x16xf32>
    %43 = vector.extract_strided_slice %1 {offsets = [2, 1, 0], sizes = [16, 16, 16], strides = [1, 1, 1]} : vector<18x18x16xbf16> to vector<16x16x16xbf16>
    %44 = vector.shape_cast %43 : vector<16x16x16xbf16> to vector<256x16xbf16>
    %c7 = arith.constant 7 : index
    %c0_24 = arith.constant 0 : index
    %c0_25 = arith.constant 0 : index
    %45 = vector.load %arg2[%c7, %c0_24, %c0_25] : memref<9x16x16xbf16, #tpu.memory_space<vmem>>, vector<1x16x16xbf16>
    %46 = vector.shape_cast %45 : vector<1x16x16xbf16> to vector<16x16xbf16>
    %cst_26 = arith.constant dense<0.000000e+00> : vector<256x16xf32>
    %47 = tpu.matmul %44, %46, %cst_26 {dimension_numbers = #tpu.dot_dimension_numbers<[1], [0], [0], [1], [0, 0, 1, 1], [], []>} : vector<256x16xbf16>, vector<16x16xbf16>, vector<256x16xf32> -> vector<256x16xf32>
    %48 = arith.addf %42, %47 : vector<256x16xf32>
    %49 = vector.extract_strided_slice %1 {offsets = [2, 2, 0], sizes = [16, 16, 16], strides = [1, 1, 1]} : vector<18x18x16xbf16> to vector<16x16x16xbf16>
    %50 = vector.shape_cast %49 : vector<16x16x16xbf16> to vector<256x16xbf16>
    %c8 = arith.constant 8 : index
    %c0_27 = arith.constant 0 : index
    %c0_28 = arith.constant 0 : index
    %51 = vector.load %arg2[%c8, %c0_27, %c0_28] : memref<9x16x16xbf16, #tpu.memory_space<vmem>>, vector<1x16x16xbf16>
    %52 = vector.shape_cast %51 : vector<1x16x16xbf16> to vector<16x16xbf16>
    %cst_29 = arith.constant dense<0.000000e+00> : vector<256x16xf32>
    %53 = tpu.matmul %50, %52, %cst_29 {dimension_numbers = #tpu.dot_dimension_numbers<[1], [0], [0], [1], [0, 0, 1, 1], [], []>} : vector<256x16xbf16>, vector<16x16xbf16>, vector<256x16xf32> -> vector<256x16xf32>
    %54 = arith.addf %48, %53 : vector<256x16xf32>
    %c0_30 = arith.constant 0 : index
    %c0_31 = arith.constant 0 : index
    %55 = vector.load %arg3[%c0_30, %c0_31] : memref<1x16xf32, #tpu.memory_space<vmem>>, vector<1x16xf32>
    %56 = vector.broadcast %55 : vector<1x16xf32> to vector<256x16xf32>
    %57 = arith.addf %54, %56 : vector<256x16xf32>
    %cst_32 = arith.constant 0.000000e+00 : f32
    %58 = vector.broadcast %cst_32 : f32 to vector<256x16xf32>
    %59 = arith.cmpf oge, %57, %58 : vector<256x16xf32>
    %c0_33 = arith.constant 0 : index
    %c0_34 = arith.constant 0 : index
    %60 = vector.load %arg4[%c0_33, %c0_34] : memref<1x16xf32, #tpu.memory_space<vmem>>, vector<1x16xf32>
    %61 = vector.broadcast %60 : vector<1x16xf32> to vector<256x16xf32>
    %62 = arith.mulf %57, %61 : vector<256x16xf32>
    %63 = arith.select %59, %57, %62 : vector<256x16xi1>, vector<256x16xf32>
    %64 = vector.shape_cast %63 : vector<256x16xf32> to vector<16x16x16xf32>
    %65 = arith.truncf %64 : vector<16x16x16xf32> to vector<16x16x16xbf16>
    %c0_35 = arith.constant 0 : index
    %c0_36 = arith.constant 0 : index
    %c0_37 = arith.constant 0 : index
    %c0_38 = arith.constant 0 : index
    %66 = vector.load %arg5[%c0_35, %c0_36, %c0_37, %c0_38] : memref<1x16x16x16xbf16, #tpu.memory_space<vmem>>, vector<1x16x16x16xbf16>
    %67 = vector.shape_cast %66 : vector<1x16x16x16xbf16> to vector<16x16x16xbf16>
    %68 = vector.shape_cast %65 : vector<16x16x16xbf16> to vector<1x16x16x16xbf16>
    tpu.vector_store %arg5[%c0_35, %c0_36, %c0_37, %c0_38], %68 {strides = array<i32>} : memref<1x16x16x16xbf16, #tpu.memory_space<vmem>>, vector<1x16x16x16xbf16>,
    return
  }
  func.func @transform_0(%arg0: i32) -> (i32, i32, i32, i32) {
    %c0_i32 = arith.constant 0 : i32
    %c0_i32_0 = arith.constant 0 : i32
    %c0_i32_1 = arith.constant 0 : i32
    %c0_i32_2 = arith.constant 0 : i32
    return %arg0, %c0_i32, %c0_i32_0, %c0_i32_1 : i32, i32, i32, i32
  }
  func.func @transform_1(%arg0: i32) -> (i32, i32, i32) {
    %c0_i32 = arith.constant 0 : i32
    %c0_i32_0 = arith.constant 0 : i32
    %c0_i32_1 = arith.constant 0 : i32
    %c0_i32_2 = arith.constant 0 : i32
    return %c0_i32, %c0_i32_0, %c0_i32_1 : i32, i32, i32
  }
  func.func @transform_2(%arg0: i32) -> (i32, i32) {
    %c0_i32 = arith.constant 0 : i32
    %c0_i32_0 = arith.constant 0 : i32
    %c0_i32_1 = arith.constant 0 : i32
    return %c0_i32, %c0_i32_0 : i32, i32
  }
  func.func @transform_3(%arg0: i32) -> (i32, i32) {
    %c0_i32 = arith.constant 0 : i32
    %c0_i32_0 = arith.constant 0 : i32
    %c0_i32_1 = arith.constant 0 : i32
    return %c0_i32, %c0_i32_0 : i32, i32
  }
  func.func @transform_4(%arg0: i32) -> (i32, i32, i32, i32) {
    %c0_i32 = arith.constant 0 : i32
    %c0_i32_0 = arith.constant 0 : i32
    %c0_i32_1 = arith.constant 0 : i32
    %c0_i32_2 = arith.constant 0 : i32
    return %arg0, %c0_i32, %c0_i32_0, %c0_i32_1 : i32, i32, i32, i32
  }
}

module attributes {stable_mosaic.version = 11 : i64} {
  func.func @_linear_kernel(%arg0: i32, %arg1: memref<256x16xbf16, #tpu.memory_space<vmem>>, %arg2: memref<16x16xbf16, #tpu.memory_space<vmem>>, %arg3: memref<1x16xf32, #tpu.memory_space<vmem>>, %arg4: memref<1x16xf32, #tpu.memory_space<vmem>>, %arg5: memref<256x16xbf16, #tpu.memory_space<vmem>>) attributes {dimension_semantics = [#tpu.dimension_semantics<parallel>], iteration_bounds = array<i64: 2>, scalar_prefetch = 0 : i64, scratch_operands = 0 : i64, tpu.core_type = #tpu.core_type<tc>, window_params = [{transform_indices = @transform_0, window_bounds = array<i64: 256, 16>}, {pipeline_mode = #tpu.pipeline_mode<synchronous>, transform_indices = @transform_1, window_bounds = array<i64: 16, 16>}, {pipeline_mode = #tpu.pipeline_mode<synchronous>, transform_indices = @transform_2, window_bounds = array<i64: 1, 16>}, {pipeline_mode = #tpu.pipeline_mode<synchronous>, transform_indices = @transform_3, window_bounds = array<i64: 1, 16>}, {transform_indices = @transform_4, window_bounds = array<i64: 256, 16>}]} {
    %c0 = arith.constant 0 : index
    %c0_0 = arith.constant 0 : index
    %0 = vector.load %arg1[%c0, %c0_0] : memref<256x16xbf16, #tpu.memory_space<vmem>>, vector<256x16xbf16>
    %c0_1 = arith.constant 0 : index
    %c0_2 = arith.constant 0 : index
    %1 = vector.load %arg2[%c0_1, %c0_2] : memref<16x16xbf16, #tpu.memory_space<vmem>>, vector<16x16xbf16>
    %cst = arith.constant dense<0.000000e+00> : vector<256x16xf32>
    %2 = tpu.matmul %0, %1, %cst {dimension_numbers = #tpu.dot_dimension_numbers<[1], [0], [0], [1], [0, 0, 1, 1], [], []>} : vector<256x16xbf16>, vector<16x16xbf16>, vector<256x16xf32> -> vector<256x16xf32>
    %c0_3 = arith.constant 0 : index
    %c0_4 = arith.constant 0 : index
    %3 = vector.load %arg3[%c0_3, %c0_4] : memref<1x16xf32, #tpu.memory_space<vmem>>, vector<1x16xf32>
    %4 = vector.broadcast %3 : vector<1x16xf32> to vector<256x16xf32>
    %5 = arith.addf %2, %4 : vector<256x16xf32>
    %cst_5 = arith.constant 0.000000e+00 : f32
    %6 = vector.broadcast %cst_5 : f32 to vector<256x16xf32>
    %7 = arith.cmpf oge, %5, %6 : vector<256x16xf32>
    %c0_6 = arith.constant 0 : index
    %c0_7 = arith.constant 0 : index
    %8 = vector.load %arg4[%c0_6, %c0_7] : memref<1x16xf32, #tpu.memory_space<vmem>>, vector<1x16xf32>
    %9 = vector.broadcast %8 : vector<1x16xf32> to vector<256x16xf32>
    %10 = arith.mulf %5, %9 : vector<256x16xf32>
    %11 = arith.select %7, %5, %10 : vector<256x16xi1>, vector<256x16xf32>
    %12 = arith.truncf %11 : vector<256x16xf32> to vector<256x16xbf16>
    %c0_8 = arith.constant 0 : index
    %c0_9 = arith.constant 0 : index
    %13 = vector.load %arg5[%c0_8, %c0_9] : memref<256x16xbf16, #tpu.memory_space<vmem>>, vector<256x16xbf16>
    tpu.vector_store %arg5[%c0_8, %c0_9], %12 {strides = array<i32>} : memref<256x16xbf16, #tpu.memory_space<vmem>>, vector<256x16xbf16>,
    return
  }
  func.func @transform_0(%arg0: i32) -> (i32, i32) {
    %c0_i32 = arith.constant 0 : i32
    %c0_i32_0 = arith.constant 0 : i32
    return %arg0, %c0_i32 : i32, i32
  }
  func.func @transform_1(%arg0: i32) -> (i32, i32) {
    %c0_i32 = arith.constant 0 : i32
    %c0_i32_0 = arith.constant 0 : i32
    %c0_i32_1 = arith.constant 0 : i32
    return %c0_i32, %c0_i32_0 : i32, i32
  }
  func.func @transform_2(%arg0: i32) -> (i32, i32) {
    %c0_i32 = arith.constant 0 : i32
    %c0_i32_0 = arith.constant 0 : i32
    %c0_i32_1 = arith.constant 0 : i32
    return %c0_i32, %c0_i32_0 : i32, i32
  }
  func.func @transform_3(%arg0: i32) -> (i32, i32) {
    %c0_i32 = arith.constant 0 : i32
    %c0_i32_0 = arith.constant 0 : i32
    %c0_i32_1 = arith.constant 0 : i32
    return %c0_i32, %c0_i32_0 : i32, i32
  }
  func.func @transform_4(%arg0: i32) -> (i32, i32) {
    %c0_i32 = arith.constant 0 : i32
    %c0_i32_0 = arith.constant 0 : i32
    return %arg0, %c0_i32 : i32, i32
  }
}

module attributes {stable_mosaic.version = 11 : i64} {
  func.func @_fuse4_esa_head_kernel(%arg0: i32, %arg1: memref<256x16xbf16, #tpu.memory_space<vmem>>, %arg2: memref<256x16xbf16, #tpu.memory_space<vmem>>, %arg3: memref<256x16xbf16, #tpu.memory_space<vmem>>, %arg4: memref<256x16xbf16, #tpu.memory_space<vmem>>, %arg5: memref<4x16x16xbf16, #tpu.memory_space<vmem>>, %arg6: memref<1x16xf32, #tpu.memory_space<vmem>>, %arg7: memref<16x4xbf16, #tpu.memory_space<vmem>>, %arg8: memref<1x4xf32, #tpu.memory_space<vmem>>, %arg9: memref<4x4xbf16, #tpu.memory_space<vmem>>, %arg10: memref<1x4xf32, #tpu.memory_space<vmem>>, %arg11: memref<256x16xbf16, #tpu.memory_space<vmem>>, %arg12: memref<256x4xbf16, #tpu.memory_space<vmem>>, %arg13: memref<256x4xf32, #tpu.memory_space<vmem>>) attributes {dimension_semantics = [#tpu.dimension_semantics<parallel>], iteration_bounds = array<i64: 2>, scalar_prefetch = 0 : i64, scratch_operands = 0 : i64, tpu.core_type = #tpu.core_type<tc>, window_params = [{transform_indices = @transform_0, window_bounds = array<i64: 256, 16>}, {transform_indices = @transform_1, window_bounds = array<i64: 256, 16>}, {transform_indices = @transform_2, window_bounds = array<i64: 256, 16>}, {transform_indices = @transform_3, window_bounds = array<i64: 256, 16>}, {pipeline_mode = #tpu.pipeline_mode<synchronous>, transform_indices = @transform_4, window_bounds = array<i64: 4, 16, 16>}, {pipeline_mode = #tpu.pipeline_mode<synchronous>, transform_indices = @transform_5, window_bounds = array<i64: 1, 16>}, {pipeline_mode = #tpu.pipeline_mode<synchronous>, transform_indices = @transform_6, window_bounds = array<i64: 16, 4>}, {pipeline_mode = #tpu.pipeline_mode<synchronous>, transform_indices = @transform_7, window_bounds = array<i64: 1, 4>}, {pipeline_mode = #tpu.pipeline_mode<synchronous>, transform_indices = @transform_8, window_bounds = array<i64: 4, 4>}, {pipeline_mode = #tpu.pipeline_mode<synchronous>, transform_indices = @transform_9, window_bounds = array<i64: 1, 4>}, {transform_indices = @transform_10, window_bounds = array<i64: 256, 16>}, {transform_indices = @transform_11, window_bounds = array<i64: 256, 4>}, {transform_indices = @transform_12, window_bounds = array<i64: 256, 4>}]} {
    %c0 = arith.constant 0 : index
    %c0_0 = arith.constant 0 : index
    %0 = vector.load %arg1[%c0, %c0_0] : memref<256x16xbf16, #tpu.memory_space<vmem>>, vector<256x16xbf16>
    %c0_1 = arith.constant 0 : index
    %c0_2 = arith.constant 0 : index
    %c0_3 = arith.constant 0 : index
    %1 = vector.load %arg5[%c0_1, %c0_2, %c0_3] : memref<4x16x16xbf16, #tpu.memory_space<vmem>>, vector<1x16x16xbf16>
    %2 = vector.shape_cast %1 : vector<1x16x16xbf16> to vector<16x16xbf16>
    %cst = arith.constant dense<0.000000e+00> : vector<256x16xf32>
    %3 = tpu.matmul %0, %2, %cst {dimension_numbers = #tpu.dot_dimension_numbers<[1], [0], [0], [1], [0, 0, 1, 1], [], []>} : vector<256x16xbf16>, vector<16x16xbf16>, vector<256x16xf32> -> vector<256x16xf32>
    %c0_4 = arith.constant 0 : index
    %c0_5 = arith.constant 0 : index
    %4 = vector.load %arg2[%c0_4, %c0_5] : memref<256x16xbf16, #tpu.memory_space<vmem>>, vector<256x16xbf16>
    %c1 = arith.constant 1 : index
    %c0_6 = arith.constant 0 : index
    %c0_7 = arith.constant 0 : index
    %5 = vector.load %arg5[%c1, %c0_6, %c0_7] : memref<4x16x16xbf16, #tpu.memory_space<vmem>>, vector<1x16x16xbf16>
    %6 = vector.shape_cast %5 : vector<1x16x16xbf16> to vector<16x16xbf16>
    %cst_8 = arith.constant dense<0.000000e+00> : vector<256x16xf32>
    %7 = tpu.matmul %4, %6, %cst_8 {dimension_numbers = #tpu.dot_dimension_numbers<[1], [0], [0], [1], [0, 0, 1, 1], [], []>} : vector<256x16xbf16>, vector<16x16xbf16>, vector<256x16xf32> -> vector<256x16xf32>
    %8 = arith.addf %3, %7 : vector<256x16xf32>
    %c0_9 = arith.constant 0 : index
    %c0_10 = arith.constant 0 : index
    %9 = vector.load %arg3[%c0_9, %c0_10] : memref<256x16xbf16, #tpu.memory_space<vmem>>, vector<256x16xbf16>
    %c2 = arith.constant 2 : index
    %c0_11 = arith.constant 0 : index
    %c0_12 = arith.constant 0 : index
    %10 = vector.load %arg5[%c2, %c0_11, %c0_12] : memref<4x16x16xbf16, #tpu.memory_space<vmem>>, vector<1x16x16xbf16>
    %11 = vector.shape_cast %10 : vector<1x16x16xbf16> to vector<16x16xbf16>
    %cst_13 = arith.constant dense<0.000000e+00> : vector<256x16xf32>
    %12 = tpu.matmul %9, %11, %cst_13 {dimension_numbers = #tpu.dot_dimension_numbers<[1], [0], [0], [1], [0, 0, 1, 1], [], []>} : vector<256x16xbf16>, vector<16x16xbf16>, vector<256x16xf32> -> vector<256x16xf32>
    %13 = arith.addf %8, %12 : vector<256x16xf32>
    %c0_14 = arith.constant 0 : index
    %c0_15 = arith.constant 0 : index
    %14 = vector.load %arg4[%c0_14, %c0_15] : memref<256x16xbf16, #tpu.memory_space<vmem>>, vector<256x16xbf16>
    %c3 = arith.constant 3 : index
    %c0_16 = arith.constant 0 : index
    %c0_17 = arith.constant 0 : index
    %15 = vector.load %arg5[%c3, %c0_16, %c0_17] : memref<4x16x16xbf16, #tpu.memory_space<vmem>>, vector<1x16x16xbf16>
    %16 = vector.shape_cast %15 : vector<1x16x16xbf16> to vector<16x16xbf16>
    %cst_18 = arith.constant dense<0.000000e+00> : vector<256x16xf32>
    %17 = tpu.matmul %14, %16, %cst_18 {dimension_numbers = #tpu.dot_dimension_numbers<[1], [0], [0], [1], [0, 0, 1, 1], [], []>} : vector<256x16xbf16>, vector<16x16xbf16>, vector<256x16xf32> -> vector<256x16xf32>
    %18 = arith.addf %13, %17 : vector<256x16xf32>
    %c0_19 = arith.constant 0 : index
    %c0_20 = arith.constant 0 : index
    %19 = vector.load %arg6[%c0_19, %c0_20] : memref<1x16xf32, #tpu.memory_space<vmem>>, vector<1x16xf32>
    %20 = vector.broadcast %19 : vector<1x16xf32> to vector<256x16xf32>
    %21 = arith.addf %18, %20 : vector<256x16xf32>
    %22 = arith.truncf %21 : vector<256x16xf32> to vector<256x16xbf16>
    %c0_21 = arith.constant 0 : index
    %c0_22 = arith.constant 0 : index
    %23 = vector.load %arg11[%c0_21, %c0_22] : memref<256x16xbf16, #tpu.memory_space<vmem>>, vector<256x16xbf16>
    tpu.vector_store %arg11[%c0_21, %c0_22], %22 {strides = array<i32>} : memref<256x16xbf16, #tpu.memory_space<vmem>>, vector<256x16xbf16>,
    %c0_23 = arith.constant 0 : index
    %c0_24 = arith.constant 0 : index
    %24 = vector.load %arg7[%c0_23, %c0_24] : memref<16x4xbf16, #tpu.memory_space<vmem>>, vector<16x4xbf16>
    %cst_25 = arith.constant dense<0.000000e+00> : vector<256x4xf32>
    %25 = tpu.matmul %22, %24, %cst_25 {dimension_numbers = #tpu.dot_dimension_numbers<[1], [0], [0], [1], [0, 0, 1, 1], [], []>} : vector<256x16xbf16>, vector<16x4xbf16>, vector<256x4xf32> -> vector<256x4xf32>
    %c0_26 = arith.constant 0 : index
    %c0_27 = arith.constant 0 : index
    %26 = vector.load %arg8[%c0_26, %c0_27] : memref<1x4xf32, #tpu.memory_space<vmem>>, vector<1x4xf32>
    %27 = vector.broadcast %26 : vector<1x4xf32> to vector<256x4xf32>
    %28 = arith.addf %25, %27 : vector<256x4xf32>
    %29 = arith.truncf %28 : vector<256x4xf32> to vector<256x4xbf16>
    %c0_28 = arith.constant 0 : index
    %c0_29 = arith.constant 0 : index
    %30 = vector.load %arg12[%c0_28, %c0_29] : memref<256x4xbf16, #tpu.memory_space<vmem>>, vector<256x4xbf16>
    tpu.vector_store %arg12[%c0_28, %c0_29], %29 {strides = array<i32>} : memref<256x4xbf16, #tpu.memory_space<vmem>>, vector<256x4xbf16>,
    %31 = arith.truncf %28 : vector<256x4xf32> to vector<256x4xbf16>
    %c0_30 = arith.constant 0 : index
    %c0_31 = arith.constant 0 : index
    %32 = vector.load %arg9[%c0_30, %c0_31] : memref<4x4xbf16, #tpu.memory_space<vmem>>, vector<4x4xbf16>
    %cst_32 = arith.constant dense<0.000000e+00> : vector<256x4xf32>
    %33 = tpu.matmul %31, %32, %cst_32 {dimension_numbers = #tpu.dot_dimension_numbers<[1], [0], [0], [1], [0, 0, 1, 1], [], []>} : vector<256x4xbf16>, vector<4x4xbf16>, vector<256x4xf32> -> vector<256x4xf32>
    %c0_33 = arith.constant 0 : index
    %c0_34 = arith.constant 0 : index
    %34 = vector.load %arg10[%c0_33, %c0_34] : memref<1x4xf32, #tpu.memory_space<vmem>>, vector<1x4xf32>
    %35 = vector.broadcast %34 : vector<1x4xf32> to vector<256x4xf32>
    %36 = arith.addf %33, %35 : vector<256x4xf32>
    %c0_35 = arith.constant 0 : index
    %c0_36 = arith.constant 0 : index
    %37 = vector.load %arg13[%c0_35, %c0_36] : memref<256x4xf32, #tpu.memory_space<vmem>>, vector<256x4xf32>
    tpu.vector_store %arg13[%c0_35, %c0_36], %36 {strides = array<i32>} : memref<256x4xf32, #tpu.memory_space<vmem>>, vector<256x4xf32>,
    return
  }
  func.func @transform_0(%arg0: i32) -> (i32, i32) {
    %c0_i32 = arith.constant 0 : i32
    %c0_i32_0 = arith.constant 0 : i32
    return %arg0, %c0_i32 : i32, i32
  }
  func.func @transform_1(%arg0: i32) -> (i32, i32) {
    %c0_i32 = arith.constant 0 : i32
    %c0_i32_0 = arith.constant 0 : i32
    return %arg0, %c0_i32 : i32, i32
  }
  func.func @transform_2(%arg0: i32) -> (i32, i32) {
    %c0_i32 = arith.constant 0 : i32
    %c0_i32_0 = arith.constant 0 : i32
    return %arg0, %c0_i32 : i32, i32
  }
  func.func @transform_3(%arg0: i32) -> (i32, i32) {
    %c0_i32 = arith.constant 0 : i32
    %c0_i32_0 = arith.constant 0 : i32
    return %arg0, %c0_i32 : i32, i32
  }
  func.func @transform_4(%arg0: i32) -> (i32, i32, i32) {
    %c0_i32 = arith.constant 0 : i32
    %c0_i32_0 = arith.constant 0 : i32
    %c0_i32_1 = arith.constant 0 : i32
    %c0_i32_2 = arith.constant 0 : i32
    return %c0_i32, %c0_i32_0, %c0_i32_1 : i32, i32, i32
  }
  func.func @transform_5(%arg0: i32) -> (i32, i32) {
    %c0_i32 = arith.constant 0 : i32
    %c0_i32_0 = arith.constant 0 : i32
    %c0_i32_1 = arith.constant 0 : i32
    return %c0_i32, %c0_i32_0 : i32, i32
  }
  func.func @transform_6(%arg0: i32) -> (i32, i32) {
    %c0_i32 = arith.constant 0 : i32
    %c0_i32_0 = arith.constant 0 : i32
    %c0_i32_1 = arith.constant 0 : i32
    return %c0_i32, %c0_i32_0 : i32, i32
  }
  func.func @transform_7(%arg0: i32) -> (i32, i32) {
    %c0_i32 = arith.constant 0 : i32
    %c0_i32_0 = arith.constant 0 : i32
    %c0_i32_1 = arith.constant 0 : i32
    return %c0_i32, %c0_i32_0 : i32, i32
  }
  func.func @transform_8(%arg0: i32) -> (i32, i32) {
    %c0_i32 = arith.constant 0 : i32
    %c0_i32_0 = arith.constant 0 : i32
    %c0_i32_1 = arith.constant 0 : i32
    return %c0_i32, %c0_i32_0 : i32, i32
  }
  func.func @transform_9(%arg0: i32) -> (i32, i32) {
    %c0_i32 = arith.constant 0 : i32
    %c0_i32_0 = arith.constant 0 : i32
    %c0_i32_1 = arith.constant 0 : i32
    return %c0_i32, %c0_i32_0 : i32, i32
  }
  func.func @transform_10(%arg0: i32) -> (i32, i32) {
    %c0_i32 = arith.constant 0 : i32
    %c0_i32_0 = arith.constant 0 : i32
    return %arg0, %c0_i32 : i32, i32
  }
  func.func @transform_11(%arg0: i32) -> (i32, i32) {
    %c0_i32 = arith.constant 0 : i32
    %c0_i32_0 = arith.constant 0 : i32
    return %arg0, %c0_i32 : i32, i32
  }
  func.func @transform_12(%arg0: i32) -> (i32, i32) {
    %c0_i32 = arith.constant 0 : i32
    %c0_i32_0 = arith.constant 0 : i32
    return %arg0, %c0_i32 : i32, i32
  }
}

module attributes {stable_mosaic.version = 11 : i64} {
  func.func @_linear_kernel(%arg0: i32, %arg1: memref<64x36xbf16, #tpu.memory_space<vmem>>, %arg2: memref<36x4xbf16, #tpu.memory_space<vmem>>, %arg3: memref<1x4xf32, #tpu.memory_space<vmem>>, %arg4: memref<1x4xf32, #tpu.memory_space<vmem>>, %arg5: memref<64x4xbf16, #tpu.memory_space<vmem>>) attributes {dimension_semantics = [#tpu.dimension_semantics<parallel>], iteration_bounds = array<i64: 2>, scalar_prefetch = 0 : i64, scratch_operands = 0 : i64, tpu.core_type = #tpu.core_type<tc>, window_params = [{transform_indices = @transform_0, window_bounds = array<i64: 64, 36>}, {pipeline_mode = #tpu.pipeline_mode<synchronous>, transform_indices = @transform_1, window_bounds = array<i64: 36, 4>}, {pipeline_mode = #tpu.pipeline_mode<synchronous>, transform_indices = @transform_2, window_bounds = array<i64: 1, 4>}, {pipeline_mode = #tpu.pipeline_mode<synchronous>, transform_indices = @transform_3, window_bounds = array<i64: 1, 4>}, {transform_indices = @transform_4, window_bounds = array<i64: 64, 4>}]} {
    %c0 = arith.constant 0 : index
    %c0_0 = arith.constant 0 : index
    %0 = vector.load %arg1[%c0, %c0_0] : memref<64x36xbf16, #tpu.memory_space<vmem>>, vector<64x36xbf16>
    %c0_1 = arith.constant 0 : index
    %c0_2 = arith.constant 0 : index
    %1 = vector.load %arg2[%c0_1, %c0_2] : memref<36x4xbf16, #tpu.memory_space<vmem>>, vector<36x4xbf16>
    %cst = arith.constant dense<0.000000e+00> : vector<64x4xf32>
    %2 = tpu.matmul %0, %1, %cst {dimension_numbers = #tpu.dot_dimension_numbers<[1], [0], [0], [1], [0, 0, 1, 1], [], []>} : vector<64x36xbf16>, vector<36x4xbf16>, vector<64x4xf32> -> vector<64x4xf32>
    %c0_3 = arith.constant 0 : index
    %c0_4 = arith.constant 0 : index
    %3 = vector.load %arg3[%c0_3, %c0_4] : memref<1x4xf32, #tpu.memory_space<vmem>>, vector<1x4xf32>
    %4 = vector.broadcast %3 : vector<1x4xf32> to vector<64x4xf32>
    %5 = arith.addf %2, %4 : vector<64x4xf32>
    %6 = arith.truncf %5 : vector<64x4xf32> to vector<64x4xbf16>
    %c0_5 = arith.constant 0 : index
    %c0_6 = arith.constant 0 : index
    %7 = vector.load %arg5[%c0_5, %c0_6] : memref<64x4xbf16, #tpu.memory_space<vmem>>, vector<64x4xbf16>
    tpu.vector_store %arg5[%c0_5, %c0_6], %6 {strides = array<i32>} : memref<64x4xbf16, #tpu.memory_space<vmem>>, vector<64x4xbf16>,
    return
  }
  func.func @transform_0(%arg0: i32) -> (i32, i32) {
    %c0_i32 = arith.constant 0 : i32
    %c0_i32_0 = arith.constant 0 : i32
    return %arg0, %c0_i32 : i32, i32
  }
  func.func @transform_1(%arg0: i32) -> (i32, i32) {
    %c0_i32 = arith.constant 0 : i32
    %c0_i32_0 = arith.constant 0 : i32
    %c0_i32_1 = arith.constant 0 : i32
    return %c0_i32, %c0_i32_0 : i32, i32
  }
  func.func @transform_2(%arg0: i32) -> (i32, i32) {
    %c0_i32 = arith.constant 0 : i32
    %c0_i32_0 = arith.constant 0 : i32
    %c0_i32_1 = arith.constant 0 : i32
    return %c0_i32, %c0_i32_0 : i32, i32
  }
  func.func @transform_3(%arg0: i32) -> (i32, i32) {
    %c0_i32 = arith.constant 0 : i32
    %c0_i32_0 = arith.constant 0 : i32
    %c0_i32_1 = arith.constant 0 : i32
    return %c0_i32, %c0_i32_0 : i32, i32
  }
  func.func @transform_4(%arg0: i32) -> (i32, i32) {
    %c0_i32 = arith.constant 0 : i32
    %c0_i32_0 = arith.constant 0 : i32
    return %arg0, %c0_i32 : i32, i32
  }
}

module attributes {stable_mosaic.version = 11 : i64} {
  func.func @_linear_kernel(%arg0: i32, %arg1: memref<32x36xbf16, #tpu.memory_space<vmem>>, %arg2: memref<36x4xbf16, #tpu.memory_space<vmem>>, %arg3: memref<1x4xf32, #tpu.memory_space<vmem>>, %arg4: memref<1x4xf32, #tpu.memory_space<vmem>>, %arg5: memref<32x4xf32, #tpu.memory_space<vmem>>) attributes {dimension_semantics = [#tpu.dimension_semantics<parallel>], iteration_bounds = array<i64: 1>, scalar_prefetch = 0 : i64, scratch_operands = 0 : i64, tpu.core_type = #tpu.core_type<tc>, window_params = [{transform_indices = @transform_0, window_bounds = array<i64: 32, 36>}, {pipeline_mode = #tpu.pipeline_mode<synchronous>, transform_indices = @transform_1, window_bounds = array<i64: 36, 4>}, {pipeline_mode = #tpu.pipeline_mode<synchronous>, transform_indices = @transform_2, window_bounds = array<i64: 1, 4>}, {pipeline_mode = #tpu.pipeline_mode<synchronous>, transform_indices = @transform_3, window_bounds = array<i64: 1, 4>}, {transform_indices = @transform_4, window_bounds = array<i64: 32, 4>}]} {
    %c0 = arith.constant 0 : index
    %c0_0 = arith.constant 0 : index
    %0 = vector.load %arg1[%c0, %c0_0] : memref<32x36xbf16, #tpu.memory_space<vmem>>, vector<32x36xbf16>
    %c0_1 = arith.constant 0 : index
    %c0_2 = arith.constant 0 : index
    %1 = vector.load %arg2[%c0_1, %c0_2] : memref<36x4xbf16, #tpu.memory_space<vmem>>, vector<36x4xbf16>
    %cst = arith.constant dense<0.000000e+00> : vector<32x4xf32>
    %2 = tpu.matmul %0, %1, %cst {dimension_numbers = #tpu.dot_dimension_numbers<[1], [0], [0], [1], [0, 0, 1, 1], [], []>} : vector<32x36xbf16>, vector<36x4xbf16>, vector<32x4xf32> -> vector<32x4xf32>
    %c0_3 = arith.constant 0 : index
    %c0_4 = arith.constant 0 : index
    %3 = vector.load %arg3[%c0_3, %c0_4] : memref<1x4xf32, #tpu.memory_space<vmem>>, vector<1x4xf32>
    %4 = vector.broadcast %3 : vector<1x4xf32> to vector<32x4xf32>
    %5 = arith.addf %2, %4 : vector<32x4xf32>
    %c0_5 = arith.constant 0 : index
    %c0_6 = arith.constant 0 : index
    %6 = vector.load %arg5[%c0_5, %c0_6] : memref<32x4xf32, #tpu.memory_space<vmem>>, vector<32x4xf32>
    tpu.vector_store %arg5[%c0_5, %c0_6], %5 {strides = array<i32>} : memref<32x4xf32, #tpu.memory_space<vmem>>, vector<32x4xf32>,
    return
  }
  func.func @transform_0(%arg0: i32) -> (i32, i32) {
    %c0_i32 = arith.constant 0 : i32
    %c0_i32_0 = arith.constant 0 : i32
    return %arg0, %c0_i32 : i32, i32
  }
  func.func @transform_1(%arg0: i32) -> (i32, i32) {
    %c0_i32 = arith.constant 0 : i32
    %c0_i32_0 = arith.constant 0 : i32
    %c0_i32_1 = arith.constant 0 : i32
    return %c0_i32, %c0_i32_0 : i32, i32
  }
  func.func @transform_2(%arg0: i32) -> (i32, i32) {
    %c0_i32 = arith.constant 0 : i32
    %c0_i32_0 = arith.constant 0 : i32
    %c0_i32_1 = arith.constant 0 : i32
    return %c0_i32, %c0_i32_0 : i32, i32
  }
  func.func @transform_3(%arg0: i32) -> (i32, i32) {
    %c0_i32 = arith.constant 0 : i32
    %c0_i32_0 = arith.constant 0 : i32
    %c0_i32_1 = arith.constant 0 : i32
    return %c0_i32, %c0_i32_0 : i32, i32
  }
  func.func @transform_4(%arg0: i32) -> (i32, i32) {
    %c0_i32 = arith.constant 0 : i32
    %c0_i32_0 = arith.constant 0 : i32
    return %arg0, %c0_i32 : i32, i32
  }
}

module attributes {stable_mosaic.version = 11 : i64} {
  func.func @_esa_gate_kernel(%arg0: i32, %arg1: memref<256x4xf32, #tpu.memory_space<vmem>>, %arg2: memref<256x4xf32, #tpu.memory_space<vmem>>, %arg3: memref<4x16xf32, #tpu.memory_space<vmem>>, %arg4: memref<1x16xf32, #tpu.memory_space<vmem>>, %arg5: memref<256x16xbf16, #tpu.memory_space<vmem>>, %arg6: memref<256x16xf32, #tpu.memory_space<vmem>>, %arg7: memref<256x16xf32, #tpu.memory_space<vmem>>) attributes {dimension_semantics = [#tpu.dimension_semantics<parallel>], iteration_bounds = array<i64: 2>, scalar_prefetch = 0 : i64, scratch_operands = 0 : i64, tpu.core_type = #tpu.core_type<tc>, window_params = [{transform_indices = @transform_0, window_bounds = array<i64: 256, 4>}, {transform_indices = @transform_1, window_bounds = array<i64: 256, 4>}, {pipeline_mode = #tpu.pipeline_mode<synchronous>, transform_indices = @transform_2, window_bounds = array<i64: 4, 16>}, {pipeline_mode = #tpu.pipeline_mode<synchronous>, transform_indices = @transform_3, window_bounds = array<i64: 1, 16>}, {transform_indices = @transform_4, window_bounds = array<i64: 256, 16>}, {transform_indices = @transform_5, window_bounds = array<i64: 256, 16>}, {transform_indices = @transform_6, window_bounds = array<i64: 256, 16>}]} {
    %c0 = arith.constant 0 : index
    %c0_0 = arith.constant 0 : index
    %0 = vector.load %arg1[%c0, %c0_0] : memref<256x4xf32, #tpu.memory_space<vmem>>, vector<256x4xf32>
    %c0_1 = arith.constant 0 : index
    %c0_2 = arith.constant 0 : index
    %1 = vector.load %arg2[%c0_1, %c0_2] : memref<256x4xf32, #tpu.memory_space<vmem>>, vector<256x4xf32>
    %2 = arith.addf %0, %1 : vector<256x4xf32>
    %c0_3 = arith.constant 0 : index
    %c0_4 = arith.constant 0 : index
    %3 = vector.load %arg3[%c0_3, %c0_4] : memref<4x16xf32, #tpu.memory_space<vmem>>, vector<4x16xf32>
    %cst = arith.constant dense<0.000000e+00> : vector<256x16xf32>
    %4 = tpu.matmul %2, %3, %cst {dimension_numbers = #tpu.dot_dimension_numbers<[1], [0], [0], [1], [0, 0, 1, 1], [], []>} : vector<256x4xf32>, vector<4x16xf32>, vector<256x16xf32> -> vector<256x16xf32>
    %c0_5 = arith.constant 0 : index
    %c0_6 = arith.constant 0 : index
    %5 = vector.load %arg4[%c0_5, %c0_6] : memref<1x16xf32, #tpu.memory_space<vmem>>, vector<1x16xf32>
    %6 = vector.broadcast %5 : vector<1x16xf32> to vector<256x16xf32>
    %7 = arith.addf %4, %6 : vector<256x16xf32>
    %8 = arith.negf %7 : vector<256x16xf32>
    %9 = math.exp %8 : vector<256x16xf32>
    %cst_7 = arith.constant 1.000000e+00 : f32
    %10 = vector.broadcast %cst_7 : f32 to vector<256x16xf32>
    %11 = arith.addf %10, %9 : vector<256x16xf32>
    %12 = arith.divf %10, %11 : vector<256x16xf32>
    %c0_8 = arith.constant 0 : index
    %c0_9 = arith.constant 0 : index
    %13 = vector.load %arg5[%c0_8, %c0_9] : memref<256x16xbf16, #tpu.memory_space<vmem>>, vector<256x16xbf16>
    %14 = arith.extf %13 : vector<256x16xbf16> to vector<256x16xf32>
    %15 = arith.mulf %14, %12 : vector<256x16xf32>
    %c0_10 = arith.constant 0 : index
    %c0_11 = arith.constant 0 : index
    %16 = vector.load %arg6[%c0_10, %c0_11] : memref<256x16xf32, #tpu.memory_space<vmem>>, vector<256x16xf32>
    %17 = arith.addf %15, %16 : vector<256x16xf32>
    %c0_12 = arith.constant 0 : index
    %c0_13 = arith.constant 0 : index
    %18 = vector.load %arg7[%c0_12, %c0_13] : memref<256x16xf32, #tpu.memory_space<vmem>>, vector<256x16xf32>
    tpu.vector_store %arg7[%c0_12, %c0_13], %17 {strides = array<i32>} : memref<256x16xf32, #tpu.memory_space<vmem>>, vector<256x16xf32>,
    return
  }
  func.func @transform_0(%arg0: i32) -> (i32, i32) {
    %c0_i32 = arith.constant 0 : i32
    %c0_i32_0 = arith.constant 0 : i32
    return %arg0, %c0_i32 : i32, i32
  }
  func.func @transform_1(%arg0: i32) -> (i32, i32) {
    %c0_i32 = arith.constant 0 : i32
    %c0_i32_0 = arith.constant 0 : i32
    return %arg0, %c0_i32 : i32, i32
  }
  func.func @transform_2(%arg0: i32) -> (i32, i32) {
    %c0_i32 = arith.constant 0 : i32
    %c0_i32_0 = arith.constant 0 : i32
    %c0_i32_1 = arith.constant 0 : i32
    return %c0_i32, %c0_i32_0 : i32, i32
  }
  func.func @transform_3(%arg0: i32) -> (i32, i32) {
    %c0_i32 = arith.constant 0 : i32
    %c0_i32_0 = arith.constant 0 : i32
    %c0_i32_1 = arith.constant 0 : i32
    return %c0_i32, %c0_i32_0 : i32, i32
  }
  func.func @transform_4(%arg0: i32) -> (i32, i32) {
    %c0_i32 = arith.constant 0 : i32
    %c0_i32_0 = arith.constant 0 : i32
    return %arg0, %c0_i32 : i32, i32
  }
  func.func @transform_5(%arg0: i32) -> (i32, i32) {
    %c0_i32 = arith.constant 0 : i32
    %c0_i32_0 = arith.constant 0 : i32
    return %arg0, %c0_i32 : i32, i32
  }
  func.func @transform_6(%arg0: i32) -> (i32, i32) {
    %c0_i32 = arith.constant 0 : i32
    %c0_i32_0 = arith.constant 0 : i32
    return %arg0, %c0_i32 : i32, i32
  }
}

</mosaic_0001>

<llo_original>
// kernel: efdb_forward.7
$region0: #{efdb_forward.7}
  #allocation0 [shape = 'u32[]', space=smem, size = 0x4, offset = 0x4, fixed_abs, tag = 'smem constant byte address 0x4 - core index']
  #allocation1 [shape = 'u32[144,128]{1,0:T(1,128)}', space=vmem, size = 0x12000, scoped, tag = 'internal scratch']
  %s0 = inlined_call_operand.vmem [shape: bf16[512,16], index: 0, kind: input, shape index: {}]
  %s1 = inlined_call_operand.vmem [shape: bf16[16,16], index: 1, kind: input, shape index: {}]
  %s2 = inlined_call_operand.vmem [shape: f32[1,16], index: 2, kind: input, shape index: {}]
  %s3 = inlined_call_operand.vmem [shape: f32[1,16], index: 3, kind: input, shape index: {}]
  %s4 = inlined_call_operand.vmem [shape: bf16[512,16], index: 4, kind: output, shape index: {}]
  %s5 = sld [smem:[#allocation0]]
  $region49: #{efdb_forward.7} parent=0
    _
  %s7 = ssub.s32 1, %s5
  %s8 = scalar_select 0, %s7, %s5
  loop: start=0, step=1, limit=4
  $region2: #{efdb_forward.7} parent=0 // loop_pre_header
    _
  $region3: #{efdb_forward.7} parent=0 // loop_header
    %s10 = sphi 0, %s14
    %p11 = scmp.ge.s32.totalorder %s10, 4
    %s20 = sphi 0, %s22
    %s23 = sphi 0, %s20
    %s24 = sphi 0, %s23
    %s40 = sphi 0, %s24
    %s44 = sphi 0, %s44
    %s46 = sphi 0, %s44
    %s47 = sphi 0, %s46
    %s61 = sphi 0, %s47
    %s65 = sphi 0, %s65
    %s67 = sphi 0, %s65
    %s68 = sphi 0, %s67
    %s82 = sphi 0, %s68
    %s86 = sphi 0, %s86
    %s88 = sphi 0, %s86
    %s89 = sphi 0, %s88
    %s103 = sphi 0, %s89
    %s109 = sphi 0, %s111
    %s112 = sphi 0, %s109
    %s113 = sphi 0, %s112
    %s129 = sphi 0, %s113
  $region4: #{efdb_forward.7} parent=0 // loop_header_branch
    %13 = sbr.rel (%p11) target = $region8
  $region5: #{efdb_forward.7} parent=0 // loop_body
    %s15 = ssub.s32 %s10, 1
    %s16 = ssub.s32 %s10, 2
    %s17 = sadd.s32 %s10, 1
    %s18 = ssub.s32 %s10, %s17
    %p19 = scmp.eq.s32.totalorder %s18, 0
    %s21 = sadd.s32 %s20, 1
    %s22 = scalar_select %p19, %s20, %s21
    %p25 = pneg %p19
    %p26 = scmp.eq.s32.totalorder %s10, 1
    %p27 = por %p25, %p26
    %p28 = scmp.ne.s32.totalorder %s20, %s23
    %p29 = scmp.eq.s32.totalorder %s10, 0
    %p30 = por %p28, %p29
    %p31 = scmp.ne.s32.totalorder %s20, %s23
    %p32 = scmp.eq.s32.totalorder %s15, 1
    %p33 = por %p31, %p32
    %p34 = scmp.ne.s32.totalorder %s23, %s24
    %p35 = scmp.eq.s32.totalorder %s15, 0
    %p36 = por %p34, %p35
    %p37 = scmp.ne.s32.totalorder %s23, %s24
    %p38 = scmp.eq.s32.totalorder %s16, 1
    %p39 = por %p37, %p38
    %p41 = scmp.ne.s32.totalorder %s24, %s40
    %p42 = scmp.eq.s32.totalorder %s16, 0
    %p43 = por %p41, %p42
    %s45 = sadd.s32 %s44, 1
    %p48 = scmp.eq.s32.totalorder %s10, 1
    %p49 = scmp.ne.s32.totalorder %s44, %s46
    %p50 = scmp.eq.s32.totalorder %s10, 0
    %p51 = por %p49, %p50
    %p52 = scmp.ne.s32.totalorder %s44, %s46
    %p53 = scmp.eq.s32.totalorder %s15, 1
    %p54 = por %p52, %p53
    %p55 = scmp.ne.s32.totalorder %s46, %s47
    %p56 = scmp.eq.s32.totalorder %s15, 0
    %p57 = por %p55, %p56
    %p58 = scmp.ne.s32.totalorder %s46, %s47
    %p59 = scmp.eq.s32.totalorder %s16, 1
    %p60 = por %p58, %p59
    %p62 = scmp.ne.s32.totalorder %s47, %s61
    %p63 = scmp.eq.s32.totalorder %s16, 0
    %p64 = por %p62, %p63
    %s66 = sadd.s32 %s65, 1
    %p69 = scmp.eq.s32.totalorder %s10, 1
    %p70 = scmp.ne.s32.totalorder %s65, %s67
    %p71 = scmp.eq.s32.totalorder %s10, 0
    %p72 = por %p70, %p71
    %p73 = scmp.ne.s32.totalorder %s65, %s67
    %p74 = scmp.eq.s32.totalorder %s15, 1
    %p75 = por %p73, %p74
    %p76 = scmp.ne.s32.totalorder %s67, %s68
    %p77 = scmp.eq.s32.totalorder %s15, 0
    %p78 = por %p76, %p77
    %p79 = scmp.ne.s32.totalorder %s67, %s68
    %p80 = scmp.eq.s32.totalorder %s16, 1
    %p81 = por %p79, %p80
    %p83 = scmp.ne.s32.totalorder %s68, %s82
    %p84 = scmp.eq.s32.totalorder %s16, 0
    %p85 = por %p83, %p84
    %s87 = sadd.s32 %s86, 1
    %p90 = scmp.eq.s32.totalorder %s10, 1
    %p91 = scmp.ne.s32.totalorder %s86, %s88
    %p92 = scmp.eq.s32.totalorder %s10, 0
    %p93 = por %p91, %p92
    %p94 = scmp.ne.s32.totalorder %s86, %s88
    %p95 = scmp.eq.s32.totalorder %s15, 1
    %p96 = por %p94, %p95
    %p97 = scmp.ne.s32.totalorder %s88, %s89
    %p98 = scmp.eq.s32.totalorder %s15, 0
    %p99 = por %p97, %p98
    %p100 = scmp.ne.s32.totalorder %s88, %s89
    %p101 = scmp.eq.s32.totalorder %s16, 1
    %p102 = por %p100, %p101
    %p104 = scmp.ne.s32.totalorder %s89, %s103
    %p105 = scmp.eq.s32.totalorder %s16, 0
    %p106 = por %p104, %p105
    %s107 = ssub.s32 %s10, %s17
    %p108 = scmp.eq.s32.totalorder %s107, 0
    %s110 = sadd.s32 %s109, 1
    %s111 = scalar_select %p108, %s109, %s110
    %p114 = pneg %p108
    %p115 = scmp.eq.s32.totalorder %s10, 1
    %p116 = por %p114, %p115
    %p117 = scmp.ne.s32.totalorder %s109, %s112
    %p118 = scmp.eq.s32.totalorder %s10, 0
    %p119 = por %p117, %p118
    %p120 = scmp.ne.s32.totalorder %s109, %s112
    %p121 = scmp.eq.s32.totalorder %s15, 1
    %p122 = por %p120, %p121
    %p123 = scmp.ne.s32.totalorder %s112, %s113
    %p124 = scmp.eq.s32.totalorder %s15, 0
    %p125 = por %p123, %p124
    %p126 = scmp.ne.s32.totalorder %s112, %s113
    %p127 = scmp.eq.s32.totalorder %s16, 1
    %p128 = por %p126, %p127
    %p130 = scmp.ne.s32.totalorder %s113, %s129
    %p131 = scmp.eq.s32.totalorder %s16, 0
    %p132 = por %p130, %p131
    %p133 = scmp.le.s32.totalorder 1, %s10
    %p134 = scmp.lt.s32.totalorder %s10, 3
    %p135 = pnand %p133, %p134
    %p136 = pneg %p135
    // Predicated region
    $region9: #{efdb_forward.7} parent=5 // pred_check
      _
    $region10: #{efdb_forward.7} parent=5 // pred_check_branch
      %138 = sbr.rel (%p135) target = $region12
    $region11: #{efdb_forward.7} parent=5 // pred_region
      %s139 = ssub.s32 %s10, 1
      // Predicated region
      $region13: #{efdb_forward.7} parent=11 // pred_check
        %p140 = pneg %p57
      $region14: #{efdb_forward.7} parent=11 // pred_check_branch
        %142 = sbr.rel (%p140) target = $region16
      $region15: #{efdb_forward.7} parent=11 // pred_region
        _
      $region16: #{efdb_forward.7} parent=11 // pred_fallthru
        _
      // Predicated region
      $region17: #{efdb_forward.7} parent=11 // pred_check
        %p143 = pneg %p78
      $region18: #{efdb_forward.7} parent=11 // pred_check_branch
        %145 = sbr.rel (%p143) target = $region20
      $region19: #{efdb_forward.7} parent=11 // pred_region
        _
      $region20: #{efdb_forward.7} parent=11 // pred_fallthru
        _
      // Predicated region
      $region21: #{efdb_forward.7} parent=11 // pred_check
        %p146 = pneg %p99
      $region22: #{efdb_forward.7} parent=11 // pred_check_branch
        %148 = sbr.rel (%p146) target = $region24
      $region23: #{efdb_forward.7} parent=11 // pred_region
        _
      $region24: #{efdb_forward.7} parent=11 // pred_fallthru
        _
    $region12: #{efdb_forward.7} parent=5 // pred_fallthru
      _
    %p149 = scmp.lt.s32.totalorder %s10, 2
    // Predicated region
    $region25: #{efdb_forward.7} parent=5 // pred_check
      %p150 = pneg %p149
    $region26: #{efdb_forward.7} parent=5 // pred_check_branch
      %152 = sbr.rel (%p150) target = $region28
    $region27: #{efdb_forward.7} parent=5 // pred_region
      // Predicated region
      $region29: #{efdb_forward.7} parent=27 // pred_check
        %p153 = pneg %p30
      $region30: #{efdb_forward.7} parent=27 // pred_check_branch
        %155 = sbr.rel (%p153) target = $region32
      $region31: #{efdb_forward.7} parent=27 // pred_region
        %s156 = smul.u32 32, %s10
        %p157 = scmp.lt.s32.totalorder %s156, 63
        %s158 = scalar_select %p157, %s156, 63
        %s159 = smul.addr %s158, 4
        %s160 = scalar_lea.vmem %s0, %s159
        %s161 = smul.u32 32, %s10
      $region32: #{efdb_forward.7} parent=27 // pred_fallthru
        _
    $region28: #{efdb_forward.7} parent=5 // pred_fallthru
      _
    %p162 = scmp.le.s32.totalorder 1, %s10
    %p163 = scmp.lt.s32.totalorder %s10, 3
    %p164 = pnand %p162, %p163
    %p165 = pneg %p164
    // Predicated region
    $region33: #{efdb_forward.7} parent=5 // pred_check
      _
    $region34: #{efdb_forward.7} parent=5 // pred_check_branch
      %167 = sbr.rel (%p164) target = $region36
    $region35: #{efdb_forward.7} parent=5 // pred_region
      %s168 = ssub.s32 %s10, 1
      %s169 = smul.u32 32, %s15
      %p170 = scmp.lt.s32.totalorder %s169, 63
      %s171 = scalar_select %p170, %s169, 63
      %s172 = smul.addr %s171, 4
      %s173 = scalar_lea.vmem %s0, %s172
      %p174 = pneg %p36
      %p175 = pneg %p33
      %p176 = pneg %p57
      %p177 = pneg %p54
      %p178 = pneg %p78
      %p179 = pneg %p75
      %p180 = pneg %p99
      %p181 = pneg %p96
      %p182 = pneg %p125
      %p183 = pneg %p122
      %s184 = smul.u32 32, %s15
      %p185 = scmp.lt.s32.totalorder %s184, 63
      %s186 = scalar_select %p185, %s184, 63
      %s187 = smul.addr %s186, 4
      %s188 = scalar_lea.vmem %s4, %s187
      %s189 = smul.u32 32, %s15
      %p190 = scmp.lt.s32.totalorder %s189, 63
      %s191 = scalar_select %p190, %s189, 63
      %s192 = smul.addr %s191, 4
      %s193 = scalar_lea.vmem %s0, %s192
      %s194 = smul.u32 32, %s15
      %s195 = smul.u32 32, %s15
      %p196 = scmp.lt.s32.totalorder %s195, 63
      %s197 = scalar_select %p196, %s195, 63
      %s198 = smul.addr %s197, 4
      %s199 = scalar_lea.vmem %s4, %s198
      %s200 = smul.u32 32, %s15
      %v202 = vld [vmem:[%s193] sm:$0xf]
      %v203 = vld [vmem:[%s193 + $0x4] sm:$0xf]
      %v204 = vld [vmem:[%s193 + $0x8] sm:$0xf]
      %v205 = vld [vmem:[%s193 + $0xc] sm:$0xf]
      %v206 = vld [vmem:[%s193 + $0x10] sm:$0xf]
      %v207 = vld [vmem:[%s193 + $0x14] sm:$0xf]
      %v208 = vld [vmem:[%s193 + $0x18] sm:$0xf]
      %v209 = vld [vmem:[%s193 + $0x1c] sm:$0xf]
      %v210 = vld [vmem:[%s193 + $0x20] sm:$0xf]
      %v211 = vld [vmem:[%s193 + $0x24] sm:$0xf]
      %v212 = vld [vmem:[%s193 + $0x28] sm:$0xf]
      %v213 = vld [vmem:[%s193 + $0x2c] sm:$0xf]
      %v214 = vld [vmem:[%s193 + $0x30] sm:$0xf]
      %v215 = vld [vmem:[%s193 + $0x34] sm:$0xf]
      %v216 = vld [vmem:[%s193 + $0x38] sm:$0xf]
      %v217 = vld [vmem:[%s193 + $0x3c] sm:$0xf]
      %v218 = vld [vmem:[%s193 + $0x40] sm:$0xf]
      %v219 = vld [vmem:[%s193 + $0x44] sm:$0xf]
      %v220 = vld [vmem:[%s193 + $0x48] sm:$0xf]
      %v221 = vld [vmem:[%s193 + $0x4c] sm:$0xf]
      %v222 = vld [vmem:[%s193 + $0x50] sm:$0xf]
      %v223 = vld [vmem:[%s193 + $0x54] sm:$0xf]
      %v224 = vld [vmem:[%s193 + $0x58] sm:$0xf]
      %v225 = vld [vmem:[%s193 + $0x5c] sm:$0xf]
      %v226 = vld [vmem:[%s193 + $0x60] sm:$0xf]
      %v227 = vld [vmem:[%s193 + $0x64] sm:$0xf]
      %v228 = vld [vmem:[%s193 + $0x68] sm:$0xf]
      %v229 = vld [vmem:[%s193 + $0x6c] sm:$0xf]
      %v230 = vld [vmem:[%s193 + $0x70] sm:$0xf]
      %v231 = vld [vmem:[%s193 + $0x74] sm:$0xf]
      %v232 = vld [vmem:[%s193 + $0x78] sm:$0xf]
      %v233 = vld [vmem:[%s193 + $0x7c] sm:$0xf]
      %v234 = vld [vmem:[%s1] sm:$0xf]
      %v235 = vld [vmem:[%s1 + $0x4] sm:$0xf]
      %v236 = vld [vmem:[%s2] sm:$0x1]
      %v238 = vlaneseq
      %v239 = vshrl.u32 %v238, 7
      %v240 = vsub.s32 0, %v239
      %v241 = vrot.slane %v236, %v240
      %v275 = vunpack.c.l.b16 %v202
      %v276 = vunpack.c.l.b16 %v203
      %v277 = vunpack.c.l.b16 %v204
      %v278 = vunpack.c.l.b16 %v205
      %v279 = vunpack.c.l.b16 %v206
      %v280 = vunpack.c.l.b16 %v207
      %v281 = vunpack.c.l.b16 %v208
      %v282 = vunpack.c.l.b16 %v209
      %v283 = vunpack.c.l.b16 %v210
      %v284 = vunpack.c.l.b16 %v211
      %v285 = vunpack.c.l.b16 %v212
      %v286 = vunpack.c.l.b16 %v213
      %v287 = vunpack.c.l.b16 %v214
      %v288 = vunpack.c.l.b16 %v215
      %v289 = vunpack.c.l.b16 %v216
      %v290 = vunpack.c.l.b16 %v217
      %v291 = vunpack.c.l.b16 %v218
      %v292 = vunpack.c.l.b16 %v219
      %v293 = vunpack.c.l.b16 %v220
      %v294 = vunpack.c.l.b16 %v221
      %v295 = vunpack.c.l.b16 %v222
      %v296 = vunpack.c.l.b16 %v223
      %v297 = vunpack.c.l.b16 %v224
      %v298 = vunpack.c.l.b16 %v225
      %v299 = vunpack.c.l.b16 %v226
      %v300 = vunpack.c.l.b16 %v227
      %v301 = vunpack.c.l.b16 %v228
      %v302 = vunpack.c.l.b16 %v229
      %v303 = vunpack.c.l.b16 %v230
      %v304 = vunpack.c.l.b16 %v231
      %v305 = vunpack.c.l.b16 %v232
      %v306 = vunpack.c.l.b16 %v233
      %v307 = vpack.c.b16 %v276, %v275
      %v308 = vpack.c.b16 %v278, %v277
      %v309 = vpack.c.b16 %v280, %v279
      %v310 = vpack.c.b16 %v282, %v281
      %v311 = vpack.c.b16 %v284, %v283
      %v312 = vpack.c.b16 %v286, %v285
      %v313 = vpack.c.b16 %v288, %v287
      %v314 = vpack.c.b16 %v290, %v289
      %v315 = vpack.c.b16 %v292, %v291
      %v316 = vpack.c.b16 %v294, %v293
      %v317 = vpack.c.b16 %v296, %v295
      %v318 = vpack.c.b16 %v298, %v297
      %v319 = vpack.c.b16 %v300, %v299
      %v320 = vpack.c.b16 %v302, %v301
      %v321 = vpack.c.b16 %v304, %v303
      %v322 = vpack.c.b16 %v306, %v305
      %v325 = vunpack.c.l.b16 %v234
      %v326 = vunpack.c.l.b16 %v235
      %v327 = vpack.c.b16 %v326, %v325
      %vm329 = vcmask 130048
      %v331 = vsel %vm329, %v307, 0
      %v334 = vsel %vm329, %v308, 0
      %v337 = vsel %vm329, %v309, 0
      %v340 = vsel %vm329, %v310, 0
      %v343 = vsel %vm329, %v311, 0
      %v346 = vsel %vm329, %v312, 0
      %v349 = vsel %vm329, %v313, 0
      %v352 = vsel %vm329, %v314, 0
      %v355 = vsel %vm329, %v315, 0
      %v358 = vsel %vm329, %v316, 0
      %v361 = vsel %vm329, %v317, 0
      %v364 = vsel %vm329, %v318, 0
      %v367 = vsel %vm329, %v319, 0
      %v370 = vsel %vm329, %v320, 0
      %v373 = vsel %vm329, %v321, 0
      %v376 = vsel %vm329, %v322, 0
      %378 = vmatprep.subr.bf16.mxu0 0
      %379 = vmatpush1.bf16.msra.mxu0 %v327
      %380 = vmatprep.subr.bf16.mxu0 0
      %381 = vmatpush1.bf16.msra.mxu0 0
      %382 = vmatprep.subr.bf16.mxu0 0
      %383 = vmatpush1.bf16.msra.mxu0 0
      %384 = vmatprep.subr.bf16.mxu0 0
      %385 = vmatpush1.bf16.msra.mxu0 0
      %386 = vmatprep.subr.bf16.mxu0 0
      %387 = vmatpush1.bf16.msra.mxu0 0
      %388 = vmatprep.subr.bf16.mxu0 0
      %389 = vmatpush1.bf16.msra.mxu0 0
      %390 = vmatprep.subr.bf16.mxu0 0
      %391 = vmatpush1.bf16.msra.mxu0 0
      %392 = vmatprep.subr.bf16.mxu0 0
      %393 = vmatpush1.bf16.msra.mxu0 0
      %394 = vmatprep.subr.bf16.mxu0 0
      %395 = vmatpush1.bf16.msra.mxu0 0
      %396 = vmatprep.subr.bf16.mxu0 0
      %397 = vmatpush1.bf16.msra.mxu0 0
      %398 = vmatprep.subr.bf16.mxu0 0
      %399 = vmatpush1.bf16.msra.mxu0 0
      %400 = vmatprep.subr.bf16.mxu0 0
      %401 = vmatpush1.bf16.msra.mxu0 0
      %402 = vmatprep.subr.bf16.mxu0 0
      %403 = vmatpush1.bf16.msra.mxu0 0
      %404 = vmatprep.subr.bf16.mxu0 0
      %405 = vmatpush1.bf16.msra.mxu0 0
      %406 = vmatprep.subr.bf16.mxu0 0
      %407 = vmatpush1.bf16.msra.mxu0 0
      %408 = vmatprep.subr.bf16.mxu0 0
      %409 = vmatpush1.bf16.msra.mxu0 0
      %410 = vmatprep.mubr.bf16.mxu0 0
      %411 = vmatmul.mubr.bf16.gmra.mrb[0].mxu0 %v331
      %v412 = vpop.f32.mrb[0].mxu0
      %v413 = vadd.f32 %v241, %v412
      %v414 = vpop.f32.mrb[0].mxu0
      %v415 = vpop.f32.mrb[0].mxu0
      %v416 = vadd.f32 %v241, %v415
      %v417 = vpop.f32.mrb[0].mxu0
      %418 = vmatprep.mubr.bf16.mxu0 0
      %419 = vmatmul.mubr.bf16.gmra.mrb[0].mxu0 %v334
      %v420 = vpop.f32.mrb[0].mxu0
      %v421 = vadd.f32 %v241, %v420
      %v422 = vpop.f32.mrb[0].mxu0
      %v423 = vpop.f32.mrb[0].mxu0
      %v424 = vadd.f32 %v241, %v423
      %v425 = vpop.f32.mrb[0].mxu0
      %426 = vmatprep.mubr.bf16.mxu0 0
      %427 = vmatmul.mubr.bf16.gmra.mrb[0].mxu0 %v337
      %v428 = vpop.f32.mrb[0].mxu0
      %v429 = vadd.f32 %v241, %v428
      %v430 = vpop.f32.mrb[0].mxu0
      %v431 = vpop.f32.mrb[0].mxu0
      %v432 = vadd.f32 %v241, %v431
      %v433 = vpop.f32.mrb[0].mxu0
      %434 = vmatprep.mubr.bf16.mxu0 0
      %435 = vmatmul.mubr.bf16.gmra.mrb[0].mxu0 %v340
      %v436 = vpop.f32.mrb[0].mxu0
      %v437 = vadd.f32 %v241, %v436
      %v438 = vpop.f32.mrb[0].mxu0
      %v439 = vpop.f32.mrb[0].mxu0
      %v440 = vadd.f32 %v241, %v439
      %v441 = vpop.f32.mrb[0].mxu0
      %442 = vmatprep.mubr.bf16.mxu0 0
      %443 = vmatmul.mubr.bf16.gmra.mrb[0].mxu0 %v343
      %v444 = vpop.f32.mrb[0].mxu0
      %v445 = vadd.f32 %v241, %v444
      %v446 = vpop.f32.mrb[0].mxu0
      %v447 = vpop.f32.mrb[0].mxu0
      %v448 = vadd.f32 %v241, %v447
      %v449 = vpop.f32.mrb[0].mxu0
      %450 = vmatprep.mubr.bf16.mxu0 0
      %451 = vmatmul.mubr.bf16.gmra.mrb[0].mxu0 %v346
      %v452 = vpop.f32.mrb[0].mxu0
      %v453 = vadd.f32 %v241, %v452
      %v454 = vpop.f32.mrb[0].mxu0
      %v455 = vpop.f32.mrb[0].mxu0
      %v456 = vadd.f32 %v241, %v455
      %v457 = vpop.f32.mrb[0].mxu0
      %458 = vmatprep.mubr.bf16.mxu0 0
      %459 = vmatmul.mubr.bf16.gmra.mrb[0].mxu0 %v349
      %v460 = vpop.f32.mrb[0].mxu0
      %v461 = vadd.f32 %v241, %v460
      %v462 = vpop.f32.mrb[0].mxu0
      %v463 = vpop.f32.mrb[0].mxu0
      %v464 = vadd.f32 %v241, %v463
      %v465 = vpop.f32.mrb[0].mxu0
      %466 = vmatprep.mubr.bf16.mxu0 0
      %467 = vmatmul.mubr.bf16.gmra.mrb[0].mxu0 %v352
      %v468 = vpop.f32.mrb[0].mxu0
      %v469 = vadd.f32 %v241, %v468
      %v470 = vpop.f32.mrb[0].mxu0
      %v471 = vpop.f32.mrb[0].mxu0
      %v472 = vadd.f32 %v241, %v471
      %v473 = vpop.f32.mrb[0].mxu0
      %474 = vmatprep.mubr.bf16.mxu0 0
      %475 = vmatmul.mubr.bf16.gmra.mrb[0].mxu0 %v355
      %v476 = vpop.f32.mrb[0].mxu0
      %v477 = vadd.f32 %v241, %v476
      %v478 = vpop.f32.mrb[0].mxu0
      %v479 = vpop.f32.mrb[0].mxu0
      %v480 = vadd.f32 %v241, %v479
      %v481 = vpop.f32.mrb[0].mxu0
      %482 = vmatprep.mubr.bf16.mxu0 0
      %483 = vmatmul.mubr.bf16.gmra.mrb[0].mxu0 %v358
      %v484 = vpop.f32.mrb[0].mxu0
      %v485 = vadd.f32 %v241, %v484
      %v486 = vpop.f32.mrb[0].mxu0
      %v487 = vpop.f32.mrb[0].mxu0
      %v488 = vadd.f32 %v241, %v487
      %v489 = vpop.f32.mrb[0].mxu0
      %490 = vmatprep.mubr.bf16.mxu0 0
      %491 = vmatmul.mubr.bf16.gmra.mrb[0].mxu0 %v361
      %v492 = vpop.f32.mrb[0].mxu0
      %v493 = vadd.f32 %v241, %v492
      %v494 = vpop.f32.mrb[0].mxu0
      %v495 = vpop.f32.mrb[0].mxu0
      %v496 = vadd.f32 %v241, %v495
      %v497 = vpop.f32.mrb[0].mxu0
      %498 = vmatprep.mubr.bf16.mxu0 0
      %499 = vmatmul.mubr.bf16.gmra.mrb[0].mxu0 %v364
      %v500 = vpop.f32.mrb[0].mxu0
      %v501 = vadd.f32 %v241, %v500
      %v502 = vpop.f32.mrb[0].mxu0
      %v503 = vpop.f32.mrb[0].mxu0
      %v504 = vadd.f32 %v241, %v503
      %v505 = vpop.f32.mrb[0].mxu0
      %506 = vmatprep.mubr.bf16.mxu0 0
      %507 = vmatmul.mubr.bf16.gmra.mrb[0].mxu0 %v367
      %v508 = vpop.f32.mrb[0].mxu0
      %v509 = vadd.f32 %v241, %v508
      %v510 = vpop.f32.mrb[0].mxu0
      %v511 = vpop.f32.mrb[0].mxu0
      %v512 = vadd.f32 %v241, %v511
      %v513 = vpop.f32.mrb[0].mxu0
      %514 = vmatprep.mubr.bf16.mxu0 0
      %515 = vmatmul.mubr.bf16.gmra.mrb[0].mxu0 %v370
      %v516 = vpop.f32.mrb[0].mxu0
      %v517 = vadd.f32 %v241, %v516
      %v518 = vpop.f32.mrb[0].mxu0
      %v519 = vpop.f32.mrb[0].mxu0
      %v520 = vadd.f32 %v241, %v519
      %v521 = vpop.f32.mrb[0].mxu0
      %522 = vmatprep.mubr.bf16.mxu0 0
      %523 = vmatmul.mubr.bf16.gmra.mrb[0].mxu0 %v373
      %v524 = vpop.f32.mrb[0].mxu0
      %v525 = vadd.f32 %v241, %v524
      %v526 = vpop.f32.mrb[0].mxu0
      %v527 = vpop.f32.mrb[0].mxu0
      %v528 = vadd.f32 %v241, %v527
      %v529 = vpop.f32.mrb[0].mxu0
      %530 = vmatprep.mubr.bf16.mxu0 0
      %531 = vmatmul.mubr.bf16.gmra.mrb[0].mxu0 %v376
      %v532 = vpop.f32.mrb[0].mxu0
      %v533 = vadd.f32 %v241, %v532
      %v534 = vpop.f32.mrb[0].mxu0
      %v535 = vpop.f32.mrb[0].mxu0
      %v536 = vadd.f32 %v241, %v535
      %v537 = vpop.f32.mrb[0].mxu0
      %538 = vdwg.mxu0
      %vm539 = vcmp.ge.f32.partialorder %v413, 0.0
      %vm540 = vcmp.ge.f32.partialorder %v416, 0.0
      %vm541 = vcmp.ge.f32.partialorder %v421, 0.0
      %vm542 = vcmp.ge.f32.partialorder %v424, 0.0
      %vm543 = vcmp.ge.f32.partialorder %v429, 0.0
      %vm544 = vcmp.ge.f32.partialorder %v432, 0.0
      %vm545 = vcmp.ge.f32.partialorder %v437, 0.0
      %vm546 = vcmp.ge.f32.partialorder %v440, 0.0
      %vm547 = vcmp.ge.f32.partialorder %v445, 0.0
      %vm548 = vcmp.ge.f32.partialorder %v448, 0.0
      %vm549 = vcmp.ge.f32.partialorder %v453, 0.0
      %vm550 = vcmp.ge.f32.partialorder %v456, 0.0
      %vm551 = vcmp.ge.f32.partialorder %v461, 0.0
      %vm552 = vcmp.ge.f32.partialorder %v464, 0.0
      %vm553 = vcmp.ge.f32.partialorder %v469, 0.0
      %vm554 = vcmp.ge.f32.partialorder %v472, 0.0
      %vm555 = vcmp.ge.f32.partialorder %v477, 0.0
      %vm556 = vcmp.ge.f32.partialorder %v480, 0.0
      %vm557 = vcmp.ge.f32.partialorder %v485, 0.0
      %vm558 = vcmp.ge.f32.partialorder %v488, 0.0
      %vm559 = vcmp.ge.f32.partialorder %v493, 0.0
      %vm560 = vcmp.ge.f32.partialorder %v496, 0.0
      %vm561 = vcmp.ge.f32.partialorder %v501, 0.0
      %vm562 = vcmp.ge.f32.partialorder %v504, 0.0
      %vm563 = vcmp.ge.f32.partialorder %v509, 0.0
      %vm564 = vcmp.ge.f32.partialorder %v512, 0.0
      %vm565 = vcmp.ge.f32.partialorder %v517, 0.0
      %vm566 = vcmp.ge.f32.partialorder %v520, 0.0
      %vm567 = vcmp.ge.f32.partialorder %v525, 0.0
      %vm568 = vcmp.ge.f32.partialorder %v528, 0.0
      %vm569 = vcmp.ge.f32.partialorder %v533, 0.0
      %vm570 = vcmp.ge.f32.partialorder %v536, 0.0
      %v571 = vld [vmem:[%s3] sm:$0x1]
      %v573 = vlaneseq
      %v574 = vshrl.u32 %v573, 7
      %v575 = vsub.s32 0, %v574
      %v576 = vrot.slane %v571, %v575
      %v578 = vmul.f32 %v413, %v576
      %v579 = vmul.f32 %v416, %v576
      %v580 = vmul.f32 %v421, %v576
      %v581 = vmul.f32 %v424, %v576
      %v582 = vmul.f32 %v429, %v576
      %v583 = vmul.f32 %v432, %v576
      %v584 = vmul.f32 %v437, %v576
      %v585 = vmul.f32 %v440, %v576
      %v586 = vmul.f32 %v445, %v576
      %v587 = vmul.f32 %v448, %v576
      %v588 = vmul.f32 %v453, %v576
      %v589 = vmul.f32 %v456, %v576
      %v590 = vmul.f32 %v461, %v576
      %v591 = vmul.f32 %v464, %v576
      %v592 = vmul.f32 %v469, %v576
      %v593 = vmul.f32 %v472, %v576
      %v594 = vmul.f32 %v477, %v576
      %v595 = vmul.f32 %v480, %v576
      %v596 = vmul.f32 %v485, %v576
      %v597 = vmul.f32 %v488, %v576
      %v598 = vmul.f32 %v493, %v576
      %v599 = vmul.f32 %v496, %v576
      %v600 = vmul.f32 %v501, %v576
      %v601 = vmul.f32 %v504, %v576
      %v602 = vmul.f32 %v509, %v576
      %v603 = vmul.f32 %v512, %v576
      %v604 = vmul.f32 %v517, %v576
      %v605 = vmul.f32 %v520, %v576
      %v606 = vmul.f32 %v525, %v576
      %v607 = vmul.f32 %v528, %v576
      %v608 = vmul.f32 %v533, %v576
      %v609 = vmul.f32 %v536, %v576
      %v610 = vsel %vm539, %v413, %v578
      %v611 = vsel %vm540, %v416, %v579
      %v612 = vsel %vm541, %v421, %v580
      %v613 = vsel %vm542, %v424, %v581
      %v614 = vsel %vm543, %v429, %v582
      %v615 = vsel %vm544, %v432, %v583
      %v616 = vsel %vm545, %v437, %v584
      %v617 = vsel %vm546, %v440, %v585
      %v618 = vsel %vm547, %v445, %v586
      %v619 = vsel %vm548, %v448, %v587
      %v620 = vsel %vm549, %v453, %v588
      %v621 = vsel %vm550, %v456, %v589
      %v622 = vsel %vm551, %v461, %v590
      %v623 = vsel %vm552, %v464, %v591
      %v624 = vsel %vm553, %v469, %v592
      %v625 = vsel %vm554, %v472, %v593
      %v626 = vsel %vm555, %v477, %v594
      %v627 = vsel %vm556, %v480, %v595
      %v628 = vsel %vm557, %v485, %v596
      %v629 = vsel %vm558, %v488, %v597
      %v630 = vsel %vm559, %v493, %v598
      %v631 = vsel %vm560, %v496, %v599
      %v632 = vsel %vm561, %v501, %v600
      %v633 = vsel %vm562, %v504, %v601
      %v634 = vsel %vm563, %v509, %v602
      %v635 = vsel %vm564, %v512, %v603
      %v636 = vsel %vm565, %v517, %v604
      %v637 = vsel %vm566, %v520, %v605
      %v638 = vsel %vm567, %v525, %v606
      %v639 = vsel %vm568, %v528, %v607
      %v640 = vsel %vm569, %v533, %v608
      %v641 = vsel %vm570, %v536, %v609
      %v642 = vpack.c.bf16 %v611, %v610
      %v643 = vpack.c.bf16 %v613, %v612
      %v644 = vpack.c.bf16 %v615, %v614
      %v645 = vpack.c.bf16 %v617, %v616
      %v646 = vpack.c.bf16 %v619, %v618
      %v647 = vpack.c.bf16 %v621, %v620
      %v648 = vpack.c.bf16 %v623, %v622
      %v649 = vpack.c.bf16 %v625, %v624
      %v650 = vpack.c.bf16 %v627, %v626
      %v651 = vpack.c.bf16 %v629, %v628
      %v652 = vpack.c.bf16 %v631, %v630
      %v653 = vpack.c.bf16 %v633, %v632
      %v654 = vpack.c.bf16 %v635, %v634
      %v655 = vpack.c.bf16 %v637, %v636
      %v656 = vpack.c.bf16 %v639, %v638
      %v657 = vpack.c.bf16 %v641, %v640
      %v674 = vunpack.c.l.b16 %v642
      %v675 = vunpack.c.h.b16 %v642
      %v676 = vunpack.c.l.b16 %v643
      %v677 = vunpack.c.h.b16 %v643
      %v678 = vunpack.c.l.b16 %v644
      %v679 = vunpack.c.h.b16 %v644
      %v680 = vunpack.c.l.b16 %v645
      %v681 = vunpack.c.h.b16 %v645
      %v682 = vunpack.c.l.b16 %v646
      %v683 = vunpack.c.h.b16 %v646
      %v684 = vunpack.c.l.b16 %v647
      %v685 = vunpack.c.h.b16 %v647
      %v686 = vunpack.c.l.b16 %v648
      %v687 = vunpack.c.h.b16 %v648
      %v688 = vunpack.c.l.b16 %v649
      %v689 = vunpack.c.h.b16 %v649
      %v690 = vunpack.c.l.b16 %v650
      %v691 = vunpack.c.h.b16 %v650
      %v692 = vunpack.c.l.b16 %v651
      %v693 = vunpack.c.h.b16 %v651
      %v694 = vunpack.c.l.b16 %v652
      %v695 = vunpack.c.h.b16 %v652
      %v696 = vunpack.c.l.b16 %v653
      %v697 = vunpack.c.h.b16 %v653
      %v698 = vunpack.c.l.b16 %v654
      %v699 = vunpack.c.h.b16 %v654
      %v700 = vunpack.c.l.b16 %v655
      %v701 = vunpack.c.h.b16 %v655
      %v702 = vunpack.c.l.b16 %v656
      %v703 = vunpack.c.h.b16 %v656
      %v704 = vunpack.c.l.b16 %v657
      %v705 = vunpack.c.h.b16 %v657
      %v706 = vpack.c.b16 %v674, %v674
      %v707 = vpack.c.b16 %v675, %v675
      %v708 = vpack.c.b16 %v676, %v676
      %v709 = vpack.c.b16 %v677, %v677
      %v710 = vpack.c.b16 %v678, %v678
      %v711 = vpack.c.b16 %v679, %v679
      %v712 = vpack.c.b16 %v680, %v680
      %v713 = vpack.c.b16 %v681, %v681
      %v714 = vpack.c.b16 %v682, %v682
      %v715 = vpack.c.b16 %v683, %v683
      %v716 = vpack.c.b16 %v684, %v684
      %v717 = vpack.c.b16 %v685, %v685
      %v718 = vpack.c.b16 %v686, %v686
      %v719 = vpack.c.b16 %v687, %v687
      %v720 = vpack.c.b16 %v688, %v688
      %v721 = vpack.c.b16 %v689, %v689
      %v722 = vpack.c.b16 %v690, %v690
      %v723 = vpack.c.b16 %v691, %v691
      %v724 = vpack.c.b16 %v692, %v692
      %v725 = vpack.c.b16 %v693, %v693
      %v726 = vpack.c.b16 %v694, %v694
      %v727 = vpack.c.b16 %v695, %v695
      %v728 = vpack.c.b16 %v696, %v696
      %v729 = vpack.c.b16 %v697, %v697
      %v730 = vpack.c.b16 %v698, %v698
      %v731 = vpack.c.b16 %v699, %v699
      %v732 = vpack.c.b16 %v700, %v700
      %v733 = vpack.c.b16 %v701, %v701
      %v734 = vpack.c.b16 %v702, %v702
      %v735 = vpack.c.b16 %v703, %v703
      %v736 = vpack.c.b16 %v704, %v704
      %v737 = vpack.c.b16 %v705, %v705
      %vm770 = vcmask 125952
      %771 = vst.msk [vmem:[%s199] sm:$0xf] %vm770, %v706
      %772 = vst.msk [vmem:[%s199 + $0x4] sm:$0xf] %vm770, %v707
      %773 = vst.msk [vmem:[%s199 + $0x8] sm:$0xf] %vm770, %v708
      %774 = vst.msk [vmem:[%s199 + $0xc] sm:$0xf] %vm770, %v709
      %775 = vst.msk [vmem:[%s199 + $0x10] sm:$0xf] %vm770, %v710
      %776 = vst.msk [vmem:[%s199 + $0x14] sm:$0xf] %vm770, %v711
      %777 = vst.msk [vmem:[%s199 + $0x18] sm:$0xf] %vm770, %v712
      %778 = vst.msk [vmem:[%s199 + $0x1c] sm:$0xf] %vm770, %v713
      %779 = vst.msk [vmem:[%s199 + $0x20] sm:$0xf] %vm770, %v714
      %780 = vst.msk [vmem:[%s199 + $0x24] sm:$0xf] %vm770, %v715
      %781 = vst.msk [vmem:[%s199 + $0x28] sm:$0xf] %vm770, %v716
      %782 = vst.msk [vmem:[%s199 + $0x2c] sm:$0xf] %vm770, %v717
      %783 = vst.msk [vmem:[%s199 + $0x30] sm:$0xf] %vm770, %v718
      %784 = vst.msk [vmem:[%s199 + $0x34] sm:$0xf] %vm770, %v719
      %785 = vst.msk [vmem:[%s199 + $0x38] sm:$0xf] %vm770, %v720
      %786 = vst.msk [vmem:[%s199 + $0x3c] sm:$0xf] %vm770, %v721
      %787 = vst.msk [vmem:[%s199 + $0x40] sm:$0xf] %vm770, %v722
      %788 = vst.msk [vmem:[%s199 + $0x44] sm:$0xf] %vm770, %v723
      %789 = vst.msk [vmem:[%s199 + $0x48] sm:$0xf] %vm770, %v724
      %790 = vst.msk [vmem:[%s199 + $0x4c] sm:$0xf] %vm770, %v725
      %791 = vst.msk [vmem:[%s199 + $0x50] sm:$0xf] %vm770, %v726
      %792 = vst.msk [vmem:[%s199 + $0x54] sm:$0xf] %vm770, %v727
      %793 = vst.msk [vmem:[%s199 + $0x58] sm:$0xf] %vm770, %v728
      %794 = vst.msk [vmem:[%s199 + $0x5c] sm:$0xf] %vm770, %v729
      %795 = vst.msk [vmem:[%s199 + $0x60] sm:$0xf] %vm770, %v730
      %796 = vst.msk [vmem:[%s199 + $0x64] sm:$0xf] %vm770, %v731
      %797 = vst.msk [vmem:[%s199 + $0x68] sm:$0xf] %vm770, %v732
      %798 = vst.msk [vmem:[%s199 + $0x6c] sm:$0xf] %vm770, %v733
      %799 = vst.msk [vmem:[%s199 + $0x70] sm:$0xf] %vm770, %v734
      %800 = vst.msk [vmem:[%s199 + $0x74] sm:$0xf] %vm770, %v735
      %801 = vst.msk [vmem:[%s199 + $0x78] sm:$0xf] %vm770, %v736
      %802 = vst.msk [vmem:[%s199 + $0x7c] sm:$0xf] %vm770, %v737
      %s803 = smul.u32 32, %s15
      %p804 = scmp.lt.s32.totalorder %s803, 63
      %s805 = scalar_select %p804, %s803, 63
      %s806 = smul.addr %s805, 4
      %s807 = scalar_lea.vmem %s4, %s806
      // Predicated region
      $region37: #{efdb_forward.7} parent=35 // pred_check
        %p808 = pneg %p122
      $region38: #{efdb_forward.7} parent=35 // pred_check_branch
        %810 = sbr.rel (%p808) target = $region40
      $region39: #{efdb_forward.7} parent=35 // pred_region
        %s811 = smul.u32 32, %s15
      $region40: #{efdb_forward.7} parent=35 // pred_fallthru
        _
    $region36: #{efdb_forward.7} parent=5 // pred_fallthru
      _
    %p812 = scmp.le.s32.totalorder 2, %s10
    // Predicated region
    $region41: #{efdb_forward.7} parent=5 // pred_check
      %p813 = pneg %p812
    $region42: #{efdb_forward.7} parent=5 // pred_check_branch
      %815 = sbr.rel (%p813) target = $region44
    $region43: #{efdb_forward.7} parent=5 // pred_region
      %s816 = ssub.s32 %s10, 2
      // Predicated region
      $region45: #{efdb_forward.7} parent=43 // pred_check
        %p817 = pneg %p128
      $region46: #{efdb_forward.7} parent=43 // pred_check_branch
        %819 = sbr.rel (%p817) target = $region48
      $region47: #{efdb_forward.7} parent=43 // pred_region
        %s820 = smul.u32 32, %s16
        %p821 = scmp.lt.s32.totalorder %s820, 63
        %s822 = scalar_select %p821, %s820, 63
        %s823 = smul.addr %s822, 4
        %s824 = scalar_lea.vmem %s4, %s823
      $region48: #{efdb_forward.7} parent=43 // pred_fallthru
        _
    $region44: #{efdb_forward.7} parent=5 // pred_fallthru
      _
  $region6: #{efdb_forward.7} parent=0 // loop_footer
    %s14 = sadd.s32 1, %s10
  $region7: #{efdb_forward.7} parent=0 // loop_footer_branch
    %9 = sbr.rel target = $region3
  $region8: #{efdb_forward.7} parent=0 // loop_exit
    _

// kernel: efdb_forward.8
$region0: #{efdb_forward.8}
  #allocation0 [shape = 'u32[]', space=smem, size = 0x4, offset = 0x4, fixed_abs, tag = 'smem constant byte address 0x4 - core index']
  #allocation1 [shape = 'u32[144,128]{1,0:T(1,128)}', space=vmem, size = 0x12000, scoped, tag = 'internal scratch']
  %s0 = inlined_call_operand.vmem [shape: bf16[2,18,18,16], index: 0, kind: input, shape index: {}]
  %s1 = inlined_call_operand.vmem [shape: bf16[9,16,16], index: 1, kind: input, shape index: {}]
  %s2 = inlined_call_operand.vmem [shape: f32[1,16], index: 2, kind: input, shape index: {}]
  %s3 = inlined_call_operand.vmem [shape: f32[1,16], index: 3, kind: input, shape index: {}]
  %s4 = inlined_call_operand.vmem [shape: bf16[2,16,16,16], index: 4, kind: output, shape index: {}]
  %s5 = sld [smem:[#allocation0]]
  $region49: #{efdb_forward.8} parent=0
    _
  %s7 = ssub.s32 1, %s5
  %s8 = scalar_select 0, %s7, %s5
  loop: start=0, step=1, limit=4
  $region2: #{efdb_forward.8} parent=0 // loop_pre_header
    _
  $region3: #{efdb_forward.8} parent=0 // loop_header
    %s10 = sphi 0, %s14
    %p11 = scmp.ge.s32.totalorder %s10, 4
    %s20 = sphi 0, %s22
    %s23 = sphi 0, %s20
    %s24 = sphi 0, %s23
    %s40 = sphi 0, %s24
    %s44 = sphi 0, %s44
    %s46 = sphi 0, %s44
    %s47 = sphi 0, %s46
    %s61 = sphi 0, %s47
    %s65 = sphi 0, %s65
    %s67 = sphi 0, %s65
    %s68 = sphi 0, %s67
    %s82 = sphi 0, %s68
    %s86 = sphi 0, %s86
    %s88 = sphi 0, %s86
    %s89 = sphi 0, %s88
    %s103 = sphi 0, %s89
    %s109 = sphi 0, %s111
    %s112 = sphi 0, %s109
    %s113 = sphi 0, %s112
    %s129 = sphi 0, %s113
  $region4: #{efdb_forward.8} parent=0 // loop_header_branch
    %13 = sbr.rel (%p11) target = $region8
  $region5: #{efdb_forward.8} parent=0 // loop_body
    %s15 = ssub.s32 %s10, 1
    %s16 = ssub.s32 %s10, 2
    %s17 = sadd.s32 %s10, 1
    %s18 = ssub.s32 %s10, %s17
    %p19 = scmp.eq.s32.totalorder %s18, 0
    %s21 = sadd.s32 %s20, 1
    %s22 = scalar_select %p19, %s20, %s21
    %p25 = pneg %p19
    %p26 = scmp.eq.s32.totalorder %s10, 1
    %p27 = por %p25, %p26
    %p28 = scmp.ne.s32.totalorder %s20, %s23
    %p29 = scmp.eq.s32.totalorder %s10, 0
    %p30 = por %p28, %p29
    %p31 = scmp.ne.s32.totalorder %s20, %s23
    %p32 = scmp.eq.s32.totalorder %s15, 1
    %p33 = por %p31, %p32
    %p34 = scmp.ne.s32.totalorder %s23, %s24
    %p35 = scmp.eq.s32.totalorder %s15, 0
    %p36 = por %p34, %p35
    %p37 = scmp.ne.s32.totalorder %s23, %s24
    %p38 = scmp.eq.s32.totalorder %s16, 1
    %p39 = por %p37, %p38
    %p41 = scmp.ne.s32.totalorder %s24, %s40
    %p42 = scmp.eq.s32.totalorder %s16, 0
    %p43 = por %p41, %p42
    %s45 = sadd.s32 %s44, 1
    %p48 = scmp.eq.s32.totalorder %s10, 1
    %p49 = scmp.ne.s32.totalorder %s44, %s46
    %p50 = scmp.eq.s32.totalorder %s10, 0
    %p51 = por %p49, %p50
    %p52 = scmp.ne.s32.totalorder %s44, %s46
    %p53 = scmp.eq.s32.totalorder %s15, 1
    %p54 = por %p52, %p53
    %p55 = scmp.ne.s32.totalorder %s46, %s47
    %p56 = scmp.eq.s32.totalorder %s15, 0
    %p57 = por %p55, %p56
    %p58 = scmp.ne.s32.totalorder %s46, %s47
    %p59 = scmp.eq.s32.totalorder %s16, 1
    %p60 = por %p58, %p59
    %p62 = scmp.ne.s32.totalorder %s47, %s61
    %p63 = scmp.eq.s32.totalorder %s16, 0
    %p64 = por %p62, %p63
    %s66 = sadd.s32 %s65, 1
    %p69 = scmp.eq.s32.totalorder %s10, 1
    %p70 = scmp.ne.s32.totalorder %s65, %s67
    %p71 = scmp.eq.s32.totalorder %s10, 0
    %p72 = por %p70, %p71
    %p73 = scmp.ne.s32.totalorder %s65, %s67
    %p74 = scmp.eq.s32.totalorder %s15, 1
    %p75 = por %p73, %p74
    %p76 = scmp.ne.s32.totalorder %s67, %s68
    %p77 = scmp.eq.s32.totalorder %s15, 0
    %p78 = por %p76, %p77
    %p79 = scmp.ne.s32.totalorder %s67, %s68
    %p80 = scmp.eq.s32.totalorder %s16, 1
    %p81 = por %p79, %p80
    %p83 = scmp.ne.s32.totalorder %s68, %s82
    %p84 = scmp.eq.s32.totalorder %s16, 0
    %p85 = por %p83, %p84
    %s87 = sadd.s32 %s86, 1
    %p90 = scmp.eq.s32.totalorder %s10, 1
    %p91 = scmp.ne.s32.totalorder %s86, %s88
    %p92 = scmp.eq.s32.totalorder %s10, 0
    %p93 = por %p91, %p92
    %p94 = scmp.ne.s32.totalorder %s86, %s88
    %p95 = scmp.eq.s32.totalorder %s15, 1
    %p96 = por %p94, %p95
    %p97 = scmp.ne.s32.totalorder %s88, %s89
    %p98 = scmp.eq.s32.totalorder %s15, 0
    %p99 = por %p97, %p98
    %p100 = scmp.ne.s32.totalorder %s88, %s89
    %p101 = scmp.eq.s32.totalorder %s16, 1
    %p102 = por %p100, %p101
    %p104 = scmp.ne.s32.totalorder %s89, %s103
    %p105 = scmp.eq.s32.totalorder %s16, 0
    %p106 = por %p104, %p105
    %s107 = ssub.s32 %s10, %s17
    %p108 = scmp.eq.s32.totalorder %s107, 0
    %s110 = sadd.s32 %s109, 1
    %s111 = scalar_select %p108, %s109, %s110
    %p114 = pneg %p108
    %p115 = scmp.eq.s32.totalorder %s10, 1
    %p116 = por %p114, %p115
    %p117 = scmp.ne.s32.totalorder %s109, %s112
    %p118 = scmp.eq.s32.totalorder %s10, 0
    %p119 = por %p117, %p118
    %p120 = scmp.ne.s32.totalorder %s109, %s112
    %p121 = scmp.eq.s32.totalorder %s15, 1
    %p122 = por %p120, %p121
    %p123 = scmp.ne.s32.totalorder %s112, %s113
    %p124 = scmp.eq.s32.totalorder %s15, 0
    %p125 = por %p123, %p124
    %p126 = scmp.ne.s32.totalorder %s112, %s113
    %p127 = scmp.eq.s32.totalorder %s16, 1
    %p128 = por %p126, %p127
    %p130 = scmp.ne.s32.totalorder %s113, %s129
    %p131 = scmp.eq.s32.totalorder %s16, 0
    %p132 = por %p130, %p131
    %p133 = scmp.le.s32.totalorder 1, %s10
    %p134 = scmp.lt.s32.totalorder %s10, 3
    %p135 = pnand %p133, %p134
    %p136 = pneg %p135
    // Predicated region
    $region9: #{efdb_forward.8} parent=5 // pred_check
      _
    $region10: #{efdb_forward.8} parent=5 // pred_check_branch
      %138 = sbr.rel (%p135) target = $region12
    $region11: #{efdb_forward.8} parent=5 // pred_region
      %s139 = ssub.s32 %s10, 1
      // Predicated region
      $region13: #{efdb_forward.8} parent=11 // pred_check
        %p140 = pneg %p57
      $region14: #{efdb_forward.8} parent=11 // pred_check_branch
        %142 = sbr.rel (%p140) target = $region16
      $region15: #{efdb_forward.8} parent=11 // pred_region
        _
      $region16: #{efdb_forward.8} parent=11 // pred_fallthru
        _
      // Predicated region
      $region17: #{efdb_forward.8} parent=11 // pred_check
        %p143 = pneg %p78
      $region18: #{efdb_forward.8} parent=11 // pred_check_branch
        %145 = sbr.rel (%p143) target = $region20
      $region19: #{efdb_forward.8} parent=11 // pred_region
        _
      $region20: #{efdb_forward.8} parent=11 // pred_fallthru
        _
      // Predicated region
      $region21: #{efdb_forward.8} parent=11 // pred_check
        %p146 = pneg %p99
      $region22: #{efdb_forward.8} parent=11 // pred_check_branch
        %148 = sbr.rel (%p146) target = $region24
      $region23: #{efdb_forward.8} parent=11 // pred_region
        _
      $region24: #{efdb_forward.8} parent=11 // pred_fallthru
        _
    $region12: #{efdb_forward.8} parent=5 // pred_fallthru
      _
    %p149 = scmp.lt.s32.totalorder %s10, 2
    // Predicated region
    $region25: #{efdb_forward.8} parent=5 // pred_check
      %p150 = pneg %p149
    $region26: #{efdb_forward.8} parent=5 // pred_check_branch
      %152 = sbr.rel (%p150) target = $region28
    $region27: #{efdb_forward.8} parent=5 // pred_region
      // Predicated region
      $region29: #{efdb_forward.8} parent=27 // pred_check
        %p153 = pneg %p30
      $region30: #{efdb_forward.8} parent=27 // pred_check_branch
        %155 = sbr.rel (%p153) target = $region32
      $region31: #{efdb_forward.8} parent=27 // pred_region
        %p156 = scmp.lt.s32.totalorder %s10, 1
        %s157 = scalar_select %p156, %s10, 1
        %s158 = smul.addr %s157, 54
        %s159 = smul.addr %s158, 4
        %s160 = scalar_lea.vmem %s0, %s159
      $region32: #{efdb_forward.8} parent=27 // pred_fallthru
        _
    $region28: #{efdb_forward.8} parent=5 // pred_fallthru
      _
    %p161 = scmp.le.s32.totalorder 1, %s10
    %p162 = scmp.lt.s32.totalorder %s10, 3
    %p163 = pnand %p161, %p162
    %p164 = pneg %p163
    // Predicated region
    $region33: #{efdb_forward.8} parent=5 // pred_check
      _
    $region34: #{efdb_forward.8} parent=5 // pred_check_branch
      %166 = sbr.rel (%p163) target = $region36
    $region35: #{efdb_forward.8} parent=5 // pred_region
      %s167 = ssub.s32 %s10, 1
      %p168 = scmp.lt.s32.totalorder %s15, 1
      %s169 = scalar_select %p168, %s15, 1
      %s170 = smul.addr %s169, 54
      %s171 = smul.addr %s170, 4
      %s172 = scalar_lea.vmem %s0, %s171
      %p173 = pneg %p36
      %p174 = pneg %p33
      %p175 = pneg %p57
      %p176 = pneg %p54
      %p177 = pneg %p78
      %p178 = pneg %p75
      %p179 = pneg %p99
      %p180 = pneg %p96
      %p181 = pneg %p125
      %p182 = pneg %p122
      %p183 = scmp.lt.s32.totalorder %s15, 1
      %s184 = scalar_select %p183, %s15, 1
      %s185 = smul.addr %s184, 32
      %s186 = smul.addr %s185, 4
      %s187 = scalar_lea.vmem %s4, %s186
      %p188 = scmp.lt.s32.totalorder %s15, 1
      %s189 = scalar_select %p188, %s15, 1
      %s190 = smul.addr %s189, 54
      %s191 = smul.addr %s190, 4
      %s192 = scalar_lea.vmem %s0, %s191
      %p193 = scmp.lt.s32.totalorder %s15, 1
      %s194 = scalar_select %p193, %s15, 1
      %s195 = smul.addr %s194, 32
      %s196 = smul.addr %s195, 4
      %s197 = scalar_lea.vmem %s4, %s196
      %v199 = vld [vmem:[%s192] sm:$0xf]
      %v200 = vld [vmem:[%s192 + $0x4] sm:$0xf]
      %v201 = vld [vmem:[%s192 + $0x8] sm:$0x1]
      %v202 = vld [vmem:[%s192 + $0xc] sm:$0xf]
      %v203 = vld [vmem:[%s192 + $0x10] sm:$0xf]
      %v204 = vld [vmem:[%s192 + $0x14] sm:$0x1]
      %v205 = vld [vmem:[%s192 + $0x18] sm:$0xf]
      %v206 = vld [vmem:[%s192 + $0x1c] sm:$0xf]
      %v207 = vld [vmem:[%s192 + $0x20] sm:$0x1]
      %v208 = vld [vmem:[%s192 + $0x24] sm:$0xf]
      %v209 = vld [vmem:[%s192 + $0x28] sm:$0xf]
      %v210 = vld [vmem:[%s192 + $0x2c] sm:$0x1]
      %v211 = vld [vmem:[%s192 + $0x30] sm:$0xf]
      %v212 = vld [vmem:[%s192 + $0x34] sm:$0xf]
      %v213 = vld [vmem:[%s192 + $0x38] sm:$0x1]
      %v214 = vld [vmem:[%s192 + $0x3c] sm:$0xf]
      %v215 = vld [vmem:[%s192 + $0x40] sm:$0xf]
      %v216 = vld [vmem:[%s192 + $0x44] sm:$0x1]
      %v217 = vld [vmem:[%s192 + $0x48] sm:$0xf]
      %v218 = vld [vmem:[%s192 + $0x4c] sm:$0xf]
      %v219 = vld [vmem:[%s192 + $0x50] sm:$0x1]
      %v220 = vld [vmem:[%s192 + $0x54] sm:$0xf]
      %v221 = vld [vmem:[%s192 + $0x58] sm:$0xf]
      %v222 = vld [vmem:[%s192 + $0x5c] sm:$0x1]
      %v223 = vld [vmem:[%s192 + $0x60] sm:$0xf]
      %v224 = vld [vmem:[%s192 + $0x64] sm:$0xf]
      %v225 = vld [vmem:[%s192 + $0x68] sm:$0x1]
      %v226 = vld [vmem:[%s192 + $0x6c] sm:$0xf]
      %v227 = vld [vmem:[%s192 + $0x70] sm:$0xf]
      %v228 = vld [vmem:[%s192 + $0x74] sm:$0x1]
      %v229 = vld [vmem:[%s192 + $0x78] sm:$0xf]
      %v230 = vld [vmem:[%s192 + $0x7c] sm:$0xf]
      %v231 = vld [vmem:[%s192 + $0x80] sm:$0x1]
      %v232 = vld [vmem:[%s192 + $0x84] sm:$0xf]
      %v233 = vld [vmem:[%s192 + $0x88] sm:$0xf]
      %v234 = vld [vmem:[%s192 + $0x8c] sm:$0x1]
      %v235 = vld [vmem:[%s192 + $0x90] sm:$0xf]
      %v236 = vld [vmem:[%s192 + $0x94] sm:$0xf]
      %v237 = vld [vmem:[%s192 + $0x98] sm:$0x1]
      %v238 = vld [vmem:[%s192 + $0x9c] sm:$0xf]
      %v239 = vld [vmem:[%s192 + $0xa0] sm:$0xf]
      %v240 = vld [vmem:[%s192 + $0xa4] sm:$0x1]
      %v241 = vld [vmem:[%s192 + $0xa8] sm:$0xf]
      %v242 = vld [vmem:[%s192 + $0xac] sm:$0xf]
      %v243 = vld [vmem:[%s192 + $0xb0] sm:$0x1]
      %v244 = vld [vmem:[%s192 + $0xb4] sm:$0xf]
      %v245 = vld [vmem:[%s192 + $0xb8] sm:$0xf]
      %v246 = vld [vmem:[%s192 + $0xbc] sm:$0x1]
      %v247 = vld [vmem:[%s192 + $0xc0] sm:$0xf]
      %v248 = vld [vmem:[%s192 + $0xc4] sm:$0xf]
      %v249 = vld [vmem:[%s192 + $0xc8] sm:$0x1]
      %v250 = vld [vmem:[%s192 + $0xcc] sm:$0xf]
      %v251 = vld [vmem:[%s192 + $0xd0] sm:$0xf]
      %v252 = vld [vmem:[%s192 + $0xd4] sm:$0x1]
      %v253 = vld [vmem:[%s1] sm:$0xf]
      %v254 = vld [vmem:[%s1 + $0x4] sm:$0xf]
      %vm255 = vsmask.f32 3328
      %vm256 = vsmask.f32 7440
      %vm257 = vmor %vm255, %vm256
      %v259 = vshrl.u32 %v199, 16
      %v261 = vrot.slane %v259, 4
      %v262 = vshll.u32 %v199, 16
      %v264 = vrot.slane %v262, 5
      %v265 = vor.u32 %v261, %v264
      %v266 = vrot.slane %v265, 4
      %v268 = vshll.u32 %v200, 16
      %v270 = vrot.slane %v268, 5
      %v271 = vsel %vm257, %v266, %v270
      %v272 = vshrl.u32 %v200, 16
      %v274 = vrot.slane %v272, 4
      %v275 = vor.u32 %v274, %v270
      %v276 = vrot.slane %v275, 4
      %v278 = vshll.u32 %v201, 16
      %v280 = vrot.slane %v278, 5
      %v281 = vsel %vm257, %v276, %v280
      %v283 = vshrl.u32 %v202, 16
      %v285 = vrot.slane %v283, 4
      %v286 = vshll.u32 %v202, 16
      %v288 = vrot.slane %v286, 5
      %v289 = vor.u32 %v285, %v288
      %v290 = vrot.slane %v289, 4
      %v292 = vshll.u32 %v203, 16
      %v294 = vrot.slane %v292, 5
      %v295 = vsel %vm257, %v290, %v294
      %v296 = vshrl.u32 %v203, 16
      %v298 = vrot.slane %v296, 4
      %v299 = vor.u32 %v298, %v294
      %v300 = vrot.slane %v299, 4
      %v302 = vshll.u32 %v204, 16
      %v304 = vrot.slane %v302, 5
      %v305 = vsel %vm257, %v300, %v304
      %v307 = vshrl.u32 %v205, 16
      %v309 = vrot.slane %v307, 4
      %v310 = vshll.u32 %v205, 16
      %v312 = vrot.slane %v310, 5
      %v313 = vor.u32 %v309, %v312
      %v314 = vrot.slane %v313, 4
      %v316 = vshll.u32 %v206, 16
      %v318 = vrot.slane %v316, 5
      %v319 = vsel %vm257, %v314, %v318
      %v320 = vshrl.u32 %v206, 16
      %v322 = vrot.slane %v320, 4
      %v323 = vor.u32 %v322, %v318
      %v324 = vrot.slane %v323, 4
      %v326 = vshll.u32 %v207, 16
      %v328 = vrot.slane %v326, 5
      %v329 = vsel %vm257, %v324, %v328
      %v331 = vshrl.u32 %v208, 16
      %v333 = vrot.slane %v331, 4
      %v334 = vshll.u32 %v208, 16
      %v336 = vrot.slane %v334, 5
      %v337 = vor.u32 %v333, %v336
      %v338 = vrot.slane %v337, 4
      %v340 = vshll.u32 %v209, 16
      %v342 = vrot.slane %v340, 5
      %v343 = vsel %vm257, %v338, %v342
      %v344 = vshrl.u32 %v209, 16
      %v346 = vrot.slane %v344, 4
      %v347 = vor.u32 %v346, %v342
      %v348 = vrot.slane %v347, 4
      %v350 = vshll.u32 %v210, 16
      %v352 = vrot.slane %v350, 5
      %v353 = vsel %vm257, %v348, %v352
      %v355 = vshrl.u32 %v211, 16
      %v357 = vrot.slane %v355, 4
      %v358 = vshll.u32 %v211, 16
      %v360 = vrot.slane %v358, 5
      %v361 = vor.u32 %v357, %v360
      %v362 = vrot.slane %v361, 4
      %v364 = vshll.u32 %v212, 16
      %v366 = vrot.slane %v364, 5
      %v367 = vsel %vm257, %v362, %v366
      %v368 = vshrl.u32 %v212, 16
      %v370 = vrot.slane %v368, 4
      %v371 = vor.u32 %v370, %v366
      %v372 = vrot.slane %v371, 4
      %v374 = vshll.u32 %v213, 16
      %v376 = vrot.slane %v374, 5
      %v377 = vsel %vm257, %v372, %v376
      %v379 = vshrl.u32 %v214, 16
      %v381 = vrot.slane %v379, 4
      %v382 = vshll.u32 %v214, 16
      %v384 = vrot.slane %v382, 5
      %v385 = vor.u32 %v381, %v384
      %v386 = vrot.slane %v385, 4
      %v388 = vshll.u32 %v215, 16
      %v390 = vrot.slane %v388, 5
      %v391 = vsel %vm257, %v386, %v390
      %v392 = vshrl.u32 %v215, 16
      %v394 = vrot.slane %v392, 4
      %v395 = vor.u32 %v394, %v390
      %v396 = vrot.slane %v395, 4
      %v398 = vshll.u32 %v216, 16
      %v400 = vrot.slane %v398, 5
      %v401 = vsel %vm257, %v396, %v400
      %v403 = vshrl.u32 %v217, 16
      %v405 = vrot.slane %v403, 4
      %v406 = vshll.u32 %v217, 16
      %v408 = vrot.slane %v406, 5
      %v409 = vor.u32 %v405, %v408
      %v410 = vrot.slane %v409, 4
      %v412 = vshll.u32 %v218, 16
      %v414 = vrot.slane %v412, 5
      %v415 = vsel %vm257, %v410, %v414
      %v416 = vshrl.u32 %v218, 16
      %v418 = vrot.slane %v416, 4
      %v419 = vor.u32 %v418, %v414
      %v420 = vrot.slane %v419, 4
      %v422 = vshll.u32 %v219, 16
      %v424 = vrot.slane %v422, 5
      %v425 = vsel %vm257, %v420, %v424
      %v427 = vshrl.u32 %v220, 16
      %v429 = vrot.slane %v427, 4
      %v430 = vshll.u32 %v220, 16
      %v432 = vrot.slane %v430, 5
      %v433 = vor.u32 %v429, %v432
      %v434 = vrot.slane %v433, 4
      %v436 = vshll.u32 %v221, 16
      %v438 = vrot.slane %v436, 5
      %v439 = vsel %vm257, %v434, %v438
      %v440 = vshrl.u32 %v221, 16
      %v442 = vrot.slane %v440, 4
      %v443 = vor.u32 %v442, %v438
      %v444 = vrot.slane %v443, 4
      %v446 = vshll.u32 %v222, 16
      %v448 = vrot.slane %v446, 5
      %v449 = vsel %vm257, %v444, %v448
      %v451 = vshrl.u32 %v223, 16
      %v453 = vrot.slane %v451, 4
      %v454 = vshll.u32 %v223, 16
      %v456 = vrot.slane %v454, 5
      %v457 = vor.u32 %v453, %v456
      %v458 = vrot.slane %v457, 4
      %v460 = vshll.u32 %v224, 16
      %v462 = vrot.slane %v460, 5
      %v463 = vsel %vm257, %v458, %v462
      %v464 = vshrl.u32 %v224, 16
      %v466 = vrot.slane %v464, 4
      %v467 = vor.u32 %v466, %v462
      %v468 = vrot.slane %v467, 4
      %v470 = vshll.u32 %v225, 16
      %v472 = vrot.slane %v470, 5
      %v473 = vsel %vm257, %v468, %v472
      %v475 = vshrl.u32 %v226, 16
      %v477 = vrot.slane %v475, 4
      %v478 = vshll.u32 %v226, 16
      %v480 = vrot.slane %v478, 5
      %v481 = vor.u32 %v477, %v480
      %v482 = vrot.slane %v481, 4
      %v484 = vshll.u32 %v227, 16
      %v486 = vrot.slane %v484, 5
      %v487 = vsel %vm257, %v482, %v486
      %v488 = vshrl.u32 %v227, 16
      %v490 = vrot.slane %v488, 4
      %v491 = vor.u32 %v490, %v486
      %v492 = vrot.slane %v491, 4
      %v494 = vshll.u32 %v228, 16
      %v496 = vrot.slane %v494, 5
      %v497 = vsel %vm257, %v492, %v496
      %v499 = vshrl.u32 %v229, 16
      %v501 = vrot.slane %v499, 4
      %v502 = vshll.u32 %v229, 16
      %v504 = vrot.slane %v502, 5
      %v505 = vor.u32 %v501, %v504
      %v506 = vrot.slane %v505, 4
      %v508 = vshll.u32 %v230, 16
      %v510 = vrot.slane %v508, 5
      %v511 = vsel %vm257, %v506, %v510
      %v512 = vshrl.u32 %v230, 16
      %v514 = vrot.slane %v512, 4
      %v515 = vor.u32 %v514, %v510
      %v516 = vrot.slane %v515, 4
      %v518 = vshll.u32 %v231, 16
      %v520 = vrot.slane %v518, 5
      %v521 = vsel %vm257, %v516, %v520
      %v523 = vshrl.u32 %v232, 16
      %v525 = vrot.slane %v523, 4
      %v526 = vshll.u32 %v232, 16
      %v528 = vrot.slane %v526, 5
      %v529 = vor.u32 %v525, %v528
      %v530 = vrot.slane %v529, 4
      %v532 = vshll.u32 %v233, 16
      %v534 = vrot.slane %v532, 5
      %v535 = vsel %vm257, %v530, %v534
      %v536 = vshrl.u32 %v233, 16
      %v538 = vrot.slane %v536, 4
      %v539 = vor.u32 %v538, %v534
      %v540 = vrot.slane %v539, 4
      %v542 = vshll.u32 %v234, 16
      %v544 = vrot.slane %v542, 5
      %v545 = vsel %vm257, %v540, %v544
      %v547 = vshrl.u32 %v235, 16
      %v549 = vrot.slane %v547, 4
      %v550 = vshll.u32 %v235, 16
      %v552 = vrot.slane %v550, 5
      %v553 = vor.u32 %v549, %v552
      %v554 = vrot.slane %v553, 4
      %v556 = vshll.u32 %v236, 16
      %v558 = vrot.slane %v556, 5
      %v559 = vsel %vm257, %v554, %v558
      %v560 = vshrl.u32 %v236, 16
      %v562 = vrot.slane %v560, 4
      %v563 = vor.u32 %v562, %v558
      %v564 = vrot.slane %v563, 4
      %v566 = vshll.u32 %v237, 16
      %v568 = vrot.slane %v566, 5
      %v569 = vsel %vm257, %v564, %v568
      %v571 = vshrl.u32 %v238, 16
      %v573 = vrot.slane %v571, 4
      %v574 = vshll.u32 %v238, 16
      %v576 = vrot.slane %v574, 5
      %v577 = vor.u32 %v573, %v576
      %v578 = vrot.slane %v577, 4
      %v580 = vshll.u32 %v239, 16
      %v582 = vrot.slane %v580, 5
      %v583 = vsel %vm257, %v578, %v582
      %v584 = vshrl.u32 %v239, 16
      %v586 = vrot.slane %v584, 4
      %v587 = vor.u32 %v586, %v582
      %v588 = vrot.slane %v587, 4
      %v590 = vshll.u32 %v240, 16
      %v592 = vrot.slane %v590, 5
      %v593 = vsel %vm257, %v588, %v592
      %v595 = vshrl.u32 %v241, 16
      %v597 = vrot.slane %v595, 4
      %v598 = vshll.u32 %v241, 16
      %v600 = vrot.slane %v598, 5
      %v601 = vor.u32 %v597, %v600
      %v602 = vrot.slane %v601, 4
      %v604 = vshll.u32 %v242, 16
      %v606 = vrot.slane %v604, 5
      %v607 = vsel %vm257, %v602, %v606
      %v608 = vshrl.u32 %v242, 16
      %v610 = vrot.slane %v608, 4
      %v611 = vor.u32 %v610, %v606
      %v612 = vrot.slane %v611, 4
      %v614 = vshll.u32 %v243, 16
      %v616 = vrot.slane %v614, 5
      %v617 = vsel %vm257, %v612, %v616
      %v619 = vshrl.u32 %v244, 16
      %v621 = vrot.slane %v619, 4
      %v622 = vshll.u32 %v244, 16
      %v624 = vrot.slane %v622, 5
      %v625 = vor.u32 %v621, %v624
      %v626 = vrot.slane %v625, 4
      %v628 = vshll.u32 %v245, 16
      %v630 = vrot.slane %v628, 5
      %v631 = vsel %vm257, %v626, %v630
      %v632 = vshrl.u32 %v245, 16
      %v634 = vrot.slane %v632, 4
      %v635 = vor.u32 %v634, %v630
      %v636 = vrot.slane %v635, 4
      %v638 = vshll.u32 %v246, 16
      %v640 = vrot.slane %v638, 5
      %v641 = vsel %vm257, %v636, %v640
      %s642 = scalar_lea.vmem %s1, 8
      %v643 = vld [vmem:[%s642] sm:$0xf]
      %v644 = vld [vmem:[%s642 + $0x4] sm:$0xf]
      %v645 = vunpack.c.l.b16 %v271
      %v646 = vunpack.c.l.b16 %v281
      %v647 = vunpack.c.l.b16 %v295
      %v648 = vunpack.c.l.b16 %v305
      %v649 = vunpack.c.l.b16 %v319
      %v650 = vunpack.c.l.b16 %v329
      %v651 = vunpack.c.l.b16 %v343
      %v652 = vunpack.c.l.b16 %v353
      %v653 = vunpack.c.l.b16 %v367
      %v654 = vunpack.c.l.b16 %v377
      %v655 = vunpack.c.l.b16 %v391
      %v656 = vunpack.c.l.b16 %v401
      %v657 = vunpack.c.l.b16 %v415
      %v658 = vunpack.c.l.b16 %v425
      %v659 = vunpack.c.l.b16 %v439
      %v660 = vunpack.c.l.b16 %v449
      %v661 = vunpack.c.l.b16 %v463
      %v662 = vunpack.c.l.b16 %v473
      %v663 = vunpack.c.l.b16 %v487
      %v664 = vunpack.c.l.b16 %v497
      %v665 = vunpack.c.l.b16 %v511
      %v666 = vunpack.c.l.b16 %v521
      %v667 = vunpack.c.l.b16 %v535
      %v668 = vunpack.c.l.b16 %v545
      %v669 = vunpack.c.l.b16 %v559
      %v670 = vunpack.c.l.b16 %v569
      %v671 = vunpack.c.l.b16 %v583
      %v672 = vunpack.c.l.b16 %v593
      %v673 = vunpack.c.l.b16 %v607
      %v674 = vunpack.c.l.b16 %v617
      %v675 = vunpack.c.l.b16 %v631
      %v676 = vunpack.c.l.b16 %v641
      %v677 = vpack.c.b16 %v646, %v645
      %v678 = vpack.c.b16 %v648, %v647
      %v679 = vpack.c.b16 %v650, %v649
      %v680 = vpack.c.b16 %v652, %v651
      %v681 = vpack.c.b16 %v654, %v653
      %v682 = vpack.c.b16 %v656, %v655
      %v683 = vpack.c.b16 %v658, %v657
      %v684 = vpack.c.b16 %v660, %v659
      %v685 = vpack.c.b16 %v662, %v661
      %v686 = vpack.c.b16 %v664, %v663
      %v687 = vpack.c.b16 %v666, %v665
      %v688 = vpack.c.b16 %v668, %v667
      %v689 = vpack.c.b16 %v670, %v669
      %v690 = vpack.c.b16 %v672, %v671
      %v691 = vpack.c.b16 %v674, %v673
      %v692 = vpack.c.b16 %v676, %v675
      %v695 = vunpack.c.l.b16 %v643
      %v696 = vunpack.c.l.b16 %v644
      %v697 = vpack.c.b16 %v696, %v695
      %vm699 = vcmask 130048
      %v701 = vsel %vm699, %v677, 0
      %v704 = vsel %vm699, %v678, 0
      %v707 = vsel %vm699, %v679, 0
      %v710 = vsel %vm699, %v680, 0
      %v713 = vsel %vm699, %v681, 0
      %v716 = vsel %vm699, %v682, 0
      %v719 = vsel %vm699, %v683, 0
      %v722 = vsel %vm699, %v684, 0
      %v725 = vsel %vm699, %v685, 0
      %v728 = vsel %vm699, %v686, 0
      %v731 = vsel %vm699, %v687, 0
      %v734 = vsel %vm699, %v688, 0
      %v737 = vsel %vm699, %v689, 0
      %v740 = vsel %vm699, %v690, 0
      %v743 = vsel %vm699, %v691, 0
      %v746 = vsel %vm699, %v692, 0
      %748 = vmatprep.subr.bf16.mxu0 0
      %749 = vmatpush1.bf16.msra.mxu0 %v697
      %750 = vmatprep.subr.bf16.mxu0 0
      %751 = vmatpush1.bf16.msra.mxu0 0
      %752 = vmatprep.subr.bf16.mxu0 0
      %753 = vmatpush1.bf16.msra.mxu0 0
      %754 = vmatprep.subr.bf16.mxu0 0
      %755 = vmatpush1.bf16.msra.mxu0 0
      %756 = vmatprep.subr.bf16.mxu0 0
      %757 = vmatpush1.bf16.msra.mxu0 0
      %758 = vmatprep.subr.bf16.mxu0 0
      %759 = vmatpush1.bf16.msra.mxu0 0
      %760 = vmatprep.subr.bf16.mxu0 0
      %761 = vmatpush1.bf16.msra.mxu0 0
      %762 = vmatprep.subr.bf16.mxu0 0
      %763 = vmatpush1.bf16.msra.mxu0 0
      %764 = vmatprep.subr.bf16.mxu0 0
      %765 = vmatpush1.bf16.msra.mxu0 0
      %766 = vmatprep.subr.bf16.mxu0 0
      %767 = vmatpush1.bf16.msra.mxu0 0
      %768 = vmatprep.subr.bf16.mxu0 0
      %769 = vmatpush1.bf16.msra.mxu0 0
      %770 = vmatprep.subr.bf16.mxu0 0
      %771 = vmatpush1.bf16.msra.mxu0 0
      %772 = vmatprep.subr.bf16.mxu0 0
      %773 = vmatpush1.bf16.msra.mxu0 0
      %774 = vmatprep.subr.bf16.mxu0 0
      %775 = vmatpush1.bf16.msra.mxu0 0
      %776 = vmatprep.subr.bf16.mxu0 0
      %777 = vmatpush1.bf16.msra.mxu0 0
      %778 = vmatprep.subr.bf16.mxu0 0
      %779 = vmatpush1.bf16.msra.mxu0 0
      %780 = vmatprep.mubr.bf16.mxu0 0
      %781 = vmatmul.mubr.bf16.gmra.mrb[0].mxu0 %v701
      %v782 = vpop.f32.mrb[0].mxu0
      %v783 = vadd.f32 0.0, %v782
      %v784 = vpop.f32.mrb[0].mxu0
      %v785 = vpop.f32.mrb[0].mxu0
      %v786 = vadd.f32 0.0, %v785
      %v787 = vpop.f32.mrb[0].mxu0
      %788 = vmatprep.mubr.bf16.mxu0 0
      %789 = vmatmul.mubr.bf16.gmra.mrb[0].mxu0 %v704
      %v790 = vpop.f32.mrb[0].mxu0
      %v791 = vadd.f32 0.0, %v790
      %v792 = vpop.f32.mrb[0].mxu0
      %v793 = vpop.f32.mrb[0].mxu0
      %v794 = vadd.f32 0.0, %v793
      %v795 = vpop.f32.mrb[0].mxu0
      %796 = vmatprep.mubr.bf16.mxu0 0
      %797 = vmatmul.mubr.bf16.gmra.mrb[0].mxu0 %v707
      %v798 = vpop.f32.mrb[0].mxu0
      %v799 = vadd.f32 0.0, %v798
      %v800 = vpop.f32.mrb[0].mxu0
      %v801 = vpop.f32.mrb[0].mxu0
      %v802 = vadd.f32 0.0, %v801
      %v803 = vpop.f32.mrb[0].mxu0
      %804 = vmatprep.mubr.bf16.mxu0 0
      %805 = vmatmul.mubr.bf16.gmra.mrb[0].mxu0 %v710
      %v806 = vpop.f32.mrb[0].mxu0
      %v807 = vadd.f32 0.0, %v806
      %v808 = vpop.f32.mrb[0].mxu0
      %v809 = vpop.f32.mrb[0].mxu0
      %v810 = vadd.f32 0.0, %v809
      %v811 = vpop.f32.mrb[0].mxu0
      %812 = vmatprep.mubr.bf16.mxu0 0
      %813 = vmatmul.mubr.bf16.gmra.mrb[0].mxu0 %v713
      %v814 = vpop.f32.mrb[0].mxu0
      %v815 = vadd.f32 0.0, %v814
      %v816 = vpop.f32.mrb[0].mxu0
      %v817 = vpop.f32.mrb[0].mxu0
      %v818 = vadd.f32 0.0, %v817
      %v819 = vpop.f32.mrb[0].mxu0
      %820 = vmatprep.mubr.bf16.mxu0 0
      %821 = vmatmul.mubr.bf16.gmra.mrb[0].mxu0 %v716
      %v822 = vpop.f32.mrb[0].mxu0
      %v823 = vadd.f32 0.0, %v822
      %v824 = vpop.f32.mrb[0].mxu0
      %v825 = vpop.f32.mrb[0].mxu0
      %v826 = vadd.f32 0.0, %v825
      %v827 = vpop.f32.mrb[0].mxu0
      %828 = vmatprep.mubr.bf16.mxu0 0
      %829 = vmatmul.mubr.bf16.gmra.mrb[0].mxu0 %v719
      %v830 = vpop.f32.mrb[0].mxu0
      %v831 = vadd.f32 0.0, %v830
      %v832 = vpop.f32.mrb[0].mxu0
      %v833 = vpop.f32.mrb[0].mxu0
      %v834 = vadd.f32 0.0, %v833
      %v835 = vpop.f32.mrb[0].mxu0
      %836 = vmatprep.mubr.bf16.mxu0 0
      %837 = vmatmul.mubr.bf16.gmra.mrb[0].mxu0 %v722
      %v838 = vpop.f32.mrb[0].mxu0
      %v839 = vadd.f32 0.0, %v838
      %v840 = vpop.f32.mrb[0].mxu0
      %v841 = vpop.f32.mrb[0].mxu0
      %v842 = vadd.f32 0.0, %v841
      %v843 = vpop.f32.mrb[0].mxu0
      %844 = vmatprep.mubr.bf16.mxu0 0
      %845 = vmatmul.mubr.bf16.gmra.mrb[0].mxu0 %v725
      %v846 = vpop.f32.mrb[0].mxu0
      %v847 = vadd.f32 0.0, %v846
      %v848 = vpop.f32.mrb[0].mxu0
      %v849 = vpop.f32.mrb[0].mxu0
      %v850 = vadd.f32 0.0, %v849
      %v851 = vpop.f32.mrb[0].mxu0
      %852 = vmatprep.mubr.bf16.mxu0 0
      %853 = vmatmul.mubr.bf16.gmra.mrb[0].mxu0 %v728
      %v854 = vpop.f32.mrb[0].mxu0
      %v855 = vadd.f32 0.0, %v854
      %v856 = vpop.f32.mrb[0].mxu0
      %v857 = vpop.f32.mrb[0].mxu0
      %v858 = vadd.f32 0.0, %v857
      %v859 = vpop.f32.mrb[0].mxu0
      %860 = vmatprep.mubr.bf16.mxu0 0
      %861 = vmatmul.mubr.bf16.gmra.mrb[0].mxu0 %v731
      %v862 = vpop.f32.mrb[0].mxu0
      %v863 = vadd.f32 0.0, %v862
      %v864 = vpop.f32.mrb[0].mxu0
      %v865 = vpop.f32.mrb[0].mxu0
      %v866 = vadd.f32 0.0, %v865
      %v867 = vpop.f32.mrb[0].mxu0
      %868 = vmatprep.mubr.bf16.mxu0 0
      %869 = vmatmul.mubr.bf16.gmra.mrb[0].mxu0 %v734
      %v870 = vpop.f32.mrb[0].mxu0
      %v871 = vadd.f32 0.0, %v870
      %v872 = vpop.f32.mrb[0].mxu0
      %v873 = vpop.f32.mrb[0].mxu0
      %v874 = vadd.f32 0.0, %v873
      %v875 = vpop.f32.mrb[0].mxu0
      %876 = vmatprep.mubr.bf16.mxu0 0
      %877 = vmatmul.mubr.bf16.gmra.mrb[0].mxu0 %v737
      %v878 = vpop.f32.mrb[0].mxu0
      %v879 = vadd.f32 0.0, %v878
      %v880 = vpop.f32.mrb[0].mxu0
      %v881 = vpop.f32.mrb[0].mxu0
      %v882 = vadd.f32 0.0, %v881
      %v883 = vpop.f32.mrb[0].mxu0
      %884 = vmatprep.mubr.bf16.mxu0 0
      %885 = vmatmul.mubr.bf16.gmra.mrb[0].mxu0 %v740
      %v886 = vpop.f32.mrb[0].mxu0
      %v887 = vadd.f32 0.0, %v886
      %v888 = vpop.f32.mrb[0].mxu0
      %v889 = vpop.f32.mrb[0].mxu0
      %v890 = vadd.f32 0.0, %v889
      %v891 = vpop.f32.mrb[0].mxu0
      %892 = vmatprep.mubr.bf16.mxu0 0
      %893 = vmatmul.mubr.bf16.gmra.mrb[0].mxu0 %v743
      %v894 = vpop.f32.mrb[0].mxu0
      %v895 = vadd.f32 0.0, %v894
      %v896 = vpop.f32.mrb[0].mxu0
      %v897 = vpop.f32.mrb[0].mxu0
      %v898 = vadd.f32 0.0, %v897
      %v899 = vpop.f32.mrb[0].mxu0
      %900 = vmatprep.mubr.bf16.mxu0 0
      %901 = vmatmul.mubr.bf16.gmra.mrb[0].mxu0 %v746
      %v902 = vpop.f32.mrb[0].mxu0
      %v903 = vadd.f32 0.0, %v902
      %v904 = vpop.f32.mrb[0].mxu0
      %v905 = vpop.f32.mrb[0].mxu0
      %v906 = vadd.f32 0.0, %v905
      %v907 = vpop.f32.mrb[0].mxu0
      %908 = vdwg.mxu0
      %v941 = vunpack.c.l.b16 %v199
      %v942 = vunpack.c.l.b16 %v200
      %v943 = vunpack.c.l.b16 %v202
      %v944 = vunpack.c.l.b16 %v203
      %v945 = vunpack.c.l.b16 %v205
      %v946 = vunpack.c.l.b16 %v206
      %v947 = vunpack.c.l.b16 %v208
      %v948 = vunpack.c.l.b16 %v209
      %v949 = vunpack.c.l.b16 %v211
      %v950 = vunpack.c.l.b16 %v212
      %v951 = vunpack.c.l.b16 %v214
      %v952 = vunpack.c.l.b16 %v215
      %v953 = vunpack.c.l.b16 %v217
      %v954 = vunpack.c.l.b16 %v218
      %v955 = vunpack.c.l.b16 %v220
      %v956 = vunpack.c.l.b16 %v221
      %v957 = vunpack.c.l.b16 %v223
      %v958 = vunpack.c.l.b16 %v224
      %v959 = vunpack.c.l.b16 %v226
      %v960 = vunpack.c.l.b16 %v227
      %v961 = vunpack.c.l.b16 %v229
      %v962 = vunpack.c.l.b16 %v230
      %v963 = vunpack.c.l.b16 %v232
      %v964 = vunpack.c.l.b16 %v233
      %v965 = vunpack.c.l.b16 %v235
      %v966 = vunpack.c.l.b16 %v236
      %v967 = vunpack.c.l.b16 %v238
      %v968 = vunpack.c.l.b16 %v239
      %v969 = vunpack.c.l.b16 %v241
      %v970 = vunpack.c.l.b16 %v242
      %v971 = vunpack.c.l.b16 %v244
      %v972 = vunpack.c.l.b16 %v245
      %v973 = vpack.c.b16 %v942, %v941
      %v974 = vpack.c.b16 %v944, %v943
      %v975 = vpack.c.b16 %v946, %v945
      %v976 = vpack.c.b16 %v948, %v947
      %v977 = vpack.c.b16 %v950, %v949
      %v978 = vpack.c.b16 %v952, %v951
      %v979 = vpack.c.b16 %v954, %v953
      %v980 = vpack.c.b16 %v956, %v955
      %v981 = vpack.c.b16 %v958, %v957
      %v982 = vpack.c.b16 %v960, %v959
      %v983 = vpack.c.b16 %v962, %v961
      %v984 = vpack.c.b16 %v964, %v963
      %v985 = vpack.c.b16 %v966, %v965
      %v986 = vpack.c.b16 %v968, %v967
      %v987 = vpack.c.b16 %v970, %v969
      %v988 = vpack.c.b16 %v972, %v971
      %v991 = vunpack.c.l.b16 %v253
      %v992 = vunpack.c.l.b16 %v254
      %v993 = vpack.c.b16 %v992, %v991
      %v996 = vsel %vm699, %v973, 0
      %v999 = vsel %vm699, %v974, 0
      %v1002 = vsel %vm699, %v975, 0
      %v1005 = vsel %vm699, %v976, 0
      %v1008 = vsel %vm699, %v977, 0
      %v1011 = vsel %vm699, %v978, 0
      %v1014 = vsel %vm699, %v979, 0
      %v1017 = vsel %vm699, %v980, 0
      %v1020 = vsel %vm699, %v981, 0
      %v1023 = vsel %vm699, %v982, 0
      %v1026 = vsel %vm699, %v983, 0
      %v1029 = vsel %vm699, %v984, 0
      %v1032 = vsel %vm699, %v985, 0
      %v1035 = vsel %vm699, %v986, 0
      %v1038 = vsel %vm699, %v987, 0
      %v1041 = vsel %vm699, %v988, 0
      %1043 = vmatprep.subr.bf16.mxu0 0
      %1044 = vmatpush1.bf16.msra.mxu0 %v993
      %1045 = vmatprep.subr.bf16.mxu0 0
      %1046 = vmatpush1.bf16.msra.mxu0 0
      %1047 = vmatprep.subr.bf16.mxu0 0
      %1048 = vmatpush1.bf16.msra.mxu0 0
      %1049 = vmatprep.subr.bf16.mxu0 0
      %1050 = vmatpush1.bf16.msra.mxu0 0
      %1051 = vmatprep.subr.bf16.mxu0 0
      %1052 = vmatpush1.bf16.msra.mxu0 0
      %1053 = vmatprep.subr.bf16.mxu0 0
      %1054 = vmatpush1.bf16.msra.mxu0 0
      %1055 = vmatprep.subr.bf16.mxu0 0
      %1056 = vmatpush1.bf16.msra.mxu0 0
      %1057 = vmatprep.subr.bf16.mxu0 0
      %1058 = vmatpush1.bf16.msra.mxu0 0
      %1059 = vmatprep.subr.bf16.mxu0 0
      %1060 = vmatpush1.bf16.msra.mxu0 0
      %1061 = vmatprep.subr.bf16.mxu0 0
      %1062 = vmatpush1.bf16.msra.mxu0 0
      %1063 = vmatprep.subr.bf16.mxu0 0
      %1064 = vmatpush1.bf16.msra.mxu0 0
      %1065 = vmatprep.subr.bf16.mxu0 0
      %1066 = vmatpush1.bf16.msra.mxu0 0
      %1067 = vmatprep.subr.bf16.mxu0 0
      %1068 = vmatpush1.bf16.msra.mxu0 0
      %1069 = vmatprep.subr.bf16.mxu0 0
      %1070 = vmatpush1.bf16.msra.mxu0 0
      %1071 = vmatprep.subr.bf16.mxu0 0
      %1072 = vmatpush1.bf16.msra.mxu0 0
      %1073 = vmatprep.subr.bf16.mxu0 0
      %1074 = vmatpush1.bf16.msra.mxu0 0
      %1075 = vmatprep.mubr.bf16.mxu0 0
      %1076 = vmatmul.mubr.bf16.gmra.mrb[0].mxu0 %v996
      %v1077 = vpop.f32.mrb[0].mxu0
      %v1078 = vadd.f32 %v783, %v1077
      %v1079 = vpop.f32.mrb[0].mxu0
      %v1080 = vpop.f32.mrb[0].mxu0
      %v1081 = vadd.f32 %v786, %v1080
      %v1082 = vpop.f32.mrb[0].mxu0
      %1083 = vmatprep.mubr.bf16.mxu0 0
      %1084 = vmatmul.mubr.bf16.gmra.mrb[0].mxu0 %v999
      %v1085 = vpop.f32.mrb[0].mxu0
      %v1086 = vadd.f32 %v791, %v1085
      %v1087 = vpop.f32.mrb[0].mxu0
      %v1088 = vpop.f32.mrb[0].mxu0
      %v1089 = vadd.f32 %v794, %v1088
      %v1090 = vpop.f32.mrb[0].mxu0
      %1091 = vmatprep.mubr.bf16.mxu0 0
      %1092 = vmatmul.mubr.bf16.gmra.mrb[0].mxu0 %v1002
      %v1093 = vpop.f32.mrb[0].mxu0
      %v1094 = vadd.f32 %v799, %v1093
      %v1095 = vpop.f32.mrb[0].mxu0
      %v1096 = vpop.f32.mrb[0].mxu0
      %v1097 = vadd.f32 %v802, %v1096
      %v1098 = vpop.f32.mrb[0].mxu0
      %1099 = vmatprep.mubr.bf16.mxu0 0
      %1100 = vmatmul.mubr.bf16.gmra.mrb[0].mxu0 %v1005
      %v1101 = vpop.f32.mrb[0].mxu0
      %v1102 = vadd.f32 %v807, %v1101
      %v1103 = vpop.f32.mrb[0].mxu0
      %v1104 = vpop.f32.mrb[0].mxu0
      %v1105 = vadd.f32 %v810, %v1104
      %v1106 = vpop.f32.mrb[0].mxu0
      %1107 = vmatprep.mubr.bf16.mxu0 0
      %1108 = vmatmul.mubr.bf16.gmra.mrb[0].mxu0 %v1008
      %v1109 = vpop.f32.mrb[0].mxu0
      %v1110 = vadd.f32 %v815, %v1109
      %v1111 = vpop.f32.mrb[0].mxu0
      %v1112 = vpop.f32.mrb[0].mxu0
      %v1113 = vadd.f32 %v818, %v1112
      %v1114 = vpop.f32.mrb[0].mxu0
      %1115 = vmatprep.mubr.bf16.mxu0 0
      %1116 = vmatmul.mubr.bf16.gmra.mrb[0].mxu0 %v1011
      %v1117 = vpop.f32.mrb[0].mxu0
      %v1118 = vadd.f32 %v823, %v1117
      %v1119 = vpop.f32.mrb[0].mxu0
      %v1120 = vpop.f32.mrb[0].mxu0
      %v1121 = vadd.f32 %v826, %v1120
      %v1122 = vpop.f32.mrb[0].mxu0
      %1123 = vmatprep.mubr.bf16.mxu0 0
      %1124 = vmatmul.mubr.bf16.gmra.mrb[0].mxu0 %v1014
      %v1125 = vpop.f32.mrb[0].mxu0
      %v1126 = vadd.f32 %v831, %v1125
      %v1127 = vpop.f32.mrb[0].mxu0
      %v1128 = vpop.f32.mrb[0].mxu0
      %v1129 = vadd.f32 %v834, %v1128
      %v1130 = vpop.f32.mrb[0].mxu0
      %1131 = vmatprep.mubr.bf16.mxu0 0
      %1132 = vmatmul.mubr.bf16.gmra.mrb[0].mxu0 %v1017
      %v1133 = vpop.f32.mrb[0].mxu0
      %v1134 = vadd.f32 %v839, %v1133
      %v1135 = vpop.f32.mrb[0].mxu0
      %v1136 = vpop.f32.mrb[0].mxu0
      %v1137 = vadd.f32 %v842, %v1136
      %v1138 = vpop.f32.mrb[0].mxu0
      %1139 = vmatprep.mubr.bf16.mxu0 0
      %1140 = vmatmul.mubr.bf16.gmra.mrb[0].mxu0 %v1020
      %v1141 = vpop.f32.mrb[0].mxu0
      %v1142 = vadd.f32 %v847, %v1141
      %v1143 = vpop.f32.mrb[0].mxu0
      %v1144 = vpop.f32.mrb[0].mxu0
      %v1145 = vadd.f32 %v850, %v1144
      %v1146 = vpop.f32.mrb[0].mxu0
      %1147 = vmatprep.mubr.bf16.mxu0 0
      %1148 = vmatmul.mubr.bf16.gmra.mrb[0].mxu0 %v1023
      %v1149 = vpop.f32.mrb[0].mxu0
      %v1150 = vadd.f32 %v855, %v1149
      %v1151 = vpop.f32.mrb[0].mxu0
      %v1152 = vpop.f32.mrb[0].mxu0
      %v1153 = vadd.f32 %v858, %v1152
      %v1154 = vpop.f32.mrb[0].mxu0
      %1155 = vmatprep.mubr.bf16.mxu0 0
      %1156 = vmatmul.mubr.bf16.gmra.mrb[0].mxu0 %v1026
      %v1157 = vpop.f32.mrb[0].mxu0
      %v1158 = vadd.f32 %v863, %v1157
      %v1159 = vpop.f32.mrb[0].mxu0
      %v1160 = vpop.f32.mrb[0].mxu0
      %v1161 = vadd.f32 %v866, %v1160
      %v1162 = vpop.f32.mrb[0].mxu0
      %1163 = vmatprep.mubr.bf16.mxu0 0
      %1164 = vmatmul.mubr.bf16.gmra.mrb[0].mxu0 %v1029
      %v1165 = vpop.f32.mrb[0].mxu0
      %v1166 = vadd.f32 %v871, %v1165
      %v1167 = vpop.f32.mrb[0].mxu0
      %v1168 = vpop.f32.mrb[0].mxu0
      %v1169 = vadd.f32 %v874, %v1168
      %v1170 = vpop.f32.mrb[0].mxu0
      %1171 = vmatprep.mubr.bf16.mxu0 0
      %1172 = vmatmul.mubr.bf16.gmra.mrb[0].mxu0 %v1032
      %v1173 = vpop.f32.mrb[0].mxu0
      %v1174 = vadd.f32 %v879, %v1173
      %v1175 = vpop.f32.mrb[0].mxu0
      %v1176 = vpop.f32.mrb[0].mxu0
      %v1177 = vadd.f32 %v882, %v1176
      %v1178 = vpop.f32.mrb[0].mxu0
      %1179 = vmatprep.mubr.bf16.mxu0 0
      %1180 = vmatmul.mubr.bf16.gmra.mrb[0].mxu0 %v1035
      %v1181 = vpop.f32.mrb[0].mxu0
      %v1182 = vadd.f32 %v887, %v1181
      %v1183 = vpop.f32.mrb[0].mxu0
      %v1184 = vpop.f32.mrb[0].mxu0
      %v1185 = vadd.f32 %v890, %v1184
      %v1186 = vpop.f32.mrb[0].mxu0
      %1187 = vmatprep.mubr.bf16.mxu0 0
      %1188 = vmatmul.mubr.bf16.gmra.mrb[0].mxu0 %v1038
      %v1189 = vpop.f32.mrb[0].mxu0
      %v1190 = vadd.f32 %v895, %v1189
      %v1191 = vpop.f32.mrb[0].mxu0
      %v1192 = vpop.f32.mrb[0].mxu0
      %v1193 = vadd.f32 %v898, %v1192
      %v1194 = vpop.f32.mrb[0].mxu0
      %1195 = vmatprep.mubr.bf16.mxu0 0
      %1196 = vmatmul.mubr.bf16.gmra.mrb[0].mxu0 %v1041
      %v1197 = vpop.f32.mrb[0].mxu0
      %v1198 = vadd.f32 %v903, %v1197
      %v1199 = vpop.f32.mrb[0].mxu0
      %v1200 = vpop.f32.mrb[0].mxu0
      %v1201 = vadd.f32 %v906, %v1200
      %v1202 = vpop.f32.mrb[0].mxu0
      %1203 = vdwg.mxu0
      %vm1220 = vcmask 1042432
      %vm1221 = vcmask 1046532
      %vm1222 = vmor %vm1220, %vm1221
      %v1223 = vrot.slane %v199, 5
      %v1224 = vrot.slane %v1223, 4
      %v1225 = vrot.slane %v200, 5
      %v1226 = vsel %vm1222, %v1224, %v1225
      %v1227 = vrot.slane %v1225, 4
      %v1228 = vrot.slane %v201, 5
      %v1229 = vsel %vm1222, %v1227, %v1228
      %v1230 = vrot.slane %v202, 5
      %v1231 = vrot.slane %v1230, 4
      %v1232 = vrot.slane %v203, 5
      %v1233 = vsel %vm1222, %v1231, %v1232
      %v1234 = vrot.slane %v1232, 4
      %v1235 = vrot.slane %v204, 5
      %v1236 = vsel %vm1222, %v1234, %v1235
      %v1237 = vrot.slane %v205, 5
      %v1238 = vrot.slane %v1237, 4
      %v1239 = vrot.slane %v206, 5
      %v1240 = vsel %vm1222, %v1238, %v1239
      %v1241 = vrot.slane %v1239, 4
      %v1242 = vrot.slane %v207, 5
      %v1243 = vsel %vm1222, %v1241, %v1242
      %v1244 = vrot.slane %v208, 5
      %v1245 = vrot.slane %v1244, 4
      %v1246 = vrot.slane %v209, 5
      %v1247 = vsel %vm1222, %v1245, %v1246
      %v1248 = vrot.slane %v1246, 4
      %v1249 = vrot.slane %v210, 5
      %v1250 = vsel %vm1222, %v1248, %v1249
      %v1251 = vrot.slane %v211, 5
      %v1252 = vrot.slane %v1251, 4
      %v1253 = vrot.slane %v212, 5
      %v1254 = vsel %vm1222, %v1252, %v1253
      %v1255 = vrot.slane %v1253, 4
      %v1256 = vrot.slane %v213, 5
      %v1257 = vsel %vm1222, %v1255, %v1256
      %v1258 = vrot.slane %v214, 5
      %v1259 = vrot.slane %v1258, 4
      %v1260 = vrot.slane %v215, 5
      %v1261 = vsel %vm1222, %v1259, %v1260
      %v1262 = vrot.slane %v1260, 4
      %v1263 = vrot.slane %v216, 5
      %v1264 = vsel %vm1222, %v1262, %v1263
      %v1265 = vrot.slane %v217, 5
      %v1266 = vrot.slane %v1265, 4
      %v1267 = vrot.slane %v218, 5
      %v1268 = vsel %vm1222, %v1266, %v1267
      %v1269 = vrot.slane %v1267, 4
      %v1270 = vrot.slane %v219, 5
      %v1271 = vsel %vm1222, %v1269, %v1270
      %v1272 = vrot.slane %v220, 5
      %v1273 = vrot.slane %v1272, 4
      %v1274 = vrot.slane %v221, 5
      %v1275 = vsel %vm1222, %v1273, %v1274
      %v1276 = vrot.slane %v1274, 4
      %v1277 = vrot.slane %v222, 5
      %v1278 = vsel %vm1222, %v1276, %v1277
      %v1279 = vrot.slane %v223, 5
      %v1280 = vrot.slane %v1279, 4
      %v1281 = vrot.slane %v224, 5
      %v1282 = vsel %vm1222, %v1280, %v1281
      %v1283 = vrot.slane %v1281, 4
      %v1284 = vrot.slane %v225, 5
      %v1285 = vsel %vm1222, %v1283, %v1284
      %v1286 = vrot.slane %v226, 5
      %v1287 = vrot.slane %v1286, 4
      %v1288 = vrot.slane %v227, 5
      %v1289 = vsel %vm1222, %v1287, %v1288
      %v1290 = vrot.slane %v1288, 4
      %v1291 = vrot.slane %v228, 5
      %v1292 = vsel %vm1222, %v1290, %v1291
      %v1293 = vrot.slane %v229, 5
      %v1294 = vrot.slane %v1293, 4
      %v1295 = vrot.slane %v230, 5
      %v1296 = vsel %vm1222, %v1294, %v1295
      %v1297 = vrot.slane %v1295, 4
      %v1298 = vrot.slane %v231, 5
      %v1299 = vsel %vm1222, %v1297, %v1298
      %v1300 = vrot.slane %v232, 5
      %v1301 = vrot.slane %v1300, 4
      %v1302 = vrot.slane %v233, 5
      %v1303 = vsel %vm1222, %v1301, %v1302
      %v1304 = vrot.slane %v1302, 4
      %v1305 = vrot.slane %v234, 5
      %v1306 = vsel %vm1222, %v1304, %v1305
      %v1307 = vrot.slane %v235, 5
      %v1308 = vrot.slane %v1307, 4
      %v1309 = vrot.slane %v236, 5
      %v1310 = vsel %vm1222, %v1308, %v1309
      %v1311 = vrot.slane %v1309, 4
      %v1312 = vrot.slane %v237, 5
      %v1313 = vsel %vm1222, %v1311, %v1312
      %v1314 = vrot.slane %v238, 5
      %v1315 = vrot.slane %v1314, 4
      %v1316 = vrot.slane %v239, 5
      %v1317 = vsel %vm1222, %v1315, %v1316
      %v1318 = vrot.slane %v1316, 4
      %v1319 = vrot.slane %v240, 5
      %v1320 = vsel %vm1222, %v1318, %v1319
      %v1321 = vrot.slane %v241, 5
      %v1322 = vrot.slane %v1321, 4
      %v1323 = vrot.slane %v242, 5
      %v1324 = vsel %vm1222, %v1322, %v1323
      %v1325 = vrot.slane %v1323, 4
      %v1326 = vrot.slane %v243, 5
      %v1327 = vsel %vm1222, %v1325, %v1326
      %v1328 = vrot.slane %v244, 5
      %v1329 = vrot.slane %v1328, 4
      %v1330 = vrot.slane %v245, 5
      %v1331 = vsel %vm1222, %v1329, %v1330
      %v1332 = vrot.slane %v1330, 4
      %v1333 = vrot.slane %v246, 5
      %v1334 = vsel %vm1222, %v1332, %v1333
      %s1335 = scalar_lea.vmem %s1, 16
      %v1336 = vld [vmem:[%s1335] sm:$0xf]
      %v1337 = vld [vmem:[%s1335 + $0x4] sm:$0xf]
      %v1338 = vunpack.c.l.b16 %v1226
      %v1339 = vunpack.c.l.b16 %v1229
      %v1340 = vunpack.c.l.b16 %v1233
      %v1341 = vunpack.c.l.b16 %v1236
      %v1342 = vunpack.c.l.b16 %v1240
      %v1343 = vunpack.c.l.b16 %v1243
      %v1344 = vunpack.c.l.b16 %v1247
      %v1345 = vunpack.c.l.b16 %v1250
      %v1346 = vunpack.c.l.b16 %v1254
      %v1347 = vunpack.c.l.b16 %v1257
      %v1348 = vunpack.c.l.b16 %v1261
      %v1349 = vunpack.c.l.b16 %v1264
      %v1350 = vunpack.c.l.b16 %v1268
      %v1351 = vunpack.c.l.b16 %v1271
      %v1352 = vunpack.c.l.b16 %v1275
      %v1353 = vunpack.c.l.b16 %v1278
      %v1354 = vunpack.c.l.b16 %v1282
      %v1355 = vunpack.c.l.b16 %v1285
      %v1356 = vunpack.c.l.b16 %v1289
      %v1357 = vunpack.c.l.b16 %v1292
      %v1358 = vunpack.c.l.b16 %v1296
      %v1359 = vunpack.c.l.b16 %v1299
      %v1360 = vunpack.c.l.b16 %v1303
      %v1361 = vunpack.c.l.b16 %v1306
      %v1362 = vunpack.c.l.b16 %v1310
      %v1363 = vunpack.c.l.b16 %v1313
      %v1364 = vunpack.c.l.b16 %v1317
      %v1365 = vunpack.c.l.b16 %v1320
      %v1366 = vunpack.c.l.b16 %v1324
      %v1367 = vunpack.c.l.b16 %v1327
      %v1368 = vunpack.c.l.b16 %v1331
      %v1369 = vunpack.c.l.b16 %v1334
      %v1370 = vpack.c.b16 %v1339, %v1338
      %v1371 = vpack.c.b16 %v1341, %v1340
      %v1372 = vpack.c.b16 %v1343, %v1342
      %v1373 = vpack.c.b16 %v1345, %v1344
      %v1374 = vpack.c.b16 %v1347, %v1346
      %v1375 = vpack.c.b16 %v1349, %v1348
      %v1376 = vpack.c.b16 %v1351, %v1350
      %v1377 = vpack.c.b16 %v1353, %v1352
      %v1378 = vpack.c.b16 %v1355, %v1354
      %v1379 = vpack.c.b16 %v1357, %v1356
      %v1380 = vpack.c.b16 %v1359, %v1358
      %v1381 = vpack.c.b16 %v1361, %v1360
      %v1382 = vpack.c.b16 %v1363, %v1362
      %v1383 = vpack.c.b16 %v1365, %v1364
      %v1384 = vpack.c.b16 %v1367, %v1366
      %v1385 = vpack.c.b16 %v1369, %v1368
      %v1388 = vunpack.c.l.b16 %v1336
      %v1389 = vunpack.c.l.b16 %v1337
      %v1390 = vpack.c.b16 %v1389, %v1388
      %v1393 = vsel %vm699, %v1370, 0
      %v1396 = vsel %vm699, %v1371, 0
      %v1399 = vsel %vm699, %v1372, 0
      %v1402 = vsel %vm699, %v1373, 0
      %v1405 = vsel %vm699, %v1374, 0
      %v1408 = vsel %vm699, %v1375, 0
      %v1411 = vsel %vm699, %v1376, 0
      %v1414 = vsel %vm699, %v1377, 0
      %v1417 = vsel %vm699, %v1378, 0
      %v1420 = vsel %vm699, %v1379, 0
      %v1423 = vsel %vm699, %v1380, 0
      %v1426 = vsel %vm699, %v1381, 0
      %v1429 = vsel %vm699, %v1382, 0
      %v1432 = vsel %vm699, %v1383, 0
      %v1435 = vsel %vm699, %v1384, 0
      %v1438 = vsel %vm699, %v1385, 0
      %1440 = vmatprep.subr.bf16.mxu0 0
      %1441 = vmatpush1.bf16.msra.mxu0 %v1390
      %1442 = vmatprep.subr.bf16.mxu0 0
      %1443 = vmatpush1.bf16.msra.mxu0 0
      %1444 = vmatprep.subr.bf16.mxu0 0
      %1445 = vmatpush1.bf16.msra.mxu0 0
      %1446 = vmatprep.subr.bf16.mxu0 0
      %1447 = vmatpush1.bf16.msra.mxu0 0
      %1448 = vmatprep.subr.bf16.mxu0 0
      %1449 = vmatpush1.bf16.msra.mxu0 0
      %1450 = vmatprep.subr.bf16.mxu0 0
      %1451 = vmatpush1.bf16.msra.mxu0 0
      %1452 = vmatprep.subr.bf16.mxu0 0
      %1453 = vmatpush1.bf16.msra.mxu0 0
      %1454 = vmatprep.subr.bf16.mxu0 0
      %1455 = vmatpush1.bf16.msra.mxu0 0
      %1456 = vmatprep.subr.bf16.mxu0 0
      %1457 = vmatpush1.bf16.msra.mxu0 0
      %1458 = vmatprep.subr.bf16.mxu0 0
      %1459 = vmatpush1.bf16.msra.mxu0 0
      %1460 = vmatprep.subr.bf16.mxu0 0
      %1461 = vmatpush1.bf16.msra.mxu0 0
      %1462 = vmatprep.subr.bf16.mxu0 0
      %1463 = vmatpush1.bf16.msra.mxu0 0
      %1464 = vmatprep.subr.bf16.mxu0 0
      %1465 = vmatpush1.bf16.msra.mxu0 0
      %1466 = vmatprep.subr.bf16.mxu0 0
      %1467 = vmatpush1.bf16.msra.mxu0 0
      %1468 = vmatprep.subr.bf16.mxu0 0
      %1469 = vmatpush1.bf16.msra.mxu0 0
      %1470 = vmatprep.subr.bf16.mxu0 0
      %1471 = vmatpush1.bf16.msra.mxu0 0
      %1472 = vmatprep.mubr.bf16.mxu0 0
      %1473 = vmatmul.mubr.bf16.gmra.mrb[0].mxu0 %v1393
      %v1474 = vpop.f32.mrb[0].mxu0
      %v1475 = vadd.f32 0.0, %v1474
      %v1476 = vpop.f32.mrb[0].mxu0
      %v1477 = vpop.f32.mrb[0].mxu0
      %v1478 = vadd.f32 0.0, %v1477
      %v1479 = vpop.f32.mrb[0].mxu0
      %1480 = vmatprep.mubr.bf16.mxu0 0
      %1481 = vmatmul.mubr.bf16.gmra.mrb[0].mxu0 %v1396
      %v1482 = vpop.f32.mrb[0].mxu0
      %v1483 = vadd.f32 0.0, %v1482
      %v1484 = vpop.f32.mrb[0].mxu0
      %v1485 = vpop.f32.mrb[0].mxu0
      %v1486 = vadd.f32 0.0, %v1485
      %v1487 = vpop.f32.mrb[0].mxu0
      %1488 = vmatprep.mubr.bf16.mxu0 0
      %1489 = vmatmul.mubr.bf16.gmra.mrb[0].mxu0 %v1399
      %v1490 = vpop.f32.mrb[0].mxu0
      %v1491 = vadd.f32 0.0, %v1490
      %v1492 = vpop.f32.mrb[0].mxu0
      %v1493 = vpop.f32.mrb[0].mxu0
      %v1494 = vadd.f32 0.0, %v1493
      %v1495 = vpop.f32.mrb[0].mxu0
      %1496 = vmatprep.mubr.bf16.mxu0 0
      %1497 = vmatmul.mubr.bf16.gmra.mrb[0].mxu0 %v1402
      %v1498 = vpop.f32.mrb[0].mxu0
      %v1499 = vadd.f32 0.0, %v1498
      %v1500 = vpop.f32.mrb[0].mxu0
      %v1501 = vpop.f32.mrb[0].mxu0
      %v1502 = vadd.f32 0.0, %v1501
      %v1503 = vpop.f32.mrb[0].mxu0
      %1504 = vmatprep.mubr.bf16.mxu0 0
      %1505 = vmatmul.mubr.bf16.gmra.mrb[0].mxu0 %v1405
      %v1506 = vpop.f32.mrb[0].mxu0
      %v1507 = vadd.f32 0.0, %v1506
      %v1508 = vpop.f32.mrb[0].mxu0
      %v1509 = vpop.f32.mrb[0].mxu0
      %v1510 = vadd.f32 0.0, %v1509
      %v1511 = vpop.f32.mrb[0].mxu0
      %1512 = vmatprep.mubr.bf16.mxu0 0
      %1513 = vmatmul.mubr.bf16.gmra.mrb[0].mxu0 %v1408
      %v1514 = vpop.f32.mrb[0].mxu0
      %v1515 = vadd.f32 0.0, %v1514
      %v1516 = vpop.f32.mrb[0].mxu0
      %v1517 = vpop.f32.mrb[0].mxu0
      %v1518 = vadd.f32 0.0, %v1517
      %v1519 = vpop.f32.mrb[0].mxu0
      %1520 = vmatprep.mubr.bf16.mxu0 0
      %1521 = vmatmul.mubr.bf16.gmra.mrb[0].mxu0 %v1411
      %v1522 = vpop.f32.mrb[0].mxu0
      %v1523 = vadd.f32 0.0, %v1522
      %v1524 = vpop.f32.mrb[0].mxu0
      %v1525 = vpop.f32.mrb[0].mxu0
      %v1526 = vadd.f32 0.0, %v1525
      %v1527 = vpop.f32.mrb[0].mxu0
      %1528 = vmatprep.mubr.bf16.mxu0 0
      %1529 = vmatmul.mubr.bf16.gmra.mrb[0].mxu0 %v1414
      %v1530 = vpop.f32.mrb[0].mxu0
      %v1531 = vadd.f32 0.0, %v1530
      %v1532 = vpop.f32.mrb[0].mxu0
      %v1533 = vpop.f32.mrb[0].mxu0
      %v1534 = vadd.f32 0.0, %v1533
      %v1535 = vpop.f32.mrb[0].mxu0
      %1536 = vmatprep.mubr.bf16.mxu0 0
      %1537 = vmatmul.mubr.bf16.gmra.mrb[0].mxu0 %v1417
      %v1538 = vpop.f32.mrb[0].mxu0
      %v1539 = vadd.f32 0.0, %v1538
      %v1540 = vpop.f32.mrb[0].mxu0
      %v1541 = vpop.f32.mrb[0].mxu0
      %v1542 = vadd.f32 0.0, %v1541
      %v1543 = vpop.f32.mrb[0].mxu0
      %1544 = vmatprep.mubr.bf16.mxu0 0
      %1545 = vmatmul.mubr.bf16.gmra.mrb[0].mxu0 %v1420
      %v1546 = vpop.f32.mrb[0].mxu0
      %v1547 = vadd.f32 0.0, %v1546
      %v1548 = vpop.f32.mrb[0].mxu0
      %v1549 = vpop.f32.mrb[0].mxu0
      %v1550 = vadd.f32 0.0, %v1549
      %v1551 = vpop.f32.mrb[0].mxu0
      %1552 = vmatprep.mubr.bf16.mxu0 0
      %1553 = vmatmul.mubr.bf16.gmra.mrb[0].mxu0 %v1423
      %v1554 = vpop.f32.mrb[0].mxu0
      %v1555 = vadd.f32 0.0, %v1554
      %v1556 = vpop.f32.mrb[0].mxu0
      %v1557 = vpop.f32.mrb[0].mxu0
      %v1558 = vadd.f32 0.0, %v1557
      %v1559 = vpop.f32.mrb[0].mxu0
      %1560 = vmatprep.mubr.bf16.mxu0 0
      %1561 = vmatmul.mubr.bf16.gmra.mrb[0].mxu0 %v1426
      %v1562 = vpop.f32.mrb[0].mxu0
      %v1563 = vadd.f32 0.0, %v1562
      %v1564 = vpop.f32.mrb[0].mxu0
      %v1565 = vpop.f32.mrb[0].mxu0
      %v1566 = vadd.f32 0.0, %v1565
      %v1567 = vpop.f32.mrb[0].mxu0
      %1568 = vmatprep.mubr.bf16.mxu0 0
      %1569 = vmatmul.mubr.bf16.gmra.mrb[0].mxu0 %v1429
      %v1570 = vpop.f32.mrb[0].mxu0
      %v1571 = vadd.f32 0.0, %v1570
      %v1572 = vpop.f32.mrb[0].mxu0
      %v1573 = vpop.f32.mrb[0].mxu0
      %v1574 = vadd.f32 0.0, %v1573
      %v1575 = vpop.f32.mrb[0].mxu0
      %1576 = vmatprep.mubr.bf16.mxu0 0
      %1577 = vmatmul.mubr.bf16.gmra.mrb[0].mxu0 %v1432
      %v1578 = vpop.f32.mrb[0].mxu0
      %v1579 = vadd.f32 0.0, %v1578
      %v1580 = vpop.f32.mrb[0].mxu0
      %v1581 = vpop.f32.mrb[0].mxu0
      %v1582 = vadd.f32 0.0, %v1581
      %v1583 = vpop.f32.mrb[0].mxu0
      %1584 = vmatprep.mubr.bf16.mxu0 0
      %1585 = vmatmul.mubr.bf16.gmra.mrb[0].mxu0 %v1435
      %v1586 = vpop.f32.mrb[0].mxu0
      %v1587 = vadd.f32 0.0, %v1586
      %v1588 = vpop.f32.mrb[0].mxu0
      %v1589 = vpop.f32.mrb[0].mxu0
      %v1590 = vadd.f32 0.0, %v1589
      %v1591 = vpop.f32.mrb[0].mxu0
      %1592 = vmatprep.mubr.bf16.mxu0 0
      %1593 = vmatmul.mubr.bf16.gmra.mrb[0].mxu0 %v1438
      %v1594 = vpop.f32.mrb[0].mxu0
      %v1595 = vadd.f32 0.0, %v1594
      %v1596 = vpop.f32.mrb[0].mxu0
      %v1597 = vpop.f32.mrb[0].mxu0
      %v1598 = vadd.f32 0.0, %v1597
      %v1599 = vpop.f32.mrb[0].mxu0
      %1600 = vdwg.mxu0
      %v1601 = vadd.f32 %v1078, %v1475
      %v1602 = vadd.f32 %v1081, %v1478
      %v1603 = vadd.f32 %v1086, %v1483
      %v1604 = vadd.f32 %v1089, %v1486
      %v1605 = vadd.f32 %v1094, %v1491
      %v1606 = vadd.f32 %v1097, %v1494
      %v1607 = vadd.f32 %v1102, %v1499
      %v1608 = vadd.f32 %v1105, %v1502
      %v1609 = vadd.f32 %v1110, %v1507
      %v1610 = vadd.f32 %v1113, %v1510
      %v1611 = vadd.f32 %v1118, %v1515
      %v1612 = vadd.f32 %v1121, %v1518
      %v1613 = vadd.f32 %v1126, %v1523
      %v1614 = vadd.f32 %v1129, %v1526
      %v1615 = vadd.f32 %v1134, %v1531
      %v1616 = vadd.f32 %v1137, %v1534
      %v1617 = vadd.f32 %v1142, %v1539
      %v1618 = vadd.f32 %v1145, %v1542
      %v1619 = vadd.f32 %v1150, %v1547
      %v1620 = vadd.f32 %v1153, %v1550
      %v1621 = vadd.f32 %v1158, %v1555
      %v1622 = vadd.f32 %v1161, %v1558
      %v1623 = vadd.f32 %v1166, %v1563
      %v1624 = vadd.f32 %v1169, %v1566
      %v1625 = vadd.f32 %v1174, %v1571
      %v1626 = vadd.f32 %v1177, %v1574
      %v1627 = vadd.f32 %v1182, %v1579
      %v1628 = vadd.f32 %v1185, %v1582
      %v1629 = vadd.f32 %v1190, %v1587
      %v1630 = vadd.f32 %v1193, %v1590
      %v1631 = vadd.f32 %v1198, %v1595
      %v1632 = vadd.f32 %v1201, %v1598
      %s1633 = scalar_lea.vmem %s1, 24
      %v1634 = vld [vmem:[%s1633] sm:$0xf]
      %v1635 = vld [vmem:[%s1633 + $0x4] sm:$0xf]
      %v1638 = vunpack.c.l.b16 %v247
      %v1639 = vunpack.c.l.b16 %v248
      %v1640 = vpack.c.b16 %v1639, %v1638
      %v1643 = vunpack.c.l.b16 %v1634
      %v1644 = vunpack.c.l.b16 %v1635
      %v1645 = vpack.c.b16 %v1644, %v1643
      %v1648 = vsel %vm699, %v1640, 0
      %1650 = vmatprep.subr.bf16.mxu0 0
      %1651 = vmatpush1.bf16.msra.mxu0 %v1645
      %1652 = vmatprep.subr.bf16.mxu0 0
      %1653 = vmatpush1.bf16.msra.mxu0 0
      %1654 = vmatprep.subr.bf16.mxu0 0
      %1655 = vmatpush1.bf16.msra.mxu0 0
      %1656 = vmatprep.subr.bf16.mxu0 0
      %1657 = vmatpush1.bf16.msra.mxu0 0
      %1658 = vmatprep.subr.bf16.mxu0 0
      %1659 = vmatpush1.bf16.msra.mxu0 0
      %1660 = vmatprep.subr.bf16.mxu0 0
      %1661 = vmatpush1.bf16.msra.mxu0 0
      %1662 = vmatprep.subr.bf16.mxu0 0
      %1663 = vmatpush1.bf16.msra.mxu0 0
      %1664 = vmatprep.subr.bf16.mxu0 0
      %1665 = vmatpush1.bf16.msra.mxu0 0
      %1666 = vmatprep.subr.bf16.mxu0 0
      %1667 = vmatpush1.bf16.msra.mxu0 0
      %1668 = vmatprep.subr.bf16.mxu0 0
      %1669 = vmatpush1.bf16.msra.mxu0 0
      %1670 = vmatprep.subr.bf16.mxu0 0
      %1671 = vmatpush1.bf16.msra.mxu0 0
      %1672 = vmatprep.subr.bf16.mxu0 0
      %1673 = vmatpush1.bf16.msra.mxu0 0
      %1674 = vmatprep.subr.bf16.mxu0 0
      %1675 = vmatpush1.bf16.msra.mxu0 0
      %1676 = vmatprep.subr.bf16.mxu0 0
      %1677 = vmatpush1.bf16.msra.mxu0 0
      %1678 = vmatprep.subr.bf16.mxu0 0
      %1679 = vmatpush1.bf16.msra.mxu0 0
      %1680 = vmatprep.subr.bf16.mxu0 0
      %1681 = vmatpush1.bf16.msra.mxu0 0
      %1682 = vmatprep.mubr.bf16.mxu0 0
      %1683 = vmatmul.mubr.bf16.gmra.mrb[0].mxu0 %v999
      %v1684 = vpop.f32.mrb[0].mxu0
      %v1685 = vadd.f32 0.0, %v1684
      %v1686 = vpop.f32.mrb[0].mxu0
      %v1687 = vpop.f32.mrb[0].mxu0
      %v1688 = vadd.f32 0.0, %v1687
      %v1689 = vpop.f32.mrb[0].mxu0
      %1690 = vmatprep.mubr.bf16.mxu0 0
      %1691 = vmatmul.mubr.bf16.gmra.mrb[0].mxu0 %v1002
      %v1692 = vpop.f32.mrb[0].mxu0
      %v1693 = vadd.f32 0.0, %v1692
      %v1694 = vpop.f32.mrb[0].mxu0
      %v1695 = vpop.f32.mrb[0].mxu0
      %v1696 = vadd.f32 0.0, %v1695
      %v1697 = vpop.f32.mrb[0].mxu0
      %1698 = vmatprep.mubr.bf16.mxu0 0
      %1699 = vmatmul.mubr.bf16.gmra.mrb[0].mxu0 %v1005
      %v1700 = vpop.f32.mrb[0].mxu0
      %v1701 = vadd.f32 0.0, %v1700
      %v1702 = vpop.f32.mrb[0].mxu0
      %v1703 = vpop.f32.mrb[0].mxu0
      %v1704 = vadd.f32 0.0, %v1703
      %v1705 = vpop.f32.mrb[0].mxu0
      %1706 = vmatprep.mubr.bf16.mxu0 0
      %1707 = vmatmul.mubr.bf16.gmra.mrb[0].mxu0 %v1008
      %v1708 = vpop.f32.mrb[0].mxu0
      %v1709 = vadd.f32 0.0, %v1708
      %v1710 = vpop.f32.mrb[0].mxu0
      %v1711 = vpop.f32.mrb[0].mxu0
      %v1712 = vadd.f32 0.0, %v1711
      %v1713 = vpop.f32.mrb[0].mxu0
      %1714 = vmatprep.mubr.bf16.mxu0 0
      %1715 = vmatmul.mubr.bf16.gmra.mrb[0].mxu0 %v1011
      %v1716 = vpop.f32.mrb[0].mxu0
      %v1717 = vadd.f32 0.0, %v1716
      %v1718 = vpop.f32.mrb[0].mxu0
      %v1719 = vpop.f32.mrb[0].mxu0
      %v1720 = vadd.f32 0.0, %v1719
      %v1721 = vpop.f32.mrb[0].mxu0
      %1722 = vmatprep.mubr.bf16.mxu0 0
      %1723 = vmatmul.mubr.bf16.gmra.mrb[0].mxu0 %v1014
      %v1724 = vpop.f32.mrb[0].mxu0
      %v1725 = vadd.f32 0.0, %v1724
      %v1726 = vpop.f32.mrb[0].mxu0
      %v1727 = vpop.f32.mrb[0].mxu0
      %v1728 = vadd.f32 0.0, %v1727
      %v1729 = vpop.f32.mrb[0].mxu0
      %1730 = vmatprep.mubr.bf16.mxu0 0
      %1731 = vmatmul.mubr.bf16.gmra.mrb[0].mxu0 %v1017
      %v1732 = vpop.f32.mrb[0].mxu0
      %v1733 = vadd.f32 0.0, %v1732
      %v1734 = vpop.f32.mrb[0].mxu0
      %v1735 = vpop.f32.mrb[0].mxu0
      %v1736 = vadd.f32 0.0, %v1735
      %v1737 = vpop.f32.mrb[0].mxu0
      %1738 = vmatprep.mubr.bf16.mxu0 0
      %1739 = vmatmul.mubr.bf16.gmra.mrb[0].mxu0 %v1020
      %v1740 = vpop.f32.mrb[0].mxu0
      %v1741 = vadd.f32 0.0, %v1740
      %v1742 = vpop.f32.mrb[0].mxu0
      %v1743 = vpop.f32.mrb[0].mxu0
      %v1744 = vadd.f32 0.0, %v1743
      %v1745 = vpop.f32.mrb[0].mxu0
      %1746 = vmatprep.mubr.bf16.mxu0 0
      %1747 = vmatmul.mubr.bf16.gmra.mrb[0].mxu0 %v1023
      %v1748 = vpop.f32.mrb[0].mxu0
      %v1749 = vadd.f32 0.0, %v1748
      %v1750 = vpop.f32.mrb[0].mxu0
      %v1751 = vpop.f32.mrb[0].mxu0
      %v1752 = vadd.f32 0.0, %v1751
      %v1753 = vpop.f32.mrb[0].mxu0
      %1754 = vmatprep.mubr.bf16.mxu0 0
      %1755 = vmatmul.mubr.bf16.gmra.mrb[0].mxu0 %v1026
      %v1756 = vpop.f32.mrb[0].mxu0
      %v1757 = vadd.f32 0.0, %v1756
      %v1758 = vpop.f32.mrb[0].mxu0
      %v1759 = vpop.f32.mrb[0].mxu0
      %v1760 = vadd.f32 0.0, %v1759
      %v1761 = vpop.f32.mrb[0].mxu0
      %1762 = vmatprep.mubr.bf16.mxu0 0
      %1763 = vmatmul.mubr.bf16.gmra.mrb[0].mxu0 %v1029
      %v1764 = vpop.f32.mrb[0].mxu0
      %v1765 = vadd.f32 0.0, %v1764
      %v1766 = vpop.f32.mrb[0].mxu0
      %v1767 = vpop.f32.mrb[0].mxu0
      %v1768 = vadd.f32 0.0, %v1767
      %v1769 = vpop.f32.mrb[0].mxu0
      %1770 = vmatprep.mubr.bf16.mxu0 0
      %1771 = vmatmul.mubr.bf16.gmra.mrb[0].mxu0 %v1032
      %v1772 = vpop.f32.mrb[0].mxu0
      %v1773 = vadd.f32 0.0, %v1772
      %v1774 = vpop.f32.mrb[0].mxu0
      %v1775 = vpop.f32.mrb[0].mxu0
      %v1776 = vadd.f32 0.0, %v1775
      %v1777 = vpop.f32.mrb[0].mxu0
      %1778 = vmatprep.mubr.bf16.mxu0 0
      %1779 = vmatmul.mubr.bf16.gmra.mrb[0].mxu0 %v1035
      %v1780 = vpop.f32.mrb[0].mxu0
      %v1781 = vadd.f32 0.0, %v1780
      %v1782 = vpop.f32.mrb[0].mxu0
      %v1783 = vpop.f32.mrb[0].mxu0
      %v1784 = vadd.f32 0.0, %v1783
      %v1785 = vpop.f32.mrb[0].mxu0
      %1786 = vmatprep.mubr.bf16.mxu0 0
      %1787 = vmatmul.mubr.bf16.gmra.mrb[0].mxu0 %v1038
      %v1788 = vpop.f32.mrb[0].mxu0
      %v1789 = vadd.f32 0.0, %v1788
      %v1790 = vpop.f32.mrb[0].mxu0
      %v1791 = vpop.f32.mrb[0].mxu0
      %v1792 = vadd.f32 0.0, %v1791
      %v1793 = vpop.f32.mrb[0].mxu0
      %1794 = vmatprep.mubr.bf16.mxu0 0
      %1795 = vmatmul.mubr.bf16.gmra.mrb[0].mxu0 %v1041
      %v1796 = vpop.f32.mrb[0].mxu0
      %v1797 = vadd.f32 0.0, %v1796
      %v1798 = vpop.f32.mrb[0].mxu0
      %v1799 = vpop.f32.mrb[0].mxu0
      %v1800 = vadd.f32 0.0, %v1799
      %v1801 = vpop.f32.mrb[0].mxu0
      %1802 = vmatprep.mubr.bf16.mxu0 0
      %1803 = vmatmul.mubr.bf16.gmra.mrb[0].mxu0 %v1648
      %v1804 = vpop.f32.mrb[0].mxu0
      %v1805 = vadd.f32 0.0, %v1804
      %v1806 = vpop.f32.mrb[0].mxu0
      %v1807 = vpop.f32.mrb[0].mxu0
      %v1808 = vadd.f32 0.0, %v1807
      %v1809 = vpop.f32.mrb[0].mxu0
      %1810 = vdwg.mxu0
      %v1811 = vadd.f32 %v1601, %v1685
      %v1812 = vadd.f32 %v1602, %v1688
      %v1813 = vadd.f32 %v1603, %v1693
      %v1814 = vadd.f32 %v1604, %v1696
      %v1815 = vadd.f32 %v1605, %v1701
      %v1816 = vadd.f32 %v1606, %v1704
      %v1817 = vadd.f32 %v1607, %v1709
      %v1818 = vadd.f32 %v1608, %v1712
      %v1819 = vadd.f32 %v1609, %v1717
      %v1820 = vadd.f32 %v1610, %v1720
      %v1821 = vadd.f32 %v1611, %v1725
      %v1822 = vadd.f32 %v1612, %v1728
      %v1823 = vadd.f32 %v1613, %v1733
      %v1824 = vadd.f32 %v1614, %v1736
      %v1825 = vadd.f32 %v1615, %v1741
      %v1826 = vadd.f32 %v1616, %v1744
      %v1827 = vadd.f32 %v1617, %v1749
      %v1828 = vadd.f32 %v1618, %v1752
      %v1829 = vadd.f32 %v1619, %v1757
      %v1830 = vadd.f32 %v1620, %v1760
      %v1831 = vadd.f32 %v1621, %v1765
      %v1832 = vadd.f32 %v1622, %v1768
      %v1833 = vadd.f32 %v1623, %v1773
      %v1834 = vadd.f32 %v1624, %v1776
      %v1835 = vadd.f32 %v1625, %v1781
      %v1836 = vadd.f32 %v1626, %v1784
      %v1837 = vadd.f32 %v1627, %v1789
      %v1838 = vadd.f32 %v1628, %v1792
      %v1839 = vadd.f32 %v1629, %v1797
      %v1840 = vadd.f32 %v1630, %v1800
      %v1841 = vadd.f32 %v1631, %v1805
      %v1842 = vadd.f32 %v1632, %v1808
      %v1844 = vshrl.u32 %v247, 16
      %v1846 = vrot.slane %v1844, 4
      %v1847 = vshll.u32 %v247, 16
      %v1849 = vrot.slane %v1847, 5
      %v1850 = vor.u32 %v1846, %v1849
      %v1851 = vrot.slane %v1850, 4
      %v1853 = vshll.u32 %v248, 16
      %v1855 = vrot.slane %v1853, 5
      %v1856 = vsel %vm257, %v1851, %v1855
      %v1857 = vshrl.u32 %v248, 16
      %v1859 = vrot.slane %v1857, 4
      %v1860 = vor.u32 %v1859, %v1855
      %v1861 = vrot.slane %v1860, 4
      %v1863 = vshll.u32 %v249, 16
      %v1865 = vrot.slane %v1863, 5
      %v1866 = vsel %vm257, %v1861, %v1865
      %s1867 = scalar_lea.vmem %s1, 32
      %v1868 = vld [vmem:[%s1867] sm:$0xf]
      %v1869 = vld [vmem:[%s1867 + $0x4] sm:$0xf]
      %v1870 = vunpack.c.l.b16 %v1856
      %v1871 = vunpack.c.l.b16 %v1866
      %v1872 = vpack.c.b16 %v1871, %v1870
      %v1875 = vunpack.c.l.b16 %v1868
      %v1876 = vunpack.c.l.b16 %v1869
      %v1877 = vpack.c.b16 %v1876, %v1875
      %v1880 = vsel %vm699, %v1872, 0
      %1882 = vmatprep.subr.bf16.mxu0 0
      %1883 = vmatpush1.bf16.msra.mxu0 %v1877
      %1884 = vmatprep.subr.bf16.mxu0 0
      %1885 = vmatpush1.bf16.msra.mxu0 0
      %1886 = vmatprep.subr.bf16.mxu0 0
      %1887 = vmatpush1.bf16.msra.mxu0 0
      %1888 = vmatprep.subr.bf16.mxu0 0
      %1889 = vmatpush1.bf16.msra.mxu0 0
      %1890 = vmatprep.subr.bf16.mxu0 0
      %1891 = vmatpush1.bf16.msra.mxu0 0
      %1892 = vmatprep.subr.bf16.mxu0 0
      %1893 = vmatpush1.bf16.msra.mxu0 0
      %1894 = vmatprep.subr.bf16.mxu0 0
      %1895 = vmatpush1.bf16.msra.mxu0 0
      %1896 = vmatprep.subr.bf16.mxu0 0
      %1897 = vmatpush1.bf16.msra.mxu0 0
      %1898 = vmatprep.subr.bf16.mxu0 0
      %1899 = vmatpush1.bf16.msra.mxu0 0
      %1900 = vmatprep.subr.bf16.mxu0 0
      %1901 = vmatpush1.bf16.msra.mxu0 0
      %1902 = vmatprep.subr.bf16.mxu0 0
      %1903 = vmatpush1.bf16.msra.mxu0 0
      %1904 = vmatprep.subr.bf16.mxu0 0
      %1905 = vmatpush1.bf16.msra.mxu0 0
      %1906 = vmatprep.subr.bf16.mxu0 0
      %1907 = vmatpush1.bf16.msra.mxu0 0
      %1908 = vmatprep.subr.bf16.mxu0 0
      %1909 = vmatpush1.bf16.msra.mxu0 0
      %1910 = vmatprep.subr.bf16.mxu0 0
      %1911 = vmatpush1.bf16.msra.mxu0 0
      %1912 = vmatprep.subr.bf16.mxu0 0
      %1913 = vmatpush1.bf16.msra.mxu0 0
      %1914 = vmatprep.mubr.bf16.mxu0 0
      %1915 = vmatmul.mubr.bf16.gmra.mrb[0].mxu0 %v704
      %v1916 = vpop.f32.mrb[0].mxu0
      %v1917 = vadd.f32 0.0, %v1916
      %v1918 = vpop.f32.mrb[0].mxu0
      %v1919 = vpop.f32.mrb[0].mxu0
      %v1920 = vadd.f32 0.0, %v1919
      %v1921 = vpop.f32.mrb[0].mxu0
      %1922 = vmatprep.mubr.bf16.mxu0 0
      %1923 = vmatmul.mubr.bf16.gmra.mrb[0].mxu0 %v707
      %v1924 = vpop.f32.mrb[0].mxu0
      %v1925 = vadd.f32 0.0, %v1924
      %v1926 = vpop.f32.mrb[0].mxu0
      %v1927 = vpop.f32.mrb[0].mxu0
      %v1928 = vadd.f32 0.0, %v1927
      %v1929 = vpop.f32.mrb[0].mxu0
      %1930 = vmatprep.mubr.bf16.mxu0 0
      %1931 = vmatmul.mubr.bf16.gmra.mrb[0].mxu0 %v710
      %v1932 = vpop.f32.mrb[0].mxu0
      %v1933 = vadd.f32 0.0, %v1932
      %v1934 = vpop.f32.mrb[0].mxu0
      %v1935 = vpop.f32.mrb[0].mxu0
      %v1936 = vadd.f32 0.0, %v1935
      %v1937 = vpop.f32.mrb[0].mxu0
      %1938 = vmatprep.mubr.bf16.mxu0 0
      %1939 = vmatmul.mubr.bf16.gmra.mrb[0].mxu0 %v713
      %v1940 = vpop.f32.mrb[0].mxu0
      %v1941 = vadd.f32 0.0, %v1940
      %v1942 = vpop.f32.mrb[0].mxu0
      %v1943 = vpop.f32.mrb[0].mxu0
      %v1944 = vadd.f32 0.0, %v1943
      %v1945 = vpop.f32.mrb[0].mxu0
      %1946 = vmatprep.mubr.bf16.mxu0 0
      %1947 = vmatmul.mubr.bf16.gmra.mrb[0].mxu0 %v716
      %v1948 = vpop.f32.mrb[0].mxu0
      %v1949 = vadd.f32 0.0, %v1948
      %v1950 = vpop.f32.mrb[0].mxu0
      %v1951 = vpop.f32.mrb[0].mxu0
      %v1952 = vadd.f32 0.0, %v1951
      %v1953 = vpop.f32.mrb[0].mxu0
      %1954 = vmatprep.mubr.bf16.mxu0 0
      %1955 = vmatmul.mubr.bf16.gmra.mrb[0].mxu0 %v719
      %v1956 = vpop.f32.mrb[0].mxu0
      %v1957 = vadd.f32 0.0, %v1956
      %v1958 = vpop.f32.mrb[0].mxu0
      %v1959 = vpop.f32.mrb[0].mxu0
      %v1960 = vadd.f32 0.0, %v1959
      %v1961 = vpop.f32.mrb[0].mxu0
      %1962 = vmatprep.mubr.bf16.mxu0 0
      %1963 = vmatmul.mubr.bf16.gmra.mrb[0].mxu0 %v722
      %v1964 = vpop.f32.mrb[0].mxu0
      %v1965 = vadd.f32 0.0, %v1964
      %v1966 = vpop.f32.mrb[0].mxu0
      %v1967 = vpop.f32.mrb[0].mxu0
      %v1968 = vadd.f32 0.0, %v1967
      %v1969 = vpop.f32.mrb[0].mxu0
      %1970 = vmatprep.mubr.bf16.mxu0 0
      %1971 = vmatmul.mubr.bf16.gmra.mrb[0].mxu0 %v725
      %v1972 = vpop.f32.mrb[0].mxu0
      %v1973 = vadd.f32 0.0, %v1972
      %v1974 = vpop.f32.mrb[0].mxu0
      %v1975 = vpop.f32.mrb[0].mxu0
      %v1976 = vadd.f32 0.0, %v1975
      %v1977 = vpop.f32.mrb[0].mxu0
      %1978 = vmatprep.mubr.bf16.mxu0 0
      %1979 = vmatmul.mubr.bf16.gmra.mrb[0].mxu0 %v728
      %v1980 = vpop.f32.mrb[0].mxu0
      %v1981 = vadd.f32 0.0, %v1980
      %v1982 = vpop.f32.mrb[0].mxu0
      %v1983 = vpop.f32.mrb[0].mxu0
      %v1984 = vadd.f32 0.0, %v1983
      %v1985 = vpop.f32.mrb[0].mxu0
      %1986 = vmatprep.mubr.bf16.mxu0 0
      %1987 = vmatmul.mubr.bf16.gmra.mrb[0].mxu0 %v731
      %v1988 = vpop.f32.mrb[0].mxu0
      %v1989 = vadd.f32 0.0, %v1988
      %v1990 = vpop.f32.mrb[0].mxu0
      %v1991 = vpop.f32.mrb[0].mxu0
      %v1992 = vadd.f32 0.0, %v1991
      %v1993 = vpop.f32.mrb[0].mxu0
      %1994 = vmatprep.mubr.bf16.mxu0 0
      %1995 = vmatmul.mubr.bf16.gmra.mrb[0].mxu0 %v734
      %v1996 = vpop.f32.mrb[0].mxu0
      %v1997 = vadd.f32 0.0, %v1996
      %v1998 = vpop.f32.mrb[0].mxu0
      %v1999 = vpop.f32.mrb[0].mxu0
      %v2000 = vadd.f32 0.0, %v1999
      %v2001 = vpop.f32.mrb[0].mxu0
      %2002 = vmatprep.mubr.bf16.mxu0 0
      %2003 = vmatmul.mubr.bf16.gmra.mrb[0].mxu0 %v737
      %v2004 = vpop.f32.mrb[0].mxu0
      %v2005 = vadd.f32 0.0, %v2004
      %v2006 = vpop.f32.mrb[0].mxu0
      %v2007 = vpop.f32.mrb[0].mxu0
      %v2008 = vadd.f32 0.0, %v2007
      %v2009 = vpop.f32.mrb[0].mxu0
      %2010 = vmatprep.mubr.bf16.mxu0 0
      %2011 = vmatmul.mubr.bf16.gmra.mrb[0].mxu0 %v740
      %v2012 = vpop.f32.mrb[0].mxu0
      %v2013 = vadd.f32 0.0, %v2012
      %v2014 = vpop.f32.mrb[0].mxu0
      %v2015 = vpop.f32.mrb[0].mxu0
      %v2016 = vadd.f32 0.0, %v2015
      %v2017 = vpop.f32.mrb[0].mxu0
      %2018 = vmatprep.mubr.bf16.mxu0 0
      %2019 = vmatmul.mubr.bf16.gmra.mrb[0].mxu0 %v743
      %v2020 = vpop.f32.mrb[0].mxu0
      %v2021 = vadd.f32 0.0, %v2020
      %v2022 = vpop.f32.mrb[0].mxu0
      %v2023 = vpop.f32.mrb[0].mxu0
      %v2024 = vadd.f32 0.0, %v2023
      %v2025 = vpop.f32.mrb[0].mxu0
      %2026 = vmatprep.mubr.bf16.mxu0 0
      %2027 = vmatmul.mubr.bf16.gmra.mrb[0].mxu0 %v746
      %v2028 = vpop.f32.mrb[0].mxu0
      %v2029 = vadd.f32 0.0, %v2028
      %v2030 = vpop.f32.mrb[0].mxu0
      %v2031 = vpop.f32.mrb[0].mxu0
      %v2032 = vadd.f32 0.0, %v2031
      %v2033 = vpop.f32.mrb[0].mxu0
      %2034 = vmatprep.mubr.bf16.mxu0 0
      %2035 = vmatmul.mubr.bf16.gmra.mrb[0].mxu0 %v1880
      %v2036 = vpop.f32.mrb[0].mxu0
      %v2037 = vadd.f32 0.0, %v2036
      %v2038 = vpop.f32.mrb[0].mxu0
      %v2039 = vpop.f32.mrb[0].mxu0
      %v2040 = vadd.f32 0.0, %v2039
      %v2041 = vpop.f32.mrb[0].mxu0
      %2042 = vdwg.mxu0
      %v2043 = vadd.f32 %v1811, %v1917
      %v2044 = vadd.f32 %v1812, %v1920
      %v2045 = vadd.f32 %v1813, %v1925
      %v2046 = vadd.f32 %v1814, %v1928
      %v2047 = vadd.f32 %v1815, %v1933
      %v2048 = vadd.f32 %v1816, %v1936
      %v2049 = vadd.f32 %v1817, %v1941
      %v2050 = vadd.f32 %v1818, %v1944
      %v2051 = vadd.f32 %v1819, %v1949
      %v2052 = vadd.f32 %v1820, %v1952
      %v2053 = vadd.f32 %v1821, %v1957
      %v2054 = vadd.f32 %v1822, %v1960
      %v2055 = vadd.f32 %v1823, %v1965
      %v2056 = vadd.f32 %v1824, %v1968
      %v2057 = vadd.f32 %v1825, %v1973
      %v2058 = vadd.f32 %v1826, %v1976
      %v2059 = vadd.f32 %v1827, %v1981
      %v2060 = vadd.f32 %v1828, %v1984
      %v2061 = vadd.f32 %v1829, %v1989
      %v2062 = vadd.f32 %v1830, %v1992
      %v2063 = vadd.f32 %v1831, %v1997
      %v2064 = vadd.f32 %v1832, %v2000
      %v2065 = vadd.f32 %v1833, %v2005
      %v2066 = vadd.f32 %v1834, %v2008
      %v2067 = vadd.f32 %v1835, %v2013
      %v2068 = vadd.f32 %v1836, %v2016
      %v2069 = vadd.f32 %v1837, %v2021
      %v2070 = vadd.f32 %v1838, %v2024
      %v2071 = vadd.f32 %v1839, %v2029
      %v2072 = vadd.f32 %v1840, %v2032
      %v2073 = vadd.f32 %v1841, %v2037
      %v2074 = vadd.f32 %v1842, %v2040
      %v2076 = vrot.slane %v247, 5
      %v2077 = vrot.slane %v2076, 4
      %v2078 = vrot.slane %v248, 5
      %v2079 = vsel %vm1222, %v2077, %v2078
      %v2080 = vrot.slane %v2078, 4
      %v2081 = vrot.slane %v249, 5
      %v2082 = vsel %vm1222, %v2080, %v2081
      %s2083 = scalar_lea.vmem %s1, 40
      %v2084 = vld [vmem:[%s2083] sm:$0xf]
      %v2085 = vld [vmem:[%s2083 + $0x4] sm:$0xf]
      %v2086 = vunpack.c.l.b16 %v2079
      %v2087 = vunpack.c.l.b16 %v2082
      %v2088 = vpack.c.b16 %v2087, %v2086
      %v2091 = vunpack.c.l.b16 %v2084
      %v2092 = vunpack.c.l.b16 %v2085
      %v2093 = vpack.c.b16 %v2092, %v2091
      %v2096 = vsel %vm699, %v2088, 0
      %2098 = vmatprep.subr.bf16.mxu0 0
      %2099 = vmatpush1.bf16.msra.mxu0 %v2093
      %2100 = vmatprep.subr.bf16.mxu0 0
      %2101 = vmatpush1.bf16.msra.mxu0 0
      %2102 = vmatprep.subr.bf16.mxu0 0
      %2103 = vmatpush1.bf16.msra.mxu0 0
      %2104 = vmatprep.subr.bf16.mxu0 0
      %2105 = vmatpush1.bf16.msra.mxu0 0
      %2106 = vmatprep.subr.bf16.mxu0 0
      %2107 = vmatpush1.bf16.msra.mxu0 0
      %2108 = vmatprep.subr.bf16.mxu0 0
      %2109 = vmatpush1.bf16.msra.mxu0 0
      %2110 = vmatprep.subr.bf16.mxu0 0
      %2111 = vmatpush1.bf16.msra.mxu0 0
      %2112 = vmatprep.subr.bf16.mxu0 0
      %2113 = vmatpush1.bf16.msra.mxu0 0
      %2114 = vmatprep.subr.bf16.mxu0 0
      %2115 = vmatpush1.bf16.msra.mxu0 0
      %2116 = vmatprep.subr.bf16.mxu0 0
      %2117 = vmatpush1.bf16.msra.mxu0 0
      %2118 = vmatprep.subr.bf16.mxu0 0
      %2119 = vmatpush1.bf16.msra.mxu0 0
      %2120 = vmatprep.subr.bf16.mxu0 0
      %2121 = vmatpush1.bf16.msra.mxu0 0
      %2122 = vmatprep.subr.bf16.mxu0 0
      %2123 = vmatpush1.bf16.msra.mxu0 0
      %2124 = vmatprep.subr.bf16.mxu0 0
      %2125 = vmatpush1.bf16.msra.mxu0 0
      %2126 = vmatprep.subr.bf16.mxu0 0
      %2127 = vmatpush1.bf16.msra.mxu0 0
      %2128 = vmatprep.subr.bf16.mxu0 0
      %2129 = vmatpush1.bf16.msra.mxu0 0
      %2130 = vmatprep.mubr.bf16.mxu0 0
      %2131 = vmatmul.mubr.bf16.gmra.mrb[0].mxu0 %v1396
      %v2132 = vpop.f32.mrb[0].mxu0
      %v2133 = vadd.f32 0.0, %v2132
      %v2134 = vpop.f32.mrb[0].mxu0
      %v2135 = vpop.f32.mrb[0].mxu0
      %v2136 = vadd.f32 0.0, %v2135
      %v2137 = vpop.f32.mrb[0].mxu0
      %2138 = vmatprep.mubr.bf16.mxu0 0
      %2139 = vmatmul.mubr.bf16.gmra.mrb[0].mxu0 %v1399
      %v2140 = vpop.f32.mrb[0].mxu0
      %v2141 = vadd.f32 0.0, %v2140
      %v2142 = vpop.f32.mrb[0].mxu0
      %v2143 = vpop.f32.mrb[0].mxu0
      %v2144 = vadd.f32 0.0, %v2143
      %v2145 = vpop.f32.mrb[0].mxu0
      %2146 = vmatprep.mubr.bf16.mxu0 0
      %2147 = vmatmul.mubr.bf16.gmra.mrb[0].mxu0 %v1402
      %v2148 = vpop.f32.mrb[0].mxu0
      %v2149 = vadd.f32 0.0, %v2148
      %v2150 = vpop.f32.mrb[0].mxu0
      %v2151 = vpop.f32.mrb[0].mxu0
      %v2152 = vadd.f32 0.0, %v2151
      %v2153 = vpop.f32.mrb[0].mxu0
      %2154 = vmatprep.mubr.bf16.mxu0 0
      %2155 = vmatmul.mubr.bf16.gmra.mrb[0].mxu0 %v1405
      %v2156 = vpop.f32.mrb[0].mxu0
      %v2157 = vadd.f32 0.0, %v2156
      %v2158 = vpop.f32.mrb[0].mxu0
      %v2159 = vpop.f32.mrb[0].mxu0
      %v2160 = vadd.f32 0.0, %v2159
      %v2161 = vpop.f32.mrb[0].mxu0
      %2162 = vmatprep.mubr.bf16.mxu0 0
      %2163 = vmatmul.mubr.bf16.gmra.mrb[0].mxu0 %v1408
      %v2164 = vpop.f32.mrb[0].mxu0
      %v2165 = vadd.f32 0.0, %v2164
      %v2166 = vpop.f32.mrb[0].mxu0
      %v2167 = vpop.f32.mrb[0].mxu0
      %v2168 = vadd.f32 0.0, %v2167
      %v2169 = vpop.f32.mrb[0].mxu0
      %2170 = vmatprep.mubr.bf16.mxu0 0
      %2171 = vmatmul.mubr.bf16.gmra.mrb[0].mxu0 %v1411
      %v2172 = vpop.f32.mrb[0].mxu0
      %v2173 = vadd.f32 0.0, %v2172
      %v2174 = vpop.f32.mrb[0].mxu0
      %v2175 = vpop.f32.mrb[0].mxu0
      %v2176 = vadd.f32 0.0, %v2175
      %v2177 = vpop.f32.mrb[0].mxu0
      %2178 = vmatprep.mubr.bf16.mxu0 0
      %2179 = vmatmul.mubr.bf16.gmra.mrb[0].mxu0 %v1414
      %v2180 = vpop.f32.mrb[0].mxu0
      %v2181 = vadd.f32 0.0, %v2180
      %v2182 = vpop.f32.mrb[0].mxu0
      %v2183 = vpop.f32.mrb[0].mxu0
      %v2184 = vadd.f32 0.0, %v2183
      %v2185 = vpop.f32.mrb[0].mxu0
      %2186 = vmatprep.mubr.bf16.mxu0 0
      %2187 = vmatmul.mubr.bf16.gmra.mrb[0].mxu0 %v1417
      %v2188 = vpop.f32.mrb[0].mxu0
      %v2189 = vadd.f32 0.0, %v2188
      %v2190 = vpop.f32.mrb[0].mxu0
      %v2191 = vpop.f32.mrb[0].mxu0
      %v2192 = vadd.f32 0.0, %v2191
      %v2193 = vpop.f32.mrb[0].mxu0
      %2194 = vmatprep.mubr.bf16.mxu0 0
      %2195 = vmatmul.mubr.bf16.gmra.mrb[0].mxu0 %v1420
      %v2196 = vpop.f32.mrb[0].mxu0
      %v2197 = vadd.f32 0.0, %v2196
      %v2198 = vpop.f32.mrb[0].mxu0
      %v2199 = vpop.f32.mrb[0].mxu0
      %v2200 = vadd.f32 0.0, %v2199
      %v2201 = vpop.f32.mrb[0].mxu0
      %2202 = vmatprep.mubr.bf16.mxu0 0
      %2203 = vmatmul.mubr.bf16.gmra.mrb[0].mxu0 %v1423
      %v2204 = vpop.f32.mrb[0].mxu0
      %v2205 = vadd.f32 0.0, %v2204
      %v2206 = vpop.f32.mrb[0].mxu0
      %v2207 = vpop.f32.mrb[0].mxu0
      %v2208 = vadd.f32 0.0, %v2207
      %v2209 = vpop.f32.mrb[0].mxu0
      %2210 = vmatprep.mubr.bf16.mxu0 0
      %2211 = vmatmul.mubr.bf16.gmra.mrb[0].mxu0 %v1426
      %v2212 = vpop.f32.mrb[0].mxu0
      %v2213 = vadd.f32 0.0, %v2212
      %v2214 = vpop.f32.mrb[0].mxu0
      %v2215 = vpop.f32.mrb[0].mxu0
      %v2216 = vadd.f32 0.0, %v2215
      %v2217 = vpop.f32.mrb[0].mxu0
      %2218 = vmatprep.mubr.bf16.mxu0 0
      %2219 = vmatmul.mubr.bf16.gmra.mrb[0].mxu0 %v1429
      %v2220 = vpop.f32.mrb[0].mxu0
      %v2221 = vadd.f32 0.0, %v2220
      %v2222 = vpop.f32.mrb[0].mxu0
      %v2223 = vpop.f32.mrb[0].mxu0
      %v2224 = vadd.f32 0.0, %v2223
      %v2225 = vpop.f32.mrb[0].mxu0
      %2226 = vmatprep.mubr.bf16.mxu0 0
      %2227 = vmatmul.mubr.bf16.gmra.mrb[0].mxu0 %v1432
      %v2228 = vpop.f32.mrb[0].mxu0
      %v2229 = vadd.f32 0.0, %v2228
      %v2230 = vpop.f32.mrb[0].mxu0
      %v2231 = vpop.f32.mrb[0].mxu0
      %v2232 = vadd.f32 0.0, %v2231
      %v2233 = vpop.f32.mrb[0].mxu0
      %2234 = vmatprep.mubr.bf16.mxu0 0
      %2235 = vmatmul.mubr.bf16.gmra.mrb[0].mxu0 %v1435
      %v2236 = vpop.f32.mrb[0].mxu0
      %v2237 = vadd.f32 0.0, %v2236
      %v2238 = vpop.f32.mrb[0].mxu0
      %v2239 = vpop.f32.mrb[0].mxu0
      %v2240 = vadd.f32 0.0, %v2239
      %v2241 = vpop.f32.mrb[0].mxu0
      %2242 = vmatprep.mubr.bf16.mxu0 0
      %2243 = vmatmul.mubr.bf16.gmra.mrb[0].mxu0 %v1438
      %v2244 = vpop.f32.mrb[0].mxu0
      %v2245 = vadd.f32 0.0, %v2244
      %v2246 = vpop.f32.mrb[0].mxu0
      %v2247 = vpop.f32.mrb[0].mxu0
      %v2248 = vadd.f32 0.0, %v2247
      %v2249 = vpop.f32.mrb[0].mxu0
      %2250 = vmatprep.mubr.bf16.mxu0 0
      %2251 = vmatmul.mubr.bf16.gmra.mrb[0].mxu0 %v2096
      %v2252 = vpop.f32.mrb[0].mxu0
      %v2253 = vadd.f32 0.0, %v2252
      %v2254 = vpop.f32.mrb[0].mxu0
      %v2255 = vpop.f32.mrb[0].mxu0
      %v2256 = vadd.f32 0.0, %v2255
      %v2257 = vpop.f32.mrb[0].mxu0
      %2258 = vdwg.mxu0
      %v2259 = vadd.f32 %v2043, %v2133
      %v2260 = vadd.f32 %v2044, %v2136
      %v2261 = vadd.f32 %v2045, %v2141
      %v2262 = vadd.f32 %v2046, %v2144
      %v2263 = vadd.f32 %v2047, %v2149
      %v2264 = vadd.f32 %v2048, %v2152
      %v2265 = vadd.f32 %v2049, %v2157
      %v2266 = vadd.f32 %v2050, %v2160
      %v2267 = vadd.f32 %v2051, %v2165
      %v2268 = vadd.f32 %v2052, %v2168
      %v2269 = vadd.f32 %v2053, %v2173
      %v2270 = vadd.f32 %v2054, %v2176
      %v2271 = vadd.f32 %v2055, %v2181
      %v2272 = vadd.f32 %v2056, %v2184
      %v2273 = vadd.f32 %v2057, %v2189
      %v2274 = vadd.f32 %v2058, %v2192
      %v2275 = vadd.f32 %v2059, %v2197
      %v2276 = vadd.f32 %v2060, %v2200
      %v2277 = vadd.f32 %v2061, %v2205
      %v2278 = vadd.f32 %v2062, %v2208
      %v2279 = vadd.f32 %v2063, %v2213
      %v2280 = vadd.f32 %v2064, %v2216
      %v2281 = vadd.f32 %v2065, %v2221
      %v2282 = vadd.f32 %v2066, %v2224
      %v2283 = vadd.f32 %v2067, %v2229
      %v2284 = vadd.f32 %v2068, %v2232
      %v2285 = vadd.f32 %v2069, %v2237
      %v2286 = vadd.f32 %v2070, %v2240
      %v2287 = vadd.f32 %v2071, %v2245
      %v2288 = vadd.f32 %v2072, %v2248
      %v2289 = vadd.f32 %v2073, %v2253
      %v2290 = vadd.f32 %v2074, %v2256
      %s2291 = scalar_lea.vmem %s1, 48
      %v2292 = vld [vmem:[%s2291] sm:$0xf]
      %v2293 = vld [vmem:[%s2291 + $0x4] sm:$0xf]
      %v2296 = vunpack.c.l.b16 %v250
      %v2297 = vunpack.c.l.b16 %v251
      %v2298 = vpack.c.b16 %v2297, %v2296
      %v2301 = vunpack.c.l.b16 %v2292
      %v2302 = vunpack.c.l.b16 %v2293
      %v2303 = vpack.c.b16 %v2302, %v2301
      %v2306 = vsel %vm699, %v2298, 0
      %2308 = vmatprep.subr.bf16.mxu0 0
      %2309 = vmatpush1.bf16.msra.mxu0 %v2303
      %2310 = vmatprep.subr.bf16.mxu0 0
      %2311 = vmatpush1.bf16.msra.mxu0 0
      %2312 = vmatprep.subr.bf16.mxu0 0
      %2313 = vmatpush1.bf16.msra.mxu0 0
      %2314 = vmatprep.subr.bf16.mxu0 0
      %2315 = vmatpush1.bf16.msra.mxu0 0
      %2316 = vmatprep.subr.bf16.mxu0 0
      %2317 = vmatpush1.bf16.msra.mxu0 0
      %2318 = vmatprep.subr.bf16.mxu0 0
      %2319 = vmatpush1.bf16.msra.mxu0 0
      %2320 = vmatprep.subr.bf16.mxu0 0
      %2321 = vmatpush1.bf16.msra.mxu0 0
      %2322 = vmatprep.subr.bf16.mxu0 0
      %2323 = vmatpush1.bf16.msra.mxu0 0
      %2324 = vmatprep.subr.bf16.mxu0 0
      %2325 = vmatpush1.bf16.msra.mxu0 0
      %2326 = vmatprep.subr.bf16.mxu0 0
      %2327 = vmatpush1.bf16.msra.mxu0 0
      %2328 = vmatprep.subr.bf16.mxu0 0
      %2329 = vmatpush1.bf16.msra.mxu0 0
      %2330 = vmatprep.subr.bf16.mxu0 0
      %2331 = vmatpush1.bf16.msra.mxu0 0
      %2332 = vmatprep.subr.bf16.mxu0 0
      %2333 = vmatpush1.bf16.msra.mxu0 0
      %2334 = vmatprep.subr.bf16.mxu0 0
      %2335 = vmatpush1.bf16.msra.mxu0 0
      %2336 = vmatprep.subr.bf16.mxu0 0
      %2337 = vmatpush1.bf16.msra.mxu0 0
      %2338 = vmatprep.subr.bf16.mxu0 0
      %2339 = vmatpush1.bf16.msra.mxu0 0
      %2340 = vmatprep.mubr.bf16.mxu0 0
      %2341 = vmatmul.mubr.bf16.gmra.mrb[0].mxu0 %v1002
      %v2342 = vpop.f32.mrb[0].mxu0
      %v2343 = vadd.f32 0.0, %v2342
      %v2344 = vpop.f32.mrb[0].mxu0
      %v2345 = vpop.f32.mrb[0].mxu0
      %v2346 = vadd.f32 0.0, %v2345
      %v2347 = vpop.f32.mrb[0].mxu0
      %2348 = vmatprep.mubr.bf16.mxu0 0
      %2349 = vmatmul.mubr.bf16.gmra.mrb[0].mxu0 %v1005
      %v2350 = vpop.f32.mrb[0].mxu0
      %v2351 = vadd.f32 0.0, %v2350
      %v2352 = vpop.f32.mrb[0].mxu0
      %v2353 = vpop.f32.mrb[0].mxu0
      %v2354 = vadd.f32 0.0, %v2353
      %v2355 = vpop.f32.mrb[0].mxu0
      %2356 = vmatprep.mubr.bf16.mxu0 0
      %2357 = vmatmul.mubr.bf16.gmra.mrb[0].mxu0 %v1008
      %v2358 = vpop.f32.mrb[0].mxu0
      %v2359 = vadd.f32 0.0, %v2358
      %v2360 = vpop.f32.mrb[0].mxu0
      %v2361 = vpop.f32.mrb[0].mxu0
      %v2362 = vadd.f32 0.0, %v2361
      %v2363 = vpop.f32.mrb[0].mxu0
      %2364 = vmatprep.mubr.bf16.mxu0 0
      %2365 = vmatmul.mubr.bf16.gmra.mrb[0].mxu0 %v1011
      %v2366 = vpop.f32.mrb[0].mxu0
      %v2367 = vadd.f32 0.0, %v2366
      %v2368 = vpop.f32.mrb[0].mxu0
      %v2369 = vpop.f32.mrb[0].mxu0
      %v2370 = vadd.f32 0.0, %v2369
      %v2371 = vpop.f32.mrb[0].mxu0
      %2372 = vmatprep.mubr.bf16.mxu0 0
      %2373 = vmatmul.mubr.bf16.gmra.mrb[0].mxu0 %v1014
      %v2374 = vpop.f32.mrb[0].mxu0
      %v2375 = vadd.f32 0.0, %v2374
      %v2376 = vpop.f32.mrb[0].mxu0
      %v2377 = vpop.f32.mrb[0].mxu0
      %v2378 = vadd.f32 0.0, %v2377
      %v2379 = vpop.f32.mrb[0].mxu0
      %2380 = vmatprep.mubr.bf16.mxu0 0
      %2381 = vmatmul.mubr.bf16.gmra.mrb[0].mxu0 %v1017
      %v2382 = vpop.f32.mrb[0].mxu0
      %v2383 = vadd.f32 0.0, %v2382
      %v2384 = vpop.f32.mrb[0].mxu0
      %v2385 = vpop.f32.mrb[0].mxu0
      %v2386 = vadd.f32 0.0, %v2385
      %v2387 = vpop.f32.mrb[0].mxu0
      %2388 = vmatprep.mubr.bf16.mxu0 0
      %2389 = vmatmul.mubr.bf16.gmra.mrb[0].mxu0 %v1020
      %v2390 = vpop.f32.mrb[0].mxu0
      %v2391 = vadd.f32 0.0, %v2390
      %v2392 = vpop.f32.mrb[0].mxu0
      %v2393 = vpop.f32.mrb[0].mxu0
      %v2394 = vadd.f32 0.0, %v2393
      %v2395 = vpop.f32.mrb[0].mxu0
      %2396 = vmatprep.mubr.bf16.mxu0 0
      %2397 = vmatmul.mubr.bf16.gmra.mrb[0].mxu0 %v1023
      %v2398 = vpop.f32.mrb[0].mxu0
      %v2399 = vadd.f32 0.0, %v2398
      %v2400 = vpop.f32.mrb[0].mxu0
      %v2401 = vpop.f32.mrb[0].mxu0
      %v2402 = vadd.f32 0.0, %v2401
      %v2403 = vpop.f32.mrb[0].mxu0
      %2404 = vmatprep.mubr.bf16.mxu0 0
      %2405 = vmatmul.mubr.bf16.gmra.mrb[0].mxu0 %v1026
      %v2406 = vpop.f32.mrb[0].mxu0
      %v2407 = vadd.f32 0.0, %v2406
      %v2408 = vpop.f32.mrb[0].mxu0
      %v2409 = vpop.f32.mrb[0].mxu0
      %v2410 = vadd.f32 0.0, %v2409
      %v2411 = vpop.f32.mrb[0].mxu0
      %2412 = vmatprep.mubr.bf16.mxu0 0
      %2413 = vmatmul.mubr.bf16.gmra.mrb[0].mxu0 %v1029
      %v2414 = vpop.f32.mrb[0].mxu0
      %v2415 = vadd.f32 0.0, %v2414
      %v2416 = vpop.f32.mrb[0].mxu0
      %v2417 = vpop.f32.mrb[0].mxu0
      %v2418 = vadd.f32 0.0, %v2417
      %v2419 = vpop.f32.mrb[0].mxu0
      %2420 = vmatprep.mubr.bf16.mxu0 0
      %2421 = vmatmul.mubr.bf16.gmra.mrb[0].mxu0 %v1032
      %v2422 = vpop.f32.mrb[0].mxu0
      %v2423 = vadd.f32 0.0, %v2422
      %v2424 = vpop.f32.mrb[0].mxu0
      %v2425 = vpop.f32.mrb[0].mxu0
      %v2426 = vadd.f32 0.0, %v2425
      %v2427 = vpop.f32.mrb[0].mxu0
      %2428 = vmatprep.mubr.bf16.mxu0 0
      %2429 = vmatmul.mubr.bf16.gmra.mrb[0].mxu0 %v1035
      %v2430 = vpop.f32.mrb[0].mxu0
      %v2431 = vadd.f32 0.0, %v2430
      %v2432 = vpop.f32.mrb[0].mxu0
      %v2433 = vpop.f32.mrb[0].mxu0
      %v2434 = vadd.f32 0.0, %v2433
      %v2435 = vpop.f32.mrb[0].mxu0
      %2436 = vmatprep.mubr.bf16.mxu0 0
      %2437 = vmatmul.mubr.bf16.gmra.mrb[0].mxu0 %v1038
      %v2438 = vpop.f32.mrb[0].mxu0
      %v2439 = vadd.f32 0.0, %v2438
      %v2440 = vpop.f32.mrb[0].mxu0
      %v2441 = vpop.f32.mrb[0].mxu0
      %v2442 = vadd.f32 0.0, %v2441
      %v2443 = vpop.f32.mrb[0].mxu0
      %2444 = vmatprep.mubr.bf16.mxu0 0
      %2445 = vmatmul.mubr.bf16.gmra.mrb[0].mxu0 %v1041
      %v2446 = vpop.f32.mrb[0].mxu0
      %v2447 = vadd.f32 0.0, %v2446
      %v2448 = vpop.f32.mrb[0].mxu0
      %v2449 = vpop.f32.mrb[0].mxu0
      %v2450 = vadd.f32 0.0, %v2449
      %v2451 = vpop.f32.mrb[0].mxu0
      %2452 = vmatprep.mubr.bf16.mxu0 0
      %2453 = vmatmul.mubr.bf16.gmra.mrb[0].mxu0 %v1648
      %v2454 = vpop.f32.mrb[0].mxu0
      %v2455 = vadd.f32 0.0, %v2454
      %v2456 = vpop.f32.mrb[0].mxu0
      %v2457 = vpop.f32.mrb[0].mxu0
      %v2458 = vadd.f32 0.0, %v2457
      %v2459 = vpop.f32.mrb[0].mxu0
      %2460 = vmatprep.mubr.bf16.mxu0 0
      %2461 = vmatmul.mubr.bf16.gmra.mrb[0].mxu0 %v2306
      %v2462 = vpop.f32.mrb[0].mxu0
      %v2463 = vadd.f32 0.0, %v2462
      %v2464 = vpop.f32.mrb[0].mxu0
      %v2465 = vpop.f32.mrb[0].mxu0
      %v2466 = vadd.f32 0.0, %v2465
      %v2467 = vpop.f32.mrb[0].mxu0
      %2468 = vdwg.mxu0
      %v2469 = vadd.f32 %v2259, %v2343
      %v2470 = vadd.f32 %v2260, %v2346
      %v2471 = vadd.f32 %v2261, %v2351
      %v2472 = vadd.f32 %v2262, %v2354
      %v2473 = vadd.f32 %v2263, %v2359
      %v2474 = vadd.f32 %v2264, %v2362
      %v2475 = vadd.f32 %v2265, %v2367
      %v2476 = vadd.f32 %v2266, %v2370
      %v2477 = vadd.f32 %v2267, %v2375
      %v2478 = vadd.f32 %v2268, %v2378
      %v2479 = vadd.f32 %v2269, %v2383
      %v2480 = vadd.f32 %v2270, %v2386
      %v2481 = vadd.f32 %v2271, %v2391
      %v2482 = vadd.f32 %v2272, %v2394
      %v2483 = vadd.f32 %v2273, %v2399
      %v2484 = vadd.f32 %v2274, %v2402
      %v2485 = vadd.f32 %v2275, %v2407
      %v2486 = vadd.f32 %v2276, %v2410
      %v2487 = vadd.f32 %v2277, %v2415
      %v2488 = vadd.f32 %v2278, %v2418
      %v2489 = vadd.f32 %v2279, %v2423
      %v2490 = vadd.f32 %v2280, %v2426
      %v2491 = vadd.f32 %v2281, %v2431
      %v2492 = vadd.f32 %v2282, %v2434
      %v2493 = vadd.f32 %v2283, %v2439
      %v2494 = vadd.f32 %v2284, %v2442
      %v2495 = vadd.f32 %v2285, %v2447
      %v2496 = vadd.f32 %v2286, %v2450
      %v2497 = vadd.f32 %v2287, %v2455
      %v2498 = vadd.f32 %v2288, %v2458
      %v2499 = vadd.f32 %v2289, %v2463
      %v2500 = vadd.f32 %v2290, %v2466
      %v2502 = vshrl.u32 %v250, 16
      %v2504 = vrot.slane %v2502, 4
      %v2505 = vshll.u32 %v250, 16
      %v2507 = vrot.slane %v2505, 5
      %v2508 = vor.u32 %v2504, %v2507
      %v2509 = vrot.slane %v2508, 4
      %v2511 = vshll.u32 %v251, 16
      %v2513 = vrot.slane %v2511, 5
      %v2514 = vsel %vm257, %v2509, %v2513
      %v2515 = vshrl.u32 %v251, 16
      %v2517 = vrot.slane %v2515, 4
      %v2518 = vor.u32 %v2517, %v2513
      %v2519 = vrot.slane %v2518, 4
      %v2521 = vshll.u32 %v252, 16
      %v2523 = vrot.slane %v2521, 5
      %v2524 = vsel %vm257, %v2519, %v2523
      %s2525 = scalar_lea.vmem %s1, 56
      %v2526 = vld [vmem:[%s2525] sm:$0xf]
      %v2527 = vld [vmem:[%s2525 + $0x4] sm:$0xf]
      %v2528 = vunpack.c.l.b16 %v2514
      %v2529 = vunpack.c.l.b16 %v2524
      %v2530 = vpack.c.b16 %v2529, %v2528
      %v2533 = vunpack.c.l.b16 %v2526
      %v2534 = vunpack.c.l.b16 %v2527
      %v2535 = vpack.c.b16 %v2534, %v2533
      %v2538 = vsel %vm699, %v2530, 0
      %2540 = vmatprep.subr.bf16.mxu0 0
      %2541 = vmatpush1.bf16.msra.mxu0 %v2535
      %2542 = vmatprep.subr.bf16.mxu0 0
      %2543 = vmatpush1.bf16.msra.mxu0 0
      %2544 = vmatprep.subr.bf16.mxu0 0
      %2545 = vmatpush1.bf16.msra.mxu0 0
      %2546 = vmatprep.subr.bf16.mxu0 0
      %2547 = vmatpush1.bf16.msra.mxu0 0
      %2548 = vmatprep.subr.bf16.mxu0 0
      %2549 = vmatpush1.bf16.msra.mxu0 0
      %2550 = vmatprep.subr.bf16.mxu0 0
      %2551 = vmatpush1.bf16.msra.mxu0 0
      %2552 = vmatprep.subr.bf16.mxu0 0
      %2553 = vmatpush1.bf16.msra.mxu0 0
      %2554 = vmatprep.subr.bf16.mxu0 0
      %2555 = vmatpush1.bf16.msra.mxu0 0
      %2556 = vmatprep.subr.bf16.mxu0 0
      %2557 = vmatpush1.bf16.msra.mxu0 0
      %2558 = vmatprep.subr.bf16.mxu0 0
      %2559 = vmatpush1.bf16.msra.mxu0 0
      %2560 = vmatprep.subr.bf16.mxu0 0
      %2561 = vmatpush1.bf16.msra.mxu0 0
      %2562 = vmatprep.subr.bf16.mxu0 0
      %2563 = vmatpush1.bf16.msra.mxu0 0
      %2564 = vmatprep.subr.bf16.mxu0 0
      %2565 = vmatpush1.bf16.msra.mxu0 0
      %2566 = vmatprep.subr.bf16.mxu0 0
      %2567 = vmatpush1.bf16.msra.mxu0 0
      %2568 = vmatprep.subr.bf16.mxu0 0
      %2569 = vmatpush1.bf16.msra.mxu0 0
      %2570 = vmatprep.subr.bf16.mxu0 0
      %2571 = vmatpush1.bf16.msra.mxu0 0
      %2572 = vmatprep.mubr.bf16.mxu0 0
      %2573 = vmatmul.mubr.bf16.gmra.mrb[0].mxu0 %v707
      %v2574 = vpop.f32.mrb[0].mxu0
      %v2575 = vadd.f32 0.0, %v2574
      %v2576 = vpop.f32.mrb[0].mxu0
      %v2577 = vpop.f32.mrb[0].mxu0
      %v2578 = vadd.f32 0.0, %v2577
      %v2579 = vpop.f32.mrb[0].mxu0
      %2580 = vmatprep.mubr.bf16.mxu0 0
      %2581 = vmatmul.mubr.bf16.gmra.mrb[0].mxu0 %v710
      %v2582 = vpop.f32.mrb[0].mxu0
      %v2583 = vadd.f32 0.0, %v2582
      %v2584 = vpop.f32.mrb[0].mxu0
      %v2585 = vpop.f32.mrb[0].mxu0
      %v2586 = vadd.f32 0.0, %v2585
      %v2587 = vpop.f32.mrb[0].mxu0
      %2588 = vmatprep.mubr.bf16.mxu0 0
      %2589 = vmatmul.mubr.bf16.gmra.mrb[0].mxu0 %v713
      %v2590 = vpop.f32.mrb[0].mxu0
      %v2591 = vadd.f32 0.0, %v2590
      %v2592 = vpop.f32.mrb[0].mxu0
      %v2593 = vpop.f32.mrb[0].mxu0
      %v2594 = vadd.f32 0.0, %v2593
      %v2595 = vpop.f32.mrb[0].mxu0
      %2596 = vmatprep.mubr.bf16.mxu0 0
      %2597 = vmatmul.mubr.bf16.gmra.mrb[0].mxu0 %v716
      %v2598 = vpop.f32.mrb[0].mxu0
      %v2599 = vadd.f32 0.0, %v2598
      %v2600 = vpop.f32.mrb[0].mxu0
      %v2601 = vpop.f32.mrb[0].mxu0
      %v2602 = vadd.f32 0.0, %v2601
      %v2603 = vpop.f32.mrb[0].mxu0
      %2604 = vmatprep.mubr.bf16.mxu0 0
      %2605 = vmatmul.mubr.bf16.gmra.mrb[0].mxu0 %v719
      %v2606 = vpop.f32.mrb[0].mxu0
      %v2607 = vadd.f32 0.0, %v2606
      %v2608 = vpop.f32.mrb[0].mxu0
      %v2609 = vpop.f32.mrb[0].mxu0
      %v2610 = vadd.f32 0.0, %v2609
      %v2611 = vpop.f32.mrb[0].mxu0
      %2612 = vmatprep.mubr.bf16.mxu0 0
      %2613 = vmatmul.mubr.bf16.gmra.mrb[0].mxu0 %v722
      %v2614 = vpop.f32.mrb[0].mxu0
      %v2615 = vadd.f32 0.0, %v2614
      %v2616 = vpop.f32.mrb[0].mxu0
      %v2617 = vpop.f32.mrb[0].mxu0
      %v2618 = vadd.f32 0.0, %v2617
      %v2619 = vpop.f32.mrb[0].mxu0
      %2620 = vmatprep.mubr.bf16.mxu0 0
      %2621 = vmatmul.mubr.bf16.gmra.mrb[0].mxu0 %v725
      %v2622 = vpop.f32.mrb[0].mxu0
      %v2623 = vadd.f32 0.0, %v2622
      %v2624 = vpop.f32.mrb[0].mxu0
      %v2625 = vpop.f32.mrb[0].mxu0
      %v2626 = vadd.f32 0.0, %v2625
      %v2627 = vpop.f32.mrb[0].mxu0
      %2628 = vmatprep.mubr.bf16.mxu0 0
      %2629 = vmatmul.mubr.bf16.gmra.mrb[0].mxu0 %v728
      %v2630 = vpop.f32.mrb[0].mxu0
      %v2631 = vadd.f32 0.0, %v2630
      %v2632 = vpop.f32.mrb[0].mxu0
      %v2633 = vpop.f32.mrb[0].mxu0
      %v2634 = vadd.f32 0.0, %v2633
      %v2635 = vpop.f32.mrb[0].mxu0
      %2636 = vmatprep.mubr.bf16.mxu0 0
      %2637 = vmatmul.mubr.bf16.gmra.mrb[0].mxu0 %v731
      %v2638 = vpop.f32.mrb[0].mxu0
      %v2639 = vadd.f32 0.0, %v2638
      %v2640 = vpop.f32.mrb[0].mxu0
      %v2641 = vpop.f32.mrb[0].mxu0
      %v2642 = vadd.f32 0.0, %v2641
      %v2643 = vpop.f32.mrb[0].mxu0
      %2644 = vmatprep.mubr.bf16.mxu0 0
      %2645 = vmatmul.mubr.bf16.gmra.mrb[0].mxu0 %v734
      %v2646 = vpop.f32.mrb[0].mxu0
      %v2647 = vadd.f32 0.0, %v2646
      %v2648 = vpop.f32.mrb[0].mxu0
      %v2649 = vpop.f32.mrb[0].mxu0
      %v2650 = vadd.f32 0.0, %v2649
      %v2651 = vpop.f32.mrb[0].mxu0
      %2652 = vmatprep.mubr.bf16.mxu0 0
      %2653 = vmatmul.mubr.bf16.gmra.mrb[0].mxu0 %v737
      %v2654 = vpop.f32.mrb[0].mxu0
      %v2655 = vadd.f32 0.0, %v2654
      %v2656 = vpop.f32.mrb[0].mxu0
      %v2657 = vpop.f32.mrb[0].mxu0
      %v2658 = vadd.f32 0.0, %v2657
      %v2659 = vpop.f32.mrb[0].mxu0
      %2660 = vmatprep.mubr.bf16.mxu0 0
      %2661 = vmatmul.mubr.bf16.gmra.mrb[0].mxu0 %v740
      %v2662 = vpop.f32.mrb[0].mxu0
      %v2663 = vadd.f32 0.0, %v2662
      %v2664 = vpop.f32.mrb[0].mxu0
      %v2665 = vpop.f32.mrb[0].mxu0
      %v2666 = vadd.f32 0.0, %v2665
      %v2667 = vpop.f32.mrb[0].mxu0
      %2668 = vmatprep.mubr.bf16.mxu0 0
      %2669 = vmatmul.mubr.bf16.gmra.mrb[0].mxu0 %v743
      %v2670 = vpop.f32.mrb[0].mxu0
      %v2671 = vadd.f32 0.0, %v2670
      %v2672 = vpop.f32.mrb[0].mxu0
      %v2673 = vpop.f32.mrb[0].mxu0
      %v2674 = vadd.f32 0.0, %v2673
      %v2675 = vpop.f32.mrb[0].mxu0
      %2676 = vmatprep.mubr.bf16.mxu0 0
      %2677 = vmatmul.mubr.bf16.gmra.mrb[0].mxu0 %v746
      %v2678 = vpop.f32.mrb[0].mxu0
      %v2679 = vadd.f32 0.0, %v2678
      %v2680 = vpop.f32.mrb[0].mxu0
      %v2681 = vpop.f32.mrb[0].mxu0
      %v2682 = vadd.f32 0.0, %v2681
      %v2683 = vpop.f32.mrb[0].mxu0
      %2684 = vmatprep.mubr.bf16.mxu0 0
      %2685 = vmatmul.mubr.bf16.gmra.mrb[0].mxu0 %v1880
      %v2686 = vpop.f32.mrb[0].mxu0
      %v2687 = vadd.f32 0.0, %v2686
      %v2688 = vpop.f32.mrb[0].mxu0
      %v2689 = vpop.f32.mrb[0].mxu0
      %v2690 = vadd.f32 0.0, %v2689
      %v2691 = vpop.f32.mrb[0].mxu0
      %2692 = vmatprep.mubr.bf16.mxu0 0
      %2693 = vmatmul.mubr.bf16.gmra.mrb[0].mxu0 %v2538
      %v2694 = vpop.f32.mrb[0].mxu0
      %v2695 = vadd.f32 0.0, %v2694
      %v2696 = vpop.f32.mrb[0].mxu0
      %v2697 = vpop.f32.mrb[0].mxu0
      %v2698 = vadd.f32 0.0, %v2697
      %v2699 = vpop.f32.mrb[0].mxu0
      %2700 = vdwg.mxu0
      %v2701 = vadd.f32 %v2469, %v2575
      %v2702 = vadd.f32 %v2470, %v2578
      %v2703 = vadd.f32 %v2471, %v2583
      %v2704 = vadd.f32 %v2472, %v2586
      %v2705 = vadd.f32 %v2473, %v2591
      %v2706 = vadd.f32 %v2474, %v2594
      %v2707 = vadd.f32 %v2475, %v2599
      %v2708 = vadd.f32 %v2476, %v2602
      %v2709 = vadd.f32 %v2477, %v2607
      %v2710 = vadd.f32 %v2478, %v2610
      %v2711 = vadd.f32 %v2479, %v2615
      %v2712 = vadd.f32 %v2480, %v2618
      %v2713 = vadd.f32 %v2481, %v2623
      %v2714 = vadd.f32 %v2482, %v2626
      %v2715 = vadd.f32 %v2483, %v2631
      %v2716 = vadd.f32 %v2484, %v2634
      %v2717 = vadd.f32 %v2485, %v2639
      %v2718 = vadd.f32 %v2486, %v2642
      %v2719 = vadd.f32 %v2487, %v2647
      %v2720 = vadd.f32 %v2488, %v2650
      %v2721 = vadd.f32 %v2489, %v2655
      %v2722 = vadd.f32 %v2490, %v2658
      %v2723 = vadd.f32 %v2491, %v2663
      %v2724 = vadd.f32 %v2492, %v2666
      %v2725 = vadd.f32 %v2493, %v2671
      %v2726 = vadd.f32 %v2494, %v2674
      %v2727 = vadd.f32 %v2495, %v2679
      %v2728 = vadd.f32 %v2496, %v2682
      %v2729 = vadd.f32 %v2497, %v2687
      %v2730 = vadd.f32 %v2498, %v2690
      %v2731 = vadd.f32 %v2499, %v2695
      %v2732 = vadd.f32 %v2500, %v2698
      %v2734 = vrot.slane %v250, 5
      %v2735 = vrot.slane %v2734, 4
      %v2736 = vrot.slane %v251, 5
      %v2737 = vsel %vm1222, %v2735, %v2736
      %v2738 = vrot.slane %v2736, 4
      %v2739 = vrot.slane %v252, 5
      %v2740 = vsel %vm1222, %v2738, %v2739
      %s2741 = scalar_lea.vmem %s1, 64
      %v2742 = vld [vmem:[%s2741] sm:$0xf]
      %v2743 = vld [vmem:[%s2741 + $0x4] sm:$0xf]
      %v2744 = vunpack.c.l.b16 %v2737
      %v2745 = vunpack.c.l.b16 %v2740
      %v2746 = vpack.c.b16 %v2745, %v2744
      %v2749 = vunpack.c.l.b16 %v2742
      %v2750 = vunpack.c.l.b16 %v2743
      %v2751 = vpack.c.b16 %v2750, %v2749
      %v2754 = vsel %vm699, %v2746, 0
      %2756 = vmatprep.subr.bf16.mxu0 0
      %2757 = vmatpush1.bf16.msra.mxu0 %v2751
      %2758 = vmatprep.subr.bf16.mxu0 0
      %2759 = vmatpush1.bf16.msra.mxu0 0
      %2760 = vmatprep.subr.bf16.mxu0 0
      %2761 = vmatpush1.bf16.msra.mxu0 0
      %2762 = vmatprep.subr.bf16.mxu0 0
      %2763 = vmatpush1.bf16.msra.mxu0 0
      %2764 = vmatprep.subr.bf16.mxu0 0
      %2765 = vmatpush1.bf16.msra.mxu0 0
      %2766 = vmatprep.subr.bf16.mxu0 0
      %2767 = vmatpush1.bf16.msra.mxu0 0
      %2768 = vmatprep.subr.bf16.mxu0 0
      %2769 = vmatpush1.bf16.msra.mxu0 0
      %2770 = vmatprep.subr.bf16.mxu0 0
      %2771 = vmatpush1.bf16.msra.mxu0 0
      %2772 = vmatprep.subr.bf16.mxu0 0
      %2773 = vmatpush1.bf16.msra.mxu0 0
      %2774 = vmatprep.subr.bf16.mxu0 0
      %2775 = vmatpush1.bf16.msra.mxu0 0
      %2776 = vmatprep.subr.bf16.mxu0 0
      %2777 = vmatpush1.bf16.msra.mxu0 0
      %2778 = vmatprep.subr.bf16.mxu0 0
      %2779 = vmatpush1.bf16.msra.mxu0 0
      %2780 = vmatprep.subr.bf16.mxu0 0
      %2781 = vmatpush1.bf16.msra.mxu0 0
      %2782 = vmatprep.subr.bf16.mxu0 0
      %2783 = vmatpush1.bf16.msra.mxu0 0
      %2784 = vmatprep.subr.bf16.mxu0 0
      %2785 = vmatpush1.bf16.msra.mxu0 0
      %2786 = vmatprep.subr.bf16.mxu0 0
      %2787 = vmatpush1.bf16.msra.mxu0 0
      %2788 = vmatprep.mubr.bf16.mxu0 0
      %2789 = vmatmul.mubr.bf16.gmra.mrb[0].mxu0 %v1399
      %v2790 = vpop.f32.mrb[0].mxu0
      %v2791 = vadd.f32 0.0, %v2790
      %v2792 = vpop.f32.mrb[0].mxu0
      %v2793 = vpop.f32.mrb[0].mxu0
      %v2794 = vadd.f32 0.0, %v2793
      %v2795 = vpop.f32.mrb[0].mxu0
      %2796 = vmatprep.mubr.bf16.mxu0 0
      %2797 = vmatmul.mubr.bf16.gmra.mrb[0].mxu0 %v1402
      %v2798 = vpop.f32.mrb[0].mxu0
      %v2799 = vadd.f32 0.0, %v2798
      %v2800 = vpop.f32.mrb[0].mxu0
      %v2801 = vpop.f32.mrb[0].mxu0
      %v2802 = vadd.f32 0.0, %v2801
      %v2803 = vpop.f32.mrb[0].mxu0
      %2804 = vmatprep.mubr.bf16.mxu0 0
      %2805 = vmatmul.mubr.bf16.gmra.mrb[0].mxu0 %v1405
      %v2806 = vpop.f32.mrb[0].mxu0
      %v2807 = vadd.f32 0.0, %v2806
      %v2808 = vpop.f32.mrb[0].mxu0
      %v2809 = vpop.f32.mrb[0].mxu0
      %v2810 = vadd.f32 0.0, %v2809
      %v2811 = vpop.f32.mrb[0].mxu0
      %2812 = vmatprep.mubr.bf16.mxu0 0
      %2813 = vmatmul.mubr.bf16.gmra.mrb[0].mxu0 %v1408
      %v2814 = vpop.f32.mrb[0].mxu0
      %v2815 = vadd.f32 0.0, %v2814
      %v2816 = vpop.f32.mrb[0].mxu0
      %v2817 = vpop.f32.mrb[0].mxu0
      %v2818 = vadd.f32 0.0, %v2817
      %v2819 = vpop.f32.mrb[0].mxu0
      %2820 = vmatprep.mubr.bf16.mxu0 0
      %2821 = vmatmul.mubr.bf16.gmra.mrb[0].mxu0 %v1411
      %v2822 = vpop.f32.mrb[0].mxu0
      %v2823 = vadd.f32 0.0, %v2822
      %v2824 = vpop.f32.mrb[0].mxu0
      %v2825 = vpop.f32.mrb[0].mxu0
      %v2826 = vadd.f32 0.0, %v2825
      %v2827 = vpop.f32.mrb[0].mxu0
      %2828 = vmatprep.mubr.bf16.mxu0 0
      %2829 = vmatmul.mubr.bf16.gmra.mrb[0].mxu0 %v1414
      %v2830 = vpop.f32.mrb[0].mxu0
      %v2831 = vadd.f32 0.0, %v2830
      %v2832 = vpop.f32.mrb[0].mxu0
      %v2833 = vpop.f32.mrb[0].mxu0
      %v2834 = vadd.f32 0.0, %v2833
      %v2835 = vpop.f32.mrb[0].mxu0
      %2836 = vmatprep.mubr.bf16.mxu0 0
      %2837 = vmatmul.mubr.bf16.gmra.mrb[0].mxu0 %v1417
      %v2838 = vpop.f32.mrb[0].mxu0
      %v2839 = vadd.f32 0.0, %v2838
      %v2840 = vpop.f32.mrb[0].mxu0
      %v2841 = vpop.f32.mrb[0].mxu0
      %v2842 = vadd.f32 0.0, %v2841
      %v2843 = vpop.f32.mrb[0].mxu0
      %2844 = vmatprep.mubr.bf16.mxu0 0
      %2845 = vmatmul.mubr.bf16.gmra.mrb[0].mxu0 %v1420
      %v2846 = vpop.f32.mrb[0].mxu0
      %v2847 = vadd.f32 0.0, %v2846
      %v2848 = vpop.f32.mrb[0].mxu0
      %v2849 = vpop.f32.mrb[0].mxu0
      %v2850 = vadd.f32 0.0, %v2849
      %v2851 = vpop.f32.mrb[0].mxu0
      %2852 = vmatprep.mubr.bf16.mxu0 0
      %2853 = vmatmul.mubr.bf16.gmra.mrb[0].mxu0 %v1423
      %v2854 = vpop.f32.mrb[0].mxu0
      %v2855 = vadd.f32 0.0, %v2854
      %v2856 = vpop.f32.mrb[0].mxu0
      %v2857 = vpop.f32.mrb[0].mxu0
      %v2858 = vadd.f32 0.0, %v2857
      %v2859 = vpop.f32.mrb[0].mxu0
      %2860 = vmatprep.mubr.bf16.mxu0 0
      %2861 = vmatmul.mubr.bf16.gmra.mrb[0].mxu0 %v1426
      %v2862 = vpop.f32.mrb[0].mxu0
      %v2863 = vadd.f32 0.0, %v2862
      %v2864 = vpop.f32.mrb[0].mxu0
      %v2865 = vpop.f32.mrb[0].mxu0
      %v2866 = vadd.f32 0.0, %v2865
      %v2867 = vpop.f32.mrb[0].mxu0
      %2868 = vmatprep.mubr.bf16.mxu0 0
      %2869 = vmatmul.mubr.bf16.gmra.mrb[0].mxu0 %v1429
      %v2870 = vpop.f32.mrb[0].mxu0
      %v2871 = vadd.f32 0.0, %v2870
      %v2872 = vpop.f32.mrb[0].mxu0
      %v2873 = vpop.f32.mrb[0].mxu0
      %v2874 = vadd.f32 0.0, %v2873
      %v2875 = vpop.f32.mrb[0].mxu0
      %2876 = vmatprep.mubr.bf16.mxu0 0
      %2877 = vmatmul.mubr.bf16.gmra.mrb[0].mxu0 %v1432
      %v2878 = vpop.f32.mrb[0].mxu0
      %v2879 = vadd.f32 0.0, %v2878
      %v2880 = vpop.f32.mrb[0].mxu0
      %v2881 = vpop.f32.mrb[0].mxu0
      %v2882 = vadd.f32 0.0, %v2881
      %v2883 = vpop.f32.mrb[0].mxu0
      %2884 = vmatprep.mubr.bf16.mxu0 0
      %2885 = vmatmul.mubr.bf16.gmra.mrb[0].mxu0 %v1435
      %v2886 = vpop.f32.mrb[0].mxu0
      %v2887 = vadd.f32 0.0, %v2886
      %v2888 = vpop.f32.mrb[0].mxu0
      %v2889 = vpop.f32.mrb[0].mxu0
      %v2890 = vadd.f32 0.0, %v2889
      %v2891 = vpop.f32.mrb[0].mxu0
      %2892 = vmatprep.mubr.bf16.mxu0 0
      %2893 = vmatmul.mubr.bf16.gmra.mrb[0].mxu0 %v1438
      %v2894 = vpop.f32.mrb[0].mxu0
      %v2895 = vadd.f32 0.0, %v2894
      %v2896 = vpop.f32.mrb[0].mxu0
      %v2897 = vpop.f32.mrb[0].mxu0
      %v2898 = vadd.f32 0.0, %v2897
      %v2899 = vpop.f32.mrb[0].mxu0
      %2900 = vmatprep.mubr.bf16.mxu0 0
      %2901 = vmatmul.mubr.bf16.gmra.mrb[0].mxu0 %v2096
      %v2902 = vpop.f32.mrb[0].mxu0
      %v2903 = vadd.f32 0.0, %v2902
      %v2904 = vpop.f32.mrb[0].mxu0
      %v2905 = vpop.f32.mrb[0].mxu0
      %v2906 = vadd.f32 0.0, %v2905
      %v2907 = vpop.f32.mrb[0].mxu0
      %2908 = vmatprep.mubr.bf16.mxu0 0
      %2909 = vmatmul.mubr.bf16.gmra.mrb[0].mxu0 %v2754
      %v2910 = vpop.f32.mrb[0].mxu0
      %v2911 = vadd.f32 0.0, %v2910
      %v2912 = vpop.f32.mrb[0].mxu0
      %v2913 = vpop.f32.mrb[0].mxu0
      %v2914 = vadd.f32 0.0, %v2913
      %v2915 = vpop.f32.mrb[0].mxu0
      %2916 = vdwg.mxu0
      %v2917 = vadd.f32 %v2701, %v2791
      %v2918 = vadd.f32 %v2702, %v2794
      %v2919 = vadd.f32 %v2703, %v2799
      %v2920 = vadd.f32 %v2704, %v2802
      %v2921 = vadd.f32 %v2705, %v2807
      %v2922 = vadd.f32 %v2706, %v2810
      %v2923 = vadd.f32 %v2707, %v2815
      %v2924 = vadd.f32 %v2708, %v2818
      %v2925 = vadd.f32 %v2709, %v2823
      %v2926 = vadd.f32 %v2710, %v2826
      %v2927 = vadd.f32 %v2711, %v2831
      %v2928 = vadd.f32 %v2712, %v2834
      %v2929 = vadd.f32 %v2713, %v2839
      %v2930 = vadd.f32 %v2714, %v2842
      %v2931 = vadd.f32 %v2715, %v2847
      %v2932 = vadd.f32 %v2716, %v2850
      %v2933 = vadd.f32 %v2717, %v2855
      %v2934 = vadd.f32 %v2718, %v2858
      %v2935 = vadd.f32 %v2719, %v2863
      %v2936 = vadd.f32 %v2720, %v2866
      %v2937 = vadd.f32 %v2721, %v2871
      %v2938 = vadd.f32 %v2722, %v2874
      %v2939 = vadd.f32 %v2723, %v2879
      %v2940 = vadd.f32 %v2724, %v2882
      %v2941 = vadd.f32 %v2725, %v2887
      %v2942 = vadd.f32 %v2726, %v2890
      %v2943 = vadd.f32 %v2727, %v2895
      %v2944 = vadd.f32 %v2728, %v2898
      %v2945 = vadd.f32 %v2729, %v2903
      %v2946 = vadd.f32 %v2730, %v2906
      %v2947 = vadd.f32 %v2731, %v2911
      %v2948 = vadd.f32 %v2732, %v2914
      %v2949 = vld [vmem:[%s2] sm:$0x1]
      %v2951 = vlaneseq
      %v2952 = vshrl.u32 %v2951, 7
      %v2953 = vsub.s32 0, %v2952
      %v2954 = vrot.slane %v2949, %v2953
      %v2956 = vadd.f32 %v2917, %v2954
      %v2957 = vadd.f32 %v2918, %v2954
      %v2958 = vadd.f32 %v2919, %v2954
      %v2959 = vadd.f32 %v2920, %v2954
      %v2960 = vadd.f32 %v2921, %v2954
      %v2961 = vadd.f32 %v2922, %v2954
      %v2962 = vadd.f32 %v2923, %v2954
      %v2963 = vadd.f32 %v2924, %v2954
      %v2964 = vadd.f32 %v2925, %v2954
      %v2965 = vadd.f32 %v2926, %v2954
      %v2966 = vadd.f32 %v2927, %v2954
      %v2967 = vadd.f32 %v2928, %v2954
      %v2968 = vadd.f32 %v2929, %v2954
      %v2969 = vadd.f32 %v2930, %v2954
      %v2970 = vadd.f32 %v2931, %v2954
      %v2971 = vadd.f32 %v2932, %v2954
      %v2972 = vadd.f32 %v2933, %v2954
      %v2973 = vadd.f32 %v2934, %v2954
      %v2974 = vadd.f32 %v2935, %v2954
      %v2975 = vadd.f32 %v2936, %v2954
      %v2976 = vadd.f32 %v2937, %v2954
      %v2977 = vadd.f32 %v2938, %v2954
      %v2978 = vadd.f32 %v2939, %v2954
      %v2979 = vadd.f32 %v2940, %v2954
      %v2980 = vadd.f32 %v2941, %v2954
      %v2981 = vadd.f32 %v2942, %v2954
      %v2982 = vadd.f32 %v2943, %v2954
      %v2983 = vadd.f32 %v2944, %v2954
      %v2984 = vadd.f32 %v2945, %v2954
      %v2985 = vadd.f32 %v2946, %v2954
      %v2986 = vadd.f32 %v2947, %v2954
      %v2987 = vadd.f32 %v2948, %v2954
      %vm2988 = vcmp.ge.f32.partialorder %v2956, 0.0
      %vm2989 = vcmp.ge.f32.partialorder %v2957, 0.0
      %vm2990 = vcmp.ge.f32.partialorder %v2958, 0.0
      %vm2991 = vcmp.ge.f32.partialorder %v2959, 0.0
      %vm2992 = vcmp.ge.f32.partialorder %v2960, 0.0
      %vm2993 = vcmp.ge.f32.partialorder %v2961, 0.0
      %vm2994 = vcmp.ge.f32.partialorder %v2962, 0.0
      %vm2995 = vcmp.ge.f32.partialorder %v2963, 0.0
      %vm2996 = vcmp.ge.f32.partialorder %v2964, 0.0
      %vm2997 = vcmp.ge.f32.partialorder %v2965, 0.0
      %vm2998 = vcmp.ge.f32.partialorder %v2966, 0.0
      %vm2999 = vcmp.ge.f32.partialorder %v2967, 0.0
      %vm3000 = vcmp.ge.f32.partialorder %v2968, 0.0
      %vm3001 = vcmp.ge.f32.partialorder %v2969, 0.0
      %vm3002 = vcmp.ge.f32.partialorder %v2970, 0.0
      %vm3003 = vcmp.ge.f32.partialorder %v2971, 0.0
      %vm3004 = vcmp.ge.f32.partialorder %v2972, 0.0
      %vm3005 = vcmp.ge.f32.partialorder %v2973, 0.0
      %vm3006 = vcmp.ge.f32.partialorder %v2974, 0.0
      %vm3007 = vcmp.ge.f32.partialorder %v2975, 0.0
      %vm3008 = vcmp.ge.f32.partialorder %v2976, 0.0
      %vm3009 = vcmp.ge.f32.partialorder %v2977, 0.0
      %vm3010 = vcmp.ge.f32.partialorder %v2978, 0.0
      %vm3011 = vcmp.ge.f32.partialorder %v2979, 0.0
      %vm3012 = vcmp.ge.f32.partialorder %v2980, 0.0
      %vm3013 = vcmp.ge.f32.partialorder %v2981, 0.0
      %vm3014 = vcmp.ge.f32.partialorder %v2982, 0.0
      %vm3015 = vcmp.ge.f32.partialorder %v2983, 0.0
      %vm3016 = vcmp.ge.f32.partialorder %v2984, 0.0
      %vm3017 = vcmp.ge.f32.partialorder %v2985, 0.0
      %vm3018 = vcmp.ge.f32.partialorder %v2986, 0.0
      %vm3019 = vcmp.ge.f32.partialorder %v2987, 0.0
      %v3020 = vld [vmem:[%s3] sm:$0x1]
      %v3022 = vlaneseq
      %v3023 = vshrl.u32 %v3022, 7
      %v3024 = vsub.s32 0, %v3023
      %v3025 = vrot.slane %v3020, %v3024
      %v3027 = vmul.f32 %v2956, %v3025
      %v3028 = vmul.f32 %v2957, %v3025
      %v3029 = vmul.f32 %v2958, %v3025
      %v3030 = vmul.f32 %v2959, %v3025
      %v3031 = vmul.f32 %v2960, %v3025
      %v3032 = vmul.f32 %v2961, %v3025
      %v3033 = vmul.f32 %v2962, %v3025
      %v3034 = vmul.f32 %v2963, %v3025
      %v3035 = vmul.f32 %v2964, %v3025
      %v3036 = vmul.f32 %v2965, %v3025
      %v3037 = vmul.f32 %v2966, %v3025
      %v3038 = vmul.f32 %v2967, %v3025
      %v3039 = vmul.f32 %v2968, %v3025
      %v3040 = vmul.f32 %v2969, %v3025
      %v3041 = vmul.f32 %v2970, %v3025
      %v3042 = vmul.f32 %v2971, %v3025
      %v3043 = vmul.f32 %v2972, %v3025
      %v3044 = vmul.f32 %v2973, %v3025
      %v3045 = vmul.f32 %v2974, %v3025
      %v3046 = vmul.f32 %v2975, %v3025
      %v3047 = vmul.f32 %v2976, %v3025
      %v3048 = vmul.f32 %v2977, %v3025
      %v3049 = vmul.f32 %v2978, %v3025
      %v3050 = vmul.f32 %v2979, %v3025
      %v3051 = vmul.f32 %v2980, %v3025
      %v3052 = vmul.f32 %v2981, %v3025
      %v3053 = vmul.f32 %v2982, %v3025
      %v3054 = vmul.f32 %v2983, %v3025
      %v3055 = vmul.f32 %v2984, %v3025
      %v3056 = vmul.f32 %v2985, %v3025
      %v3057 = vmul.f32 %v2986, %v3025
      %v3058 = vmul.f32 %v2987, %v3025
      %v3059 = vsel %vm2988, %v2956, %v3027
      %v3060 = vsel %vm2989, %v2957, %v3028
      %v3061 = vsel %vm2990, %v2958, %v3029
      %v3062 = vsel %vm2991, %v2959, %v3030
      %v3063 = vsel %vm2992, %v2960, %v3031
      %v3064 = vsel %vm2993, %v2961, %v3032
      %v3065 = vsel %vm2994, %v2962, %v3033
      %v3066 = vsel %vm2995, %v2963, %v3034
      %v3067 = vsel %vm2996, %v2964, %v3035
      %v3068 = vsel %vm2997, %v2965, %v3036
      %v3069 = vsel %vm2998, %v2966, %v3037
      %v3070 = vsel %vm2999, %v2967, %v3038
      %v3071 = vsel %vm3000, %v2968, %v3039
      %v3072 = vsel %vm3001, %v2969, %v3040
      %v3073 = vsel %vm3002, %v2970, %v3041
      %v3074 = vsel %vm3003, %v2971, %v3042
      %v3075 = vsel %vm3004, %v2972, %v3043
      %v3076 = vsel %vm3005, %v2973, %v3044
      %v3077 = vsel %vm3006, %v2974, %v3045
      %v3078 = vsel %vm3007, %v2975, %v3046
      %v3079 = vsel %vm3008, %v2976, %v3047
      %v3080 = vsel %vm3009, %v2977, %v3048
      %v3081 = vsel %vm3010, %v2978, %v3049
      %v3082 = vsel %vm3011, %v2979, %v3050
      %v3083 = vsel %vm3012, %v2980, %v3051
      %v3084 = vsel %vm3013, %v2981, %v3052
      %v3085 = vsel %vm3014, %v2982, %v3053
      %v3086 = vsel %vm3015, %v2983, %v3054
      %v3087 = vsel %vm3016, %v2984, %v3055
      %v3088 = vsel %vm3017, %v2985, %v3056
      %v3089 = vsel %vm3018, %v2986, %v3057
      %v3090 = vsel %vm3019, %v2987, %v3058
      %v3091 = vpack.c.bf16 %v3060, %v3059
      %v3092 = vpack.c.bf16 %v3062, %v3061
      %v3093 = vpack.c.bf16 %v3064, %v3063
      %v3094 = vpack.c.bf16 %v3066, %v3065
      %v3095 = vpack.c.bf16 %v3068, %v3067
      %v3096 = vpack.c.bf16 %v3070, %v3069
      %v3097 = vpack.c.bf16 %v3072, %v3071
      %v3098 = vpack.c.bf16 %v3074, %v3073
      %v3099 = vpack.c.bf16 %v3076, %v3075
      %v3100 = vpack.c.bf16 %v3078, %v3077
      %v3101 = vpack.c.bf16 %v3080, %v3079
      %v3102 = vpack.c.bf16 %v3082, %v3081
      %v3103 = vpack.c.bf16 %v3084, %v3083
      %v3104 = vpack.c.bf16 %v3086, %v3085
      %v3105 = vpack.c.bf16 %v3088, %v3087
      %v3106 = vpack.c.bf16 %v3090, %v3089
      %v3123 = vunpack.c.l.b16 %v3091
      %v3124 = vunpack.c.h.b16 %v3091
      %v3125 = vunpack.c.l.b16 %v3092
      %v3126 = vunpack.c.h.b16 %v3092
      %v3127 = vunpack.c.l.b16 %v3093
      %v3128 = vunpack.c.h.b16 %v3093
      %v3129 = vunpack.c.l.b16 %v3094
      %v3130 = vunpack.c.h.b16 %v3094
      %v3131 = vunpack.c.l.b16 %v3095
      %v3132 = vunpack.c.h.b16 %v3095
      %v3133 = vunpack.c.l.b16 %v3096
      %v3134 = vunpack.c.h.b16 %v3096
      %v3135 = vunpack.c.l.b16 %v3097
      %v3136 = vunpack.c.h.b16 %v3097
      %v3137 = vunpack.c.l.b16 %v3098
      %v3138 = vunpack.c.h.b16 %v3098
      %v3139 = vunpack.c.l.b16 %v3099
      %v3140 = vunpack.c.h.b16 %v3099
      %v3141 = vunpack.c.l.b16 %v3100
      %v3142 = vunpack.c.h.b16 %v3100
      %v3143 = vunpack.c.l.b16 %v3101
      %v3144 = vunpack.c.h.b16 %v3101
      %v3145 = vunpack.c.l.b16 %v3102
      %v3146 = vunpack.c.h.b16 %v3102
      %v3147 = vunpack.c.l.b16 %v3103
      %v3148 = vunpack.c.h.b16 %v3103
      %v3149 = vunpack.c.l.b16 %v3104
      %v3150 = vunpack.c.h.b16 %v3104
      %v3151 = vunpack.c.l.b16 %v3105
      %v3152 = vunpack.c.h.b16 %v3105
      %v3153 = vunpack.c.l.b16 %v3106
      %v3154 = vunpack.c.h.b16 %v3106
      %v3155 = vpack.c.b16 %v3123, %v3123
      %v3156 = vpack.c.b16 %v3124, %v3124
      %v3157 = vpack.c.b16 %v3125, %v3125
      %v3158 = vpack.c.b16 %v3126, %v3126
      %v3159 = vpack.c.b16 %v3127, %v3127
      %v3160 = vpack.c.b16 %v3128, %v3128
      %v3161 = vpack.c.b16 %v3129, %v3129
      %v3162 = vpack.c.b16 %v3130, %v3130
      %v3163 = vpack.c.b16 %v3131, %v3131
      %v3164 = vpack.c.b16 %v3132, %v3132
      %v3165 = vpack.c.b16 %v3133, %v3133
      %v3166 = vpack.c.b16 %v3134, %v3134
      %v3167 = vpack.c.b16 %v3135, %v3135
      %v3168 = vpack.c.b16 %v3136, %v3136
      %v3169 = vpack.c.b16 %v3137, %v3137
      %v3170 = vpack.c.b16 %v3138, %v3138
      %v3171 = vpack.c.b16 %v3139, %v3139
      %v3172 = vpack.c.b16 %v3140, %v3140
      %v3173 = vpack.c.b16 %v3141, %v3141
      %v3174 = vpack.c.b16 %v3142, %v3142
      %v3175 = vpack.c.b16 %v3143, %v3143
      %v3176 = vpack.c.b16 %v3144, %v3144
      %v3177 = vpack.c.b16 %v3145, %v3145
      %v3178 = vpack.c.b16 %v3146, %v3146
      %v3179 = vpack.c.b16 %v3147, %v3147
      %v3180 = vpack.c.b16 %v3148, %v3148
      %v3181 = vpack.c.b16 %v3149, %v3149
      %v3182 = vpack.c.b16 %v3150, %v3150
      %v3183 = vpack.c.b16 %v3151, %v3151
      %v3184 = vpack.c.b16 %v3152, %v3152
      %v3185 = vpack.c.b16 %v3153, %v3153
      %v3186 = vpack.c.b16 %v3154, %v3154
      %vm3219 = vcmask 125952
      %3220 = vst.msk [vmem:[%s197] sm:$0xf] %vm3219, %v3155
      %3221 = vst.msk [vmem:[%s197 + $0x4] sm:$0xf] %vm3219, %v3156
      %3222 = vst.msk [vmem:[%s197 + $0x8] sm:$0xf] %vm3219, %v3157
      %3223 = vst.msk [vmem:[%s197 + $0xc] sm:$0xf] %vm3219, %v3158
      %3224 = vst.msk [vmem:[%s197 + $0x10] sm:$0xf] %vm3219, %v3159
      %3225 = vst.msk [vmem:[%s197 + $0x14] sm:$0xf] %vm3219, %v3160
      %3226 = vst.msk [vmem:[%s197 + $0x18] sm:$0xf] %vm3219, %v3161
      %3227 = vst.msk [vmem:[%s197 + $0x1c] sm:$0xf] %vm3219, %v3162
      %3228 = vst.msk [vmem:[%s197 + $0x20] sm:$0xf] %vm3219, %v3163
      %3229 = vst.msk [vmem:[%s197 + $0x24] sm:$0xf] %vm3219, %v3164
      %3230 = vst.msk [vmem:[%s197 + $0x28] sm:$0xf] %vm3219, %v3165
      %3231 = vst.msk [vmem:[%s197 + $0x2c] sm:$0xf] %vm3219, %v3166
      %3232 = vst.msk [vmem:[%s197 + $0x30] sm:$0xf] %vm3219, %v3167
      %3233 = vst.msk [vmem:[%s197 + $0x34] sm:$0xf] %vm3219, %v3168
      %3234 = vst.msk [vmem:[%s197 + $0x38] sm:$0xf] %vm3219, %v3169
      %3235 = vst.msk [vmem:[%s197 + $0x3c] sm:$0xf] %vm3219, %v3170
      %3236 = vst.msk [vmem:[%s197 + $0x40] sm:$0xf] %vm3219, %v3171
      %3237 = vst.msk [vmem:[%s197 + $0x44] sm:$0xf] %vm3219, %v3172
      %3238 = vst.msk [vmem:[%s197 + $0x48] sm:$0xf] %vm3219, %v3173
      %3239 = vst.msk [vmem:[%s197 + $0x4c] sm:$0xf] %vm3219, %v3174
      %3240 = vst.msk [vmem:[%s197 + $0x50] sm:$0xf] %vm3219, %v3175
      %3241 = vst.msk [vmem:[%s197 + $0x54] sm:$0xf] %vm3219, %v3176
      %3242 = vst.msk [vmem:[%s197 + $0x58] sm:$0xf] %vm3219, %v3177
      %3243 = vst.msk [vmem:[%s197 + $0x5c] sm:$0xf] %vm3219, %v3178
      %3244 = vst.msk [vmem:[%s197 + $0x60] sm:$0xf] %vm3219, %v3179
      %3245 = vst.msk [vmem:[%s197 + $0x64] sm:$0xf] %vm3219, %v3180
      %3246 = vst.msk [vmem:[%s197 + $0x68] sm:$0xf] %vm3219, %v3181
      %3247 = vst.msk [vmem:[%s197 + $0x6c] sm:$0xf] %vm3219, %v3182
      %3248 = vst.msk [vmem:[%s197 + $0x70] sm:$0xf] %vm3219, %v3183
      %3249 = vst.msk [vmem:[%s197 + $0x74] sm:$0xf] %vm3219, %v3184
      %3250 = vst.msk [vmem:[%s197 + $0x78] sm:$0xf] %vm3219, %v3185
      %3251 = vst.msk [vmem:[%s197 + $0x7c] sm:$0xf] %vm3219, %v3186
      %p3252 = scmp.lt.s32.totalorder %s15, 1
      %s3253 = scalar_select %p3252, %s15, 1
      %s3254 = smul.addr %s3253, 32
      %s3255 = smul.addr %s3254, 4
      %s3256 = scalar_lea.vmem %s4, %s3255
      // Predicated region
      $region37: #{efdb_forward.8} parent=35 // pred_check
        %p3257 = pneg %p122
      $region38: #{efdb_forward.8} parent=35 // pred_check_branch
        %3259 = sbr.rel (%p3257) target = $region40
      $region39: #{efdb_forward.8} parent=35 // pred_region
        _
      $region40: #{efdb_forward.8} parent=35 // pred_fallthru
        _
    $region36: #{efdb_forward.8} parent=5 // pred_fallthru
      _
    %p3260 = scmp.le.s32.totalorder 2, %s10
    // Predicated region
    $region41: #{efdb_forward.8} parent=5 // pred_check
      %p3261 = pneg %p3260
    $region42: #{efdb_forward.8} parent=5 // pred_check_branch
      %3263 = sbr.rel (%p3261) target = $region44
    $region43: #{efdb_forward.8} parent=5 // pred_region
      %s3264 = ssub.s32 %s10, 2
      // Predicated region
      $region45: #{efdb_forward.8} parent=43 // pred_check
        %p3265 = pneg %p128
      $region46: #{efdb_forward.8} parent=43 // pred_check_branch
        %3267 = sbr.rel (%p3265) target = $region48
      $region47: #{efdb_forward.8} parent=43 // pred_region
        %p3268 = scmp.lt.s32.totalorder %s16, 1
        %s3269 = scalar_select %p3268, %s16, 1
        %s3270 = smul.addr %s3269, 32
        %s3271 = smul.addr %s3270, 4
        %s3272 = scalar_lea.vmem %s4, %s3271
      $region48: #{efdb_forward.8} parent=43 // pred_fallthru
        _
    $region44: #{efdb_forward.8} parent=5 // pred_fallthru
      _
  $region6: #{efdb_forward.8} parent=0 // loop_footer
    %s14 = sadd.s32 1, %s10
  $region7: #{efdb_forward.8} parent=0 // loop_footer_branch
    %9 = sbr.rel target = $region3
  $region8: #{efdb_forward.8} parent=0 // loop_exit
    _

// kernel: efdb_forward.11
$region0: #{efdb_forward.11}
  #allocation0 [shape = 'u32[]', space=smem, size = 0x4, offset = 0x4, fixed_abs, tag = 'smem constant byte address 0x4 - core index']
  #allocation1 [shape = 'u32[144,128]{1,0:T(1,128)}', space=vmem, size = 0x12000, scoped, tag = 'internal scratch']
  %s0 = inlined_call_operand.vmem [shape: bf16[128,36], index: 0, kind: input, shape index: {}]
  %s1 = inlined_call_operand.vmem [shape: bf16[36,4], index: 1, kind: input, shape index: {}]
  %s2 = inlined_call_operand.vmem [shape: f32[1,4], index: 2, kind: input, shape index: {}]
  %s3 = inlined_call_operand.vmem [shape: f32[1,4], index: 3, kind: input, shape index: {}]
  %s4 = inlined_call_operand.vmem [shape: bf16[128,4], index: 4, kind: output, shape index: {}]
  %s5 = sld [smem:[#allocation0]]
  $region49: #{efdb_forward.11} parent=0
    _
  %s7 = ssub.s32 1, %s5
  %s8 = scalar_select 0, %s7, %s5
  loop: start=0, step=1, limit=4
  $region2: #{efdb_forward.11} parent=0 // loop_pre_header
    _
  $region3: #{efdb_forward.11} parent=0 // loop_header
    %s10 = sphi 0, %s14
    %p11 = scmp.ge.s32.totalorder %s10, 4
    %s20 = sphi 0, %s22
    %s23 = sphi 0, %s20
    %s24 = sphi 0, %s23
    %s40 = sphi 0, %s24
    %s44 = sphi 0, %s44
    %s46 = sphi 0, %s44
    %s47 = sphi 0, %s46
    %s61 = sphi 0, %s47
    %s65 = sphi 0, %s65
    %s67 = sphi 0, %s65
    %s68 = sphi 0, %s67
    %s82 = sphi 0, %s68
    %s86 = sphi 0, %s86
    %s88 = sphi 0, %s86
    %s89 = sphi 0, %s88
    %s103 = sphi 0, %s89
    %s109 = sphi 0, %s111
    %s112 = sphi 0, %s109
    %s113 = sphi 0, %s112
    %s129 = sphi 0, %s113
  $region4: #{efdb_forward.11} parent=0 // loop_header_branch
    %13 = sbr.rel (%p11) target = $region8
  $region5: #{efdb_forward.11} parent=0 // loop_body
    %s15 = ssub.s32 %s10, 1
    %s16 = ssub.s32 %s10, 2
    %s17 = sadd.s32 %s10, 1
    %s18 = ssub.s32 %s10, %s17
    %p19 = scmp.eq.s32.totalorder %s18, 0
    %s21 = sadd.s32 %s20, 1
    %s22 = scalar_select %p19, %s20, %s21
    %p25 = pneg %p19
    %p26 = scmp.eq.s32.totalorder %s10, 1
    %p27 = por %p25, %p26
    %p28 = scmp.ne.s32.totalorder %s20, %s23
    %p29 = scmp.eq.s32.totalorder %s10, 0
    %p30 = por %p28, %p29
    %p31 = scmp.ne.s32.totalorder %s20, %s23
    %p32 = scmp.eq.s32.totalorder %s15, 1
    %p33 = por %p31, %p32
    %p34 = scmp.ne.s32.totalorder %s23, %s24
    %p35 = scmp.eq.s32.totalorder %s15, 0
    %p36 = por %p34, %p35
    %p37 = scmp.ne.s32.totalorder %s23, %s24
    %p38 = scmp.eq.s32.totalorder %s16, 1
    %p39 = por %p37, %p38
    %p41 = scmp.ne.s32.totalorder %s24, %s40
    %p42 = scmp.eq.s32.totalorder %s16, 0
    %p43 = por %p41, %p42
    %s45 = sadd.s32 %s44, 1
    %p48 = scmp.eq.s32.totalorder %s10, 1
    %p49 = scmp.ne.s32.totalorder %s44, %s46
    %p50 = scmp.eq.s32.totalorder %s10, 0
    %p51 = por %p49, %p50
    %p52 = scmp.ne.s32.totalorder %s44, %s46
    %p53 = scmp.eq.s32.totalorder %s15, 1
    %p54 = por %p52, %p53
    %p55 = scmp.ne.s32.totalorder %s46, %s47
    %p56 = scmp.eq.s32.totalorder %s15, 0
    %p57 = por %p55, %p56
    %p58 = scmp.ne.s32.totalorder %s46, %s47
    %p59 = scmp.eq.s32.totalorder %s16, 1
    %p60 = por %p58, %p59
    %p62 = scmp.ne.s32.totalorder %s47, %s61
    %p63 = scmp.eq.s32.totalorder %s16, 0
    %p64 = por %p62, %p63
    %s66 = sadd.s32 %s65, 1
    %p69 = scmp.eq.s32.totalorder %s10, 1
    %p70 = scmp.ne.s32.totalorder %s65, %s67
    %p71 = scmp.eq.s32.totalorder %s10, 0
    %p72 = por %p70, %p71
    %p73 = scmp.ne.s32.totalorder %s65, %s67
    %p74 = scmp.eq.s32.totalorder %s15, 1
    %p75 = por %p73, %p74
    %p76 = scmp.ne.s32.totalorder %s67, %s68
    %p77 = scmp.eq.s32.totalorder %s15, 0
    %p78 = por %p76, %p77
    %p79 = scmp.ne.s32.totalorder %s67, %s68
    %p80 = scmp.eq.s32.totalorder %s16, 1
    %p81 = por %p79, %p80
    %p83 = scmp.ne.s32.totalorder %s68, %s82
    %p84 = scmp.eq.s32.totalorder %s16, 0
    %p85 = por %p83, %p84
    %s87 = sadd.s32 %s86, 1
    %p90 = scmp.eq.s32.totalorder %s10, 1
    %p91 = scmp.ne.s32.totalorder %s86, %s88
    %p92 = scmp.eq.s32.totalorder %s10, 0
    %p93 = por %p91, %p92
    %p94 = scmp.ne.s32.totalorder %s86, %s88
    %p95 = scmp.eq.s32.totalorder %s15, 1
    %p96 = por %p94, %p95
    %p97 = scmp.ne.s32.totalorder %s88, %s89
    %p98 = scmp.eq.s32.totalorder %s15, 0
    %p99 = por %p97, %p98
    %p100 = scmp.ne.s32.totalorder %s88, %s89
    %p101 = scmp.eq.s32.totalorder %s16, 1
    %p102 = por %p100, %p101
    %p104 = scmp.ne.s32.totalorder %s89, %s103
    %p105 = scmp.eq.s32.totalorder %s16, 0
    %p106 = por %p104, %p105
    %s107 = ssub.s32 %s10, %s17
    %p108 = scmp.eq.s32.totalorder %s107, 0
    %s110 = sadd.s32 %s109, 1
    %s111 = scalar_select %p108, %s109, %s110
    %p114 = pneg %p108
    %p115 = scmp.eq.s32.totalorder %s10, 1
    %p116 = por %p114, %p115
    %p117 = scmp.ne.s32.totalorder %s109, %s112
    %p118 = scmp.eq.s32.totalorder %s10, 0
    %p119 = por %p117, %p118
    %p120 = scmp.ne.s32.totalorder %s109, %s112
    %p121 = scmp.eq.s32.totalorder %s15, 1
    %p122 = por %p120, %p121
    %p123 = scmp.ne.s32.totalorder %s112, %s113
    %p124 = scmp.eq.s32.totalorder %s15, 0
    %p125 = por %p123, %p124
    %p126 = scmp.ne.s32.totalorder %s112, %s113
    %p127 = scmp.eq.s32.totalorder %s16, 1
    %p128 = por %p126, %p127
    %p130 = scmp.ne.s32.totalorder %s113, %s129
    %p131 = scmp.eq.s32.totalorder %s16, 0
    %p132 = por %p130, %p131
    %p133 = scmp.le.s32.totalorder 1, %s10
    %p134 = scmp.lt.s32.totalorder %s10, 3
    %p135 = pnand %p133, %p134
    %p136 = pneg %p135
    // Predicated region
    $region9: #{efdb_forward.11} parent=5 // pred_check
      _
    $region10: #{efdb_forward.11} parent=5 // pred_check_branch
      %138 = sbr.rel (%p135) target = $region12
    $region11: #{efdb_forward.11} parent=5 // pred_region
      %s139 = ssub.s32 %s10, 1
      // Predicated region
      $region13: #{efdb_forward.11} parent=11 // pred_check
        %p140 = pneg %p57
      $region14: #{efdb_forward.11} parent=11 // pred_check_branch
        %142 = sbr.rel (%p140) target = $region16
      $region15: #{efdb_forward.11} parent=11 // pred_region
        _
      $region16: #{efdb_forward.11} parent=11 // pred_fallthru
        _
      // Predicated region
      $region17: #{efdb_forward.11} parent=11 // pred_check
        %p143 = pneg %p78
      $region18: #{efdb_forward.11} parent=11 // pred_check_branch
        %145 = sbr.rel (%p143) target = $region20
      $region19: #{efdb_forward.11} parent=11 // pred_region
        _
      $region20: #{efdb_forward.11} parent=11 // pred_fallthru
        _
      // Predicated region
      $region21: #{efdb_forward.11} parent=11 // pred_check
        %p146 = pneg %p99
      $region22: #{efdb_forward.11} parent=11 // pred_check_branch
        %148 = sbr.rel (%p146) target = $region24
      $region23: #{efdb_forward.11} parent=11 // pred_region
        _
      $region24: #{efdb_forward.11} parent=11 // pred_fallthru
        _
    $region12: #{efdb_forward.11} parent=5 // pred_fallthru
      _
    %p149 = scmp.lt.s32.totalorder %s10, 2
    // Predicated region
    $region25: #{efdb_forward.11} parent=5 // pred_check
      %p150 = pneg %p149
    $region26: #{efdb_forward.11} parent=5 // pred_check_branch
      %152 = sbr.rel (%p150) target = $region28
    $region27: #{efdb_forward.11} parent=5 // pred_region
      // Predicated region
      $region29: #{efdb_forward.11} parent=27 // pred_check
        %p153 = pneg %p30
      $region30: #{efdb_forward.11} parent=27 // pred_check_branch
        %155 = sbr.rel (%p153) target = $region32
      $region31: #{efdb_forward.11} parent=27 // pred_region
        %s156 = smul.u32 8, %s10
        %p157 = scmp.lt.s32.totalorder %s156, 15
        %s158 = scalar_select %p157, %s156, 15
        %s159 = smul.addr %s158, 4
        %s160 = scalar_lea.vmem %s0, %s159
        %s161 = smul.u32 8, %s10
      $region32: #{efdb_forward.11} parent=27 // pred_fallthru
        _
    $region28: #{efdb_forward.11} parent=5 // pred_fallthru
      _
    %p162 = scmp.le.s32.totalorder 1, %s10
    %p163 = scmp.lt.s32.totalorder %s10, 3
    %p164 = pnand %p162, %p163
    %p165 = pneg %p164
    // Predicated region
    $region33: #{efdb_forward.11} parent=5 // pred_check
      _
    $region34: #{efdb_forward.11} parent=5 // pred_check_branch
      %167 = sbr.rel (%p164) target = $region36
    $region35: #{efdb_forward.11} parent=5 // pred_region
      %s168 = ssub.s32 %s10, 1
      %s169 = smul.u32 8, %s15
      %p170 = scmp.lt.s32.totalorder %s169, 15
      %s171 = scalar_select %p170, %s169, 15
      %s172 = smul.addr %s171, 4
      %s173 = scalar_lea.vmem %s0, %s172
      %p174 = pneg %p36
      %p175 = pneg %p33
      %p176 = pneg %p57
      %p177 = pneg %p54
      %p178 = pneg %p78
      %p179 = pneg %p75
      %p180 = pneg %p99
      %p181 = pneg %p96
      %p182 = pneg %p125
      %p183 = pneg %p122
      %s184 = smul.u32 8, %s15
      %p185 = scmp.lt.s32.totalorder %s184, 15
      %s186 = scalar_select %p185, %s184, 15
      %s187 = smul.addr %s186, 4
      %s188 = scalar_lea.vmem %s4, %s187
      %s189 = smul.u32 8, %s15
      %p190 = scmp.lt.s32.totalorder %s189, 15
      %s191 = scalar_select %p190, %s189, 15
      %s192 = smul.addr %s191, 4
      %s193 = scalar_lea.vmem %s0, %s192
      %s194 = smul.u32 8, %s15
      %s195 = smul.u32 8, %s15
      %p196 = scmp.lt.s32.totalorder %s195, 15
      %s197 = scalar_select %p196, %s195, 15
      %s198 = smul.addr %s197, 4
      %s199 = scalar_lea.vmem %s4, %s198
      %s200 = smul.u32 8, %s15
      %v202 = vld [vmem:[%s193] sm:$0xf]
      %v203 = vld [vmem:[%s193 + $0x4] sm:$0xf]
      %v204 = vld [vmem:[%s193 + $0x8] sm:$0xf]
      %v205 = vld [vmem:[%s193 + $0xc] sm:$0xf]
      %v206 = vld [vmem:[%s193 + $0x10] sm:$0xf]
      %v207 = vld [vmem:[%s193 + $0x14] sm:$0xf]
      %v208 = vld [vmem:[%s193 + $0x18] sm:$0xf]
      %v209 = vld [vmem:[%s193 + $0x1c] sm:$0xf]
      %v210 = vld [vmem:[%s1] sm:$0xf]
      %v211 = vld [vmem:[%s1 + $0x4] sm:$0xf]
      %v212 = vld [vmem:[%s1 + $0x8] sm:$0xf]
      %v213 = vld [vmem:[%s1 + $0xc] sm:$0xf]
      %v214 = vld [vmem:[%s1 + $0x10] sm:$0x3]
      %v215 = vld [vmem:[%s2] sm:$0x1]
      %v217 = vlaneseq
      %v218 = vshrl.u32 %v217, 7
      %v219 = vsub.s32 0, %v218
      %v220 = vrot.slane %v215, %v219
      %v230 = vunpack.c.l.b16 %v202
      %v231 = vunpack.c.l.b16 %v203
      %v232 = vunpack.c.l.b16 %v204
      %v233 = vunpack.c.l.b16 %v205
      %v234 = vunpack.c.l.b16 %v206
      %v235 = vunpack.c.l.b16 %v207
      %v236 = vunpack.c.l.b16 %v208
      %v237 = vunpack.c.l.b16 %v209
      %v238 = vpack.c.b16 %v231, %v230
      %v239 = vpack.c.b16 %v233, %v232
      %v240 = vpack.c.b16 %v235, %v234
      %v241 = vpack.c.b16 %v237, %v236
      %v247 = vunpack.c.l.b16 %v210
      %v248 = vunpack.c.l.b16 %v211
      %v249 = vunpack.c.l.b16 %v212
      %v250 = vunpack.c.l.b16 %v213
      %v251 = vunpack.c.l.b16 %v214
      %v252 = vpack.c.b16 %v248, %v247
      %v253 = vpack.c.b16 %v250, %v249
      %v254 = vpack.c.b16 %v251, %v251
      %vm257 = vcmask 293888
      %v259 = vsel %vm257, %v238, 0
      %v262 = vsel %vm257, %v239, 0
      %v265 = vsel %vm257, %v240, 0
      %v268 = vsel %vm257, %v241, 0
      %vm270 = vcmask 1041408
      %v272 = vsel %vm270, %v254, 0
      %274 = vmatprep.subr.bf16.mxu0 0
      %275 = vmatpush1.bf16.msra.mxu0 %v252
      %276 = vmatprep.subr.bf16.mxu0 0
      %277 = vmatpush1.bf16.msra.mxu0 %v253
      %278 = vmatprep.subr.bf16.mxu0 0
      %279 = vmatpush1.bf16.msra.mxu0 %v272
      %280 = vmatprep.subr.bf16.mxu0 0
      %281 = vmatpush1.bf16.msra.mxu0 0
      %282 = vmatprep.subr.bf16.mxu0 0
      %283 = vmatpush1.bf16.msra.mxu0 0
      %284 = vmatprep.subr.bf16.mxu0 0
      %285 = vmatpush1.bf16.msra.mxu0 0
      %286 = vmatprep.subr.bf16.mxu0 0
      %287 = vmatpush1.bf16.msra.mxu0 0
      %288 = vmatprep.subr.bf16.mxu0 0
      %289 = vmatpush1.bf16.msra.mxu0 0
      %290 = vmatprep.subr.bf16.mxu0 0
      %291 = vmatpush1.bf16.msra.mxu0 0
      %292 = vmatprep.subr.bf16.mxu0 0
      %293 = vmatpush1.bf16.msra.mxu0 0
      %294 = vmatprep.subr.bf16.mxu0 0
      %295 = vmatpush1.bf16.msra.mxu0 0
      %296 = vmatprep.subr.bf16.mxu0 0
      %297 = vmatpush1.bf16.msra.mxu0 0
      %298 = vmatprep.subr.bf16.mxu0 0
      %299 = vmatpush1.bf16.msra.mxu0 0
      %300 = vmatprep.subr.bf16.mxu0 0
      %301 = vmatpush1.bf16.msra.mxu0 0
      %302 = vmatprep.subr.bf16.mxu0 0
      %303 = vmatpush1.bf16.msra.mxu0 0
      %304 = vmatprep.subr.bf16.mxu0 0
      %305 = vmatpush1.bf16.msra.mxu0 0
      %306 = vmatprep.mubr.bf16.mxu0 0
      %307 = vmatmul.mubr.bf16.gmra.mrb[0].mxu0 %v259
      %v308 = vpop.f32.mrb[0].mxu0
      %v309 = vadd.f32 %v220, %v308
      %v310 = vpop.f32.mrb[0].mxu0
      %v311 = vpop.f32.mrb[0].mxu0
      %v312 = vadd.f32 %v220, %v311
      %v313 = vpop.f32.mrb[0].mxu0
      %314 = vmatprep.mubr.bf16.mxu0 0
      %315 = vmatmul.mubr.bf16.gmra.mrb[0].mxu0 %v262
      %v316 = vpop.f32.mrb[0].mxu0
      %v317 = vadd.f32 %v220, %v316
      %v318 = vpop.f32.mrb[0].mxu0
      %v319 = vpop.f32.mrb[0].mxu0
      %v320 = vadd.f32 %v220, %v319
      %v321 = vpop.f32.mrb[0].mxu0
      %322 = vmatprep.mubr.bf16.mxu0 0
      %323 = vmatmul.mubr.bf16.gmra.mrb[0].mxu0 %v265
      %v324 = vpop.f32.mrb[0].mxu0
      %v325 = vadd.f32 %v220, %v324
      %v326 = vpop.f32.mrb[0].mxu0
      %v327 = vpop.f32.mrb[0].mxu0
      %v328 = vadd.f32 %v220, %v327
      %v329 = vpop.f32.mrb[0].mxu0
      %330 = vmatprep.mubr.bf16.mxu0 0
      %331 = vmatmul.mubr.bf16.gmra.mrb[0].mxu0 %v268
      %v332 = vpop.f32.mrb[0].mxu0
      %v333 = vadd.f32 %v220, %v332
      %v334 = vpop.f32.mrb[0].mxu0
      %v335 = vpop.f32.mrb[0].mxu0
      %v336 = vadd.f32 %v220, %v335
      %v337 = vpop.f32.mrb[0].mxu0
      %338 = vdwg.mxu0
      %v339 = vpack.c.bf16 %v312, %v309
      %v340 = vpack.c.bf16 %v320, %v317
      %v341 = vpack.c.bf16 %v328, %v325
      %v342 = vpack.c.bf16 %v336, %v333
      %v347 = vunpack.c.l.b16 %v339
      %v348 = vunpack.c.h.b16 %v339
      %v349 = vunpack.c.l.b16 %v340
      %v350 = vunpack.c.h.b16 %v340
      %v351 = vunpack.c.l.b16 %v341
      %v352 = vunpack.c.h.b16 %v341
      %v353 = vunpack.c.l.b16 %v342
      %v354 = vunpack.c.h.b16 %v342
      %v355 = vpack.c.b16 %v347, %v347
      %v356 = vpack.c.b16 %v348, %v348
      %v357 = vpack.c.b16 %v349, %v349
      %v358 = vpack.c.b16 %v350, %v350
      %v359 = vpack.c.b16 %v351, %v351
      %v360 = vpack.c.b16 %v352, %v352
      %v361 = vpack.c.b16 %v353, %v353
      %v362 = vpack.c.b16 %v354, %v354
      %vm371 = vcmask 27648
      %372 = vst.msk [vmem:[%s199] sm:$0xf] %vm371, %v355
      %373 = vst.msk [vmem:[%s199 + $0x4] sm:$0xf] %vm371, %v356
      %374 = vst.msk [vmem:[%s199 + $0x8] sm:$0xf] %vm371, %v357
      %375 = vst.msk [vmem:[%s199 + $0xc] sm:$0xf] %vm371, %v358
      %376 = vst.msk [vmem:[%s199 + $0x10] sm:$0xf] %vm371, %v359
      %377 = vst.msk [vmem:[%s199 + $0x14] sm:$0xf] %vm371, %v360
      %378 = vst.msk [vmem:[%s199 + $0x18] sm:$0xf] %vm371, %v361
      %379 = vst.msk [vmem:[%s199 + $0x1c] sm:$0xf] %vm371, %v362
      %s380 = smul.u32 8, %s15
      %p381 = scmp.lt.s32.totalorder %s380, 15
      %s382 = scalar_select %p381, %s380, 15
      %s383 = smul.addr %s382, 4
      %s384 = scalar_lea.vmem %s4, %s383
      // Predicated region
      $region37: #{efdb_forward.11} parent=35 // pred_check
        %p385 = pneg %p122
      $region38: #{efdb_forward.11} parent=35 // pred_check_branch
        %387 = sbr.rel (%p385) target = $region40
      $region39: #{efdb_forward.11} parent=35 // pred_region
        %s388 = smul.u32 8, %s15
      $region40: #{efdb_forward.11} parent=35 // pred_fallthru
        _
    $region36: #{efdb_forward.11} parent=5 // pred_fallthru
      _
    %p389 = scmp.le.s32.totalorder 2, %s10
    // Predicated region
    $region41: #{efdb_forward.11} parent=5 // pred_check
      %p390 = pneg %p389
    $region42: #{efdb_forward.11} parent=5 // pred_check_branch
      %392 = sbr.rel (%p390) target = $region44
    $region43: #{efdb_forward.11} parent=5 // pred_region
      %s393 = ssub.s32 %s10, 2
      // Predicated region
      $region45: #{efdb_forward.11} parent=43 // pred_check
        %p394 = pneg %p128
      $region46: #{efdb_forward.11} parent=43 // pred_check_branch
        %396 = sbr.rel (%p394) target = $region48
      $region47: #{efdb_forward.11} parent=43 // pred_region
        %s397 = smul.u32 8, %s16
        %p398 = scmp.lt.s32.totalorder %s397, 15
        %s399 = scalar_select %p398, %s397, 15
        %s400 = smul.addr %s399, 4
        %s401 = scalar_lea.vmem %s4, %s400
      $region48: #{efdb_forward.11} parent=43 // pred_fallthru
        _
    $region44: #{efdb_forward.11} parent=5 // pred_fallthru
      _
  $region6: #{efdb_forward.11} parent=0 // loop_footer
    %s14 = sadd.s32 1, %s10
  $region7: #{efdb_forward.11} parent=0 // loop_footer_branch
    %9 = sbr.rel target = $region3
  $region8: #{efdb_forward.11} parent=0 // loop_exit
    _

// kernel: efdb_forward.10
$region0: #{efdb_forward.10}
  #allocation0 [shape = 'u32[]', space=smem, size = 0x4, offset = 0x4, fixed_abs, tag = 'smem constant byte address 0x4 - core index']
  #allocation1 [shape = 'u32[144,128]{1,0:T(1,128)}', space=vmem, size = 0x12000, scoped, tag = 'internal scratch']
  %s0 = inlined_call_operand.vmem [shape: bf16[512,16], index: 0, kind: input, shape index: {}]
  %s1 = inlined_call_operand.vmem [shape: bf16[512,16], index: 1, kind: input, shape index: {}]
  %s2 = inlined_call_operand.vmem [shape: bf16[512,16], index: 2, kind: input, shape index: {}]
  %s3 = inlined_call_operand.vmem [shape: bf16[512,16], index: 3, kind: input, shape index: {}]
  %s4 = inlined_call_operand.vmem [shape: bf16[4,16,16], index: 4, kind: input, shape index: {}]
  %s5 = inlined_call_operand.vmem [shape: f32[1,16], index: 5, kind: input, shape index: {}]
  %s6 = inlined_call_operand.vmem [shape: bf16[16,4], index: 6, kind: input, shape index: {}]
  %s7 = inlined_call_operand.vmem [shape: f32[1,4], index: 7, kind: input, shape index: {}]
  %s8 = inlined_call_operand.vmem [shape: bf16[4,4], index: 8, kind: input, shape index: {}]
  %s9 = inlined_call_operand.vmem [shape: f32[1,4], index: 9, kind: input, shape index: {}]
  %s10 = inlined_call_operand.vmem [shape: bf16[512,16], index: 10, kind: output, shape index: {0}]
  %s11 = inlined_call_operand.vmem [shape: bf16[512,4], index: 11, kind: output, shape index: {1}]
  %s12 = inlined_call_operand.vmem [shape: f32[512,4], index: 12, kind: output, shape index: {2}]
  %13 = xla_tuple %s10, %s11, %s12
  %s14 = sld [smem:[#allocation0]]
  $region89: #{efdb_forward.10} parent=0
    _
  %s16 = ssub.s32 1, %s14
  %s17 = scalar_select 0, %s16, %s14
  loop: start=0, step=1, limit=4
  $region2: #{efdb_forward.10} parent=0 // loop_pre_header
    _
  $region3: #{efdb_forward.10} parent=0 // loop_header
    %s19 = sphi 0, %s23
    %p20 = scmp.ge.s32.totalorder %s19, 4
    %s29 = sphi 0, %s31
    %s32 = sphi 0, %s29
    %s33 = sphi 0, %s32
    %s49 = sphi 0, %s33
    %s55 = sphi 0, %s57
    %s58 = sphi 0, %s55
    %s59 = sphi 0, %s58
    %s75 = sphi 0, %s59
    %s81 = sphi 0, %s83
    %s84 = sphi 0, %s81
    %s85 = sphi 0, %s84
    %s101 = sphi 0, %s85
    %s107 = sphi 0, %s109
    %s110 = sphi 0, %s107
    %s111 = sphi 0, %s110
    %s127 = sphi 0, %s111
    %s131 = sphi 0, %s131
    %s133 = sphi 0, %s131
    %s134 = sphi 0, %s133
    %s148 = sphi 0, %s134
    %s152 = sphi 0, %s152
    %s154 = sphi 0, %s152
    %s155 = sphi 0, %s154
    %s169 = sphi 0, %s155
    %s173 = sphi 0, %s173
    %s175 = sphi 0, %s173
    %s176 = sphi 0, %s175
    %s190 = sphi 0, %s176
    %s194 = sphi 0, %s194
    %s196 = sphi 0, %s194
    %s197 = sphi 0, %s196
    %s211 = sphi 0, %s197
    %s215 = sphi 0, %s215
    %s217 = sphi 0, %s215
    %s218 = sphi 0, %s217
    %s232 = sphi 0, %s218
    %s236 = sphi 0, %s236
    %s238 = sphi 0, %s236
    %s239 = sphi 0, %s238
    %s253 = sphi 0, %s239
    %s259 = sphi 0, %s261
    %s262 = sphi 0, %s259
    %s263 = sphi 0, %s262
    %s279 = sphi 0, %s263
    %s285 = sphi 0, %s287
    %s288 = sphi 0, %s285
    %s289 = sphi 0, %s288
    %s305 = sphi 0, %s289
    %s311 = sphi 0, %s313
    %s314 = sphi 0, %s311
    %s315 = sphi 0, %s314
    %s331 = sphi 0, %s315
  $region4: #{efdb_forward.10} parent=0 // loop_header_branch
    %22 = sbr.rel (%p20) target = $region8
  $region5: #{efdb_forward.10} parent=0 // loop_body
    %s24 = ssub.s32 %s19, 1
    %s25 = ssub.s32 %s19, 2
    %s26 = sadd.s32 %s19, 1
    %s27 = ssub.s32 %s19, %s26
    %p28 = scmp.eq.s32.totalorder %s27, 0
    %s30 = sadd.s32 %s29, 1
    %s31 = scalar_select %p28, %s29, %s30
    %p34 = pneg %p28
    %p35 = scmp.eq.s32.totalorder %s19, 1
    %p36 = por %p34, %p35
    %p37 = scmp.ne.s32.totalorder %s29, %s32
    %p38 = scmp.eq.s32.totalorder %s19, 0
    %p39 = por %p37, %p38
    %p40 = scmp.ne.s32.totalorder %s29, %s32
    %p41 = scmp.eq.s32.totalorder %s24, 1
    %p42 = por %p40, %p41
    %p43 = scmp.ne.s32.totalorder %s32, %s33
    %p44 = scmp.eq.s32.totalorder %s24, 0
    %p45 = por %p43, %p44
    %p46 = scmp.ne.s32.totalorder %s32, %s33
    %p47 = scmp.eq.s32.totalorder %s25, 1
    %p48 = por %p46, %p47
    %p50 = scmp.ne.s32.totalorder %s33, %s49
    %p51 = scmp.eq.s32.totalorder %s25, 0
    %p52 = por %p50, %p51
    %s53 = ssub.s32 %s19, %s26
    %p54 = scmp.eq.s32.totalorder %s53, 0
    %s56 = sadd.s32 %s55, 1
    %s57 = scalar_select %p54, %s55, %s56
    %p60 = pneg %p54
    %p61 = scmp.eq.s32.totalorder %s19, 1
    %p62 = por %p60, %p61
    %p63 = scmp.ne.s32.totalorder %s55, %s58
    %p64 = scmp.eq.s32.totalorder %s19, 0
    %p65 = por %p63, %p64
    %p66 = scmp.ne.s32.totalorder %s55, %s58
    %p67 = scmp.eq.s32.totalorder %s24, 1
    %p68 = por %p66, %p67
    %p69 = scmp.ne.s32.totalorder %s58, %s59
    %p70 = scmp.eq.s32.totalorder %s24, 0
    %p71 = por %p69, %p70
    %p72 = scmp.ne.s32.totalorder %s58, %s59
    %p73 = scmp.eq.s32.totalorder %s25, 1
    %p74 = por %p72, %p73
    %p76 = scmp.ne.s32.totalorder %s59, %s75
    %p77 = scmp.eq.s32.totalorder %s25, 0
    %p78 = por %p76, %p77
    %s79 = ssub.s32 %s19, %s26
    %p80 = scmp.eq.s32.totalorder %s79, 0
    %s82 = sadd.s32 %s81, 1
    %s83 = scalar_select %p80, %s81, %s82
    %p86 = pneg %p80
    %p87 = scmp.eq.s32.totalorder %s19, 1
    %p88 = por %p86, %p87
    %p89 = scmp.ne.s32.totalorder %s81, %s84
    %p90 = scmp.eq.s32.totalorder %s19, 0
    %p91 = por %p89, %p90
    %p92 = scmp.ne.s32.totalorder %s81, %s84
    %p93 = scmp.eq.s32.totalorder %s24, 1
    %p94 = por %p92, %p93
    %p95 = scmp.ne.s32.totalorder %s84, %s85
    %p96 = scmp.eq.s32.totalorder %s24, 0
    %p97 = por %p95, %p96
    %p98 = scmp.ne.s32.totalorder %s84, %s85
    %p99 = scmp.eq.s32.totalorder %s25, 1
    %p100 = por %p98, %p99
    %p102 = scmp.ne.s32.totalorder %s85, %s101
    %p103 = scmp.eq.s32.totalorder %s25, 0
    %p104 = por %p102, %p103
    %s105 = ssub.s32 %s19, %s26
    %p106 = scmp.eq.s32.totalorder %s105, 0
    %s108 = sadd.s32 %s107, 1
    %s109 = scalar_select %p106, %s107, %s108
    %p112 = pneg %p106
    %p113 = scmp.eq.s32.totalorder %s19, 1
    %p114 = por %p112, %p113
    %p115 = scmp.ne.s32.totalorder %s107, %s110
    %p116 = scmp.eq.s32.totalorder %s19, 0
    %p117 = por %p115, %p116
    %p118 = scmp.ne.s32.totalorder %s107, %s110
    %p119 = scmp.eq.s32.totalorder %s24, 1
    %p120 = por %p118, %p119
    %p121 = scmp.ne.s32.totalorder %s110, %s111
    %p122 = scmp.eq.s32.totalorder %s24, 0
    %p123 = por %p121, %p122
    %p124 = scmp.ne.s32.totalorder %s110, %s111
    %p125 = scmp.eq.s32.totalorder %s25, 1
    %p126 = por %p124, %p125
    %p128 = scmp.ne.s32.totalorder %s111, %s127
    %p129 = scmp.eq.s32.totalorder %s25, 0
    %p130 = por %p128, %p129
    %s132 = sadd.s32 %s131, 1
    %p135 = scmp.eq.s32.totalorder %s19, 1
    %p136 = scmp.ne.s32.totalorder %s131, %s133
    %p137 = scmp.eq.s32.totalorder %s19, 0
    %p138 = por %p136, %p137
    %p139 = scmp.ne.s32.totalorder %s131, %s133
    %p140 = scmp.eq.s32.totalorder %s24, 1
    %p141 = por %p139, %p140
    %p142 = scmp.ne.s32.totalorder %s133, %s134
    %p143 = scmp.eq.s32.totalorder %s24, 0
    %p144 = por %p142, %p143
    %p145 = scmp.ne.s32.totalorder %s133, %s134
    %p146 = scmp.eq.s32.totalorder %s25, 1
    %p147 = por %p145, %p146
    %p149 = scmp.ne.s32.totalorder %s134, %s148
    %p150 = scmp.eq.s32.totalorder %s25, 0
    %p151 = por %p149, %p150
    %s153 = sadd.s32 %s152, 1
    %p156 = scmp.eq.s32.totalorder %s19, 1
    %p157 = scmp.ne.s32.totalorder %s152, %s154
    %p158 = scmp.eq.s32.totalorder %s19, 0
    %p159 = por %p157, %p158
    %p160 = scmp.ne.s32.totalorder %s152, %s154
    %p161 = scmp.eq.s32.totalorder %s24, 1
    %p162 = por %p160, %p161
    %p163 = scmp.ne.s32.totalorder %s154, %s155
    %p164 = scmp.eq.s32.totalorder %s24, 0
    %p165 = por %p163, %p164
    %p166 = scmp.ne.s32.totalorder %s154, %s155
    %p167 = scmp.eq.s32.totalorder %s25, 1
    %p168 = por %p166, %p167
    %p170 = scmp.ne.s32.totalorder %s155, %s169
    %p171 = scmp.eq.s32.totalorder %s25, 0
    %p172 = por %p170, %p171
    %s174 = sadd.s32 %s173, 1
    %p177 = scmp.eq.s32.totalorder %s19, 1
    %p178 = scmp.ne.s32.totalorder %s173, %s175
    %p179 = scmp.eq.s32.totalorder %s19, 0
    %p180 = por %p178, %p179
    %p181 = scmp.ne.s32.totalorder %s173, %s175
    %p182 = scmp.eq.s32.totalorder %s24, 1
    %p183 = por %p181, %p182
    %p184 = scmp.ne.s32.totalorder %s175, %s176
    %p185 = scmp.eq.s32.totalorder %s24, 0
    %p186 = por %p184, %p185
    %p187 = scmp.ne.s32.totalorder %s175, %s176
    %p188 = scmp.eq.s32.totalorder %s25, 1
    %p189 = por %p187, %p188
    %p191 = scmp.ne.s32.totalorder %s176, %s190
    %p192 = scmp.eq.s32.totalorder %s25, 0
    %p193 = por %p191, %p192
    %s195 = sadd.s32 %s194, 1
    %p198 = scmp.eq.s32.totalorder %s19, 1
    %p199 = scmp.ne.s32.totalorder %s194, %s196
    %p200 = scmp.eq.s32.totalorder %s19, 0
    %p201 = por %p199, %p200
    %p202 = scmp.ne.s32.totalorder %s194, %s196
    %p203 = scmp.eq.s32.totalorder %s24, 1
    %p204 = por %p202, %p203
    %p205 = scmp.ne.s32.totalorder %s196, %s197
    %p206 = scmp.eq.s32.totalorder %s24, 0
    %p207 = por %p205, %p206
    %p208 = scmp.ne.s32.totalorder %s196, %s197
    %p209 = scmp.eq.s32.totalorder %s25, 1
    %p210 = por %p208, %p209
    %p212 = scmp.ne.s32.totalorder %s197, %s211
    %p213 = scmp.eq.s32.totalorder %s25, 0
    %p214 = por %p212, %p213
    %s216 = sadd.s32 %s215, 1
    %p219 = scmp.eq.s32.totalorder %s19, 1
    %p220 = scmp.ne.s32.totalorder %s215, %s217
    %p221 = scmp.eq.s32.totalorder %s19, 0
    %p222 = por %p220, %p221
    %p223 = scmp.ne.s32.totalorder %s215, %s217
    %p224 = scmp.eq.s32.totalorder %s24, 1
    %p225 = por %p223, %p224
    %p226 = scmp.ne.s32.totalorder %s217, %s218
    %p227 = scmp.eq.s32.totalorder %s24, 0
    %p228 = por %p226, %p227
    %p229 = scmp.ne.s32.totalorder %s217, %s218
    %p230 = scmp.eq.s32.totalorder %s25, 1
    %p231 = por %p229, %p230
    %p233 = scmp.ne.s32.totalorder %s218, %s232
    %p234 = scmp.eq.s32.totalorder %s25, 0
    %p235 = por %p233, %p234
    %s237 = sadd.s32 %s236, 1
    %p240 = scmp.eq.s32.totalorder %s19, 1
    %p241 = scmp.ne.s32.totalorder %s236, %s238
    %p242 = scmp.eq.s32.totalorder %s19, 0
    %p243 = por %p241, %p242
    %p244 = scmp.ne.s32.totalorder %s236, %s238
    %p245 = scmp.eq.s32.totalorder %s24, 1
    %p246 = por %p244, %p245
    %p247 = scmp.ne.s32.totalorder %s238, %s239
    %p248 = scmp.eq.s32.totalorder %s24, 0
    %p249 = por %p247, %p248
    %p250 = scmp.ne.s32.totalorder %s238, %s239
    %p251 = scmp.eq.s32.totalorder %s25, 1
    %p252 = por %p250, %p251
    %p254 = scmp.ne.s32.totalorder %s239, %s253
    %p255 = scmp.eq.s32.totalorder %s25, 0
    %p256 = por %p254, %p255
    %s257 = ssub.s32 %s19, %s26
    %p258 = scmp.eq.s32.totalorder %s257, 0
    %s260 = sadd.s32 %s259, 1
    %s261 = scalar_select %p258, %s259, %s260
    %p264 = pneg %p258
    %p265 = scmp.eq.s32.totalorder %s19, 1
    %p266 = por %p264, %p265
    %p267 = scmp.ne.s32.totalorder %s259, %s262
    %p268 = scmp.eq.s32.totalorder %s19, 0
    %p269 = por %p267, %p268
    %p270 = scmp.ne.s32.totalorder %s259, %s262
    %p271 = scmp.eq.s32.totalorder %s24, 1
    %p272 = por %p270, %p271
    %p273 = scmp.ne.s32.totalorder %s262, %s263
    %p274 = scmp.eq.s32.totalorder %s24, 0
    %p275 = por %p273, %p274
    %p276 = scmp.ne.s32.totalorder %s262, %s263
    %p277 = scmp.eq.s32.totalorder %s25, 1
    %p278 = por %p276, %p277
    %p280 = scmp.ne.s32.totalorder %s263, %s279
    %p281 = scmp.eq.s32.totalorder %s25, 0
    %p282 = por %p280, %p281
    %s283 = ssub.s32 %s19, %s26
    %p284 = scmp.eq.s32.totalorder %s283, 0
    %s286 = sadd.s32 %s285, 1
    %s287 = scalar_select %p284, %s285, %s286
    %p290 = pneg %p284
    %p291 = scmp.eq.s32.totalorder %s19, 1
    %p292 = por %p290, %p291
    %p293 = scmp.ne.s32.totalorder %s285, %s288
    %p294 = scmp.eq.s32.totalorder %s19, 0
    %p295 = por %p293, %p294
    %p296 = scmp.ne.s32.totalorder %s285, %s288
    %p297 = scmp.eq.s32.totalorder %s24, 1
    %p298 = por %p296, %p297
    %p299 = scmp.ne.s32.totalorder %s288, %s289
    %p300 = scmp.eq.s32.totalorder %s24, 0
    %p301 = por %p299, %p300
    %p302 = scmp.ne.s32.totalorder %s288, %s289
    %p303 = scmp.eq.s32.totalorder %s25, 1
    %p304 = por %p302, %p303
    %p306 = scmp.ne.s32.totalorder %s289, %s305
    %p307 = scmp.eq.s32.totalorder %s25, 0
    %p308 = por %p306, %p307
    %s309 = ssub.s32 %s19, %s26
    %p310 = scmp.eq.s32.totalorder %s309, 0
    %s312 = sadd.s32 %s311, 1
    %s313 = scalar_select %p310, %s311, %s312
    %p316 = pneg %p310
    %p317 = scmp.eq.s32.totalorder %s19, 1
    %p318 = por %p316, %p317
    %p319 = scmp.ne.s32.totalorder %s311, %s314
    %p320 = scmp.eq.s32.totalorder %s19, 0
    %p321 = por %p319, %p320
    %p322 = scmp.ne.s32.totalorder %s311, %s314
    %p323 = scmp.eq.s32.totalorder %s24, 1
    %p324 = por %p322, %p323
    %p325 = scmp.ne.s32.totalorder %s314, %s315
    %p326 = scmp.eq.s32.totalorder %s24, 0
    %p327 = por %p325, %p326
    %p328 = scmp.ne.s32.totalorder %s314, %s315
    %p329 = scmp.eq.s32.totalorder %s25, 1
    %p330 = por %p328, %p329
    %p332 = scmp.ne.s32.totalorder %s315, %s331
    %p333 = scmp.eq.s32.totalorder %s25, 0
    %p334 = por %p332, %p333
    %p335 = scmp.le.s32.totalorder 1, %s19
    %p336 = scmp.lt.s32.totalorder %s19, 3
    %p337 = pnand %p335, %p336
    %p338 = pneg %p337
    // Predicated region
    $region9: #{efdb_forward.10} parent=5 // pred_check
      _
    $region10: #{efdb_forward.10} parent=5 // pred_check_branch
      %340 = sbr.rel (%p337) target = $region12
    $region11: #{efdb_forward.10} parent=5 // pred_region
      %s341 = ssub.s32 %s19, 1
      // Predicated region
      $region13: #{efdb_forward.10} parent=11 // pred_check
        %p342 = pneg %p144
      $region14: #{efdb_forward.10} parent=11 // pred_check_branch
        %344 = sbr.rel (%p342) target = $region16
      $region15: #{efdb_forward.10} parent=11 // pred_region
        _
      $region16: #{efdb_forward.10} parent=11 // pred_fallthru
        _
      // Predicated region
      $region17: #{efdb_forward.10} parent=11 // pred_check
        %p345 = pneg %p165
      $region18: #{efdb_forward.10} parent=11 // pred_check_branch
        %347 = sbr.rel (%p345) target = $region20
      $region19: #{efdb_forward.10} parent=11 // pred_region
        _
      $region20: #{efdb_forward.10} parent=11 // pred_fallthru
        _
      // Predicated region
      $region21: #{efdb_forward.10} parent=11 // pred_check
        %p348 = pneg %p186
      $region22: #{efdb_forward.10} parent=11 // pred_check_branch
        %350 = sbr.rel (%p348) target = $region24
      $region23: #{efdb_forward.10} parent=11 // pred_region
        _
      $region24: #{efdb_forward.10} parent=11 // pred_fallthru
        _
      // Predicated region
      $region25: #{efdb_forward.10} parent=11 // pred_check
        %p351 = pneg %p207
      $region26: #{efdb_forward.10} parent=11 // pred_check_branch
        %353 = sbr.rel (%p351) target = $region28
      $region27: #{efdb_forward.10} parent=11 // pred_region
        _
      $region28: #{efdb_forward.10} parent=11 // pred_fallthru
        _
      // Predicated region
      $region29: #{efdb_forward.10} parent=11 // pred_check
        %p354 = pneg %p228
      $region30: #{efdb_forward.10} parent=11 // pred_check_branch
        %356 = sbr.rel (%p354) target = $region32
      $region31: #{efdb_forward.10} parent=11 // pred_region
        _
      $region32: #{efdb_forward.10} parent=11 // pred_fallthru
        _
      // Predicated region
      $region33: #{efdb_forward.10} parent=11 // pred_check
        %p357 = pneg %p249
      $region34: #{efdb_forward.10} parent=11 // pred_check_branch
        %359 = sbr.rel (%p357) target = $region36
      $region35: #{efdb_forward.10} parent=11 // pred_region
        _
      $region36: #{efdb_forward.10} parent=11 // pred_fallthru
        _
    $region12: #{efdb_forward.10} parent=5 // pred_fallthru
      _
    %p360 = scmp.lt.s32.totalorder %s19, 2
    // Predicated region
    $region37: #{efdb_forward.10} parent=5 // pred_check
      %p361 = pneg %p360
    $region38: #{efdb_forward.10} parent=5 // pred_check_branch
      %363 = sbr.rel (%p361) target = $region40
    $region39: #{efdb_forward.10} parent=5 // pred_region
      // Predicated region
      $region41: #{efdb_forward.10} parent=39 // pred_check
        %p364 = pneg %p39
      $region42: #{efdb_forward.10} parent=39 // pred_check_branch
        %366 = sbr.rel (%p364) target = $region44
      $region43: #{efdb_forward.10} parent=39 // pred_region
        %s367 = smul.u32 32, %s19
        %p368 = scmp.lt.s32.totalorder %s367, 63
        %s369 = scalar_select %p368, %s367, 63
        %s370 = smul.addr %s369, 4
        %s371 = scalar_lea.vmem %s0, %s370
        %s372 = smul.u32 32, %s19
      $region44: #{efdb_forward.10} parent=39 // pred_fallthru
        _
      // Predicated region
      $region45: #{efdb_forward.10} parent=39 // pred_check
        %p373 = pneg %p65
      $region46: #{efdb_forward.10} parent=39 // pred_check_branch
        %375 = sbr.rel (%p373) target = $region48
      $region47: #{efdb_forward.10} parent=39 // pred_region
        %s376 = smul.u32 32, %s19
        %p377 = scmp.lt.s32.totalorder %s376, 63
        %s378 = scalar_select %p377, %s376, 63
        %s379 = smul.addr %s378, 4
        %s380 = scalar_lea.vmem %s1, %s379
        %s381 = smul.u32 32, %s19
      $region48: #{efdb_forward.10} parent=39 // pred_fallthru
        _
      // Predicated region
      $region49: #{efdb_forward.10} parent=39 // pred_check
        %p382 = pneg %p91
      $region50: #{efdb_forward.10} parent=39 // pred_check_branch
        %384 = sbr.rel (%p382) target = $region52
      $region51: #{efdb_forward.10} parent=39 // pred_region
        %s385 = smul.u32 32, %s19
        %p386 = scmp.lt.s32.totalorder %s385, 63
        %s387 = scalar_select %p386, %s385, 63
        %s388 = smul.addr %s387, 4
        %s389 = scalar_lea.vmem %s2, %s388
        %s390 = smul.u32 32, %s19
      $region52: #{efdb_forward.10} parent=39 // pred_fallthru
        _
      // Predicated region
      $region53: #{efdb_forward.10} parent=39 // pred_check
        %p391 = pneg %p117
      $region54: #{efdb_forward.10} parent=39 // pred_check_branch
        %393 = sbr.rel (%p391) target = $region56
      $region55: #{efdb_forward.10} parent=39 // pred_region
        %s394 = smul.u32 32, %s19
        %p395 = scmp.lt.s32.totalorder %s394, 63
        %s396 = scalar_select %p395, %s394, 63
        %s397 = smul.addr %s396, 4
        %s398 = scalar_lea.vmem %s3, %s397
        %s399 = smul.u32 32, %s19
      $region56: #{efdb_forward.10} parent=39 // pred_fallthru
        _
    $region40: #{efdb_forward.10} parent=5 // pred_fallthru
      _
    %p400 = scmp.le.s32.totalorder 1, %s19
    %p401 = scmp.lt.s32.totalorder %s19, 3
    %p402 = pnand %p400, %p401
    %p403 = pneg %p402
    // Predicated region
    $region57: #{efdb_forward.10} parent=5 // pred_check
      _
    $region58: #{efdb_forward.10} parent=5 // pred_check_branch
      %405 = sbr.rel (%p402) target = $region60
    $region59: #{efdb_forward.10} parent=5 // pred_region
      %s406 = ssub.s32 %s19, 1
      %s407 = smul.u32 32, %s24
      %p408 = scmp.lt.s32.totalorder %s407, 63
      %s409 = scalar_select %p408, %s407, 63
      %s410 = smul.addr %s409, 4
      %s411 = scalar_lea.vmem %s0, %s410
      %p412 = pneg %p45
      %p413 = pneg %p42
      %s414 = smul.u32 32, %s24
      %p415 = scmp.lt.s32.totalorder %s414, 63
      %s416 = scalar_select %p415, %s414, 63
      %s417 = smul.addr %s416, 4
      %s418 = scalar_lea.vmem %s1, %s417
      %p419 = pneg %p71
      %p420 = pneg %p68
      %s421 = smul.u32 32, %s24
      %p422 = scmp.lt.s32.totalorder %s421, 63
      %s423 = scalar_select %p422, %s421, 63
      %s424 = smul.addr %s423, 4
      %s425 = scalar_lea.vmem %s2, %s424
      %p426 = pneg %p97
      %p427 = pneg %p94
      %s428 = smul.u32 32, %s24
      %p429 = scmp.lt.s32.totalorder %s428, 63
      %s430 = scalar_select %p429, %s428, 63
      %s431 = smul.addr %s430, 4
      %s432 = scalar_lea.vmem %s3, %s431
      %p433 = pneg %p123
      %p434 = pneg %p120
      %p435 = pneg %p144
      %p436 = pneg %p141
      %p437 = pneg %p165
      %p438 = pneg %p162
      %p439 = pneg %p186
      %p440 = pneg %p183
      %p441 = pneg %p207
      %p442 = pneg %p204
      %p443 = pneg %p228
      %p444 = pneg %p225
      %p445 = pneg %p249
      %p446 = pneg %p246
      %p447 = pneg %p275
      %p448 = pneg %p272
      %s449 = smul.u32 32, %s24
      %p450 = scmp.lt.s32.totalorder %s449, 63
      %s451 = scalar_select %p450, %s449, 63
      %s452 = smul.addr %s451, 4
      %s453 = scalar_lea.vmem %s10, %s452
      %p454 = pneg %p301
      %p455 = pneg %p298
      %s456 = smul.u32 32, %s24
      %p457 = scmp.lt.s32.totalorder %s456, 63
      %s458 = scalar_select %p457, %s456, 63
      %s459 = smul.addr %s458, 4
      %s460 = scalar_lea.vmem %s11, %s459
      %p461 = pneg %p327
      %p462 = pneg %p324
      %s463 = smul.u32 32, %s24
      %p464 = scmp.lt.s32.totalorder %s463, 63
      %s465 = scalar_select %p464, %s463, 63
      %s466 = smul.addr %s465, 8
      %s467 = scalar_lea.vmem %s12, %s466
      %s468 = smul.u32 32, %s24
      %p469 = scmp.lt.s32.totalorder %s468, 63
      %s470 = scalar_select %p469, %s468, 63
      %s471 = smul.addr %s470, 4
      %s472 = scalar_lea.vmem %s0, %s471
      %s473 = smul.u32 32, %s24
      %s474 = smul.u32 32, %s24
      %p475 = scmp.lt.s32.totalorder %s474, 63
      %s476 = scalar_select %p475, %s474, 63
      %s477 = smul.addr %s476, 4
      %s478 = scalar_lea.vmem %s1, %s477
      %s479 = smul.u32 32, %s24
      %s480 = smul.u32 32, %s24
      %p481 = scmp.lt.s32.totalorder %s480, 63
      %s482 = scalar_select %p481, %s480, 63
      %s483 = smul.addr %s482, 4
      %s484 = scalar_lea.vmem %s2, %s483
      %s485 = smul.u32 32, %s24
      %s486 = smul.u32 32, %s24
      %p487 = scmp.lt.s32.totalorder %s486, 63
      %s488 = scalar_select %p487, %s486, 63
      %s489 = smul.addr %s488, 4
      %s490 = scalar_lea.vmem %s3, %s489
      %s491 = smul.u32 32, %s24
      %s492 = smul.u32 32, %s24
      %p493 = scmp.lt.s32.totalorder %s492, 63
      %s494 = scalar_select %p493, %s492, 63
      %s495 = smul.addr %s494, 4
      %s496 = scalar_lea.vmem %s10, %s495
      %s497 = smul.u32 32, %s24
      %s498 = smul.u32 32, %s24
      %p499 = scmp.lt.s32.totalorder %s498, 63
      %s500 = scalar_select %p499, %s498, 63
      %s501 = smul.addr %s500, 4
      %s502 = scalar_lea.vmem %s11, %s501
      %s503 = smul.u32 32, %s24
      %s504 = smul.u32 32, %s24
      %p505 = scmp.lt.s32.totalorder %s504, 63
      %s506 = scalar_select %p505, %s504, 63
      %s507 = smul.addr %s506, 8
      %s508 = scalar_lea.vmem %s12, %s507
      %s509 = smul.u32 32, %s24
      %v511 = vld [vmem:[%s472] sm:$0xf]
      %v512 = vld [vmem:[%s472 + $0x4] sm:$0xf]
      %v513 = vld [vmem:[%s472 + $0x8] sm:$0xf]
      %v514 = vld [vmem:[%s472 + $0xc] sm:$0xf]
      %v515 = vld [vmem:[%s472 + $0x10] sm:$0xf]
      %v516 = vld [vmem:[%s472 + $0x14] sm:$0xf]
      %v517 = vld [vmem:[%s472 + $0x18] sm:$0xf]
      %v518 = vld [vmem:[%s472 + $0x1c] sm:$0xf]
      %v519 = vld [vmem:[%s472 + $0x20] sm:$0xf]
      %v520 = vld [vmem:[%s472 + $0x24] sm:$0xf]
      %v521 = vld [vmem:[%s472 + $0x28] sm:$0xf]
      %v522 = vld [vmem:[%s472 + $0x2c] sm:$0xf]
      %v523 = vld [vmem:[%s472 + $0x30] sm:$0xf]
      %v524 = vld [vmem:[%s472 + $0x34] sm:$0xf]
      %v525 = vld [vmem:[%s472 + $0x38] sm:$0xf]
      %v526 = vld [vmem:[%s472 + $0x3c] sm:$0xf]
      %v527 = vld [vmem:[%s472 + $0x40] sm:$0xf]
      %v528 = vld [vmem:[%s472 + $0x44] sm:$0xf]
      %v529 = vld [vmem:[%s472 + $0x48] sm:$0xf]
      %v530 = vld [vmem:[%s472 + $0x4c] sm:$0xf]
      %v531 = vld [vmem:[%s472 + $0x50] sm:$0xf]
      %v532 = vld [vmem:[%s472 + $0x54] sm:$0xf]
      %v533 = vld [vmem:[%s472 + $0x58] sm:$0xf]
      %v534 = vld [vmem:[%s472 + $0x5c] sm:$0xf]
      %v535 = vld [vmem:[%s472 + $0x60] sm:$0xf]
      %v536 = vld [vmem:[%s472 + $0x64] sm:$0xf]
      %v537 = vld [vmem:[%s472 + $0x68] sm:$0xf]
      %v538 = vld [vmem:[%s472 + $0x6c] sm:$0xf]
      %v539 = vld [vmem:[%s472 + $0x70] sm:$0xf]
      %v540 = vld [vmem:[%s472 + $0x74] sm:$0xf]
      %v541 = vld [vmem:[%s472 + $0x78] sm:$0xf]
      %v542 = vld [vmem:[%s472 + $0x7c] sm:$0xf]
      %v543 = vld [vmem:[%s4] sm:$0xf]
      %v544 = vld [vmem:[%s4 + $0x4] sm:$0xf]
      %v545 = vld [vmem:[%s478] sm:$0xf]
      %v546 = vld [vmem:[%s478 + $0x4] sm:$0xf]
      %v547 = vld [vmem:[%s478 + $0x8] sm:$0xf]
      %v548 = vld [vmem:[%s478 + $0xc] sm:$0xf]
      %v549 = vld [vmem:[%s478 + $0x10] sm:$0xf]
      %v550 = vld [vmem:[%s478 + $0x14] sm:$0xf]
      %v551 = vld [vmem:[%s478 + $0x18] sm:$0xf]
      %v552 = vld [vmem:[%s478 + $0x1c] sm:$0xf]
      %v553 = vld [vmem:[%s478 + $0x20] sm:$0xf]
      %v554 = vld [vmem:[%s478 + $0x24] sm:$0xf]
      %v555 = vld [vmem:[%s478 + $0x28] sm:$0xf]
      %v556 = vld [vmem:[%s478 + $0x2c] sm:$0xf]
      %v557 = vld [vmem:[%s478 + $0x30] sm:$0xf]
      %v558 = vld [vmem:[%s478 + $0x34] sm:$0xf]
      %v559 = vld [vmem:[%s478 + $0x38] sm:$0xf]
      %v560 = vld [vmem:[%s478 + $0x3c] sm:$0xf]
      %v561 = vld [vmem:[%s478 + $0x40] sm:$0xf]
      %v562 = vld [vmem:[%s478 + $0x44] sm:$0xf]
      %v563 = vld [vmem:[%s478 + $0x48] sm:$0xf]
      %v564 = vld [vmem:[%s478 + $0x4c] sm:$0xf]
      %v565 = vld [vmem:[%s478 + $0x50] sm:$0xf]
      %v566 = vld [vmem:[%s478 + $0x54] sm:$0xf]
      %v567 = vld [vmem:[%s478 + $0x58] sm:$0xf]
      %v568 = vld [vmem:[%s478 + $0x5c] sm:$0xf]
      %v569 = vld [vmem:[%s478 + $0x60] sm:$0xf]
      %v570 = vld [vmem:[%s478 + $0x64] sm:$0xf]
      %v571 = vld [vmem:[%s478 + $0x68] sm:$0xf]
      %v572 = vld [vmem:[%s478 + $0x6c] sm:$0xf]
      %v573 = vld [vmem:[%s478 + $0x70] sm:$0xf]
      %v574 = vld [vmem:[%s478 + $0x74] sm:$0xf]
      %v575 = vld [vmem:[%s478 + $0x78] sm:$0xf]
      %v576 = vld [vmem:[%s478 + $0x7c] sm:$0xf]
      %s577 = scalar_lea.vmem %s4, 8
      %v578 = vld [vmem:[%s577] sm:$0xf]
      %v579 = vld [vmem:[%s577 + $0x4] sm:$0xf]
      %v612 = vunpack.c.l.b16 %v545
      %v613 = vunpack.c.l.b16 %v546
      %v614 = vunpack.c.l.b16 %v547
      %v615 = vunpack.c.l.b16 %v548
      %v616 = vunpack.c.l.b16 %v549
      %v617 = vunpack.c.l.b16 %v550
      %v618 = vunpack.c.l.b16 %v551
      %v619 = vunpack.c.l.b16 %v552
      %v620 = vunpack.c.l.b16 %v553
      %v621 = vunpack.c.l.b16 %v554
      %v622 = vunpack.c.l.b16 %v555
      %v623 = vunpack.c.l.b16 %v556
      %v624 = vunpack.c.l.b16 %v557
      %v625 = vunpack.c.l.b16 %v558
      %v626 = vunpack.c.l.b16 %v559
      %v627 = vunpack.c.l.b16 %v560
      %v628 = vunpack.c.l.b16 %v561
      %v629 = vunpack.c.l.b16 %v562
      %v630 = vunpack.c.l.b16 %v563
      %v631 = vunpack.c.l.b16 %v564
      %v632 = vunpack.c.l.b16 %v565
      %v633 = vunpack.c.l.b16 %v566
      %v634 = vunpack.c.l.b16 %v567
      %v635 = vunpack.c.l.b16 %v568
      %v636 = vunpack.c.l.b16 %v569
      %v637 = vunpack.c.l.b16 %v570
      %v638 = vunpack.c.l.b16 %v571
      %v639 = vunpack.c.l.b16 %v572
      %v640 = vunpack.c.l.b16 %v573
      %v641 = vunpack.c.l.b16 %v574
      %v642 = vunpack.c.l.b16 %v575
      %v643 = vunpack.c.l.b16 %v576
      %v644 = vpack.c.b16 %v613, %v612
      %v645 = vpack.c.b16 %v615, %v614
      %v646 = vpack.c.b16 %v617, %v616
      %v647 = vpack.c.b16 %v619, %v618
      %v648 = vpack.c.b16 %v621, %v620
      %v649 = vpack.c.b16 %v623, %v622
      %v650 = vpack.c.b16 %v625, %v624
      %v651 = vpack.c.b16 %v627, %v626
      %v652 = vpack.c.b16 %v629, %v628
      %v653 = vpack.c.b16 %v631, %v630
      %v654 = vpack.c.b16 %v633, %v632
      %v655 = vpack.c.b16 %v635, %v634
      %v656 = vpack.c.b16 %v637, %v636
      %v657 = vpack.c.b16 %v639, %v638
      %v658 = vpack.c.b16 %v641, %v640
      %v659 = vpack.c.b16 %v643, %v642
      %v662 = vunpack.c.l.b16 %v578
      %v663 = vunpack.c.l.b16 %v579
      %v664 = vpack.c.b16 %v663, %v662
      %vm666 = vcmask 130048
      %v668 = vsel %vm666, %v644, 0
      %v671 = vsel %vm666, %v645, 0
      %v674 = vsel %vm666, %v646, 0
      %v677 = vsel %vm666, %v647, 0
      %v680 = vsel %vm666, %v648, 0
      %v683 = vsel %vm666, %v649, 0
      %v686 = vsel %vm666, %v650, 0
      %v689 = vsel %vm666, %v651, 0
      %v692 = vsel %vm666, %v652, 0
      %v695 = vsel %vm666, %v653, 0
      %v698 = vsel %vm666, %v654, 0
      %v701 = vsel %vm666, %v655, 0
      %v704 = vsel %vm666, %v656, 0
      %v707 = vsel %vm666, %v657, 0
      %v710 = vsel %vm666, %v658, 0
      %v713 = vsel %vm666, %v659, 0
      %715 = vmatprep.subr.bf16.mxu0 0
      %716 = vmatpush1.bf16.msra.mxu0 %v664
      %717 = vmatprep.subr.bf16.mxu0 0
      %718 = vmatpush1.bf16.msra.mxu0 0
      %719 = vmatprep.subr.bf16.mxu0 0
      %720 = vmatpush1.bf16.msra.mxu0 0
      %721 = vmatprep.subr.bf16.mxu0 0
      %722 = vmatpush1.bf16.msra.mxu0 0
      %723 = vmatprep.subr.bf16.mxu0 0
      %724 = vmatpush1.bf16.msra.mxu0 0
      %725 = vmatprep.subr.bf16.mxu0 0
      %726 = vmatpush1.bf16.msra.mxu0 0
      %727 = vmatprep.subr.bf16.mxu0 0
      %728 = vmatpush1.bf16.msra.mxu0 0
      %729 = vmatprep.subr.bf16.mxu0 0
      %730 = vmatpush1.bf16.msra.mxu0 0
      %731 = vmatprep.subr.bf16.mxu0 0
      %732 = vmatpush1.bf16.msra.mxu0 0
      %733 = vmatprep.subr.bf16.mxu0 0
      %734 = vmatpush1.bf16.msra.mxu0 0
      %735 = vmatprep.subr.bf16.mxu0 0
      %736 = vmatpush1.bf16.msra.mxu0 0
      %737 = vmatprep.subr.bf16.mxu0 0
      %738 = vmatpush1.bf16.msra.mxu0 0
      %739 = vmatprep.subr.bf16.mxu0 0
      %740 = vmatpush1.bf16.msra.mxu0 0
      %741 = vmatprep.subr.bf16.mxu0 0
      %742 = vmatpush1.bf16.msra.mxu0 0
      %743 = vmatprep.subr.bf16.mxu0 0
      %744 = vmatpush1.bf16.msra.mxu0 0
      %745 = vmatprep.subr.bf16.mxu0 0
      %746 = vmatpush1.bf16.msra.mxu0 0
      %747 = vmatprep.mubr.bf16.mxu0 0
      %748 = vmatmul.mubr.bf16.gmra.mrb[0].mxu0 %v668
      %v749 = vpop.f32.mrb[0].mxu0
      %v750 = vadd.f32 0.0, %v749
      %v751 = vpop.f32.mrb[0].mxu0
      %v752 = vpop.f32.mrb[0].mxu0
      %v753 = vadd.f32 0.0, %v752
      %v754 = vpop.f32.mrb[0].mxu0
      %755 = vmatprep.mubr.bf16.mxu0 0
      %756 = vmatmul.mubr.bf16.gmra.mrb[0].mxu0 %v671
      %v757 = vpop.f32.mrb[0].mxu0
      %v758 = vadd.f32 0.0, %v757
      %v759 = vpop.f32.mrb[0].mxu0
      %v760 = vpop.f32.mrb[0].mxu0
      %v761 = vadd.f32 0.0, %v760
      %v762 = vpop.f32.mrb[0].mxu0
      %763 = vmatprep.mubr.bf16.mxu0 0
      %764 = vmatmul.mubr.bf16.gmra.mrb[0].mxu0 %v674
      %v765 = vpop.f32.mrb[0].mxu0
      %v766 = vadd.f32 0.0, %v765
      %v767 = vpop.f32.mrb[0].mxu0
      %v768 = vpop.f32.mrb[0].mxu0
      %v769 = vadd.f32 0.0, %v768
      %v770 = vpop.f32.mrb[0].mxu0
      %771 = vmatprep.mubr.bf16.mxu0 0
      %772 = vmatmul.mubr.bf16.gmra.mrb[0].mxu0 %v677
      %v773 = vpop.f32.mrb[0].mxu0
      %v774 = vadd.f32 0.0, %v773
      %v775 = vpop.f32.mrb[0].mxu0
      %v776 = vpop.f32.mrb[0].mxu0
      %v777 = vadd.f32 0.0, %v776
      %v778 = vpop.f32.mrb[0].mxu0
      %779 = vmatprep.mubr.bf16.mxu0 0
      %780 = vmatmul.mubr.bf16.gmra.mrb[0].mxu0 %v680
      %v781 = vpop.f32.mrb[0].mxu0
      %v782 = vadd.f32 0.0, %v781
      %v783 = vpop.f32.mrb[0].mxu0
      %v784 = vpop.f32.mrb[0].mxu0
      %v785 = vadd.f32 0.0, %v784
      %v786 = vpop.f32.mrb[0].mxu0
      %787 = vmatprep.mubr.bf16.mxu0 0
      %788 = vmatmul.mubr.bf16.gmra.mrb[0].mxu0 %v683
      %v789 = vpop.f32.mrb[0].mxu0
      %v790 = vadd.f32 0.0, %v789
      %v791 = vpop.f32.mrb[0].mxu0
      %v792 = vpop.f32.mrb[0].mxu0
      %v793 = vadd.f32 0.0, %v792
      %v794 = vpop.f32.mrb[0].mxu0
      %795 = vmatprep.mubr.bf16.mxu0 0
      %796 = vmatmul.mubr.bf16.gmra.mrb[0].mxu0 %v686
      %v797 = vpop.f32.mrb[0].mxu0
      %v798 = vadd.f32 0.0, %v797
      %v799 = vpop.f32.mrb[0].mxu0
      %v800 = vpop.f32.mrb[0].mxu0
      %v801 = vadd.f32 0.0, %v800
      %v802 = vpop.f32.mrb[0].mxu0
      %803 = vmatprep.mubr.bf16.mxu0 0
      %804 = vmatmul.mubr.bf16.gmra.mrb[0].mxu0 %v689
      %v805 = vpop.f32.mrb[0].mxu0
      %v806 = vadd.f32 0.0, %v805
      %v807 = vpop.f32.mrb[0].mxu0
      %v808 = vpop.f32.mrb[0].mxu0
      %v809 = vadd.f32 0.0, %v808
      %v810 = vpop.f32.mrb[0].mxu0
      %811 = vmatprep.mubr.bf16.mxu0 0
      %812 = vmatmul.mubr.bf16.gmra.mrb[0].mxu0 %v692
      %v813 = vpop.f32.mrb[0].mxu0
      %v814 = vadd.f32 0.0, %v813
      %v815 = vpop.f32.mrb[0].mxu0
      %v816 = vpop.f32.mrb[0].mxu0
      %v817 = vadd.f32 0.0, %v816
      %v818 = vpop.f32.mrb[0].mxu0
      %819 = vmatprep.mubr.bf16.mxu0 0
      %820 = vmatmul.mubr.bf16.gmra.mrb[0].mxu0 %v695
      %v821 = vpop.f32.mrb[0].mxu0
      %v822 = vadd.f32 0.0, %v821
      %v823 = vpop.f32.mrb[0].mxu0
      %v824 = vpop.f32.mrb[0].mxu0
      %v825 = vadd.f32 0.0, %v824
      %v826 = vpop.f32.mrb[0].mxu0
      %827 = vmatprep.mubr.bf16.mxu0 0
      %828 = vmatmul.mubr.bf16.gmra.mrb[0].mxu0 %v698
      %v829 = vpop.f32.mrb[0].mxu0
      %v830 = vadd.f32 0.0, %v829
      %v831 = vpop.f32.mrb[0].mxu0
      %v832 = vpop.f32.mrb[0].mxu0
      %v833 = vadd.f32 0.0, %v832
      %v834 = vpop.f32.mrb[0].mxu0
      %835 = vmatprep.mubr.bf16.mxu0 0
      %836 = vmatmul.mubr.bf16.gmra.mrb[0].mxu0 %v701
      %v837 = vpop.f32.mrb[0].mxu0
      %v838 = vadd.f32 0.0, %v837
      %v839 = vpop.f32.mrb[0].mxu0
      %v840 = vpop.f32.mrb[0].mxu0
      %v841 = vadd.f32 0.0, %v840
      %v842 = vpop.f32.mrb[0].mxu0
      %843 = vmatprep.mubr.bf16.mxu0 0
      %844 = vmatmul.mubr.bf16.gmra.mrb[0].mxu0 %v704
      %v845 = vpop.f32.mrb[0].mxu0
      %v846 = vadd.f32 0.0, %v845
      %v847 = vpop.f32.mrb[0].mxu0
      %v848 = vpop.f32.mrb[0].mxu0
      %v849 = vadd.f32 0.0, %v848
      %v850 = vpop.f32.mrb[0].mxu0
      %851 = vmatprep.mubr.bf16.mxu0 0
      %852 = vmatmul.mubr.bf16.gmra.mrb[0].mxu0 %v707
      %v853 = vpop.f32.mrb[0].mxu0
      %v854 = vadd.f32 0.0, %v853
      %v855 = vpop.f32.mrb[0].mxu0
      %v856 = vpop.f32.mrb[0].mxu0
      %v857 = vadd.f32 0.0, %v856
      %v858 = vpop.f32.mrb[0].mxu0
      %859 = vmatprep.mubr.bf16.mxu0 0
      %860 = vmatmul.mubr.bf16.gmra.mrb[0].mxu0 %v710
      %v861 = vpop.f32.mrb[0].mxu0
      %v862 = vadd.f32 0.0, %v861
      %v863 = vpop.f32.mrb[0].mxu0
      %v864 = vpop.f32.mrb[0].mxu0
      %v865 = vadd.f32 0.0, %v864
      %v866 = vpop.f32.mrb[0].mxu0
      %867 = vmatprep.mubr.bf16.mxu0 0
      %868 = vmatmul.mubr.bf16.gmra.mrb[0].mxu0 %v713
      %v869 = vpop.f32.mrb[0].mxu0
      %v870 = vadd.f32 0.0, %v869
      %v871 = vpop.f32.mrb[0].mxu0
      %v872 = vpop.f32.mrb[0].mxu0
      %v873 = vadd.f32 0.0, %v872
      %v874 = vpop.f32.mrb[0].mxu0
      %875 = vdwg.mxu0
      %v908 = vunpack.c.l.b16 %v511
      %v909 = vunpack.c.l.b16 %v512
      %v910 = vunpack.c.l.b16 %v513
      %v911 = vunpack.c.l.b16 %v514
      %v912 = vunpack.c.l.b16 %v515
      %v913 = vunpack.c.l.b16 %v516
      %v914 = vunpack.c.l.b16 %v517
      %v915 = vunpack.c.l.b16 %v518
      %v916 = vunpack.c.l.b16 %v519
      %v917 = vunpack.c.l.b16 %v520
      %v918 = vunpack.c.l.b16 %v521
      %v919 = vunpack.c.l.b16 %v522
      %v920 = vunpack.c.l.b16 %v523
      %v921 = vunpack.c.l.b16 %v524
      %v922 = vunpack.c.l.b16 %v525
      %v923 = vunpack.c.l.b16 %v526
      %v924 = vunpack.c.l.b16 %v527
      %v925 = vunpack.c.l.b16 %v528
      %v926 = vunpack.c.l.b16 %v529
      %v927 = vunpack.c.l.b16 %v530
      %v928 = vunpack.c.l.b16 %v531
      %v929 = vunpack.c.l.b16 %v532
      %v930 = vunpack.c.l.b16 %v533
      %v931 = vunpack.c.l.b16 %v534
      %v932 = vunpack.c.l.b16 %v535
      %v933 = vunpack.c.l.b16 %v536
      %v934 = vunpack.c.l.b16 %v537
      %v935 = vunpack.c.l.b16 %v538
      %v936 = vunpack.c.l.b16 %v539
      %v937 = vunpack.c.l.b16 %v540
      %v938 = vunpack.c.l.b16 %v541
      %v939 = vunpack.c.l.b16 %v542
      %v940 = vpack.c.b16 %v909, %v908
      %v941 = vpack.c.b16 %v911, %v910
      %v942 = vpack.c.b16 %v913, %v912
      %v943 = vpack.c.b16 %v915, %v914
      %v944 = vpack.c.b16 %v917, %v916
      %v945 = vpack.c.b16 %v919, %v918
      %v946 = vpack.c.b16 %v921, %v920
      %v947 = vpack.c.b16 %v923, %v922
      %v948 = vpack.c.b16 %v925, %v924
      %v949 = vpack.c.b16 %v927, %v926
      %v950 = vpack.c.b16 %v929, %v928
      %v951 = vpack.c.b16 %v931, %v930
      %v952 = vpack.c.b16 %v933, %v932
      %v953 = vpack.c.b16 %v935, %v934
      %v954 = vpack.c.b16 %v937, %v936
      %v955 = vpack.c.b16 %v939, %v938
      %v958 = vunpack.c.l.b16 %v543
      %v959 = vunpack.c.l.b16 %v544
      %v960 = vpack.c.b16 %v959, %v958
      %v963 = vsel %vm666, %v940, 0
      %v966 = vsel %vm666, %v941, 0
      %v969 = vsel %vm666, %v942, 0
      %v972 = vsel %vm666, %v943, 0
      %v975 = vsel %vm666, %v944, 0
      %v978 = vsel %vm666, %v945, 0
      %v981 = vsel %vm666, %v946, 0
      %v984 = vsel %vm666, %v947, 0
      %v987 = vsel %vm666, %v948, 0
      %v990 = vsel %vm666, %v949, 0
      %v993 = vsel %vm666, %v950, 0
      %v996 = vsel %vm666, %v951, 0
      %v999 = vsel %vm666, %v952, 0
      %v1002 = vsel %vm666, %v953, 0
      %v1005 = vsel %vm666, %v954, 0
      %v1008 = vsel %vm666, %v955, 0
      %1010 = vmatprep.subr.bf16.mxu0 0
      %1011 = vmatpush1.bf16.msra.mxu0 %v960
      %1012 = vmatprep.subr.bf16.mxu0 0
      %1013 = vmatpush1.bf16.msra.mxu0 0
      %1014 = vmatprep.subr.bf16.mxu0 0
      %1015 = vmatpush1.bf16.msra.mxu0 0
      %1016 = vmatprep.subr.bf16.mxu0 0
      %1017 = vmatpush1.bf16.msra.mxu0 0
      %1018 = vmatprep.subr.bf16.mxu0 0
      %1019 = vmatpush1.bf16.msra.mxu0 0
      %1020 = vmatprep.subr.bf16.mxu0 0
      %1021 = vmatpush1.bf16.msra.mxu0 0
      %1022 = vmatprep.subr.bf16.mxu0 0
      %1023 = vmatpush1.bf16.msra.mxu0 0
      %1024 = vmatprep.subr.bf16.mxu0 0
      %1025 = vmatpush1.bf16.msra.mxu0 0
      %1026 = vmatprep.subr.bf16.mxu0 0
      %1027 = vmatpush1.bf16.msra.mxu0 0
      %1028 = vmatprep.subr.bf16.mxu0 0
      %1029 = vmatpush1.bf16.msra.mxu0 0
      %1030 = vmatprep.subr.bf16.mxu0 0
      %1031 = vmatpush1.bf16.msra.mxu0 0
      %1032 = vmatprep.subr.bf16.mxu0 0
      %1033 = vmatpush1.bf16.msra.mxu0 0
      %1034 = vmatprep.subr.bf16.mxu0 0
      %1035 = vmatpush1.bf16.msra.mxu0 0
      %1036 = vmatprep.subr.bf16.mxu0 0
      %1037 = vmatpush1.bf16.msra.mxu0 0
      %1038 = vmatprep.subr.bf16.mxu0 0
      %1039 = vmatpush1.bf16.msra.mxu0 0
      %1040 = vmatprep.subr.bf16.mxu0 0
      %1041 = vmatpush1.bf16.msra.mxu0 0
      %1042 = vmatprep.mubr.bf16.mxu0 0
      %1043 = vmatmul.mubr.bf16.gmra.mrb[0].mxu0 %v963
      %v1044 = vpop.f32.mrb[0].mxu0
      %v1045 = vadd.f32 %v750, %v1044
      %v1046 = vpop.f32.mrb[0].mxu0
      %v1047 = vpop.f32.mrb[0].mxu0
      %v1048 = vadd.f32 %v753, %v1047
      %v1049 = vpop.f32.mrb[0].mxu0
      %1050 = vmatprep.mubr.bf16.mxu0 0
      %1051 = vmatmul.mubr.bf16.gmra.mrb[0].mxu0 %v966
      %v1052 = vpop.f32.mrb[0].mxu0
      %v1053 = vadd.f32 %v758, %v1052
      %v1054 = vpop.f32.mrb[0].mxu0
      %v1055 = vpop.f32.mrb[0].mxu0
      %v1056 = vadd.f32 %v761, %v1055
      %v1057 = vpop.f32.mrb[0].mxu0
      %1058 = vmatprep.mubr.bf16.mxu0 0
      %1059 = vmatmul.mubr.bf16.gmra.mrb[0].mxu0 %v969
      %v1060 = vpop.f32.mrb[0].mxu0
      %v1061 = vadd.f32 %v766, %v1060
      %v1062 = vpop.f32.mrb[0].mxu0
      %v1063 = vpop.f32.mrb[0].mxu0
      %v1064 = vadd.f32 %v769, %v1063
      %v1065 = vpop.f32.mrb[0].mxu0
      %1066 = vmatprep.mubr.bf16.mxu0 0
      %1067 = vmatmul.mubr.bf16.gmra.mrb[0].mxu0 %v972
      %v1068 = vpop.f32.mrb[0].mxu0
      %v1069 = vadd.f32 %v774, %v1068
      %v1070 = vpop.f32.mrb[0].mxu0
      %v1071 = vpop.f32.mrb[0].mxu0
      %v1072 = vadd.f32 %v777, %v1071
      %v1073 = vpop.f32.mrb[0].mxu0
      %1074 = vmatprep.mubr.bf16.mxu0 0
      %1075 = vmatmul.mubr.bf16.gmra.mrb[0].mxu0 %v975
      %v1076 = vpop.f32.mrb[0].mxu0
      %v1077 = vadd.f32 %v782, %v1076
      %v1078 = vpop.f32.mrb[0].mxu0
      %v1079 = vpop.f32.mrb[0].mxu0
      %v1080 = vadd.f32 %v785, %v1079
      %v1081 = vpop.f32.mrb[0].mxu0
      %1082 = vmatprep.mubr.bf16.mxu0 0
      %1083 = vmatmul.mubr.bf16.gmra.mrb[0].mxu0 %v978
      %v1084 = vpop.f32.mrb[0].mxu0
      %v1085 = vadd.f32 %v790, %v1084
      %v1086 = vpop.f32.mrb[0].mxu0
      %v1087 = vpop.f32.mrb[0].mxu0
      %v1088 = vadd.f32 %v793, %v1087
      %v1089 = vpop.f32.mrb[0].mxu0
      %1090 = vmatprep.mubr.bf16.mxu0 0
      %1091 = vmatmul.mubr.bf16.gmra.mrb[0].mxu0 %v981
      %v1092 = vpop.f32.mrb[0].mxu0
      %v1093 = vadd.f32 %v798, %v1092
      %v1094 = vpop.f32.mrb[0].mxu0
      %v1095 = vpop.f32.mrb[0].mxu0
      %v1096 = vadd.f32 %v801, %v1095
      %v1097 = vpop.f32.mrb[0].mxu0
      %1098 = vmatprep.mubr.bf16.mxu0 0
      %1099 = vmatmul.mubr.bf16.gmra.mrb[0].mxu0 %v984
      %v1100 = vpop.f32.mrb[0].mxu0
      %v1101 = vadd.f32 %v806, %v1100
      %v1102 = vpop.f32.mrb[0].mxu0
      %v1103 = vpop.f32.mrb[0].mxu0
      %v1104 = vadd.f32 %v809, %v1103
      %v1105 = vpop.f32.mrb[0].mxu0
      %1106 = vmatprep.mubr.bf16.mxu0 0
      %1107 = vmatmul.mubr.bf16.gmra.mrb[0].mxu0 %v987
      %v1108 = vpop.f32.mrb[0].mxu0
      %v1109 = vadd.f32 %v814, %v1108
      %v1110 = vpop.f32.mrb[0].mxu0
      %v1111 = vpop.f32.mrb[0].mxu0
      %v1112 = vadd.f32 %v817, %v1111
      %v1113 = vpop.f32.mrb[0].mxu0
      %1114 = vmatprep.mubr.bf16.mxu0 0
      %1115 = vmatmul.mubr.bf16.gmra.mrb[0].mxu0 %v990
      %v1116 = vpop.f32.mrb[0].mxu0
      %v1117 = vadd.f32 %v822, %v1116
      %v1118 = vpop.f32.mrb[0].mxu0
      %v1119 = vpop.f32.mrb[0].mxu0
      %v1120 = vadd.f32 %v825, %v1119
      %v1121 = vpop.f32.mrb[0].mxu0
      %1122 = vmatprep.mubr.bf16.mxu0 0
      %1123 = vmatmul.mubr.bf16.gmra.mrb[0].mxu0 %v993
      %v1124 = vpop.f32.mrb[0].mxu0
      %v1125 = vadd.f32 %v830, %v1124
      %v1126 = vpop.f32.mrb[0].mxu0
      %v1127 = vpop.f32.mrb[0].mxu0
      %v1128 = vadd.f32 %v833, %v1127
      %v1129 = vpop.f32.mrb[0].mxu0
      %1130 = vmatprep.mubr.bf16.mxu0 0
      %1131 = vmatmul.mubr.bf16.gmra.mrb[0].mxu0 %v996
      %v1132 = vpop.f32.mrb[0].mxu0
      %v1133 = vadd.f32 %v838, %v1132
      %v1134 = vpop.f32.mrb[0].mxu0
      %v1135 = vpop.f32.mrb[0].mxu0
      %v1136 = vadd.f32 %v841, %v1135
      %v1137 = vpop.f32.mrb[0].mxu0
      %1138 = vmatprep.mubr.bf16.mxu0 0
      %1139 = vmatmul.mubr.bf16.gmra.mrb[0].mxu0 %v999
      %v1140 = vpop.f32.mrb[0].mxu0
      %v1141 = vadd.f32 %v846, %v1140
      %v1142 = vpop.f32.mrb[0].mxu0
      %v1143 = vpop.f32.mrb[0].mxu0
      %v1144 = vadd.f32 %v849, %v1143
      %v1145 = vpop.f32.mrb[0].mxu0
      %1146 = vmatprep.mubr.bf16.mxu0 0
      %1147 = vmatmul.mubr.bf16.gmra.mrb[0].mxu0 %v1002
      %v1148 = vpop.f32.mrb[0].mxu0
      %v1149 = vadd.f32 %v854, %v1148
      %v1150 = vpop.f32.mrb[0].mxu0
      %v1151 = vpop.f32.mrb[0].mxu0
      %v1152 = vadd.f32 %v857, %v1151
      %v1153 = vpop.f32.mrb[0].mxu0
      %1154 = vmatprep.mubr.bf16.mxu0 0
      %1155 = vmatmul.mubr.bf16.gmra.mrb[0].mxu0 %v1005
      %v1156 = vpop.f32.mrb[0].mxu0
      %v1157 = vadd.f32 %v862, %v1156
      %v1158 = vpop.f32.mrb[0].mxu0
      %v1159 = vpop.f32.mrb[0].mxu0
      %v1160 = vadd.f32 %v865, %v1159
      %v1161 = vpop.f32.mrb[0].mxu0
      %1162 = vmatprep.mubr.bf16.mxu0 0
      %1163 = vmatmul.mubr.bf16.gmra.mrb[0].mxu0 %v1008
      %v1164 = vpop.f32.mrb[0].mxu0
      %v1165 = vadd.f32 %v870, %v1164
      %v1166 = vpop.f32.mrb[0].mxu0
      %v1167 = vpop.f32.mrb[0].mxu0
      %v1168 = vadd.f32 %v873, %v1167
      %v1169 = vpop.f32.mrb[0].mxu0
      %1170 = vdwg.mxu0
      %v1171 = vld [vmem:[%s484] sm:$0xf]
      %v1172 = vld [vmem:[%s484 + $0x4] sm:$0xf]
      %v1173 = vld [vmem:[%s484 + $0x8] sm:$0xf]
      %v1174 = vld [vmem:[%s484 + $0xc] sm:$0xf]
      %v1175 = vld [vmem:[%s484 + $0x10] sm:$0xf]
      %v1176 = vld [vmem:[%s484 + $0x14] sm:$0xf]
      %v1177 = vld [vmem:[%s484 + $0x18] sm:$0xf]
      %v1178 = vld [vmem:[%s484 + $0x1c] sm:$0xf]
      %v1179 = vld [vmem:[%s484 + $0x20] sm:$0xf]
      %v1180 = vld [vmem:[%s484 + $0x24] sm:$0xf]
      %v1181 = vld [vmem:[%s484 + $0x28] sm:$0xf]
      %v1182 = vld [vmem:[%s484 + $0x2c] sm:$0xf]
      %v1183 = vld [vmem:[%s484 + $0x30] sm:$0xf]
      %v1184 = vld [vmem:[%s484 + $0x34] sm:$0xf]
      %v1185 = vld [vmem:[%s484 + $0x38] sm:$0xf]
      %v1186 = vld [vmem:[%s484 + $0x3c] sm:$0xf]
      %v1187 = vld [vmem:[%s484 + $0x40] sm:$0xf]
      %v1188 = vld [vmem:[%s484 + $0x44] sm:$0xf]
      %v1189 = vld [vmem:[%s484 + $0x48] sm:$0xf]
      %v1190 = vld [vmem:[%s484 + $0x4c] sm:$0xf]
      %v1191 = vld [vmem:[%s484 + $0x50] sm:$0xf]
      %v1192 = vld [vmem:[%s484 + $0x54] sm:$0xf]
      %v1193 = vld [vmem:[%s484 + $0x58] sm:$0xf]
      %v1194 = vld [vmem:[%s484 + $0x5c] sm:$0xf]
      %v1195 = vld [vmem:[%s484 + $0x60] sm:$0xf]
      %v1196 = vld [vmem:[%s484 + $0x64] sm:$0xf]
      %v1197 = vld [vmem:[%s484 + $0x68] sm:$0xf]
      %v1198 = vld [vmem:[%s484 + $0x6c] sm:$0xf]
      %v1199 = vld [vmem:[%s484 + $0x70] sm:$0xf]
      %v1200 = vld [vmem:[%s484 + $0x74] sm:$0xf]
      %v1201 = vld [vmem:[%s484 + $0x78] sm:$0xf]
      %v1202 = vld [vmem:[%s484 + $0x7c] sm:$0xf]
      %s1203 = scalar_lea.vmem %s4, 16
      %v1204 = vld [vmem:[%s1203] sm:$0xf]
      %v1205 = vld [vmem:[%s1203 + $0x4] sm:$0xf]
      %v1238 = vunpack.c.l.b16 %v1171
      %v1239 = vunpack.c.l.b16 %v1172
      %v1240 = vunpack.c.l.b16 %v1173
      %v1241 = vunpack.c.l.b16 %v1174
      %v1242 = vunpack.c.l.b16 %v1175
      %v1243 = vunpack.c.l.b16 %v1176
      %v1244 = vunpack.c.l.b16 %v1177
      %v1245 = vunpack.c.l.b16 %v1178
      %v1246 = vunpack.c.l.b16 %v1179
      %v1247 = vunpack.c.l.b16 %v1180
      %v1248 = vunpack.c.l.b16 %v1181
      %v1249 = vunpack.c.l.b16 %v1182
      %v1250 = vunpack.c.l.b16 %v1183
      %v1251 = vunpack.c.l.b16 %v1184
      %v1252 = vunpack.c.l.b16 %v1185
      %v1253 = vunpack.c.l.b16 %v1186
      %v1254 = vunpack.c.l.b16 %v1187
      %v1255 = vunpack.c.l.b16 %v1188
      %v1256 = vunpack.c.l.b16 %v1189
      %v1257 = vunpack.c.l.b16 %v1190
      %v1258 = vunpack.c.l.b16 %v1191
      %v1259 = vunpack.c.l.b16 %v1192
      %v1260 = vunpack.c.l.b16 %v1193
      %v1261 = vunpack.c.l.b16 %v1194
      %v1262 = vunpack.c.l.b16 %v1195
      %v1263 = vunpack.c.l.b16 %v1196
      %v1264 = vunpack.c.l.b16 %v1197
      %v1265 = vunpack.c.l.b16 %v1198
      %v1266 = vunpack.c.l.b16 %v1199
      %v1267 = vunpack.c.l.b16 %v1200
      %v1268 = vunpack.c.l.b16 %v1201
      %v1269 = vunpack.c.l.b16 %v1202
      %v1270 = vpack.c.b16 %v1239, %v1238
      %v1271 = vpack.c.b16 %v1241, %v1240
      %v1272 = vpack.c.b16 %v1243, %v1242
      %v1273 = vpack.c.b16 %v1245, %v1244
      %v1274 = vpack.c.b16 %v1247, %v1246
      %v1275 = vpack.c.b16 %v1249, %v1248
      %v1276 = vpack.c.b16 %v1251, %v1250
      %v1277 = vpack.c.b16 %v1253, %v1252
      %v1278 = vpack.c.b16 %v1255, %v1254
      %v1279 = vpack.c.b16 %v1257, %v1256
      %v1280 = vpack.c.b16 %v1259, %v1258
      %v1281 = vpack.c.b16 %v1261, %v1260
      %v1282 = vpack.c.b16 %v1263, %v1262
      %v1283 = vpack.c.b16 %v1265, %v1264
      %v1284 = vpack.c.b16 %v1267, %v1266
      %v1285 = vpack.c.b16 %v1269, %v1268
      %v1288 = vunpack.c.l.b16 %v1204
      %v1289 = vunpack.c.l.b16 %v1205
      %v1290 = vpack.c.b16 %v1289, %v1288
      %v1293 = vsel %vm666, %v1270, 0
      %v1296 = vsel %vm666, %v1271, 0
      %v1299 = vsel %vm666, %v1272, 0
      %v1302 = vsel %vm666, %v1273, 0
      %v1305 = vsel %vm666, %v1274, 0
      %v1308 = vsel %vm666, %v1275, 0
      %v1311 = vsel %vm666, %v1276, 0
      %v1314 = vsel %vm666, %v1277, 0
      %v1317 = vsel %vm666, %v1278, 0
      %v1320 = vsel %vm666, %v1279, 0
      %v1323 = vsel %vm666, %v1280, 0
      %v1326 = vsel %vm666, %v1281, 0
      %v1329 = vsel %vm666, %v1282, 0
      %v1332 = vsel %vm666, %v1283, 0
      %v1335 = vsel %vm666, %v1284, 0
      %v1338 = vsel %vm666, %v1285, 0
      %1340 = vmatprep.subr.bf16.mxu0 0
      %1341 = vmatpush1.bf16.msra.mxu0 %v1290
      %1342 = vmatprep.subr.bf16.mxu0 0
      %1343 = vmatpush1.bf16.msra.mxu0 0
      %1344 = vmatprep.subr.bf16.mxu0 0
      %1345 = vmatpush1.bf16.msra.mxu0 0
      %1346 = vmatprep.subr.bf16.mxu0 0
      %1347 = vmatpush1.bf16.msra.mxu0 0
      %1348 = vmatprep.subr.bf16.mxu0 0
      %1349 = vmatpush1.bf16.msra.mxu0 0
      %1350 = vmatprep.subr.bf16.mxu0 0
      %1351 = vmatpush1.bf16.msra.mxu0 0
      %1352 = vmatprep.subr.bf16.mxu0 0
      %1353 = vmatpush1.bf16.msra.mxu0 0
      %1354 = vmatprep.subr.bf16.mxu0 0
      %1355 = vmatpush1.bf16.msra.mxu0 0
      %1356 = vmatprep.subr.bf16.mxu0 0
      %1357 = vmatpush1.bf16.msra.mxu0 0
      %1358 = vmatprep.subr.bf16.mxu0 0
      %1359 = vmatpush1.bf16.msra.mxu0 0
      %1360 = vmatprep.subr.bf16.mxu0 0
      %1361 = vmatpush1.bf16.msra.mxu0 0
      %1362 = vmatprep.subr.bf16.mxu0 0
      %1363 = vmatpush1.bf16.msra.mxu0 0
      %1364 = vmatprep.subr.bf16.mxu0 0
      %1365 = vmatpush1.bf16.msra.mxu0 0
      %1366 = vmatprep.subr.bf16.mxu0 0
      %1367 = vmatpush1.bf16.msra.mxu0 0
      %1368 = vmatprep.subr.bf16.mxu0 0
      %1369 = vmatpush1.bf16.msra.mxu0 0
      %1370 = vmatprep.subr.bf16.mxu0 0
      %1371 = vmatpush1.bf16.msra.mxu0 0
      %1372 = vmatprep.mubr.bf16.mxu0 0
      %1373 = vmatmul.mubr.bf16.gmra.mrb[0].mxu0 %v1293
      %v1374 = vpop.f32.mrb[0].mxu0
      %v1375 = vadd.f32 0.0, %v1374
      %v1376 = vpop.f32.mrb[0].mxu0
      %v1377 = vpop.f32.mrb[0].mxu0
      %v1378 = vadd.f32 0.0, %v1377
      %v1379 = vpop.f32.mrb[0].mxu0
      %1380 = vmatprep.mubr.bf16.mxu0 0
      %1381 = vmatmul.mubr.bf16.gmra.mrb[0].mxu0 %v1296
      %v1382 = vpop.f32.mrb[0].mxu0
      %v1383 = vadd.f32 0.0, %v1382
      %v1384 = vpop.f32.mrb[0].mxu0
      %v1385 = vpop.f32.mrb[0].mxu0
      %v1386 = vadd.f32 0.0, %v1385
      %v1387 = vpop.f32.mrb[0].mxu0
      %1388 = vmatprep.mubr.bf16.mxu0 0
      %1389 = vmatmul.mubr.bf16.gmra.mrb[0].mxu0 %v1299
      %v1390 = vpop.f32.mrb[0].mxu0
      %v1391 = vadd.f32 0.0, %v1390
      %v1392 = vpop.f32.mrb[0].mxu0
      %v1393 = vpop.f32.mrb[0].mxu0
      %v1394 = vadd.f32 0.0, %v1393
      %v1395 = vpop.f32.mrb[0].mxu0
      %1396 = vmatprep.mubr.bf16.mxu0 0
      %1397 = vmatmul.mubr.bf16.gmra.mrb[0].mxu0 %v1302
      %v1398 = vpop.f32.mrb[0].mxu0
      %v1399 = vadd.f32 0.0, %v1398
      %v1400 = vpop.f32.mrb[0].mxu0
      %v1401 = vpop.f32.mrb[0].mxu0
      %v1402 = vadd.f32 0.0, %v1401
      %v1403 = vpop.f32.mrb[0].mxu0
      %1404 = vmatprep.mubr.bf16.mxu0 0
      %1405 = vmatmul.mubr.bf16.gmra.mrb[0].mxu0 %v1305
      %v1406 = vpop.f32.mrb[0].mxu0
      %v1407 = vadd.f32 0.0, %v1406
      %v1408 = vpop.f32.mrb[0].mxu0
      %v1409 = vpop.f32.mrb[0].mxu0
      %v1410 = vadd.f32 0.0, %v1409
      %v1411 = vpop.f32.mrb[0].mxu0
      %1412 = vmatprep.mubr.bf16.mxu0 0
      %1413 = vmatmul.mubr.bf16.gmra.mrb[0].mxu0 %v1308
      %v1414 = vpop.f32.mrb[0].mxu0
      %v1415 = vadd.f32 0.0, %v1414
      %v1416 = vpop.f32.mrb[0].mxu0
      %v1417 = vpop.f32.mrb[0].mxu0
      %v1418 = vadd.f32 0.0, %v1417
      %v1419 = vpop.f32.mrb[0].mxu0
      %1420 = vmatprep.mubr.bf16.mxu0 0
      %1421 = vmatmul.mubr.bf16.gmra.mrb[0].mxu0 %v1311
      %v1422 = vpop.f32.mrb[0].mxu0
      %v1423 = vadd.f32 0.0, %v1422
      %v1424 = vpop.f32.mrb[0].mxu0
      %v1425 = vpop.f32.mrb[0].mxu0
      %v1426 = vadd.f32 0.0, %v1425
      %v1427 = vpop.f32.mrb[0].mxu0
      %1428 = vmatprep.mubr.bf16.mxu0 0
      %1429 = vmatmul.mubr.bf16.gmra.mrb[0].mxu0 %v1314
      %v1430 = vpop.f32.mrb[0].mxu0
      %v1431 = vadd.f32 0.0, %v1430
      %v1432 = vpop.f32.mrb[0].mxu0
      %v1433 = vpop.f32.mrb[0].mxu0
      %v1434 = vadd.f32 0.0, %v1433
      %v1435 = vpop.f32.mrb[0].mxu0
      %1436 = vmatprep.mubr.bf16.mxu0 0
      %1437 = vmatmul.mubr.bf16.gmra.mrb[0].mxu0 %v1317
      %v1438 = vpop.f32.mrb[0].mxu0
      %v1439 = vadd.f32 0.0, %v1438
      %v1440 = vpop.f32.mrb[0].mxu0
      %v1441 = vpop.f32.mrb[0].mxu0
      %v1442 = vadd.f32 0.0, %v1441
      %v1443 = vpop.f32.mrb[0].mxu0
      %1444 = vmatprep.mubr.bf16.mxu0 0
      %1445 = vmatmul.mubr.bf16.gmra.mrb[0].mxu0 %v1320
      %v1446 = vpop.f32.mrb[0].mxu0
      %v1447 = vadd.f32 0.0, %v1446
      %v1448 = vpop.f32.mrb[0].mxu0
      %v1449 = vpop.f32.mrb[0].mxu0
      %v1450 = vadd.f32 0.0, %v1449
      %v1451 = vpop.f32.mrb[0].mxu0
      %1452 = vmatprep.mubr.bf16.mxu0 0
      %1453 = vmatmul.mubr.bf16.gmra.mrb[0].mxu0 %v1323
      %v1454 = vpop.f32.mrb[0].mxu0
      %v1455 = vadd.f32 0.0, %v1454
      %v1456 = vpop.f32.mrb[0].mxu0
      %v1457 = vpop.f32.mrb[0].mxu0
      %v1458 = vadd.f32 0.0, %v1457
      %v1459 = vpop.f32.mrb[0].mxu0
      %1460 = vmatprep.mubr.bf16.mxu0 0
      %1461 = vmatmul.mubr.bf16.gmra.mrb[0].mxu0 %v1326
      %v1462 = vpop.f32.mrb[0].mxu0
      %v1463 = vadd.f32 0.0, %v1462
      %v1464 = vpop.f32.mrb[0].mxu0
      %v1465 = vpop.f32.mrb[0].mxu0
      %v1466 = vadd.f32 0.0, %v1465
      %v1467 = vpop.f32.mrb[0].mxu0
      %1468 = vmatprep.mubr.bf16.mxu0 0
      %1469 = vmatmul.mubr.bf16.gmra.mrb[0].mxu0 %v1329
      %v1470 = vpop.f32.mrb[0].mxu0
      %v1471 = vadd.f32 0.0, %v1470
      %v1472 = vpop.f32.mrb[0].mxu0
      %v1473 = vpop.f32.mrb[0].mxu0
      %v1474 = vadd.f32 0.0, %v1473
      %v1475 = vpop.f32.mrb[0].mxu0
      %1476 = vmatprep.mubr.bf16.mxu0 0
      %1477 = vmatmul.mubr.bf16.gmra.mrb[0].mxu0 %v1332
      %v1478 = vpop.f32.mrb[0].mxu0
      %v1479 = vadd.f32 0.0, %v1478
      %v1480 = vpop.f32.mrb[0].mxu0
      %v1481 = vpop.f32.mrb[0].mxu0
      %v1482 = vadd.f32 0.0, %v1481
      %v1483 = vpop.f32.mrb[0].mxu0
      %1484 = vmatprep.mubr.bf16.mxu0 0
      %1485 = vmatmul.mubr.bf16.gmra.mrb[0].mxu0 %v1335
      %v1486 = vpop.f32.mrb[0].mxu0
      %v1487 = vadd.f32 0.0, %v1486
      %v1488 = vpop.f32.mrb[0].mxu0
      %v1489 = vpop.f32.mrb[0].mxu0
      %v1490 = vadd.f32 0.0, %v1489
      %v1491 = vpop.f32.mrb[0].mxu0
      %1492 = vmatprep.mubr.bf16.mxu0 0
      %1493 = vmatmul.mubr.bf16.gmra.mrb[0].mxu0 %v1338
      %v1494 = vpop.f32.mrb[0].mxu0
      %v1495 = vadd.f32 0.0, %v1494
      %v1496 = vpop.f32.mrb[0].mxu0
      %v1497 = vpop.f32.mrb[0].mxu0
      %v1498 = vadd.f32 0.0, %v1497
      %v1499 = vpop.f32.mrb[0].mxu0
      %1500 = vdwg.mxu0
      %v1501 = vadd.f32 %v1045, %v1375
      %v1502 = vadd.f32 %v1048, %v1378
      %v1503 = vadd.f32 %v1053, %v1383
      %v1504 = vadd.f32 %v1056, %v1386
      %v1505 = vadd.f32 %v1061, %v1391
      %v1506 = vadd.f32 %v1064, %v1394
      %v1507 = vadd.f32 %v1069, %v1399
      %v1508 = vadd.f32 %v1072, %v1402
      %v1509 = vadd.f32 %v1077, %v1407
      %v1510 = vadd.f32 %v1080, %v1410
      %v1511 = vadd.f32 %v1085, %v1415
      %v1512 = vadd.f32 %v1088, %v1418
      %v1513 = vadd.f32 %v1093, %v1423
      %v1514 = vadd.f32 %v1096, %v1426
      %v1515 = vadd.f32 %v1101, %v1431
      %v1516 = vadd.f32 %v1104, %v1434
      %v1517 = vadd.f32 %v1109, %v1439
      %v1518 = vadd.f32 %v1112, %v1442
      %v1519 = vadd.f32 %v1117, %v1447
      %v1520 = vadd.f32 %v1120, %v1450
      %v1521 = vadd.f32 %v1125, %v1455
      %v1522 = vadd.f32 %v1128, %v1458
      %v1523 = vadd.f32 %v1133, %v1463
      %v1524 = vadd.f32 %v1136, %v1466
      %v1525 = vadd.f32 %v1141, %v1471
      %v1526 = vadd.f32 %v1144, %v1474
      %v1527 = vadd.f32 %v1149, %v1479
      %v1528 = vadd.f32 %v1152, %v1482
      %v1529 = vadd.f32 %v1157, %v1487
      %v1530 = vadd.f32 %v1160, %v1490
      %v1531 = vadd.f32 %v1165, %v1495
      %v1532 = vadd.f32 %v1168, %v1498
      %v1533 = vld [vmem:[%s490] sm:$0xf]
      %v1534 = vld [vmem:[%s490 + $0x4] sm:$0xf]
      %v1535 = vld [vmem:[%s490 + $0x8] sm:$0xf]
      %v1536 = vld [vmem:[%s490 + $0xc] sm:$0xf]
      %v1537 = vld [vmem:[%s490 + $0x10] sm:$0xf]
      %v1538 = vld [vmem:[%s490 + $0x14] sm:$0xf]
      %v1539 = vld [vmem:[%s490 + $0x18] sm:$0xf]
      %v1540 = vld [vmem:[%s490 + $0x1c] sm:$0xf]
      %v1541 = vld [vmem:[%s490 + $0x20] sm:$0xf]
      %v1542 = vld [vmem:[%s490 + $0x24] sm:$0xf]
      %v1543 = vld [vmem:[%s490 + $0x28] sm:$0xf]
      %v1544 = vld [vmem:[%s490 + $0x2c] sm:$0xf]
      %v1545 = vld [vmem:[%s490 + $0x30] sm:$0xf]
      %v1546 = vld [vmem:[%s490 + $0x34] sm:$0xf]
      %v1547 = vld [vmem:[%s490 + $0x38] sm:$0xf]
      %v1548 = vld [vmem:[%s490 + $0x3c] sm:$0xf]
      %v1549 = vld [vmem:[%s490 + $0x40] sm:$0xf]
      %v1550 = vld [vmem:[%s490 + $0x44] sm:$0xf]
      %v1551 = vld [vmem:[%s490 + $0x48] sm:$0xf]
      %v1552 = vld [vmem:[%s490 + $0x4c] sm:$0xf]
      %v1553 = vld [vmem:[%s490 + $0x50] sm:$0xf]
      %v1554 = vld [vmem:[%s490 + $0x54] sm:$0xf]
      %v1555 = vld [vmem:[%s490 + $0x58] sm:$0xf]
      %v1556 = vld [vmem:[%s490 + $0x5c] sm:$0xf]
      %v1557 = vld [vmem:[%s490 + $0x60] sm:$0xf]
      %v1558 = vld [vmem:[%s490 + $0x64] sm:$0xf]
      %v1559 = vld [vmem:[%s490 + $0x68] sm:$0xf]
      %v1560 = vld [vmem:[%s490 + $0x6c] sm:$0xf]
      %v1561 = vld [vmem:[%s490 + $0x70] sm:$0xf]
      %v1562 = vld [vmem:[%s490 + $0x74] sm:$0xf]
      %v1563 = vld [vmem:[%s490 + $0x78] sm:$0xf]
      %v1564 = vld [vmem:[%s490 + $0x7c] sm:$0xf]
      %s1565 = scalar_lea.vmem %s4, 24
      %v1566 = vld [vmem:[%s1565] sm:$0xf]
      %v1567 = vld [vmem:[%s1565 + $0x4] sm:$0xf]
      %v1600 = vunpack.c.l.b16 %v1533
      %v1601 = vunpack.c.l.b16 %v1534
      %v1602 = vunpack.c.l.b16 %v1535
      %v1603 = vunpack.c.l.b16 %v1536
      %v1604 = vunpack.c.l.b16 %v1537
      %v1605 = vunpack.c.l.b16 %v1538
      %v1606 = vunpack.c.l.b16 %v1539
      %v1607 = vunpack.c.l.b16 %v1540
      %v1608 = vunpack.c.l.b16 %v1541
      %v1609 = vunpack.c.l.b16 %v1542
      %v1610 = vunpack.c.l.b16 %v1543
      %v1611 = vunpack.c.l.b16 %v1544
      %v1612 = vunpack.c.l.b16 %v1545
      %v1613 = vunpack.c.l.b16 %v1546
      %v1614 = vunpack.c.l.b16 %v1547
      %v1615 = vunpack.c.l.b16 %v1548
      %v1616 = vunpack.c.l.b16 %v1549
      %v1617 = vunpack.c.l.b16 %v1550
      %v1618 = vunpack.c.l.b16 %v1551
      %v1619 = vunpack.c.l.b16 %v1552
      %v1620 = vunpack.c.l.b16 %v1553
      %v1621 = vunpack.c.l.b16 %v1554
      %v1622 = vunpack.c.l.b16 %v1555
      %v1623 = vunpack.c.l.b16 %v1556
      %v1624 = vunpack.c.l.b16 %v1557
      %v1625 = vunpack.c.l.b16 %v1558
      %v1626 = vunpack.c.l.b16 %v1559
      %v1627 = vunpack.c.l.b16 %v1560
      %v1628 = vunpack.c.l.b16 %v1561
      %v1629 = vunpack.c.l.b16 %v1562
      %v1630 = vunpack.c.l.b16 %v1563
      %v1631 = vunpack.c.l.b16 %v1564
      %v1632 = vpack.c.b16 %v1601, %v1600
      %v1633 = vpack.c.b16 %v1603, %v1602
      %v1634 = vpack.c.b16 %v1605, %v1604
      %v1635 = vpack.c.b16 %v1607, %v1606
      %v1636 = vpack.c.b16 %v1609, %v1608
      %v1637 = vpack.c.b16 %v1611, %v1610
      %v1638 = vpack.c.b16 %v1613, %v1612
      %v1639 = vpack.c.b16 %v1615, %v1614
      %v1640 = vpack.c.b16 %v1617, %v1616
      %v1641 = vpack.c.b16 %v1619, %v1618
      %v1642 = vpack.c.b16 %v1621, %v1620
      %v1643 = vpack.c.b16 %v1623, %v1622
      %v1644 = vpack.c.b16 %v1625, %v1624
      %v1645 = vpack.c.b16 %v1627, %v1626
      %v1646 = vpack.c.b16 %v1629, %v1628
      %v1647 = vpack.c.b16 %v1631, %v1630
      %v1650 = vunpack.c.l.b16 %v1566
      %v1651 = vunpack.c.l.b16 %v1567
      %v1652 = vpack.c.b16 %v1651, %v1650
      %v1655 = vsel %vm666, %v1632, 0
      %v1658 = vsel %vm666, %v1633, 0
      %v1661 = vsel %vm666, %v1634, 0
      %v1664 = vsel %vm666, %v1635, 0
      %v1667 = vsel %vm666, %v1636, 0
      %v1670 = vsel %vm666, %v1637, 0
      %v1673 = vsel %vm666, %v1638, 0
      %v1676 = vsel %vm666, %v1639, 0
      %v1679 = vsel %vm666, %v1640, 0
      %v1682 = vsel %vm666, %v1641, 0
      %v1685 = vsel %vm666, %v1642, 0
      %v1688 = vsel %vm666, %v1643, 0
      %v1691 = vsel %vm666, %v1644, 0
      %v1694 = vsel %vm666, %v1645, 0
      %v1697 = vsel %vm666, %v1646, 0
      %v1700 = vsel %vm666, %v1647, 0
      %1702 = vmatprep.subr.bf16.mxu0 0
      %1703 = vmatpush1.bf16.msra.mxu0 %v1652
      %1704 = vmatprep.subr.bf16.mxu0 0
      %1705 = vmatpush1.bf16.msra.mxu0 0
      %1706 = vmatprep.subr.bf16.mxu0 0
      %1707 = vmatpush1.bf16.msra.mxu0 0
      %1708 = vmatprep.subr.bf16.mxu0 0
      %1709 = vmatpush1.bf16.msra.mxu0 0
      %1710 = vmatprep.subr.bf16.mxu0 0
      %1711 = vmatpush1.bf16.msra.mxu0 0
      %1712 = vmatprep.subr.bf16.mxu0 0
      %1713 = vmatpush1.bf16.msra.mxu0 0
      %1714 = vmatprep.subr.bf16.mxu0 0
      %1715 = vmatpush1.bf16.msra.mxu0 0
      %1716 = vmatprep.subr.bf16.mxu0 0
      %1717 = vmatpush1.bf16.msra.mxu0 0
      %1718 = vmatprep.subr.bf16.mxu0 0
      %1719 = vmatpush1.bf16.msra.mxu0 0
      %1720 = vmatprep.subr.bf16.mxu0 0
      %1721 = vmatpush1.bf16.msra.mxu0 0
      %1722 = vmatprep.subr.bf16.mxu0 0
      %1723 = vmatpush1.bf16.msra.mxu0 0
      %1724 = vmatprep.subr.bf16.mxu0 0
      %1725 = vmatpush1.bf16.msra.mxu0 0
      %1726 = vmatprep.subr.bf16.mxu0 0
      %1727 = vmatpush1.bf16.msra.mxu0 0
      %1728 = vmatprep.subr.bf16.mxu0 0
      %1729 = vmatpush1.bf16.msra.mxu0 0
      %1730 = vmatprep.subr.bf16.mxu0 0
      %1731 = vmatpush1.bf16.msra.mxu0 0
      %1732 = vmatprep.subr.bf16.mxu0 0
      %1733 = vmatpush1.bf16.msra.mxu0 0
      %1734 = vmatprep.mubr.bf16.mxu0 0
      %1735 = vmatmul.mubr.bf16.gmra.mrb[0].mxu0 %v1655
      %v1736 = vpop.f32.mrb[0].mxu0
      %v1737 = vadd.f32 0.0, %v1736
      %v1738 = vpop.f32.mrb[0].mxu0
      %v1739 = vpop.f32.mrb[0].mxu0
      %v1740 = vadd.f32 0.0, %v1739
      %v1741 = vpop.f32.mrb[0].mxu0
      %1742 = vmatprep.mubr.bf16.mxu0 0
      %1743 = vmatmul.mubr.bf16.gmra.mrb[0].mxu0 %v1658
      %v1744 = vpop.f32.mrb[0].mxu0
      %v1745 = vadd.f32 0.0, %v1744
      %v1746 = vpop.f32.mrb[0].mxu0
      %v1747 = vpop.f32.mrb[0].mxu0
      %v1748 = vadd.f32 0.0, %v1747
      %v1749 = vpop.f32.mrb[0].mxu0
      %1750 = vmatprep.mubr.bf16.mxu0 0
      %1751 = vmatmul.mubr.bf16.gmra.mrb[0].mxu0 %v1661
      %v1752 = vpop.f32.mrb[0].mxu0
      %v1753 = vadd.f32 0.0, %v1752
      %v1754 = vpop.f32.mrb[0].mxu0
      %v1755 = vpop.f32.mrb[0].mxu0
      %v1756 = vadd.f32 0.0, %v1755
      %v1757 = vpop.f32.mrb[0].mxu0
      %1758 = vmatprep.mubr.bf16.mxu0 0
      %1759 = vmatmul.mubr.bf16.gmra.mrb[0].mxu0 %v1664
      %v1760 = vpop.f32.mrb[0].mxu0
      %v1761 = vadd.f32 0.0, %v1760
      %v1762 = vpop.f32.mrb[0].mxu0
      %v1763 = vpop.f32.mrb[0].mxu0
      %v1764 = vadd.f32 0.0, %v1763
      %v1765 = vpop.f32.mrb[0].mxu0
      %1766 = vmatprep.mubr.bf16.mxu0 0
      %1767 = vmatmul.mubr.bf16.gmra.mrb[0].mxu0 %v1667
      %v1768 = vpop.f32.mrb[0].mxu0
      %v1769 = vadd.f32 0.0, %v1768
      %v1770 = vpop.f32.mrb[0].mxu0
      %v1771 = vpop.f32.mrb[0].mxu0
      %v1772 = vadd.f32 0.0, %v1771
      %v1773 = vpop.f32.mrb[0].mxu0
      %1774 = vmatprep.mubr.bf16.mxu0 0
      %1775 = vmatmul.mubr.bf16.gmra.mrb[0].mxu0 %v1670
      %v1776 = vpop.f32.mrb[0].mxu0
      %v1777 = vadd.f32 0.0, %v1776
      %v1778 = vpop.f32.mrb[0].mxu0
      %v1779 = vpop.f32.mrb[0].mxu0
      %v1780 = vadd.f32 0.0, %v1779
      %v1781 = vpop.f32.mrb[0].mxu0
      %1782 = vmatprep.mubr.bf16.mxu0 0
      %1783 = vmatmul.mubr.bf16.gmra.mrb[0].mxu0 %v1673
      %v1784 = vpop.f32.mrb[0].mxu0
      %v1785 = vadd.f32 0.0, %v1784
      %v1786 = vpop.f32.mrb[0].mxu0
      %v1787 = vpop.f32.mrb[0].mxu0
      %v1788 = vadd.f32 0.0, %v1787
      %v1789 = vpop.f32.mrb[0].mxu0
      %1790 = vmatprep.mubr.bf16.mxu0 0
      %1791 = vmatmul.mubr.bf16.gmra.mrb[0].mxu0 %v1676
      %v1792 = vpop.f32.mrb[0].mxu0
      %v1793 = vadd.f32 0.0, %v1792
      %v1794 = vpop.f32.mrb[0].mxu0
      %v1795 = vpop.f32.mrb[0].mxu0
      %v1796 = vadd.f32 0.0, %v1795
      %v1797 = vpop.f32.mrb[0].mxu0
      %1798 = vmatprep.mubr.bf16.mxu0 0
      %1799 = vmatmul.mubr.bf16.gmra.mrb[0].mxu0 %v1679
      %v1800 = vpop.f32.mrb[0].mxu0
      %v1801 = vadd.f32 0.0, %v1800
      %v1802 = vpop.f32.mrb[0].mxu0
      %v1803 = vpop.f32.mrb[0].mxu0
      %v1804 = vadd.f32 0.0, %v1803
      %v1805 = vpop.f32.mrb[0].mxu0
      %1806 = vmatprep.mubr.bf16.mxu0 0
      %1807 = vmatmul.mubr.bf16.gmra.mrb[0].mxu0 %v1682
      %v1808 = vpop.f32.mrb[0].mxu0
      %v1809 = vadd.f32 0.0, %v1808
      %v1810 = vpop.f32.mrb[0].mxu0
      %v1811 = vpop.f32.mrb[0].mxu0
      %v1812 = vadd.f32 0.0, %v1811
      %v1813 = vpop.f32.mrb[0].mxu0
      %1814 = vmatprep.mubr.bf16.mxu0 0
      %1815 = vmatmul.mubr.bf16.gmra.mrb[0].mxu0 %v1685
      %v1816 = vpop.f32.mrb[0].mxu0
      %v1817 = vadd.f32 0.0, %v1816
      %v1818 = vpop.f32.mrb[0].mxu0
      %v1819 = vpop.f32.mrb[0].mxu0
      %v1820 = vadd.f32 0.0, %v1819
      %v1821 = vpop.f32.mrb[0].mxu0
      %1822 = vmatprep.mubr.bf16.mxu0 0
      %1823 = vmatmul.mubr.bf16.gmra.mrb[0].mxu0 %v1688
      %v1824 = vpop.f32.mrb[0].mxu0
      %v1825 = vadd.f32 0.0, %v1824
      %v1826 = vpop.f32.mrb[0].mxu0
      %v1827 = vpop.f32.mrb[0].mxu0
      %v1828 = vadd.f32 0.0, %v1827
      %v1829 = vpop.f32.mrb[0].mxu0
      %1830 = vmatprep.mubr.bf16.mxu0 0
      %1831 = vmatmul.mubr.bf16.gmra.mrb[0].mxu0 %v1691
      %v1832 = vpop.f32.mrb[0].mxu0
      %v1833 = vadd.f32 0.0, %v1832
      %v1834 = vpop.f32.mrb[0].mxu0
      %v1835 = vpop.f32.mrb[0].mxu0
      %v1836 = vadd.f32 0.0, %v1835
      %v1837 = vpop.f32.mrb[0].mxu0
      %1838 = vmatprep.mubr.bf16.mxu0 0
      %1839 = vmatmul.mubr.bf16.gmra.mrb[0].mxu0 %v1694
      %v1840 = vpop.f32.mrb[0].mxu0
      %v1841 = vadd.f32 0.0, %v1840
      %v1842 = vpop.f32.mrb[0].mxu0
      %v1843 = vpop.f32.mrb[0].mxu0
      %v1844 = vadd.f32 0.0, %v1843
      %v1845 = vpop.f32.mrb[0].mxu0
      %1846 = vmatprep.mubr.bf16.mxu0 0
      %1847 = vmatmul.mubr.bf16.gmra.mrb[0].mxu0 %v1697
      %v1848 = vpop.f32.mrb[0].mxu0
      %v1849 = vadd.f32 0.0, %v1848
      %v1850 = vpop.f32.mrb[0].mxu0
      %v1851 = vpop.f32.mrb[0].mxu0
      %v1852 = vadd.f32 0.0, %v1851
      %v1853 = vpop.f32.mrb[0].mxu0
      %1854 = vmatprep.mubr.bf16.mxu0 0
      %1855 = vmatmul.mubr.bf16.gmra.mrb[0].mxu0 %v1700
      %v1856 = vpop.f32.mrb[0].mxu0
      %v1857 = vadd.f32 0.0, %v1856
      %v1858 = vpop.f32.mrb[0].mxu0
      %v1859 = vpop.f32.mrb[0].mxu0
      %v1860 = vadd.f32 0.0, %v1859
      %v1861 = vpop.f32.mrb[0].mxu0
      %1862 = vdwg.mxu0
      %v1863 = vadd.f32 %v1501, %v1737
      %v1864 = vadd.f32 %v1502, %v1740
      %v1865 = vadd.f32 %v1503, %v1745
      %v1866 = vadd.f32 %v1504, %v1748
      %v1867 = vadd.f32 %v1505, %v1753
      %v1868 = vadd.f32 %v1506, %v1756
      %v1869 = vadd.f32 %v1507, %v1761
      %v1870 = vadd.f32 %v1508, %v1764
      %v1871 = vadd.f32 %v1509, %v1769
      %v1872 = vadd.f32 %v1510, %v1772
      %v1873 = vadd.f32 %v1511, %v1777
      %v1874 = vadd.f32 %v1512, %v1780
      %v1875 = vadd.f32 %v1513, %v1785
      %v1876 = vadd.f32 %v1514, %v1788
      %v1877 = vadd.f32 %v1515, %v1793
      %v1878 = vadd.f32 %v1516, %v1796
      %v1879 = vadd.f32 %v1517, %v1801
      %v1880 = vadd.f32 %v1518, %v1804
      %v1881 = vadd.f32 %v1519, %v1809
      %v1882 = vadd.f32 %v1520, %v1812
      %v1883 = vadd.f32 %v1521, %v1817
      %v1884 = vadd.f32 %v1522, %v1820
      %v1885 = vadd.f32 %v1523, %v1825
      %v1886 = vadd.f32 %v1524, %v1828
      %v1887 = vadd.f32 %v1525, %v1833
      %v1888 = vadd.f32 %v1526, %v1836
      %v1889 = vadd.f32 %v1527, %v1841
      %v1890 = vadd.f32 %v1528, %v1844
      %v1891 = vadd.f32 %v1529, %v1849
      %v1892 = vadd.f32 %v1530, %v1852
      %v1893 = vadd.f32 %v1531, %v1857
      %v1894 = vadd.f32 %v1532, %v1860
      %v1895 = vld [vmem:[%s5] sm:$0x1]
      %v1897 = vlaneseq
      %v1898 = vshrl.u32 %v1897, 7
      %v1899 = vsub.s32 0, %v1898
      %v1900 = vrot.slane %v1895, %v1899
      %v1902 = vadd.f32 %v1863, %v1900
      %v1903 = vadd.f32 %v1864, %v1900
      %v1904 = vadd.f32 %v1865, %v1900
      %v1905 = vadd.f32 %v1866, %v1900
      %v1906 = vadd.f32 %v1867, %v1900
      %v1907 = vadd.f32 %v1868, %v1900
      %v1908 = vadd.f32 %v1869, %v1900
      %v1909 = vadd.f32 %v1870, %v1900
      %v1910 = vadd.f32 %v1871, %v1900
      %v1911 = vadd.f32 %v1872, %v1900
      %v1912 = vadd.f32 %v1873, %v1900
      %v1913 = vadd.f32 %v1874, %v1900
      %v1914 = vadd.f32 %v1875, %v1900
      %v1915 = vadd.f32 %v1876, %v1900
      %v1916 = vadd.f32 %v1877, %v1900
      %v1917 = vadd.f32 %v1878, %v1900
      %v1918 = vadd.f32 %v1879, %v1900
      %v1919 = vadd.f32 %v1880, %v1900
      %v1920 = vadd.f32 %v1881, %v1900
      %v1921 = vadd.f32 %v1882, %v1900
      %v1922 = vadd.f32 %v1883, %v1900
      %v1923 = vadd.f32 %v1884, %v1900
      %v1924 = vadd.f32 %v1885, %v1900
      %v1925 = vadd.f32 %v1886, %v1900
      %v1926 = vadd.f32 %v1887, %v1900
      %v1927 = vadd.f32 %v1888, %v1900
      %v1928 = vadd.f32 %v1889, %v1900
      %v1929 = vadd.f32 %v1890, %v1900
      %v1930 = vadd.f32 %v1891, %v1900
      %v1931 = vadd.f32 %v1892, %v1900
      %v1932 = vadd.f32 %v1893, %v1900
      %v1933 = vadd.f32 %v1894, %v1900
      %v1934 = vpack.c.bf16 %v1903, %v1902
      %v1935 = vpack.c.bf16 %v1905, %v1904
      %v1936 = vpack.c.bf16 %v1907, %v1906
      %v1937 = vpack.c.bf16 %v1909, %v1908
      %v1938 = vpack.c.bf16 %v1911, %v1910
      %v1939 = vpack.c.bf16 %v1913, %v1912
      %v1940 = vpack.c.bf16 %v1915, %v1914
      %v1941 = vpack.c.bf16 %v1917, %v1916
      %v1942 = vpack.c.bf16 %v1919, %v1918
      %v1943 = vpack.c.bf16 %v1921, %v1920
      %v1944 = vpack.c.bf16 %v1923, %v1922
      %v1945 = vpack.c.bf16 %v1925, %v1924
      %v1946 = vpack.c.bf16 %v1927, %v1926
      %v1947 = vpack.c.bf16 %v1929, %v1928
      %v1948 = vpack.c.bf16 %v1931, %v1930
      %v1949 = vpack.c.bf16 %v1933, %v1932
      %v1966 = vunpack.c.l.b16 %v1934
      %v1967 = vunpack.c.h.b16 %v1934
      %v1968 = vunpack.c.l.b16 %v1935
      %v1969 = vunpack.c.h.b16 %v1935
      %v1970 = vunpack.c.l.b16 %v1936
      %v1971 = vunpack.c.h.b16 %v1936
      %v1972 = vunpack.c.l.b16 %v1937
      %v1973 = vunpack.c.h.b16 %v1937
      %v1974 = vunpack.c.l.b16 %v1938
      %v1975 = vunpack.c.h.b16 %v1938
      %v1976 = vunpack.c.l.b16 %v1939
      %v1977 = vunpack.c.h.b16 %v1939
      %v1978 = vunpack.c.l.b16 %v1940
      %v1979 = vunpack.c.h.b16 %v1940
      %v1980 = vunpack.c.l.b16 %v1941
      %v1981 = vunpack.c.h.b16 %v1941
      %v1982 = vunpack.c.l.b16 %v1942
      %v1983 = vunpack.c.h.b16 %v1942
      %v1984 = vunpack.c.l.b16 %v1943
      %v1985 = vunpack.c.h.b16 %v1943
      %v1986 = vunpack.c.l.b16 %v1944
      %v1987 = vunpack.c.h.b16 %v1944
      %v1988 = vunpack.c.l.b16 %v1945
      %v1989 = vunpack.c.h.b16 %v1945
      %v1990 = vunpack.c.l.b16 %v1946
      %v1991 = vunpack.c.h.b16 %v1946
      %v1992 = vunpack.c.l.b16 %v1947
      %v1993 = vunpack.c.h.b16 %v1947
      %v1994 = vunpack.c.l.b16 %v1948
      %v1995 = vunpack.c.h.b16 %v1948
      %v1996 = vunpack.c.l.b16 %v1949
      %v1997 = vunpack.c.h.b16 %v1949
      %v1998 = vpack.c.b16 %v1966, %v1966
      %v1999 = vpack.c.b16 %v1967, %v1967
      %v2000 = vpack.c.b16 %v1968, %v1968
      %v2001 = vpack.c.b16 %v1969, %v1969
      %v2002 = vpack.c.b16 %v1970, %v1970
      %v2003 = vpack.c.b16 %v1971, %v1971
      %v2004 = vpack.c.b16 %v1972, %v1972
      %v2005 = vpack.c.b16 %v1973, %v1973
      %v2006 = vpack.c.b16 %v1974, %v1974
      %v2007 = vpack.c.b16 %v1975, %v1975
      %v2008 = vpack.c.b16 %v1976, %v1976
      %v2009 = vpack.c.b16 %v1977, %v1977
      %v2010 = vpack.c.b16 %v1978, %v1978
      %v2011 = vpack.c.b16 %v1979, %v1979
      %v2012 = vpack.c.b16 %v1980, %v1980
      %v2013 = vpack.c.b16 %v1981, %v1981
      %v2014 = vpack.c.b16 %v1982, %v1982
      %v2015 = vpack.c.b16 %v1983, %v1983
      %v2016 = vpack.c.b16 %v1984, %v1984
      %v2017 = vpack.c.b16 %v1985, %v1985
      %v2018 = vpack.c.b16 %v1986, %v1986
      %v2019 = vpack.c.b16 %v1987, %v1987
      %v2020 = vpack.c.b16 %v1988, %v1988
      %v2021 = vpack.c.b16 %v1989, %v1989
      %v2022 = vpack.c.b16 %v1990, %v1990
      %v2023 = vpack.c.b16 %v1991, %v1991
      %v2024 = vpack.c.b16 %v1992, %v1992
      %v2025 = vpack.c.b16 %v1993, %v1993
      %v2026 = vpack.c.b16 %v1994, %v1994
      %v2027 = vpack.c.b16 %v1995, %v1995
      %v2028 = vpack.c.b16 %v1996, %v1996
      %v2029 = vpack.c.b16 %v1997, %v1997
      %vm2062 = vcmask 125952
      %2063 = vst.msk [vmem:[%s496] sm:$0xf] %vm2062, %v1998
      %2064 = vst.msk [vmem:[%s496 + $0x4] sm:$0xf] %vm2062, %v1999
      %2065 = vst.msk [vmem:[%s496 + $0x8] sm:$0xf] %vm2062, %v2000
      %2066 = vst.msk [vmem:[%s496 + $0xc] sm:$0xf] %vm2062, %v2001
      %2067 = vst.msk [vmem:[%s496 + $0x10] sm:$0xf] %vm2062, %v2002
      %2068 = vst.msk [vmem:[%s496 + $0x14] sm:$0xf] %vm2062, %v2003
      %2069 = vst.msk [vmem:[%s496 + $0x18] sm:$0xf] %vm2062, %v2004
      %2070 = vst.msk [vmem:[%s496 + $0x1c] sm:$0xf] %vm2062, %v2005
      %2071 = vst.msk [vmem:[%s496 + $0x20] sm:$0xf] %vm2062, %v2006
      %2072 = vst.msk [vmem:[%s496 + $0x24] sm:$0xf] %vm2062, %v2007
      %2073 = vst.msk [vmem:[%s496 + $0x28] sm:$0xf] %vm2062, %v2008
      %2074 = vst.msk [vmem:[%s496 + $0x2c] sm:$0xf] %vm2062, %v2009
      %2075 = vst.msk [vmem:[%s496 + $0x30] sm:$0xf] %vm2062, %v2010
      %2076 = vst.msk [vmem:[%s496 + $0x34] sm:$0xf] %vm2062, %v2011
      %2077 = vst.msk [vmem:[%s496 + $0x38] sm:$0xf] %vm2062, %v2012
      %2078 = vst.msk [vmem:[%s496 + $0x3c] sm:$0xf] %vm2062, %v2013
      %2079 = vst.msk [vmem:[%s496 + $0x40] sm:$0xf] %vm2062, %v2014
      %2080 = vst.msk [vmem:[%s496 + $0x44] sm:$0xf] %vm2062, %v2015
      %2081 = vst.msk [vmem:[%s496 + $0x48] sm:$0xf] %vm2062, %v2016
      %2082 = vst.msk [vmem:[%s496 + $0x4c] sm:$0xf] %vm2062, %v2017
      %2083 = vst.msk [vmem:[%s496 + $0x50] sm:$0xf] %vm2062, %v2018
      %2084 = vst.msk [vmem:[%s496 + $0x54] sm:$0xf] %vm2062, %v2019
      %2085 = vst.msk [vmem:[%s496 + $0x58] sm:$0xf] %vm2062, %v2020
      %2086 = vst.msk [vmem:[%s496 + $0x5c] sm:$0xf] %vm2062, %v2021
      %2087 = vst.msk [vmem:[%s496 + $0x60] sm:$0xf] %vm2062, %v2022
      %2088 = vst.msk [vmem:[%s496 + $0x64] sm:$0xf] %vm2062, %v2023
      %2089 = vst.msk [vmem:[%s496 + $0x68] sm:$0xf] %vm2062, %v2024
      %2090 = vst.msk [vmem:[%s496 + $0x6c] sm:$0xf] %vm2062, %v2025
      %2091 = vst.msk [vmem:[%s496 + $0x70] sm:$0xf] %vm2062, %v2026
      %2092 = vst.msk [vmem:[%s496 + $0x74] sm:$0xf] %vm2062, %v2027
      %2093 = vst.msk [vmem:[%s496 + $0x78] sm:$0xf] %vm2062, %v2028
      %2094 = vst.msk [vmem:[%s496 + $0x7c] sm:$0xf] %vm2062, %v2029
      %v2095 = vld [vmem:[%s6] sm:$0xf]
      %v2096 = vld [vmem:[%s6 + $0x4] sm:$0xf]
      %v2097 = vld [vmem:[%s7] sm:$0x1]
      %v2099 = vlaneseq
      %v2100 = vshrl.u32 %v2099, 7
      %v2101 = vsub.s32 0, %v2100
      %v2102 = vrot.slane %v2097, %v2101
      %v2106 = vunpack.c.l.b16 %v2095
      %v2107 = vunpack.c.l.b16 %v2096
      %v2108 = vpack.c.b16 %v2107, %v2106
      %v2111 = vsel %vm666, %v1934, 0
      %v2114 = vsel %vm666, %v1935, 0
      %v2117 = vsel %vm666, %v1936, 0
      %v2120 = vsel %vm666, %v1937, 0
      %v2123 = vsel %vm666, %v1938, 0
      %v2126 = vsel %vm666, %v1939, 0
      %v2129 = vsel %vm666, %v1940, 0
      %v2132 = vsel %vm666, %v1941, 0
      %v2135 = vsel %vm666, %v1942, 0
      %v2138 = vsel %vm666, %v1943, 0
      %v2141 = vsel %vm666, %v1944, 0
      %v2144 = vsel %vm666, %v1945, 0
      %v2147 = vsel %vm666, %v1946, 0
      %v2150 = vsel %vm666, %v1947, 0
      %v2153 = vsel %vm666, %v1948, 0
      %v2156 = vsel %vm666, %v1949, 0
      %2158 = vmatprep.subr.bf16.mxu0 0
      %2159 = vmatpush1.bf16.msra.mxu0 %v2108
      %2160 = vmatprep.subr.bf16.mxu0 0
      %2161 = vmatpush1.bf16.msra.mxu0 0
      %2162 = vmatprep.subr.bf16.mxu0 0
      %2163 = vmatpush1.bf16.msra.mxu0 0
      %2164 = vmatprep.subr.bf16.mxu0 0
      %2165 = vmatpush1.bf16.msra.mxu0 0
      %2166 = vmatprep.subr.bf16.mxu0 0
      %2167 = vmatpush1.bf16.msra.mxu0 0
      %2168 = vmatprep.subr.bf16.mxu0 0
      %2169 = vmatpush1.bf16.msra.mxu0 0
      %2170 = vmatprep.subr.bf16.mxu0 0
      %2171 = vmatpush1.bf16.msra.mxu0 0
      %2172 = vmatprep.subr.bf16.mxu0 0
      %2173 = vmatpush1.bf16.msra.mxu0 0
      %2174 = vmatprep.subr.bf16.mxu0 0
      %2175 = vmatpush1.bf16.msra.mxu0 0
      %2176 = vmatprep.subr.bf16.mxu0 0
      %2177 = vmatpush1.bf16.msra.mxu0 0
      %2178 = vmatprep.subr.bf16.mxu0 0
      %2179 = vmatpush1.bf16.msra.mxu0 0
      %2180 = vmatprep.subr.bf16.mxu0 0
      %2181 = vmatpush1.bf16.msra.mxu0 0
      %2182 = vmatprep.subr.bf16.mxu0 0
      %2183 = vmatpush1.bf16.msra.mxu0 0
      %2184 = vmatprep.subr.bf16.mxu0 0
      %2185 = vmatpush1.bf16.msra.mxu0 0
      %2186 = vmatprep.subr.bf16.mxu0 0
      %2187 = vmatpush1.bf16.msra.mxu0 0
      %2188 = vmatprep.subr.bf16.mxu0 0
      %2189 = vmatpush1.bf16.msra.mxu0 0
      %2190 = vmatprep.mubr.bf16.mxu0 0
      %2191 = vmatmul.mubr.bf16.gmra.mrb[0].mxu0 %v2111
      %v2192 = vpop.f32.mrb[0].mxu0
      %v2193 = vadd.f32 %v2102, %v2192
      %v2194 = vpop.f32.mrb[0].mxu0
      %v2195 = vpop.f32.mrb[0].mxu0
      %v2196 = vadd.f32 %v2102, %v2195
      %v2197 = vpop.f32.mrb[0].mxu0
      %2198 = vmatprep.mubr.bf16.mxu0 0
      %2199 = vmatmul.mubr.bf16.gmra.mrb[0].mxu0 %v2114
      %v2200 = vpop.f32.mrb[0].mxu0
      %v2201 = vadd.f32 %v2102, %v2200
      %v2202 = vpop.f32.mrb[0].mxu0
      %v2203 = vpop.f32.mrb[0].mxu0
      %v2204 = vadd.f32 %v2102, %v2203
      %v2205 = vpop.f32.mrb[0].mxu0
      %2206 = vmatprep.mubr.bf16.mxu0 0
      %2207 = vmatmul.mubr.bf16.gmra.mrb[0].mxu0 %v2117
      %v2208 = vpop.f32.mrb[0].mxu0
      %v2209 = vadd.f32 %v2102, %v2208
      %v2210 = vpop.f32.mrb[0].mxu0
      %v2211 = vpop.f32.mrb[0].mxu0
      %v2212 = vadd.f32 %v2102, %v2211
      %v2213 = vpop.f32.mrb[0].mxu0
      %2214 = vmatprep.mubr.bf16.mxu0 0
      %2215 = vmatmul.mubr.bf16.gmra.mrb[0].mxu0 %v2120
      %v2216 = vpop.f32.mrb[0].mxu0
      %v2217 = vadd.f32 %v2102, %v2216
      %v2218 = vpop.f32.mrb[0].mxu0
      %v2219 = vpop.f32.mrb[0].mxu0
      %v2220 = vadd.f32 %v2102, %v2219
      %v2221 = vpop.f32.mrb[0].mxu0
      %2222 = vmatprep.mubr.bf16.mxu0 0
      %2223 = vmatmul.mubr.bf16.gmra.mrb[0].mxu0 %v2123
      %v2224 = vpop.f32.mrb[0].mxu0
      %v2225 = vadd.f32 %v2102, %v2224
      %v2226 = vpop.f32.mrb[0].mxu0
      %v2227 = vpop.f32.mrb[0].mxu0
      %v2228 = vadd.f32 %v2102, %v2227
      %v2229 = vpop.f32.mrb[0].mxu0
      %2230 = vmatprep.mubr.bf16.mxu0 0
      %2231 = vmatmul.mubr.bf16.gmra.mrb[0].mxu0 %v2126
      %v2232 = vpop.f32.mrb[0].mxu0
      %v2233 = vadd.f32 %v2102, %v2232
      %v2234 = vpop.f32.mrb[0].mxu0
      %v2235 = vpop.f32.mrb[0].mxu0
      %v2236 = vadd.f32 %v2102, %v2235
      %v2237 = vpop.f32.mrb[0].mxu0
      %2238 = vmatprep.mubr.bf16.mxu0 0
      %2239 = vmatmul.mubr.bf16.gmra.mrb[0].mxu0 %v2129
      %v2240 = vpop.f32.mrb[0].mxu0
      %v2241 = vadd.f32 %v2102, %v2240
      %v2242 = vpop.f32.mrb[0].mxu0
      %v2243 = vpop.f32.mrb[0].mxu0
      %v2244 = vadd.f32 %v2102, %v2243
      %v2245 = vpop.f32.mrb[0].mxu0
      %2246 = vmatprep.mubr.bf16.mxu0 0
      %2247 = vmatmul.mubr.bf16.gmra.mrb[0].mxu0 %v2132
      %v2248 = vpop.f32.mrb[0].mxu0
      %v2249 = vadd.f32 %v2102, %v2248
      %v2250 = vpop.f32.mrb[0].mxu0
      %v2251 = vpop.f32.mrb[0].mxu0
      %v2252 = vadd.f32 %v2102, %v2251
      %v2253 = vpop.f32.mrb[0].mxu0
      %2254 = vmatprep.mubr.bf16.mxu0 0
      %2255 = vmatmul.mubr.bf16.gmra.mrb[0].mxu0 %v2135
      %v2256 = vpop.f32.mrb[0].mxu0
      %v2257 = vadd.f32 %v2102, %v2256
      %v2258 = vpop.f32.mrb[0].mxu0
      %v2259 = vpop.f32.mrb[0].mxu0
      %v2260 = vadd.f32 %v2102, %v2259
      %v2261 = vpop.f32.mrb[0].mxu0
      %2262 = vmatprep.mubr.bf16.mxu0 0
      %2263 = vmatmul.mubr.bf16.gmra.mrb[0].mxu0 %v2138
      %v2264 = vpop.f32.mrb[0].mxu0
      %v2265 = vadd.f32 %v2102, %v2264
      %v2266 = vpop.f32.mrb[0].mxu0
      %v2267 = vpop.f32.mrb[0].mxu0
      %v2268 = vadd.f32 %v2102, %v2267
      %v2269 = vpop.f32.mrb[0].mxu0
      %2270 = vmatprep.mubr.bf16.mxu0 0
      %2271 = vmatmul.mubr.bf16.gmra.mrb[0].mxu0 %v2141
      %v2272 = vpop.f32.mrb[0].mxu0
      %v2273 = vadd.f32 %v2102, %v2272
      %v2274 = vpop.f32.mrb[0].mxu0
      %v2275 = vpop.f32.mrb[0].mxu0
      %v2276 = vadd.f32 %v2102, %v2275
      %v2277 = vpop.f32.mrb[0].mxu0
      %2278 = vmatprep.mubr.bf16.mxu0 0
      %2279 = vmatmul.mubr.bf16.gmra.mrb[0].mxu0 %v2144
      %v2280 = vpop.f32.mrb[0].mxu0
      %v2281 = vadd.f32 %v2102, %v2280
      %v2282 = vpop.f32.mrb[0].mxu0
      %v2283 = vpop.f32.mrb[0].mxu0
      %v2284 = vadd.f32 %v2102, %v2283
      %v2285 = vpop.f32.mrb[0].mxu0
      %2286 = vmatprep.mubr.bf16.mxu0 0
      %2287 = vmatmul.mubr.bf16.gmra.mrb[0].mxu0 %v2147
      %v2288 = vpop.f32.mrb[0].mxu0
      %v2289 = vadd.f32 %v2102, %v2288
      %v2290 = vpop.f32.mrb[0].mxu0
      %v2291 = vpop.f32.mrb[0].mxu0
      %v2292 = vadd.f32 %v2102, %v2291
      %v2293 = vpop.f32.mrb[0].mxu0
      %2294 = vmatprep.mubr.bf16.mxu0 0
      %2295 = vmatmul.mubr.bf16.gmra.mrb[0].mxu0 %v2150
      %v2296 = vpop.f32.mrb[0].mxu0
      %v2297 = vadd.f32 %v2102, %v2296
      %v2298 = vpop.f32.mrb[0].mxu0
      %v2299 = vpop.f32.mrb[0].mxu0
      %v2300 = vadd.f32 %v2102, %v2299
      %v2301 = vpop.f32.mrb[0].mxu0
      %2302 = vmatprep.mubr.bf16.mxu0 0
      %2303 = vmatmul.mubr.bf16.gmra.mrb[0].mxu0 %v2153
      %v2304 = vpop.f32.mrb[0].mxu0
      %v2305 = vadd.f32 %v2102, %v2304
      %v2306 = vpop.f32.mrb[0].mxu0
      %v2307 = vpop.f32.mrb[0].mxu0
      %v2308 = vadd.f32 %v2102, %v2307
      %v2309 = vpop.f32.mrb[0].mxu0
      %2310 = vmatprep.mubr.bf16.mxu0 0
      %2311 = vmatmul.mubr.bf16.gmra.mrb[0].mxu0 %v2156
      %v2312 = vpop.f32.mrb[0].mxu0
      %v2313 = vadd.f32 %v2102, %v2312
      %v2314 = vpop.f32.mrb[0].mxu0
      %v2315 = vpop.f32.mrb[0].mxu0
      %v2316 = vadd.f32 %v2102, %v2315
      %v2317 = vpop.f32.mrb[0].mxu0
      %2318 = vdwg.mxu0
      %v2319 = vpack.c.bf16 %v2196, %v2193
      %v2320 = vpack.c.bf16 %v2204, %v2201
      %v2321 = vpack.c.bf16 %v2212, %v2209
      %v2322 = vpack.c.bf16 %v2220, %v2217
      %v2323 = vpack.c.bf16 %v2228, %v2225
      %v2324 = vpack.c.bf16 %v2236, %v2233
      %v2325 = vpack.c.bf16 %v2244, %v2241
      %v2326 = vpack.c.bf16 %v2252, %v2249
      %v2327 = vpack.c.bf16 %v2260, %v2257
      %v2328 = vpack.c.bf16 %v2268, %v2265
      %v2329 = vpack.c.bf16 %v2276, %v2273
      %v2330 = vpack.c.bf16 %v2284, %v2281
      %v2331 = vpack.c.bf16 %v2292, %v2289
      %v2332 = vpack.c.bf16 %v2300, %v2297
      %v2333 = vpack.c.bf16 %v2308, %v2305
      %v2334 = vpack.c.bf16 %v2316, %v2313
      %v2351 = vunpack.c.l.b16 %v2319
      %v2352 = vunpack.c.h.b16 %v2319
      %v2353 = vunpack.c.l.b16 %v2320
      %v2354 = vunpack.c.h.b16 %v2320
      %v2355 = vunpack.c.l.b16 %v2321
      %v2356 = vunpack.c.h.b16 %v2321
      %v2357 = vunpack.c.l.b16 %v2322
      %v2358 = vunpack.c.h.b16 %v2322
      %v2359 = vunpack.c.l.b16 %v2323
      %v2360 = vunpack.c.h.b16 %v2323
      %v2361 = vunpack.c.l.b16 %v2324
      %v2362 = vunpack.c.h.b16 %v2324
      %v2363 = vunpack.c.l.b16 %v2325
      %v2364 = vunpack.c.h.b16 %v2325
      %v2365 = vunpack.c.l.b16 %v2326
      %v2366 = vunpack.c.h.b16 %v2326
      %v2367 = vunpack.c.l.b16 %v2327
      %v2368 = vunpack.c.h.b16 %v2327
      %v2369 = vunpack.c.l.b16 %v2328
      %v2370 = vunpack.c.h.b16 %v2328
      %v2371 = vunpack.c.l.b16 %v2329
      %v2372 = vunpack.c.h.b16 %v2329
      %v2373 = vunpack.c.l.b16 %v2330
      %v2374 = vunpack.c.h.b16 %v2330
      %v2375 = vunpack.c.l.b16 %v2331
      %v2376 = vunpack.c.h.b16 %v2331
      %v2377 = vunpack.c.l.b16 %v2332
      %v2378 = vunpack.c.h.b16 %v2332
      %v2379 = vunpack.c.l.b16 %v2333
      %v2380 = vunpack.c.h.b16 %v2333
      %v2381 = vunpack.c.l.b16 %v2334
      %v2382 = vunpack.c.h.b16 %v2334
      %v2383 = vpack.c.b16 %v2351, %v2351
      %v2384 = vpack.c.b16 %v2352, %v2352
      %v2385 = vpack.c.b16 %v2353, %v2353
      %v2386 = vpack.c.b16 %v2354, %v2354
      %v2387 = vpack.c.b16 %v2355, %v2355
      %v2388 = vpack.c.b16 %v2356, %v2356
      %v2389 = vpack.c.b16 %v2357, %v2357
      %v2390 = vpack.c.b16 %v2358, %v2358
      %v2391 = vpack.c.b16 %v2359, %v2359
      %v2392 = vpack.c.b16 %v2360, %v2360
      %v2393 = vpack.c.b16 %v2361, %v2361
      %v2394 = vpack.c.b16 %v2362, %v2362
      %v2395 = vpack.c.b16 %v2363, %v2363
      %v2396 = vpack.c.b16 %v2364, %v2364
      %v2397 = vpack.c.b16 %v2365, %v2365
      %v2398 = vpack.c.b16 %v2366, %v2366
      %v2399 = vpack.c.b16 %v2367, %v2367
      %v2400 = vpack.c.b16 %v2368, %v2368
      %v2401 = vpack.c.b16 %v2369, %v2369
      %v2402 = vpack.c.b16 %v2370, %v2370
      %v2403 = vpack.c.b16 %v2371, %v2371
      %v2404 = vpack.c.b16 %v2372, %v2372
      %v2405 = vpack.c.b16 %v2373, %v2373
      %v2406 = vpack.c.b16 %v2374, %v2374
      %v2407 = vpack.c.b16 %v2375, %v2375
      %v2408 = vpack.c.b16 %v2376, %v2376
      %v2409 = vpack.c.b16 %v2377, %v2377
      %v2410 = vpack.c.b16 %v2378, %v2378
      %v2411 = vpack.c.b16 %v2379, %v2379
      %v2412 = vpack.c.b16 %v2380, %v2380
      %v2413 = vpack.c.b16 %v2381, %v2381
      %v2414 = vpack.c.b16 %v2382, %v2382
      %vm2447 = vcmask 27648
      %2448 = vst.msk [vmem:[%s502] sm:$0xf] %vm2447, %v2383
      %2449 = vst.msk [vmem:[%s502 + $0x4] sm:$0xf] %vm2447, %v2384
      %2450 = vst.msk [vmem:[%s502 + $0x8] sm:$0xf] %vm2447, %v2385
      %2451 = vst.msk [vmem:[%s502 + $0xc] sm:$0xf] %vm2447, %v2386
      %2452 = vst.msk [vmem:[%s502 + $0x10] sm:$0xf] %vm2447, %v2387
      %2453 = vst.msk [vmem:[%s502 + $0x14] sm:$0xf] %vm2447, %v2388
      %2454 = vst.msk [vmem:[%s502 + $0x18] sm:$0xf] %vm2447, %v2389
      %2455 = vst.msk [vmem:[%s502 + $0x1c] sm:$0xf] %vm2447, %v2390
      %2456 = vst.msk [vmem:[%s502 + $0x20] sm:$0xf] %vm2447, %v2391
      %2457 = vst.msk [vmem:[%s502 + $0x24] sm:$0xf] %vm2447, %v2392
      %2458 = vst.msk [vmem:[%s502 + $0x28] sm:$0xf] %vm2447, %v2393
      %2459 = vst.msk [vmem:[%s502 + $0x2c] sm:$0xf] %vm2447, %v2394
      %2460 = vst.msk [vmem:[%s502 + $0x30] sm:$0xf] %vm2447, %v2395
      %2461 = vst.msk [vmem:[%s502 + $0x34] sm:$0xf] %vm2447, %v2396
      %2462 = vst.msk [vmem:[%s502 + $0x38] sm:$0xf] %vm2447, %v2397
      %2463 = vst.msk [vmem:[%s502 + $0x3c] sm:$0xf] %vm2447, %v2398
      %2464 = vst.msk [vmem:[%s502 + $0x40] sm:$0xf] %vm2447, %v2399
      %2465 = vst.msk [vmem:[%s502 + $0x44] sm:$0xf] %vm2447, %v2400
      %2466 = vst.msk [vmem:[%s502 + $0x48] sm:$0xf] %vm2447, %v2401
      %2467 = vst.msk [vmem:[%s502 + $0x4c] sm:$0xf] %vm2447, %v2402
      %2468 = vst.msk [vmem:[%s502 + $0x50] sm:$0xf] %vm2447, %v2403
      %2469 = vst.msk [vmem:[%s502 + $0x54] sm:$0xf] %vm2447, %v2404
      %2470 = vst.msk [vmem:[%s502 + $0x58] sm:$0xf] %vm2447, %v2405
      %2471 = vst.msk [vmem:[%s502 + $0x5c] sm:$0xf] %vm2447, %v2406
      %2472 = vst.msk [vmem:[%s502 + $0x60] sm:$0xf] %vm2447, %v2407
      %2473 = vst.msk [vmem:[%s502 + $0x64] sm:$0xf] %vm2447, %v2408
      %2474 = vst.msk [vmem:[%s502 + $0x68] sm:$0xf] %vm2447, %v2409
      %2475 = vst.msk [vmem:[%s502 + $0x6c] sm:$0xf] %vm2447, %v2410
      %2476 = vst.msk [vmem:[%s502 + $0x70] sm:$0xf] %vm2447, %v2411
      %2477 = vst.msk [vmem:[%s502 + $0x74] sm:$0xf] %vm2447, %v2412
      %2478 = vst.msk [vmem:[%s502 + $0x78] sm:$0xf] %vm2447, %v2413
      %2479 = vst.msk [vmem:[%s502 + $0x7c] sm:$0xf] %vm2447, %v2414
      %v2480 = vld [vmem:[%s8] sm:$0x3]
      %v2481 = vld [vmem:[%s9] sm:$0x1]
      %v2483 = vlaneseq
      %v2484 = vshrl.u32 %v2483, 7
      %v2485 = vsub.s32 0, %v2484
      %v2486 = vrot.slane %v2481, %v2485
      %vm2488 = vcmask 31744
      %v2490 = vsel %vm2488, %v2319, 0
      %v2493 = vsel %vm2488, %v2320, 0
      %v2496 = vsel %vm2488, %v2321, 0
      %v2499 = vsel %vm2488, %v2322, 0
      %v2502 = vsel %vm2488, %v2323, 0
      %v2505 = vsel %vm2488, %v2324, 0
      %v2508 = vsel %vm2488, %v2325, 0
      %v2511 = vsel %vm2488, %v2326, 0
      %v2514 = vsel %vm2488, %v2327, 0
      %v2517 = vsel %vm2488, %v2328, 0
      %v2520 = vsel %vm2488, %v2329, 0
      %v2523 = vsel %vm2488, %v2330, 0
      %v2526 = vsel %vm2488, %v2331, 0
      %v2529 = vsel %vm2488, %v2332, 0
      %v2532 = vsel %vm2488, %v2333, 0
      %v2535 = vsel %vm2488, %v2334, 0
      %vm2537 = vcmask 1041408
      %v2539 = vsel %vm2537, %v2480, 0
      %2541 = vmatprep.subr.bf16.mxu0 0
      %2542 = vmatpush1.bf16.msra.mxu0 %v2539
      %2543 = vmatprep.subr.bf16.mxu0 0
      %2544 = vmatpush1.bf16.msra.mxu0 0
      %2545 = vmatprep.subr.bf16.mxu0 0
      %2546 = vmatpush1.bf16.msra.mxu0 0
      %2547 = vmatprep.subr.bf16.mxu0 0
      %2548 = vmatpush1.bf16.msra.mxu0 0
      %2549 = vmatprep.subr.bf16.mxu0 0
      %2550 = vmatpush1.bf16.msra.mxu0 0
      %2551 = vmatprep.subr.bf16.mxu0 0
      %2552 = vmatpush1.bf16.msra.mxu0 0
      %2553 = vmatprep.subr.bf16.mxu0 0
      %2554 = vmatpush1.bf16.msra.mxu0 0
      %2555 = vmatprep.subr.bf16.mxu0 0
      %2556 = vmatpush1.bf16.msra.mxu0 0
      %2557 = vmatprep.subr.bf16.mxu0 0
      %2558 = vmatpush1.bf16.msra.mxu0 0
      %2559 = vmatprep.subr.bf16.mxu0 0
      %2560 = vmatpush1.bf16.msra.mxu0 0
      %2561 = vmatprep.subr.bf16.mxu0 0
      %2562 = vmatpush1.bf16.msra.mxu0 0
      %2563 = vmatprep.subr.bf16.mxu0 0
      %2564 = vmatpush1.bf16.msra.mxu0 0
      %2565 = vmatprep.subr.bf16.mxu0 0
      %2566 = vmatpush1.bf16.msra.mxu0 0
      %2567 = vmatprep.subr.bf16.mxu0 0
      %2568 = vmatpush1.bf16.msra.mxu0 0
      %2569 = vmatprep.subr.bf16.mxu0 0
      %2570 = vmatpush1.bf16.msra.mxu0 0
      %2571 = vmatprep.subr.bf16.mxu0 0
      %2572 = vmatpush1.bf16.msra.mxu0 0
      %2573 = vmatprep.mubr.bf16.mxu0 0
      %2574 = vmatmul.mubr.bf16.gmra.mrb[0].mxu0 %v2490
      %v2575 = vpop.f32.mrb[0].mxu0
      %v2576 = vadd.f32 %v2486, %v2575
      %v2577 = vpop.f32.mrb[0].mxu0
      %v2578 = vpop.f32.mrb[0].mxu0
      %v2579 = vadd.f32 %v2486, %v2578
      %v2580 = vpop.f32.mrb[0].mxu0
      %2581 = vmatprep.mubr.bf16.mxu0 0
      %2582 = vmatmul.mubr.bf16.gmra.mrb[0].mxu0 %v2493
      %v2583 = vpop.f32.mrb[0].mxu0
      %v2584 = vadd.f32 %v2486, %v2583
      %v2585 = vpop.f32.mrb[0].mxu0
      %v2586 = vpop.f32.mrb[0].mxu0
      %v2587 = vadd.f32 %v2486, %v2586
      %v2588 = vpop.f32.mrb[0].mxu0
      %2589 = vmatprep.mubr.bf16.mxu0 0
      %2590 = vmatmul.mubr.bf16.gmra.mrb[0].mxu0 %v2496
      %v2591 = vpop.f32.mrb[0].mxu0
      %v2592 = vadd.f32 %v2486, %v2591
      %v2593 = vpop.f32.mrb[0].mxu0
      %v2594 = vpop.f32.mrb[0].mxu0
      %v2595 = vadd.f32 %v2486, %v2594
      %v2596 = vpop.f32.mrb[0].mxu0
      %2597 = vmatprep.mubr.bf16.mxu0 0
      %2598 = vmatmul.mubr.bf16.gmra.mrb[0].mxu0 %v2499
      %v2599 = vpop.f32.mrb[0].mxu0
      %v2600 = vadd.f32 %v2486, %v2599
      %v2601 = vpop.f32.mrb[0].mxu0
      %v2602 = vpop.f32.mrb[0].mxu0
      %v2603 = vadd.f32 %v2486, %v2602
      %v2604 = vpop.f32.mrb[0].mxu0
      %2605 = vmatprep.mubr.bf16.mxu0 0
      %2606 = vmatmul.mubr.bf16.gmra.mrb[0].mxu0 %v2502
      %v2607 = vpop.f32.mrb[0].mxu0
      %v2608 = vadd.f32 %v2486, %v2607
      %v2609 = vpop.f32.mrb[0].mxu0
      %v2610 = vpop.f32.mrb[0].mxu0
      %v2611 = vadd.f32 %v2486, %v2610
      %v2612 = vpop.f32.mrb[0].mxu0
      %2613 = vmatprep.mubr.bf16.mxu0 0
      %2614 = vmatmul.mubr.bf16.gmra.mrb[0].mxu0 %v2505
      %v2615 = vpop.f32.mrb[0].mxu0
      %v2616 = vadd.f32 %v2486, %v2615
      %v2617 = vpop.f32.mrb[0].mxu0
      %v2618 = vpop.f32.mrb[0].mxu0
      %v2619 = vadd.f32 %v2486, %v2618
      %v2620 = vpop.f32.mrb[0].mxu0
      %2621 = vmatprep.mubr.bf16.mxu0 0
      %2622 = vmatmul.mubr.bf16.gmra.mrb[0].mxu0 %v2508
      %v2623 = vpop.f32.mrb[0].mxu0
      %v2624 = vadd.f32 %v2486, %v2623
      %v2625 = vpop.f32.mrb[0].mxu0
      %v2626 = vpop.f32.mrb[0].mxu0
      %v2627 = vadd.f32 %v2486, %v2626
      %v2628 = vpop.f32.mrb[0].mxu0
      %2629 = vmatprep.mubr.bf16.mxu0 0
      %2630 = vmatmul.mubr.bf16.gmra.mrb[0].mxu0 %v2511
      %v2631 = vpop.f32.mrb[0].mxu0
      %v2632 = vadd.f32 %v2486, %v2631
      %v2633 = vpop.f32.mrb[0].mxu0
      %v2634 = vpop.f32.mrb[0].mxu0
      %v2635 = vadd.f32 %v2486, %v2634
      %v2636 = vpop.f32.mrb[0].mxu0
      %2637 = vmatprep.mubr.bf16.mxu0 0
      %2638 = vmatmul.mubr.bf16.gmra.mrb[0].mxu0 %v2514
      %v2639 = vpop.f32.mrb[0].mxu0
      %v2640 = vadd.f32 %v2486, %v2639
      %v2641 = vpop.f32.mrb[0].mxu0
      %v2642 = vpop.f32.mrb[0].mxu0
      %v2643 = vadd.f32 %v2486, %v2642
      %v2644 = vpop.f32.mrb[0].mxu0
      %2645 = vmatprep.mubr.bf16.mxu0 0
      %2646 = vmatmul.mubr.bf16.gmra.mrb[0].mxu0 %v2517
      %v2647 = vpop.f32.mrb[0].mxu0
      %v2648 = vadd.f32 %v2486, %v2647
      %v2649 = vpop.f32.mrb[0].mxu0
      %v2650 = vpop.f32.mrb[0].mxu0
      %v2651 = vadd.f32 %v2486, %v2650
      %v2652 = vpop.f32.mrb[0].mxu0
      %2653 = vmatprep.mubr.bf16.mxu0 0
      %2654 = vmatmul.mubr.bf16.gmra.mrb[0].mxu0 %v2520
      %v2655 = vpop.f32.mrb[0].mxu0
      %v2656 = vadd.f32 %v2486, %v2655
      %v2657 = vpop.f32.mrb[0].mxu0
      %v2658 = vpop.f32.mrb[0].mxu0
      %v2659 = vadd.f32 %v2486, %v2658
      %v2660 = vpop.f32.mrb[0].mxu0
      %2661 = vmatprep.mubr.bf16.mxu0 0
      %2662 = vmatmul.mubr.bf16.gmra.mrb[0].mxu0 %v2523
      %v2663 = vpop.f32.mrb[0].mxu0
      %v2664 = vadd.f32 %v2486, %v2663
      %v2665 = vpop.f32.mrb[0].mxu0
      %v2666 = vpop.f32.mrb[0].mxu0
      %v2667 = vadd.f32 %v2486, %v2666
      %v2668 = vpop.f32.mrb[0].mxu0
      %2669 = vmatprep.mubr.bf16.mxu0 0
      %2670 = vmatmul.mubr.bf16.gmra.mrb[0].mxu0 %v2526
      %v2671 = vpop.f32.mrb[0].mxu0
      %v2672 = vadd.f32 %v2486, %v2671
      %v2673 = vpop.f32.mrb[0].mxu0
      %v2674 = vpop.f32.mrb[0].mxu0
      %v2675 = vadd.f32 %v2486, %v2674
      %v2676 = vpop.f32.mrb[0].mxu0
      %2677 = vmatprep.mubr.bf16.mxu0 0
      %2678 = vmatmul.mubr.bf16.gmra.mrb[0].mxu0 %v2529
      %v2679 = vpop.f32.mrb[0].mxu0
      %v2680 = vadd.f32 %v2486, %v2679
      %v2681 = vpop.f32.mrb[0].mxu0
      %v2682 = vpop.f32.mrb[0].mxu0
      %v2683 = vadd.f32 %v2486, %v2682
      %v2684 = vpop.f32.mrb[0].mxu0
      %2685 = vmatprep.mubr.bf16.mxu0 0
      %2686 = vmatmul.mubr.bf16.gmra.mrb[0].mxu0 %v2532
      %v2687 = vpop.f32.mrb[0].mxu0
      %v2688 = vadd.f32 %v2486, %v2687
      %v2689 = vpop.f32.mrb[0].mxu0
      %v2690 = vpop.f32.mrb[0].mxu0
      %v2691 = vadd.f32 %v2486, %v2690
      %v2692 = vpop.f32.mrb[0].mxu0
      %2693 = vmatprep.mubr.bf16.mxu0 0
      %2694 = vmatmul.mubr.bf16.gmra.mrb[0].mxu0 %v2535
      %v2695 = vpop.f32.mrb[0].mxu0
      %v2696 = vadd.f32 %v2486, %v2695
      %v2697 = vpop.f32.mrb[0].mxu0
      %v2698 = vpop.f32.mrb[0].mxu0
      %v2699 = vadd.f32 %v2486, %v2698
      %v2700 = vpop.f32.mrb[0].mxu0
      %2701 = vdwg.mxu0
      %2702 = vst.msk [vmem:[%s508] sm:$0xff] %vm2488, %v2576
      %2703 = vst.msk [vmem:[%s508 + $0x8] sm:$0xff] %vm2488, %v2579
      %2704 = vst.msk [vmem:[%s508 + $0x10] sm:$0xff] %vm2488, %v2584
      %2705 = vst.msk [vmem:[%s508 + $0x18] sm:$0xff] %vm2488, %v2587
      %2706 = vst.msk [vmem:[%s508 + $0x20] sm:$0xff] %vm2488, %v2592
      %2707 = vst.msk [vmem:[%s508 + $0x28] sm:$0xff] %vm2488, %v2595
      %2708 = vst.msk [vmem:[%s508 + $0x30] sm:$0xff] %vm2488, %v2600
      %2709 = vst.msk [vmem:[%s508 + $0x38] sm:$0xff] %vm2488, %v2603
      %2710 = vst.msk [vmem:[%s508 + $0x40] sm:$0xff] %vm2488, %v2608
      %2711 = vst.msk [vmem:[%s508 + $0x48] sm:$0xff] %vm2488, %v2611
      %2712 = vst.msk [vmem:[%s508 + $0x50] sm:$0xff] %vm2488, %v2616
      %2713 = vst.msk [vmem:[%s508 + $0x58] sm:$0xff] %vm2488, %v2619
      %2714 = vst.msk [vmem:[%s508 + $0x60] sm:$0xff] %vm2488, %v2624
      %2715 = vst.msk [vmem:[%s508 + $0x68] sm:$0xff] %vm2488, %v2627
      %2716 = vst.msk [vmem:[%s508 + $0x70] sm:$0xff] %vm2488, %v2632
      %2717 = vst.msk [vmem:[%s508 + $0x78] sm:$0xff] %vm2488, %v2635
      %2718 = vst.msk [vmem:[%s508 + $0x80] sm:$0xff] %vm2488, %v2640
      %2719 = vst.msk [vmem:[%s508 + $0x88] sm:$0xff] %vm2488, %v2643
      %2720 = vst.msk [vmem:[%s508 + $0x90] sm:$0xff] %vm2488, %v2648
      %2721 = vst.msk [vmem:[%s508 + $0x98] sm:$0xff] %vm2488, %v2651
      %2722 = vst.msk [vmem:[%s508 + $0xa0] sm:$0xff] %vm2488, %v2656
      %2723 = vst.msk [vmem:[%s508 + $0xa8] sm:$0xff] %vm2488, %v2659
      %2724 = vst.msk [vmem:[%s508 + $0xb0] sm:$0xff] %vm2488, %v2664
      %2725 = vst.msk [vmem:[%s508 + $0xb8] sm:$0xff] %vm2488, %v2667
      %2726 = vst.msk [vmem:[%s508 + $0xc0] sm:$0xff] %vm2488, %v2672
      %2727 = vst.msk [vmem:[%s508 + $0xc8] sm:$0xff] %vm2488, %v2675
      %2728 = vst.msk [vmem:[%s508 + $0xd0] sm:$0xff] %vm2488, %v2680
      %2729 = vst.msk [vmem:[%s508 + $0xd8] sm:$0xff] %vm2488, %v2683
      %2730 = vst.msk [vmem:[%s508 + $0xe0] sm:$0xff] %vm2488, %v2688
      %2731 = vst.msk [vmem:[%s508 + $0xe8] sm:$0xff] %vm2488, %v2691
      %2732 = vst.msk [vmem:[%s508 + $0xf0] sm:$0xff] %vm2488, %v2696
      %2733 = vst.msk [vmem:[%s508 + $0xf8] sm:$0xff] %vm2488, %v2699
      %s2734 = smul.u32 32, %s24
      %p2735 = scmp.lt.s32.totalorder %s2734, 63
      %s2736 = scalar_select %p2735, %s2734, 63
      %s2737 = smul.addr %s2736, 4
      %s2738 = scalar_lea.vmem %s10, %s2737
      %s2739 = smul.u32 32, %s24
      %p2740 = scmp.lt.s32.totalorder %s2739, 63
      %s2741 = scalar_select %p2740, %s2739, 63
      %s2742 = smul.addr %s2741, 4
      %s2743 = scalar_lea.vmem %s11, %s2742
      %s2744 = smul.u32 32, %s24
      %p2745 = scmp.lt.s32.totalorder %s2744, 63
      %s2746 = scalar_select %p2745, %s2744, 63
      %s2747 = smul.addr %s2746, 8
      %s2748 = scalar_lea.vmem %s12, %s2747
      // Predicated region
      $region61: #{efdb_forward.10} parent=59 // pred_check
        %p2749 = pneg %p272
      $region62: #{efdb_forward.10} parent=59 // pred_check_branch
        %2751 = sbr.rel (%p2749) target = $region64
      $region63: #{efdb_forward.10} parent=59 // pred_region
        %s2752 = smul.u32 32, %s24
      $region64: #{efdb_forward.10} parent=59 // pred_fallthru
        _
      // Predicated region
      $region65: #{efdb_forward.10} parent=59 // pred_check
        %p2753 = pneg %p298
      $region66: #{efdb_forward.10} parent=59 // pred_check_branch
        %2755 = sbr.rel (%p2753) target = $region68
      $region67: #{efdb_forward.10} parent=59 // pred_region
        %s2756 = smul.u32 32, %s24
      $region68: #{efdb_forward.10} parent=59 // pred_fallthru
        _
      // Predicated region
      $region69: #{efdb_forward.10} parent=59 // pred_check
        %p2757 = pneg %p324
      $region70: #{efdb_forward.10} parent=59 // pred_check_branch
        %2759 = sbr.rel (%p2757) target = $region72
      $region71: #{efdb_forward.10} parent=59 // pred_region
        %s2760 = smul.u32 32, %s24
      $region72: #{efdb_forward.10} parent=59 // pred_fallthru
        _
    $region60: #{efdb_forward.10} parent=5 // pred_fallthru
      _
    %p2761 = scmp.le.s32.totalorder 2, %s19
    // Predicated region
    $region73: #{efdb_forward.10} parent=5 // pred_check
      %p2762 = pneg %p2761
    $region74: #{efdb_forward.10} parent=5 // pred_check_branch
      %2764 = sbr.rel (%p2762) target = $region76
    $region75: #{efdb_forward.10} parent=5 // pred_region
      %s2765 = ssub.s32 %s19, 2
      // Predicated region
      $region77: #{efdb_forward.10} parent=75 // pred_check
        %p2766 = pneg %p278
      $region78: #{efdb_forward.10} parent=75 // pred_check_branch
        %2768 = sbr.rel (%p2766) target = $region80
      $region79: #{efdb_forward.10} parent=75 // pred_region
        %s2769 = smul.u32 32, %s25
        %p2770 = scmp.lt.s32.totalorder %s2769, 63
        %s2771 = scalar_select %p2770, %s2769, 63
        %s2772 = smul.addr %s2771, 4
        %s2773 = scalar_lea.vmem %s10, %s2772
      $region80: #{efdb_forward.10} parent=75 // pred_fallthru
        _
      // Predicated region
      $region81: #{efdb_forward.10} parent=75 // pred_check
        %p2774 = pneg %p304
      $region82: #{efdb_forward.10} parent=75 // pred_check_branch
        %2776 = sbr.rel (%p2774) target = $region84
      $region83: #{efdb_forward.10} parent=75 // pred_region
        %s2777 = smul.u32 32, %s25
        %p2778 = scmp.lt.s32.totalorder %s2777, 63
        %s2779 = scalar_select %p2778, %s2777, 63
        %s2780 = smul.addr %s2779, 4
        %s2781 = scalar_lea.vmem %s11, %s2780
      $region84: #{efdb_forward.10} parent=75 // pred_fallthru
        _
      // Predicated region
      $region85: #{efdb_forward.10} parent=75 // pred_check
        %p2782 = pneg %p330
      $region86: #{efdb_forward.10} parent=75 // pred_check_branch
        %2784 = sbr.rel (%p2782) target = $region88
      $region87: #{efdb_forward.10} parent=75 // pred_region
        %s2785 = smul.u32 32, %s25
        %p2786 = scmp.lt.s32.totalorder %s2785, 63
        %s2787 = scalar_select %p2786, %s2785, 63
        %s2788 = smul.addr %s2787, 8
        %s2789 = scalar_lea.vmem %s12, %s2788
      $region88: #{efdb_forward.10} parent=75 // pred_fallthru
        _
    $region76: #{efdb_forward.10} parent=5 // pred_fallthru
      _
  $region6: #{efdb_forward.10} parent=0 // loop_footer
    %s23 = sadd.s32 1, %s19
  $region7: #{efdb_forward.10} parent=0 // loop_footer_branch
    %18 = sbr.rel target = $region3
  $region8: #{efdb_forward.10} parent=0 // loop_exit
    _

// kernel: efdb_forward.12
$region0: #{efdb_forward.12}
  #allocation0 [shape = 'u32[]', space=smem, size = 0x4, offset = 0x4, fixed_abs, tag = 'smem constant byte address 0x4 - core index']
  #allocation1 [shape = 'u32[144,128]{1,0:T(1,128)}', space=vmem, size = 0x12000, scoped, tag = 'internal scratch']
  %s0 = inlined_call_operand.vmem [shape: bf16[32,36], index: 0, kind: input, shape index: {}]
  %s1 = inlined_call_operand.vmem [shape: bf16[36,4], index: 1, kind: input, shape index: {}]
  %s2 = inlined_call_operand.vmem [shape: f32[1,4], index: 2, kind: input, shape index: {}]
  %s3 = inlined_call_operand.vmem [shape: f32[1,4], index: 3, kind: input, shape index: {}]
  %s4 = inlined_call_operand.vmem [shape: f32[32,4], index: 4, kind: output, shape index: {}]
  %s5 = sld [smem:[#allocation0]]
  $region26: #{efdb_forward.12} parent=0
    _
  %s7 = ssub.s32 1, %s5
  %s8 = scalar_select 0, %s7, %s5
  // Predicated region
  $region2: #{efdb_forward.12} parent=0 // pred_check
    _
  $region3: #{efdb_forward.12} parent=0 // pred_check_branch
    %10 = sbr.rel (0) target = $region5
  $region4: #{efdb_forward.12} parent=0 // pred_region
    _
  $region5: #{efdb_forward.12} parent=0 // pred_fallthru
    _
  // Predicated region
  $region6: #{efdb_forward.12} parent=0 // pred_check
    _
  $region7: #{efdb_forward.12} parent=0 // pred_check_branch
    %12 = sbr.rel (0) target = $region9
  $region8: #{efdb_forward.12} parent=0 // pred_region
    _
  $region9: #{efdb_forward.12} parent=0 // pred_fallthru
    _
  // Predicated region
  $region10: #{efdb_forward.12} parent=0 // pred_check
    _
  $region11: #{efdb_forward.12} parent=0 // pred_check_branch
    %14 = sbr.rel (0) target = $region13
  $region12: #{efdb_forward.12} parent=0 // pred_region
    _
  $region13: #{efdb_forward.12} parent=0 // pred_fallthru
    _
  // Predicated region
  $region14: #{efdb_forward.12} parent=0 // pred_check
    _
  $region15: #{efdb_forward.12} parent=0 // pred_check_branch
    %16 = sbr.rel (0) target = $region17
  $region16: #{efdb_forward.12} parent=0 // pred_region
    _
  $region17: #{efdb_forward.12} parent=0 // pred_fallthru
    _
  %v18 = vld [vmem:[%s0] sm:$0xf]
  %v19 = vld [vmem:[%s0 + $0x4] sm:$0xf]
  %v20 = vld [vmem:[%s0 + $0x8] sm:$0xf]
  %v21 = vld [vmem:[%s0 + $0xc] sm:$0xf]
  %v22 = vld [vmem:[%s1] sm:$0xf]
  %v23 = vld [vmem:[%s1 + $0x4] sm:$0xf]
  %v24 = vld [vmem:[%s1 + $0x8] sm:$0xf]
  %v25 = vld [vmem:[%s1 + $0xc] sm:$0xf]
  %v26 = vld [vmem:[%s1 + $0x10] sm:$0x3]
  %v27 = vld [vmem:[%s2] sm:$0x1]
  %v29 = vlaneseq
  %v30 = vshrl.u32 %v29, 7
  %v31 = vsub.s32 0, %v30
  %v32 = vrot.slane %v27, %v31
  %v38 = vunpack.c.l.b16 %v18
  %v39 = vunpack.c.l.b16 %v19
  %v40 = vunpack.c.l.b16 %v20
  %v41 = vunpack.c.l.b16 %v21
  %v42 = vpack.c.b16 %v39, %v38
  %v43 = vpack.c.b16 %v41, %v40
  %v49 = vunpack.c.l.b16 %v22
  %v50 = vunpack.c.l.b16 %v23
  %v51 = vunpack.c.l.b16 %v24
  %v52 = vunpack.c.l.b16 %v25
  %v53 = vunpack.c.l.b16 %v26
  %v54 = vpack.c.b16 %v50, %v49
  %v55 = vpack.c.b16 %v52, %v51
  %v56 = vpack.c.b16 %v53, %v53
  %vm59 = vcmask 293888
  %v61 = vsel %vm59, %v42, 0
  %v64 = vsel %vm59, %v43, 0
  %vm66 = vcmask 1041408
  %v68 = vsel %vm66, %v56, 0
  %70 = vmatprep.subr.bf16.mxu0 0
  %71 = vmatpush1.bf16.msra.mxu0 %v54
  %72 = vmatprep.subr.bf16.mxu0 0
  %73 = vmatpush1.bf16.msra.mxu0 %v55
  %74 = vmatprep.subr.bf16.mxu0 0
  %75 = vmatpush1.bf16.msra.mxu0 %v68
  %76 = vmatprep.subr.bf16.mxu0 0
  %77 = vmatpush1.bf16.msra.mxu0 0
  %78 = vmatprep.subr.bf16.mxu0 0
  %79 = vmatpush1.bf16.msra.mxu0 0
  %80 = vmatprep.subr.bf16.mxu0 0
  %81 = vmatpush1.bf16.msra.mxu0 0
  %82 = vmatprep.subr.bf16.mxu0 0
  %83 = vmatpush1.bf16.msra.mxu0 0
  %84 = vmatprep.subr.bf16.mxu0 0
  %85 = vmatpush1.bf16.msra.mxu0 0
  %86 = vmatprep.subr.bf16.mxu0 0
  %87 = vmatpush1.bf16.msra.mxu0 0
  %88 = vmatprep.subr.bf16.mxu0 0
  %89 = vmatpush1.bf16.msra.mxu0 0
  %90 = vmatprep.subr.bf16.mxu0 0
  %91 = vmatpush1.bf16.msra.mxu0 0
  %92 = vmatprep.subr.bf16.mxu0 0
  %93 = vmatpush1.bf16.msra.mxu0 0
  %94 = vmatprep.subr.bf16.mxu0 0
  %95 = vmatpush1.bf16.msra.mxu0 0
  %96 = vmatprep.subr.bf16.mxu0 0
  %97 = vmatpush1.bf16.msra.mxu0 0
  %98 = vmatprep.subr.bf16.mxu0 0
  %99 = vmatpush1.bf16.msra.mxu0 0
  %100 = vmatprep.subr.bf16.mxu0 0
  %101 = vmatpush1.bf16.msra.mxu0 0
  %102 = vmatprep.mubr.bf16.mxu0 0
  %103 = vmatmul.mubr.bf16.gmra.mrb[0].mxu0 %v61
  %v104 = vpop.f32.mrb[0].mxu0
  %v105 = vadd.f32 %v32, %v104
  %v106 = vpop.f32.mrb[0].mxu0
  %v107 = vpop.f32.mrb[0].mxu0
  %v108 = vadd.f32 %v32, %v107
  %v109 = vpop.f32.mrb[0].mxu0
  %110 = vmatprep.mubr.bf16.mxu0 0
  %111 = vmatmul.mubr.bf16.gmra.mrb[0].mxu0 %v64
  %v112 = vpop.f32.mrb[0].mxu0
  %v113 = vadd.f32 %v32, %v112
  %v114 = vpop.f32.mrb[0].mxu0
  %v115 = vpop.f32.mrb[0].mxu0
  %v116 = vadd.f32 %v32, %v115
  %v117 = vpop.f32.mrb[0].mxu0
  %118 = vdwg.mxu0
  %vm119 = vcmask 31744
  %120 = vst.msk [vmem:[%s4] sm:$0xff] %vm119, %v105
  %121 = vst.msk [vmem:[%s4 + $0x8] sm:$0xff] %vm119, %v108
  %122 = vst.msk [vmem:[%s4 + $0x10] sm:$0xff] %vm119, %v113
  %123 = vst.msk [vmem:[%s4 + $0x18] sm:$0xff] %vm119, %v116
  // Predicated region
  $region18: #{efdb_forward.12} parent=0 // pred_check
    _
  $region19: #{efdb_forward.12} parent=0 // pred_check_branch
    %125 = sbr.rel (0) target = $region21
  $region20: #{efdb_forward.12} parent=0 // pred_region
    _
  $region21: #{efdb_forward.12} parent=0 // pred_fallthru
    _
  // Predicated region
  $region22: #{efdb_forward.12} parent=0 // pred_check
    _
  $region23: #{efdb_forward.12} parent=0 // pred_check_branch
    %127 = sbr.rel (0) target = $region25
  $region24: #{efdb_forward.12} parent=0 // pred_region
    _
  $region25: #{efdb_forward.12} parent=0 // pred_fallthru
    _

// kernel: efdb_forward.13
$region0: #{efdb_forward.13}
  #allocation0 [shape = 'u32[]', space=smem, size = 0x4, offset = 0x4, fixed_abs, tag = 'smem constant byte address 0x4 - core index']
  #allocation1 [shape = 'u32[144,128]{1,0:T(1,128)}', space=vmem, size = 0x12000, scoped, tag = 'internal scratch']
  %s0 = inlined_call_operand.vmem [shape: f32[512,4], index: 0, kind: input, shape index: {}]
  %s1 = inlined_call_operand.vmem [shape: f32[512,4], index: 1, kind: input, shape index: {}]
  %s2 = inlined_call_operand.vmem [shape: f32[4,16], index: 2, kind: input, shape index: {}]
  %s3 = inlined_call_operand.vmem [shape: f32[1,16], index: 3, kind: input, shape index: {}]
  %s4 = inlined_call_operand.vmem [shape: bf16[512,16], index: 4, kind: input, shape index: {}]
  %s5 = inlined_call_operand.vmem [shape: f32[512,16], index: 5, kind: input, shape index: {}]
  %s6 = inlined_call_operand.hbm [shape: f32[512,16], index: 6, kind: output, shape index: {}]
  %s7 = sld [smem:[#allocation0]]
  $region57: #{efdb_forward.13} parent=0
    _
  %s9 = ssub.s32 1, %s7
  %s10 = scalar_select 0, %s9, %s7
  $region1: #{efdb_forward.13} parent=0
    #allocation2 [shape = 'u8[262144]{0}', space=vmem, size = 0x40000, scoped, tag = 'output window, operand 0']
    #allocation3 [shape = 's32[2]{0}', space=sflag, size = 0x8, scoped, tag = 'scoped memory for efdb_forward.13']
    %11 = vsyncpa [#allocation3], 0
    %s12 = scalar_lea.sflag [#allocation3], 1
    %13 = vsyncpa %s12, 0
    loop: start=0, step=1, limit=4
    $region2: #{efdb_forward.13} parent=1 // loop_pre_header
      _
    $region3: #{efdb_forward.13} parent=1 // loop_header
      %s15 = sphi 0, %s19
      %p16 = scmp.ge.s32.totalorder %s15, 4
      %s25 = sphi 0, %s27
      %s28 = sphi 0, %s25
      %s29 = sphi 0, %s28
      %s45 = sphi 0, %s29
      %s51 = sphi 0, %s53
      %s54 = sphi 0, %s51
      %s55 = sphi 0, %s54
      %s71 = sphi 0, %s55
      %s75 = sphi 0, %s75
      %s77 = sphi 0, %s75
      %s78 = sphi 0, %s77
      %s92 = sphi 0, %s78
      %s96 = sphi 0, %s96
      %s98 = sphi 0, %s96
      %s99 = sphi 0, %s98
      %s113 = sphi 0, %s99
      %s119 = sphi 0, %s121
      %s122 = sphi 0, %s119
      %s123 = sphi 0, %s122
      %s139 = sphi 0, %s123
      %s145 = sphi 0, %s147
      %s148 = sphi 0, %s145
      %s149 = sphi 0, %s148
      %s165 = sphi 0, %s149
      %s171 = sphi 0, %s173
      %s174 = sphi 0, %s171
      %s175 = sphi 0, %s174
      %s191 = sphi 0, %s175
    $region4: #{efdb_forward.13} parent=1 // loop_header_branch
      %18 = sbr.rel (%p16) target = $region8
    $region5: #{efdb_forward.13} parent=1 // loop_body
      %s20 = ssub.s32 %s15, 1
      %s21 = ssub.s32 %s15, 2
      %s22 = sadd.s32 %s15, 1
      %s23 = ssub.s32 %s15, %s22
      %p24 = scmp.eq.s32.totalorder %s23, 0
      %s26 = sadd.s32 %s25, 1
      %s27 = scalar_select %p24, %s25, %s26
      %p30 = pneg %p24
      %p31 = scmp.eq.s32.totalorder %s15, 1
      %p32 = por %p30, %p31
      %p33 = scmp.ne.s32.totalorder %s25, %s28
      %p34 = scmp.eq.s32.totalorder %s15, 0
      %p35 = por %p33, %p34
      %p36 = scmp.ne.s32.totalorder %s25, %s28
      %p37 = scmp.eq.s32.totalorder %s20, 1
      %p38 = por %p36, %p37
      %p39 = scmp.ne.s32.totalorder %s28, %s29
      %p40 = scmp.eq.s32.totalorder %s20, 0
      %p41 = por %p39, %p40
      %p42 = scmp.ne.s32.totalorder %s28, %s29
      %p43 = scmp.eq.s32.totalorder %s21, 1
      %p44 = por %p42, %p43
      %p46 = scmp.ne.s32.totalorder %s29, %s45
      %p47 = scmp.eq.s32.totalorder %s21, 0
      %p48 = por %p46, %p47
      %s49 = ssub.s32 %s15, %s22
      %p50 = scmp.eq.s32.totalorder %s49, 0
      %s52 = sadd.s32 %s51, 1
      %s53 = scalar_select %p50, %s51, %s52
      %p56 = pneg %p50
      %p57 = scmp.eq.s32.totalorder %s15, 1
      %p58 = por %p56, %p57
      %p59 = scmp.ne.s32.totalorder %s51, %s54
      %p60 = scmp.eq.s32.totalorder %s15, 0
      %p61 = por %p59, %p60
      %p62 = scmp.ne.s32.totalorder %s51, %s54
      %p63 = scmp.eq.s32.totalorder %s20, 1
      %p64 = por %p62, %p63
      %p65 = scmp.ne.s32.totalorder %s54, %s55
      %p66 = scmp.eq.s32.totalorder %s20, 0
      %p67 = por %p65, %p66
      %p68 = scmp.ne.s32.totalorder %s54, %s55
      %p69 = scmp.eq.s32.totalorder %s21, 1
      %p70 = por %p68, %p69
      %p72 = scmp.ne.s32.totalorder %s55, %s71
      %p73 = scmp.eq.s32.totalorder %s21, 0
      %p74 = por %p72, %p73
      %s76 = sadd.s32 %s75, 1
      %p79 = scmp.eq.s32.totalorder %s15, 1
      %p80 = scmp.ne.s32.totalorder %s75, %s77
      %p81 = scmp.eq.s32.totalorder %s15, 0
      %p82 = por %p80, %p81
      %p83 = scmp.ne.s32.totalorder %s75, %s77
      %p84 = scmp.eq.s32.totalorder %s20, 1
      %p85 = por %p83, %p84
      %p86 = scmp.ne.s32.totalorder %s77, %s78
      %p87 = scmp.eq.s32.totalorder %s20, 0
      %p88 = por %p86, %p87
      %p89 = scmp.ne.s32.totalorder %s77, %s78
      %p90 = scmp.eq.s32.totalorder %s21, 1
      %p91 = por %p89, %p90
      %p93 = scmp.ne.s32.totalorder %s78, %s92
      %p94 = scmp.eq.s32.totalorder %s21, 0
      %p95 = por %p93, %p94
      %s97 = sadd.s32 %s96, 1
      %p100 = scmp.eq.s32.totalorder %s15, 1
      %p101 = scmp.ne.s32.totalorder %s96, %s98
      %p102 = scmp.eq.s32.totalorder %s15, 0
      %p103 = por %p101, %p102
      %p104 = scmp.ne.s32.totalorder %s96, %s98
      %p105 = scmp.eq.s32.totalorder %s20, 1
      %p106 = por %p104, %p105
      %p107 = scmp.ne.s32.totalorder %s98, %s99
      %p108 = scmp.eq.s32.totalorder %s20, 0
      %p109 = por %p107, %p108
      %p110 = scmp.ne.s32.totalorder %s98, %s99
      %p111 = scmp.eq.s32.totalorder %s21, 1
      %p112 = por %p110, %p111
      %p114 = scmp.ne.s32.totalorder %s99, %s113
      %p115 = scmp.eq.s32.totalorder %s21, 0
      %p116 = por %p114, %p115
      %s117 = ssub.s32 %s15, %s22
      %p118 = scmp.eq.s32.totalorder %s117, 0
      %s120 = sadd.s32 %s119, 1
      %s121 = scalar_select %p118, %s119, %s120
      %p124 = pneg %p118
      %p125 = scmp.eq.s32.totalorder %s15, 1
      %p126 = por %p124, %p125
      %p127 = scmp.ne.s32.totalorder %s119, %s122
      %p128 = scmp.eq.s32.totalorder %s15, 0
      %p129 = por %p127, %p128
      %p130 = scmp.ne.s32.totalorder %s119, %s122
      %p131 = scmp.eq.s32.totalorder %s20, 1
      %p132 = por %p130, %p131
      %p133 = scmp.ne.s32.totalorder %s122, %s123
      %p134 = scmp.eq.s32.totalorder %s20, 0
      %p135 = por %p133, %p134
      %p136 = scmp.ne.s32.totalorder %s122, %s123
      %p137 = scmp.eq.s32.totalorder %s21, 1
      %p138 = por %p136, %p137
      %p140 = scmp.ne.s32.totalorder %s123, %s139
      %p141 = scmp.eq.s32.totalorder %s21, 0
      %p142 = por %p140, %p141
      %s143 = ssub.s32 %s15, %s22
      %p144 = scmp.eq.s32.totalorder %s143, 0
      %s146 = sadd.s32 %s145, 1
      %s147 = scalar_select %p144, %s145, %s146
      %p150 = pneg %p144
      %p151 = scmp.eq.s32.totalorder %s15, 1
      %p152 = por %p150, %p151
      %p153 = scmp.ne.s32.totalorder %s145, %s148
      %p154 = scmp.eq.s32.totalorder %s15, 0
      %p155 = por %p153, %p154
      %p156 = scmp.ne.s32.totalorder %s145, %s148
      %p157 = scmp.eq.s32.totalorder %s20, 1
      %p158 = por %p156, %p157
      %p159 = scmp.ne.s32.totalorder %s148, %s149
      %p160 = scmp.eq.s32.totalorder %s20, 0
      %p161 = por %p159, %p160
      %p162 = scmp.ne.s32.totalorder %s148, %s149
      %p163 = scmp.eq.s32.totalorder %s21, 1
      %p164 = por %p162, %p163
      %p166 = scmp.ne.s32.totalorder %s149, %s165
      %p167 = scmp.eq.s32.totalorder %s21, 0
      %p168 = por %p166, %p167
      %s169 = ssub.s32 %s15, %s22
      %p170 = scmp.eq.s32.totalorder %s169, 0
      %s172 = sadd.s32 %s171, 1
      %s173 = scalar_select %p170, %s171, %s172
      %p176 = pneg %p170
      %p177 = scmp.eq.s32.totalorder %s15, 1
      %p178 = por %p176, %p177
      %p179 = scmp.ne.s32.totalorder %s171, %s174
      %p180 = scmp.eq.s32.totalorder %s15, 0
      %p181 = por %p179, %p180
      %p182 = scmp.ne.s32.totalorder %s171, %s174
      %p183 = scmp.eq.s32.totalorder %s20, 1
      %p184 = por %p182, %p183
      %p185 = scmp.ne.s32.totalorder %s174, %s175
      %p186 = scmp.eq.s32.totalorder %s20, 0
      %p187 = por %p185, %p186
      %p188 = scmp.ne.s32.totalorder %s174, %s175
      %p189 = scmp.eq.s32.totalorder %s21, 1
      %p190 = por %p188, %p189
      %p192 = scmp.ne.s32.totalorder %s175, %s191
      %p193 = scmp.eq.s32.totalorder %s21, 0
      %p194 = por %p192, %p193
      %p195 = scmp.le.s32.totalorder 1, %s15
      %p196 = scmp.lt.s32.totalorder %s15, 3
      %p197 = pnand %p195, %p196
      %p198 = pneg %p197
      // Predicated region
      $region9: #{efdb_forward.13} parent=5 // pred_check
        _
      $region10: #{efdb_forward.13} parent=5 // pred_check_branch
        %200 = sbr.rel (%p197) target = $region12
      $region11: #{efdb_forward.13} parent=5 // pred_region
        %s201 = ssub.s32 %s15, 1
        // Predicated region
        $region13: #{efdb_forward.13} parent=11 // pred_check
          %p202 = pneg %p88
        $region14: #{efdb_forward.13} parent=11 // pred_check_branch
          %204 = sbr.rel (%p202) target = $region16
        $region15: #{efdb_forward.13} parent=11 // pred_region
          _
        $region16: #{efdb_forward.13} parent=11 // pred_fallthru
          _
        // Predicated region
        $region17: #{efdb_forward.13} parent=11 // pred_check
          %p205 = pneg %p109
        $region18: #{efdb_forward.13} parent=11 // pred_check_branch
          %207 = sbr.rel (%p205) target = $region20
        $region19: #{efdb_forward.13} parent=11 // pred_region
          _
        $region20: #{efdb_forward.13} parent=11 // pred_fallthru
          _
      $region12: #{efdb_forward.13} parent=5 // pred_fallthru
        _
      %p208 = scmp.lt.s32.totalorder %s15, 2
      // Predicated region
      $region21: #{efdb_forward.13} parent=5 // pred_check
        %p209 = pneg %p208
      $region22: #{efdb_forward.13} parent=5 // pred_check_branch
        %211 = sbr.rel (%p209) target = $region24
      $region23: #{efdb_forward.13} parent=5 // pred_region
        // Predicated region
        $region25: #{efdb_forward.13} parent=23 // pred_check
          %p212 = pneg %p35
        $region26: #{efdb_forward.13} parent=23 // pred_check_branch
          %214 = sbr.rel (%p212) target = $region28
        $region27: #{efdb_forward.13} parent=23 // pred_region
          %s215 = smul.u32 32, %s15
          %p216 = scmp.lt.s32.totalorder %s215, 63
          %s217 = scalar_select %p216, %s215, 63
          %s218 = smul.addr %s217, 8
          %s219 = scalar_lea.vmem %s0, %s218
          %s220 = smul.u32 32, %s15
        $region28: #{efdb_forward.13} parent=23 // pred_fallthru
          _
        // Predicated region
        $region29: #{efdb_forward.13} parent=23 // pred_check
          %p221 = pneg %p61
        $region30: #{efdb_forward.13} parent=23 // pred_check_branch
          %223 = sbr.rel (%p221) target = $region32
        $region31: #{efdb_forward.13} parent=23 // pred_region
          %s224 = smul.u32 32, %s15
          %p225 = scmp.lt.s32.totalorder %s224, 63
          %s226 = scalar_select %p225, %s224, 63
          %s227 = smul.addr %s226, 8
          %s228 = scalar_lea.vmem %s1, %s227
          %s229 = smul.u32 32, %s15
        $region32: #{efdb_forward.13} parent=23 // pred_fallthru
          _
        // Predicated region
        $region33: #{efdb_forward.13} parent=23 // pred_check
          %p230 = pneg %p129
        $region34: #{efdb_forward.13} parent=23 // pred_check_branch
          %232 = sbr.rel (%p230) target = $region36
        $region35: #{efdb_forward.13} parent=23 // pred_region
          %s233 = smul.u32 32, %s15
          %p234 = scmp.lt.s32.totalorder %s233, 63
          %s235 = scalar_select %p234, %s233, 63
          %s236 = smul.addr %s235, 4
          %s237 = scalar_lea.vmem %s4, %s236
          %s238 = smul.u32 32, %s15
        $region36: #{efdb_forward.13} parent=23 // pred_fallthru
          _
        // Predicated region
        $region37: #{efdb_forward.13} parent=23 // pred_check
          %p239 = pneg %p155
        $region38: #{efdb_forward.13} parent=23 // pred_check_branch
          %241 = sbr.rel (%p239) target = $region40
        $region39: #{efdb_forward.13} parent=23 // pred_region
          %s242 = smul.u32 32, %s15
          %p243 = scmp.lt.s32.totalorder %s242, 63
          %s244 = scalar_select %p243, %s242, 63
          %s245 = smul.addr %s244, 8
          %s246 = scalar_lea.vmem %s5, %s245
          %s247 = smul.u32 32, %s15
        $region40: #{efdb_forward.13} parent=23 // pred_fallthru
          _
      $region24: #{efdb_forward.13} parent=5 // pred_fallthru
        _
      %p248 = scmp.le.s32.totalorder 1, %s15
      %p249 = scmp.lt.s32.totalorder %s15, 3
      %p250 = pnand %p248, %p249
      %p251 = pneg %p250
      // Predicated region
      $region41: #{efdb_forward.13} parent=5 // pred_check
        _
      $region42: #{efdb_forward.13} parent=5 // pred_check_branch
        %253 = sbr.rel (%p250) target = $region44
      $region43: #{efdb_forward.13} parent=5 // pred_region
        %s254 = ssub.s32 %s15, 1
        %s255 = smul.u32 32, %s20
        %p256 = scmp.lt.s32.totalorder %s255, 63
        %s257 = scalar_select %p256, %s255, 63
        %s258 = smul.addr %s257, 8
        %s259 = scalar_lea.vmem %s0, %s258
        %p260 = pneg %p41
        %p261 = pneg %p38
        %s262 = smul.u32 32, %s20
        %p263 = scmp.lt.s32.totalorder %s262, 63
        %s264 = scalar_select %p263, %s262, 63
        %s265 = smul.addr %s264, 8
        %s266 = scalar_lea.vmem %s1, %s265
        %p267 = pneg %p67
        %p268 = pneg %p64
        %p269 = pneg %p88
        %p270 = pneg %p85
        %p271 = pneg %p109
        %p272 = pneg %p106
        %s273 = smul.u32 32, %s20
        %p274 = scmp.lt.s32.totalorder %s273, 63
        %s275 = scalar_select %p274, %s273, 63
        %s276 = smul.addr %s275, 4
        %s277 = scalar_lea.vmem %s4, %s276
        %p278 = pneg %p135
        %p279 = pneg %p132
        %s280 = smul.u32 32, %s20
        %p281 = scmp.lt.s32.totalorder %s280, 63
        %s282 = scalar_select %p281, %s280, 63
        %s283 = smul.addr %s282, 8
        %s284 = scalar_lea.vmem %s5, %s283
        %p285 = pneg %p161
        %p286 = pneg %p158
        %p287 = pneg %p187
        %p288 = pneg %p184
        %s289 = sand.u32 %s174, 1
        %s290 = scalar_lea.sflag [#allocation3], %s289
        %s291 = sand.u32 %s174, 1
        %s292 = smul.addr %s291, 256
        %s293 = scalar_lea.vmem [#allocation2], %s292
        %s294 = smul.u32 32, %s20
        %p295 = scmp.lt.s32.totalorder %s294, 63
        %s296 = scalar_select %p295, %s294, 63
        %s297 = smul.addr %s296, 8
        %s298 = scalar_lea.vmem %s0, %s297
        %s299 = smul.u32 32, %s20
        %s300 = smul.u32 32, %s20
        %p301 = scmp.lt.s32.totalorder %s300, 63
        %s302 = scalar_select %p301, %s300, 63
        %s303 = smul.addr %s302, 8
        %s304 = scalar_lea.vmem %s1, %s303
        %s305 = smul.u32 32, %s20
        %s306 = smul.u32 32, %s20
        %p307 = scmp.lt.s32.totalorder %s306, 63
        %s308 = scalar_select %p307, %s306, 63
        %s309 = smul.addr %s308, 4
        %s310 = scalar_lea.vmem %s4, %s309
        %s311 = smul.u32 32, %s20
        %s312 = smul.u32 32, %s20
        %p313 = scmp.lt.s32.totalorder %s312, 63
        %s314 = scalar_select %p313, %s312, 63
        %s315 = smul.addr %s314, 8
        %s316 = scalar_lea.vmem %s5, %s315
        %s317 = smul.u32 32, %s20
        %s318 = smul.u32 32, %s20
        %v319 = vld [vmem:[%s298] sm:$0xff]
        %v320 = vld [vmem:[%s298 + $0x8] sm:$0xff]
        %v321 = vld [vmem:[%s298 + $0x10] sm:$0xff]
        %v322 = vld [vmem:[%s298 + $0x18] sm:$0xff]
        %v323 = vld [vmem:[%s298 + $0x20] sm:$0xff]
        %v324 = vld [vmem:[%s298 + $0x28] sm:$0xff]
        %v325 = vld [vmem:[%s298 + $0x30] sm:$0xff]
        %v326 = vld [vmem:[%s298 + $0x38] sm:$0xff]
        %v327 = vld [vmem:[%s298 + $0x40] sm:$0xff]
        %v328 = vld [vmem:[%s298 + $0x48] sm:$0xff]
        %v329 = vld [vmem:[%s298 + $0x50] sm:$0xff]
        %v330 = vld [vmem:[%s298 + $0x58] sm:$0xff]
        %v331 = vld [vmem:[%s298 + $0x60] sm:$0xff]
        %v332 = vld [vmem:[%s298 + $0x68] sm:$0xff]
        %v333 = vld [vmem:[%s298 + $0x70] sm:$0xff]
        %v334 = vld [vmem:[%s298 + $0x78] sm:$0xff]
        %v335 = vld [vmem:[%s298 + $0x80] sm:$0xff]
        %v336 = vld [vmem:[%s298 + $0x88] sm:$0xff]
        %v337 = vld [vmem:[%s298 + $0x90] sm:$0xff]
        %v338 = vld [vmem:[%s298 + $0x98] sm:$0xff]
        %v339 = vld [vmem:[%s298 + $0xa0] sm:$0xff]
        %v340 = vld [vmem:[%s298 + $0xa8] sm:$0xff]
        %v341 = vld [vmem:[%s298 + $0xb0] sm:$0xff]
        %v342 = vld [vmem:[%s298 + $0xb8] sm:$0xff]
        %v343 = vld [vmem:[%s298 + $0xc0] sm:$0xff]
        %v344 = vld [vmem:[%s298 + $0xc8] sm:$0xff]
        %v345 = vld [vmem:[%s298 + $0xd0] sm:$0xff]
        %v346 = vld [vmem:[%s298 + $0xd8] sm:$0xff]
        %v347 = vld [vmem:[%s298 + $0xe0] sm:$0xff]
        %v348 = vld [vmem:[%s298 + $0xe8] sm:$0xff]
        %v349 = vld [vmem:[%s298 + $0xf0] sm:$0xff]
        %v350 = vld [vmem:[%s298 + $0xf8] sm:$0xff]
        %v351 = vld [vmem:[%s304] sm:$0xff]
        %v352 = vld [vmem:[%s304 + $0x8] sm:$0xff]
        %v353 = vld [vmem:[%s304 + $0x10] sm:$0xff]
        %v354 = vld [vmem:[%s304 + $0x18] sm:$0xff]
        %v355 = vld [vmem:[%s304 + $0x20] sm:$0xff]
        %v356 = vld [vmem:[%s304 + $0x28] sm:$0xff]
        %v357 = vld [vmem:[%s304 + $0x30] sm:$0xff]
        %v358 = vld [vmem:[%s304 + $0x38] sm:$0xff]
        %v359 = vld [vmem:[%s304 + $0x40] sm:$0xff]
        %v360 = vld [vmem:[%s304 + $0x48] sm:$0xff]
        %v361 = vld [vmem:[%s304 + $0x50] sm:$0xff]
        %v362 = vld [vmem:[%s304 + $0x58] sm:$0xff]
        %v363 = vld [vmem:[%s304 + $0x60] sm:$0xff]
        %v364 = vld [vmem:[%s304 + $0x68] sm:$0xff]
        %v365 = vld [vmem:[%s304 + $0x70] sm:$0xff]
        %v366 = vld [vmem:[%s304 + $0x78] sm:$0xff]
        %v367 = vld [vmem:[%s304 + $0x80] sm:$0xff]
        %v368 = vld [vmem:[%s304 + $0x88] sm:$0xff]
        %v369 = vld [vmem:[%s304 + $0x90] sm:$0xff]
        %v370 = vld [vmem:[%s304 + $0x98] sm:$0xff]
        %v371 = vld [vmem:[%s304 + $0xa0] sm:$0xff]
        %v372 = vld [vmem:[%s304 + $0xa8] sm:$0xff]
        %v373 = vld [vmem:[%s304 + $0xb0] sm:$0xff]
        %v374 = vld [vmem:[%s304 + $0xb8] sm:$0xff]
        %v375 = vld [vmem:[%s304 + $0xc0] sm:$0xff]
        %v376 = vld [vmem:[%s304 + $0xc8] sm:$0xff]
        %v377 = vld [vmem:[%s304 + $0xd0] sm:$0xff]
        %v378 = vld [vmem:[%s304 + $0xd8] sm:$0xff]
        %v379 = vld [vmem:[%s304 + $0xe0] sm:$0xff]
        %v380 = vld [vmem:[%s304 + $0xe8] sm:$0xff]
        %v381 = vld [vmem:[%s304 + $0xf0] sm:$0xff]
        %v382 = vld [vmem:[%s304 + $0xf8] sm:$0xff]
        %v383 = vadd.f32 %v319, %v351
        %v384 = vadd.f32 %v320, %v352
        %v385 = vadd.f32 %v321, %v353
        %v386 = vadd.f32 %v322, %v354
        %v387 = vadd.f32 %v323, %v355
        %v388 = vadd.f32 %v324, %v356
        %v389 = vadd.f32 %v325, %v357
        %v390 = vadd.f32 %v326, %v358
        %v391 = vadd.f32 %v327, %v359
        %v392 = vadd.f32 %v328, %v360
        %v393 = vadd.f32 %v329, %v361
        %v394 = vadd.f32 %v330, %v362
        %v395 = vadd.f32 %v331, %v363
        %v396 = vadd.f32 %v332, %v364
        %v397 = vadd.f32 %v333, %v365
        %v398 = vadd.f32 %v334, %v366
        %v399 = vadd.f32 %v335, %v367
        %v400 = vadd.f32 %v336, %v368
        %v401 = vadd.f32 %v337, %v369
        %v402 = vadd.f32 %v338, %v370
        %v403 = vadd.f32 %v339, %v371
        %v404 = vadd.f32 %v340, %v372
        %v405 = vadd.f32 %v341, %v373
        %v406 = vadd.f32 %v342, %v374
        %v407 = vadd.f32 %v343, %v375
        %v408 = vadd.f32 %v344, %v376
        %v409 = vadd.f32 %v345, %v377
        %v410 = vadd.f32 %v346, %v378
        %v411 = vadd.f32 %v347, %v379
        %v412 = vadd.f32 %v348, %v380
        %v413 = vadd.f32 %v349, %v381
        %v414 = vadd.f32 %v350, %v382
        %v415 = vld [vmem:[%s2] sm:$0xf]
        %v416 = vld [vmem:[%s3] sm:$0x1]
        %v418 = vlaneseq
        %v419 = vshrl.u32 %v418, 7
        %v420 = vsub.s32 0, %v419
        %v421 = vrot.slane %v416, %v420
        %vm423 = vcmask 31744
        %v425 = vsel %vm423, %v383, 0
        %v428 = vsel %vm423, %v384, 0
        %v431 = vsel %vm423, %v385, 0
        %v434 = vsel %vm423, %v386, 0
        %v437 = vsel %vm423, %v387, 0
        %v440 = vsel %vm423, %v388, 0
        %v443 = vsel %vm423, %v389, 0
        %v446 = vsel %vm423, %v390, 0
        %v449 = vsel %vm423, %v391, 0
        %v452 = vsel %vm423, %v392, 0
        %v455 = vsel %vm423, %v393, 0
        %v458 = vsel %vm423, %v394, 0
        %v461 = vsel %vm423, %v395, 0
        %v464 = vsel %vm423, %v396, 0
        %v467 = vsel %vm423, %v397, 0
        %v470 = vsel %vm423, %v398, 0
        %v473 = vsel %vm423, %v399, 0
        %v476 = vsel %vm423, %v400, 0
        %v479 = vsel %vm423, %v401, 0
        %v482 = vsel %vm423, %v402, 0
        %v485 = vsel %vm423, %v403, 0
        %v488 = vsel %vm423, %v404, 0
        %v491 = vsel %vm423, %v405, 0
        %v494 = vsel %vm423, %v406, 0
        %v497 = vsel %vm423, %v407, 0
        %v500 = vsel %vm423, %v408, 0
        %v503 = vsel %vm423, %v409, 0
        %v506 = vsel %vm423, %v410, 0
        %v509 = vsel %vm423, %v411, 0
        %v512 = vsel %vm423, %v412, 0
        %v515 = vsel %vm423, %v413, 0
        %v518 = vsel %vm423, %v414, 0
        %vm520 = vcmask 1043456
        %v522 = vsel %vm520, %v415, 0
        %524 = vmatprep.subr.mxu0 0.0
        %525 = vmatpush1.msra.mxu0 %v522
        %526 = vmatprep.subr.mxu0 0.0
        %527 = vmatpush1.msra.mxu0 0.0
        %528 = vmatprep.subr.mxu0 0.0
        %529 = vmatpush1.msra.mxu0 0.0
        %530 = vmatprep.subr.mxu0 0.0
        %531 = vmatpush1.msra.mxu0 0.0
        %532 = vmatprep.subr.mxu0 0.0
        %533 = vmatpush1.msra.mxu0 0.0
        %534 = vmatprep.subr.mxu0 0.0
        %535 = vmatpush1.msra.mxu0 0.0
        %536 = vmatprep.subr.mxu0 0.0
        %537 = vmatpush1.msra.mxu0 0.0
        %538 = vmatprep.subr.mxu0 0.0
        %539 = vmatpush1.msra.mxu0 0.0
        %540 = vmatprep.subr.mxu0 0.0
        %541 = vmatpush1.msra.mxu0 0.0
        %542 = vmatprep.subr.mxu0 0.0
        %543 = vmatpush1.msra.mxu0 0.0
        %544 = vmatprep.subr.mxu0 0.0
        %545 = vmatpush1.msra.mxu0 0.0
        %546 = vmatprep.subr.mxu0 0.0
        %547 = vmatpush1.msra.mxu0 0.0
        %548 = vmatprep.subr.mxu0 0.0
        %549 = vmatpush1.msra.mxu0 0.0
        %550 = vmatprep.subr.mxu0 0.0
        %551 = vmatpush1.msra.mxu0 0.0
        %552 = vmatprep.subr.mxu0 0.0
        %553 = vmatpush1.msra.mxu0 0.0
        %554 = vmatprep.subr.mxu0 0.0
        %555 = vmatpush1.msra.mxu0 0.0
        %556 = vmatprep.subr.mxu0 0.0
        %557 = vmatpush1.msra.mxu0 0.0
        %558 = vmatprep.subr.mxu0 0.0
        %559 = vmatpush1.msra.mxu0 0.0
        %560 = vmatprep.subr.mxu0 0.0
        %561 = vmatpush1.msra.mxu0 0.0
        %562 = vmatprep.subr.mxu0 0.0
        %563 = vmatpush1.msra.mxu0 0.0
        %564 = vmatprep.subr.mxu0 0.0
        %565 = vmatpush1.msra.mxu0 0.0
        %566 = vmatprep.subr.mxu0 0.0
        %567 = vmatpush1.msra.mxu0 0.0
        %568 = vmatprep.subr.mxu0 0.0
        %569 = vmatpush1.msra.mxu0 0.0
        %570 = vmatprep.subr.mxu0 0.0
        %571 = vmatpush1.msra.mxu0 0.0
        %572 = vmatprep.subr.mxu0 0.0
        %573 = vmatpush1.msra.mxu0 0.0
        %574 = vmatprep.subr.mxu0 0.0
        %575 = vmatpush1.msra.mxu0 0.0
        %576 = vmatprep.subr.mxu0 0.0
        %577 = vmatpush1.msra.mxu0 0.0
        %578 = vmatprep.subr.mxu0 0.0
        %579 = vmatpush1.msra.mxu0 0.0
        %580 = vmatprep.subr.mxu0 0.0
        %581 = vmatpush1.msra.mxu0 0.0
        %582 = vmatprep.subr.mxu0 0.0
        %583 = vmatpush1.msra.mxu0 0.0
        %584 = vmatprep.subr.mxu0 0.0
        %585 = vmatpush1.msra.mxu0 0.0
        %586 = vmatprep.subr.mxu0 0.0
        %587 = vmatpush1.msra.mxu0 0.0
        %588 = vmatprep.mubr.f32.mxu0 0.0
        %589 = vmatmul.mubr.f32.gmra.mrb[0].mxu0 %v425
        %v590 = vpop.f32.mrb[0].mxu0
        %v591 = vadd.f32 %v421, %v590
        %v592 = vpop.f32.mrb[0].mxu0
        %593 = vmatprep.mubr.f32.mxu0 0.0
        %594 = vmatmul.mubr.f32.gmra.mrb[0].mxu0 %v428
        %v595 = vpop.f32.mrb[0].mxu0
        %v596 = vadd.f32 %v421, %v595
        %v597 = vpop.f32.mrb[0].mxu0
        %598 = vmatprep.mubr.f32.mxu0 0.0
        %599 = vmatmul.mubr.f32.gmra.mrb[0].mxu0 %v431
        %v600 = vpop.f32.mrb[0].mxu0
        %v601 = vadd.f32 %v421, %v600
        %v602 = vpop.f32.mrb[0].mxu0
        %603 = vmatprep.mubr.f32.mxu0 0.0
        %604 = vmatmul.mubr.f32.gmra.mrb[0].mxu0 %v434
        %v605 = vpop.f32.mrb[0].mxu0
        %v606 = vadd.f32 %v421, %v605
        %v607 = vpop.f32.mrb[0].mxu0
        %608 = vmatprep.mubr.f32.mxu0 0.0
        %609 = vmatmul.mubr.f32.gmra.mrb[0].mxu0 %v437
        %v610 = vpop.f32.mrb[0].mxu0
        %v611 = vadd.f32 %v421, %v610
        %v612 = vpop.f32.mrb[0].mxu0
        %613 = vmatprep.mubr.f32.mxu0 0.0
        %614 = vmatmul.mubr.f32.gmra.mrb[0].mxu0 %v440
        %v615 = vpop.f32.mrb[0].mxu0
        %v616 = vadd.f32 %v421, %v615
        %v617 = vpop.f32.mrb[0].mxu0
        %618 = vmatprep.mubr.f32.mxu0 0.0
        %619 = vmatmul.mubr.f32.gmra.mrb[0].mxu0 %v443
        %v620 = vpop.f32.mrb[0].mxu0
        %v621 = vadd.f32 %v421, %v620
        %v622 = vpop.f32.mrb[0].mxu0
        %623 = vmatprep.mubr.f32.mxu0 0.0
        %624 = vmatmul.mubr.f32.gmra.mrb[0].mxu0 %v446
        %v625 = vpop.f32.mrb[0].mxu0
        %v626 = vadd.f32 %v421, %v625
        %v627 = vpop.f32.mrb[0].mxu0
        %628 = vmatprep.mubr.f32.mxu0 0.0
        %629 = vmatmul.mubr.f32.gmra.mrb[0].mxu0 %v449
        %v630 = vpop.f32.mrb[0].mxu0
        %v631 = vadd.f32 %v421, %v630
        %v632 = vpop.f32.mrb[0].mxu0
        %633 = vmatprep.mubr.f32.mxu0 0.0
        %634 = vmatmul.mubr.f32.gmra.mrb[0].mxu0 %v452
        %v635 = vpop.f32.mrb[0].mxu0
        %v636 = vadd.f32 %v421, %v635
        %v637 = vpop.f32.mrb[0].mxu0
        %638 = vmatprep.mubr.f32.mxu0 0.0
        %639 = vmatmul.mubr.f32.gmra.mrb[0].mxu0 %v455
        %v640 = vpop.f32.mrb[0].mxu0
        %v641 = vadd.f32 %v421, %v640
        %v642 = vpop.f32.mrb[0].mxu0
        %643 = vmatprep.mubr.f32.mxu0 0.0
        %644 = vmatmul.mubr.f32.gmra.mrb[0].mxu0 %v458
        %v645 = vpop.f32.mrb[0].mxu0
        %v646 = vadd.f32 %v421, %v645
        %v647 = vpop.f32.mrb[0].mxu0
        %648 = vmatprep.mubr.f32.mxu0 0.0
        %649 = vmatmul.mubr.f32.gmra.mrb[0].mxu0 %v461
        %v650 = vpop.f32.mrb[0].mxu0
        %v651 = vadd.f32 %v421, %v650
        %v652 = vpop.f32.mrb[0].mxu0
        %653 = vmatprep.mubr.f32.mxu0 0.0
        %654 = vmatmul.mubr.f32.gmra.mrb[0].mxu0 %v464
        %v655 = vpop.f32.mrb[0].mxu0
        %v656 = vadd.f32 %v421, %v655
        %v657 = vpop.f32.mrb[0].mxu0
        %658 = vmatprep.mubr.f32.mxu0 0.0
        %659 = vmatmul.mubr.f32.gmra.mrb[0].mxu0 %v467
        %v660 = vpop.f32.mrb[0].mxu0
        %v661 = vadd.f32 %v421, %v660
        %v662 = vpop.f32.mrb[0].mxu0
        %663 = vmatprep.mubr.f32.mxu0 0.0
        %664 = vmatmul.mubr.f32.gmra.mrb[0].mxu0 %v470
        %v665 = vpop.f32.mrb[0].mxu0
        %v666 = vadd.f32 %v421, %v665
        %v667 = vpop.f32.mrb[0].mxu0
        %668 = vmatprep.mubr.f32.mxu0 0.0
        %669 = vmatmul.mubr.f32.gmra.mrb[0].mxu0 %v473
        %v670 = vpop.f32.mrb[0].mxu0
        %v671 = vadd.f32 %v421, %v670
        %v672 = vpop.f32.mrb[0].mxu0
        %673 = vmatprep.mubr.f32.mxu0 0.0
        %674 = vmatmul.mubr.f32.gmra.mrb[0].mxu0 %v476
        %v675 = vpop.f32.mrb[0].mxu0
        %v676 = vadd.f32 %v421, %v675
        %v677 = vpop.f32.mrb[0].mxu0
        %678 = vmatprep.mubr.f32.mxu0 0.0
        %679 = vmatmul.mubr.f32.gmra.mrb[0].mxu0 %v479
        %v680 = vpop.f32.mrb[0].mxu0
        %v681 = vadd.f32 %v421, %v680
        %v682 = vpop.f32.mrb[0].mxu0
        %683 = vmatprep.mubr.f32.mxu0 0.0
        %684 = vmatmul.mubr.f32.gmra.mrb[0].mxu0 %v482
        %v685 = vpop.f32.mrb[0].mxu0
        %v686 = vadd.f32 %v421, %v685
        %v687 = vpop.f32.mrb[0].mxu0
        %688 = vmatprep.mubr.f32.mxu0 0.0
        %689 = vmatmul.mubr.f32.gmra.mrb[0].mxu0 %v485
        %v690 = vpop.f32.mrb[0].mxu0
        %v691 = vadd.f32 %v421, %v690
        %v692 = vpop.f32.mrb[0].mxu0
        %693 = vmatprep.mubr.f32.mxu0 0.0
        %694 = vmatmul.mubr.f32.gmra.mrb[0].mxu0 %v488
        %v695 = vpop.f32.mrb[0].mxu0
        %v696 = vadd.f32 %v421, %v695
        %v697 = vpop.f32.mrb[0].mxu0
        %698 = vmatprep.mubr.f32.mxu0 0.0
        %699 = vmatmul.mubr.f32.gmra.mrb[0].mxu0 %v491
        %v700 = vpop.f32.mrb[0].mxu0
        %v701 = vadd.f32 %v421, %v700
        %v702 = vpop.f32.mrb[0].mxu0
        %703 = vmatprep.mubr.f32.mxu0 0.0
        %704 = vmatmul.mubr.f32.gmra.mrb[0].mxu0 %v494
        %v705 = vpop.f32.mrb[0].mxu0
        %v706 = vadd.f32 %v421, %v705
        %v707 = vpop.f32.mrb[0].mxu0
        %708 = vmatprep.mubr.f32.mxu0 0.0
        %709 = vmatmul.mubr.f32.gmra.mrb[0].mxu0 %v497
        %v710 = vpop.f32.mrb[0].mxu0
        %v711 = vadd.f32 %v421, %v710
        %v712 = vpop.f32.mrb[0].mxu0
        %713 = vmatprep.mubr.f32.mxu0 0.0
        %714 = vmatmul.mubr.f32.gmra.mrb[0].mxu0 %v500
        %v715 = vpop.f32.mrb[0].mxu0
        %v716 = vadd.f32 %v421, %v715
        %v717 = vpop.f32.mrb[0].mxu0
        %718 = vmatprep.mubr.f32.mxu0 0.0
        %719 = vmatmul.mubr.f32.gmra.mrb[0].mxu0 %v503
        %v720 = vpop.f32.mrb[0].mxu0
        %v721 = vadd.f32 %v421, %v720
        %v722 = vpop.f32.mrb[0].mxu0
        %723 = vmatprep.mubr.f32.mxu0 0.0
        %724 = vmatmul.mubr.f32.gmra.mrb[0].mxu0 %v506
        %v725 = vpop.f32.mrb[0].mxu0
        %v726 = vadd.f32 %v421, %v725
        %v727 = vpop.f32.mrb[0].mxu0
        %728 = vmatprep.mubr.f32.mxu0 0.0
        %729 = vmatmul.mubr.f32.gmra.mrb[0].mxu0 %v509
        %v730 = vpop.f32.mrb[0].mxu0
        %v731 = vadd.f32 %v421, %v730
        %v732 = vpop.f32.mrb[0].mxu0
        %733 = vmatprep.mubr.f32.mxu0 0.0
        %734 = vmatmul.mubr.f32.gmra.mrb[0].mxu0 %v512
        %v735 = vpop.f32.mrb[0].mxu0
        %v736 = vadd.f32 %v421, %v735
        %v737 = vpop.f32.mrb[0].mxu0
        %738 = vmatprep.mubr.f32.mxu0 0.0
        %739 = vmatmul.mubr.f32.gmra.mrb[0].mxu0 %v515
        %v740 = vpop.f32.mrb[0].mxu0
        %v741 = vadd.f32 %v421, %v740
        %v742 = vpop.f32.mrb[0].mxu0
        %743 = vmatprep.mubr.f32.mxu0 0.0
        %744 = vmatmul.mubr.f32.gmra.mrb[0].mxu0 %v518
        %v745 = vpop.f32.mrb[0].mxu0
        %v746 = vadd.f32 %v421, %v745
        %v747 = vpop.f32.mrb[0].mxu0
        %748 = vdwg.mxu0
        %v749 = vxor.u32 %v591, 2147483648
        %v750 = vxor.u32 %v596, 2147483648
        %v751 = vxor.u32 %v601, 2147483648
        %v752 = vxor.u32 %v606, 2147483648
        %v753 = vxor.u32 %v611, 2147483648
        %v754 = vxor.u32 %v616, 2147483648
        %v755 = vxor.u32 %v621, 2147483648
        %v756 = vxor.u32 %v626, 2147483648
        %v757 = vxor.u32 %v631, 2147483648
        %v758 = vxor.u32 %v636, 2147483648
        %v759 = vxor.u32 %v641, 2147483648
        %v760 = vxor.u32 %v646, 2147483648
        %v761 = vxor.u32 %v651, 2147483648
        %v762 = vxor.u32 %v656, 2147483648
        %v763 = vxor.u32 %v661, 2147483648
        %v764 = vxor.u32 %v666, 2147483648
        %v765 = vxor.u32 %v671, 2147483648
        %v766 = vxor.u32 %v676, 2147483648
        %v767 = vxor.u32 %v681, 2147483648
        %v768 = vxor.u32 %v686, 2147483648
        %v769 = vxor.u32 %v691, 2147483648
        %v770 = vxor.u32 %v696, 2147483648
        %v771 = vxor.u32 %v701, 2147483648
        %v772 = vxor.u32 %v706, 2147483648
        %v773 = vxor.u32 %v711, 2147483648
        %v774 = vxor.u32 %v716, 2147483648
        %v775 = vxor.u32 %v721, 2147483648
        %v776 = vxor.u32 %v726, 2147483648
        %v777 = vxor.u32 %v731, 2147483648
        %v778 = vxor.u32 %v736, 2147483648
        %v779 = vxor.u32 %v741, 2147483648
        %v780 = vxor.u32 %v746, 2147483648
        %v781 = vmul.f32 %v749, 1.442695
        %v782 = vpow.pop %v781
        %v783 = vmul.f32 %v750, 1.442695
        %v784 = vpow.pop %v783
        %v785 = vmul.f32 %v751, 1.442695
        %v786 = vpow.pop %v785
        %v787 = vmul.f32 %v752, 1.442695
        %v788 = vpow.pop %v787
        %v789 = vmul.f32 %v753, 1.442695
        %v790 = vpow.pop %v789
        %v791 = vmul.f32 %v754, 1.442695
        %v792 = vpow.pop %v791
        %v793 = vmul.f32 %v755, 1.442695
        %v794 = vpow.pop %v793
        %v795 = vmul.f32 %v756, 1.442695
        %v796 = vpow.pop %v795
        %v797 = vmul.f32 %v757, 1.442695
        %v798 = vpow.pop %v797
        %v799 = vmul.f32 %v758, 1.442695
        %v800 = vpow.pop %v799
        %v801 = vmul.f32 %v759, 1.442695
        %v802 = vpow.pop %v801
        %v803 = vmul.f32 %v760, 1.442695
        %v804 = vpow.pop %v803
        %v805 = vmul.f32 %v761, 1.442695
        %v806 = vpow.pop %v805
        %v807 = vmul.f32 %v762, 1.442695
        %v808 = vpow.pop %v807
        %v809 = vmul.f32 %v763, 1.442695
        %v810 = vpow.pop %v809
        %v811 = vmul.f32 %v764, 1.442695
        %v812 = vpow.pop %v811
        %v813 = vmul.f32 %v765, 1.442695
        %v814 = vpow.pop %v813
        %v815 = vmul.f32 %v766, 1.442695
        %v816 = vpow.pop %v815
        %v817 = vmul.f32 %v767, 1.442695
        %v818 = vpow.pop %v817
        %v819 = vmul.f32 %v768, 1.442695
        %v820 = vpow.pop %v819
        %v821 = vmul.f32 %v769, 1.442695
        %v822 = vpow.pop %v821
        %v823 = vmul.f32 %v770, 1.442695
        %v824 = vpow.pop %v823
        %v825 = vmul.f32 %v771, 1.442695
        %v826 = vpow.pop %v825
        %v827 = vmul.f32 %v772, 1.442695
        %v828 = vpow.pop %v827
        %v829 = vmul.f32 %v773, 1.442695
        %v830 = vpow.pop %v829
        %v831 = vmul.f32 %v774, 1.442695
        %v832 = vpow.pop %v831
        %v833 = vmul.f32 %v775, 1.442695
        %v834 = vpow.pop %v833
        %v835 = vmul.f32 %v776, 1.442695
        %v836 = vpow.pop %v835
        %v837 = vmul.f32 %v777, 1.442695
        %v838 = vpow.pop %v837
        %v839 = vmul.f32 %v778, 1.442695
        %v840 = vpow.pop %v839
        %v841 = vmul.f32 %v779, 1.442695
        %v842 = vpow.pop %v841
        %v843 = vmul.f32 %v780, 1.442695
        %v844 = vpow.pop %v843
        %v845 = vadd.f32 %v782, 1.0
        %v846 = vadd.f32 %v784, 1.0
        %v847 = vadd.f32 %v786, 1.0
        %v848 = vadd.f32 %v788, 1.0
        %v849 = vadd.f32 %v790, 1.0
        %v850 = vadd.f32 %v792, 1.0
        %v851 = vadd.f32 %v794, 1.0
        %v852 = vadd.f32 %v796, 1.0
        %v853 = vadd.f32 %v798, 1.0
        %v854 = vadd.f32 %v800, 1.0
        %v855 = vadd.f32 %v802, 1.0
        %v856 = vadd.f32 %v804, 1.0
        %v857 = vadd.f32 %v806, 1.0
        %v858 = vadd.f32 %v808, 1.0
        %v859 = vadd.f32 %v810, 1.0
        %v860 = vadd.f32 %v812, 1.0
        %v861 = vadd.f32 %v814, 1.0
        %v862 = vadd.f32 %v816, 1.0
        %v863 = vadd.f32 %v818, 1.0
        %v864 = vadd.f32 %v820, 1.0
        %v865 = vadd.f32 %v822, 1.0
        %v866 = vadd.f32 %v824, 1.0
        %v867 = vadd.f32 %v826, 1.0
        %v868 = vadd.f32 %v828, 1.0
        %v869 = vadd.f32 %v830, 1.0
        %v870 = vadd.f32 %v832, 1.0
        %v871 = vadd.f32 %v834, 1.0
        %v872 = vadd.f32 %v836, 1.0
        %v873 = vadd.f32 %v838, 1.0
        %v874 = vadd.f32 %v840, 1.0
        %v875 = vadd.f32 %v842, 1.0
        %v876 = vadd.f32 %v844, 1.0
        %v877 = vrcp.pop %v845
        %v878 = vmul.f32 1.0, %v877
        %v879 = vrcp.pop %v846
        %v880 = vmul.f32 1.0, %v879
        %v881 = vrcp.pop %v847
        %v882 = vmul.f32 1.0, %v881
        %v883 = vrcp.pop %v848
        %v884 = vmul.f32 1.0, %v883
        %v885 = vrcp.pop %v849
        %v886 = vmul.f32 1.0, %v885
        %v887 = vrcp.pop %v850
        %v888 = vmul.f32 1.0, %v887
        %v889 = vrcp.pop %v851
        %v890 = vmul.f32 1.0, %v889
        %v891 = vrcp.pop %v852
        %v892 = vmul.f32 1.0, %v891
        %v893 = vrcp.pop %v853
        %v894 = vmul.f32 1.0, %v893
        %v895 = vrcp.pop %v854
        %v896 = vmul.f32 1.0, %v895
        %v897 = vrcp.pop %v855
        %v898 = vmul.f32 1.0, %v897
        %v899 = vrcp.pop %v856
        %v900 = vmul.f32 1.0, %v899
        %v901 = vrcp.pop %v857
        %v902 = vmul.f32 1.0, %v901
        %v903 = vrcp.pop %v858
        %v904 = vmul.f32 1.0, %v903
        %v905 = vrcp.pop %v859
        %v906 = vmul.f32 1.0, %v905
        %v907 = vrcp.pop %v860
        %v908 = vmul.f32 1.0, %v907
        %v909 = vrcp.pop %v861
        %v910 = vmul.f32 1.0, %v909
        %v911 = vrcp.pop %v862
        %v912 = vmul.f32 1.0, %v911
        %v913 = vrcp.pop %v863
        %v914 = vmul.f32 1.0, %v913
        %v915 = vrcp.pop %v864
        %v916 = vmul.f32 1.0, %v915
        %v917 = vrcp.pop %v865
        %v918 = vmul.f32 1.0, %v917
        %v919 = vrcp.pop %v866
        %v920 = vmul.f32 1.0, %v919
        %v921 = vrcp.pop %v867
        %v922 = vmul.f32 1.0, %v921
        %v923 = vrcp.pop %v868
        %v924 = vmul.f32 1.0, %v923
        %v925 = vrcp.pop %v869
        %v926 = vmul.f32 1.0, %v925
        %v927 = vrcp.pop %v870
        %v928 = vmul.f32 1.0, %v927
        %v929 = vrcp.pop %v871
        %v930 = vmul.f32 1.0, %v929
        %v931 = vrcp.pop %v872
        %v932 = vmul.f32 1.0, %v931
        %v933 = vrcp.pop %v873
        %v934 = vmul.f32 1.0, %v933
        %v935 = vrcp.pop %v874
        %v936 = vmul.f32 1.0, %v935
        %v937 = vrcp.pop %v875
        %v938 = vmul.f32 1.0, %v937
        %v939 = vrcp.pop %v876
        %v940 = vmul.f32 1.0, %v939
        %v941 = vld [vmem:[%s310] sm:$0xf]
        %v942 = vld [vmem:[%s310 + $0x4] sm:$0xf]
        %v943 = vld [vmem:[%s310 + $0x8] sm:$0xf]
        %v944 = vld [vmem:[%s310 + $0xc] sm:$0xf]
        %v945 = vld [vmem:[%s310 + $0x10] sm:$0xf]
        %v946 = vld [vmem:[%s310 + $0x14] sm:$0xf]
        %v947 = vld [vmem:[%s310 + $0x18] sm:$0xf]
        %v948 = vld [vmem:[%s310 + $0x1c] sm:$0xf]
        %v949 = vld [vmem:[%s310 + $0x20] sm:$0xf]
        %v950 = vld [vmem:[%s310 + $0x24] sm:$0xf]
        %v951 = vld [vmem:[%s310 + $0x28] sm:$0xf]
        %v952 = vld [vmem:[%s310 + $0x2c] sm:$0xf]
        %v953 = vld [vmem:[%s310 + $0x30] sm:$0xf]
        %v954 = vld [vmem:[%s310 + $0x34] sm:$0xf]
        %v955 = vld [vmem:[%s310 + $0x38] sm:$0xf]
        %v956 = vld [vmem:[%s310 + $0x3c] sm:$0xf]
        %v957 = vld [vmem:[%s310 + $0x40] sm:$0xf]
        %v958 = vld [vmem:[%s310 + $0x44] sm:$0xf]
        %v959 = vld [vmem:[%s310 + $0x48] sm:$0xf]
        %v960 = vld [vmem:[%s310 + $0x4c] sm:$0xf]
        %v961 = vld [vmem:[%s310 + $0x50] sm:$0xf]
        %v962 = vld [vmem:[%s310 + $0x54] sm:$0xf]
        %v963 = vld [vmem:[%s310 + $0x58] sm:$0xf]
        %v964 = vld [vmem:[%s310 + $0x5c] sm:$0xf]
        %v965 = vld [vmem:[%s310 + $0x60] sm:$0xf]
        %v966 = vld [vmem:[%s310 + $0x64] sm:$0xf]
        %v967 = vld [vmem:[%s310 + $0x68] sm:$0xf]
        %v968 = vld [vmem:[%s310 + $0x6c] sm:$0xf]
        %v969 = vld [vmem:[%s310 + $0x70] sm:$0xf]
        %v970 = vld [vmem:[%s310 + $0x74] sm:$0xf]
        %v971 = vld [vmem:[%s310 + $0x78] sm:$0xf]
        %v972 = vld [vmem:[%s310 + $0x7c] sm:$0xf]
        %v973 = vunpack.c.l.bf16 %v941
        %v974 = vunpack.c.l.bf16 %v942
        %v975 = vunpack.c.l.bf16 %v943
        %v976 = vunpack.c.l.bf16 %v944
        %v977 = vunpack.c.l.bf16 %v945
        %v978 = vunpack.c.l.bf16 %v946
        %v979 = vunpack.c.l.bf16 %v947
        %v980 = vunpack.c.l.bf16 %v948
        %v981 = vunpack.c.l.bf16 %v949
        %v982 = vunpack.c.l.bf16 %v950
        %v983 = vunpack.c.l.bf16 %v951
        %v984 = vunpack.c.l.bf16 %v952
        %v985 = vunpack.c.l.bf16 %v953
        %v986 = vunpack.c.l.bf16 %v954
        %v987 = vunpack.c.l.bf16 %v955
        %v988 = vunpack.c.l.bf16 %v956
        %v989 = vunpack.c.l.bf16 %v957
        %v990 = vunpack.c.l.bf16 %v958
        %v991 = vunpack.c.l.bf16 %v959
        %v992 = vunpack.c.l.bf16 %v960
        %v993 = vunpack.c.l.bf16 %v961
        %v994 = vunpack.c.l.bf16 %v962
        %v995 = vunpack.c.l.bf16 %v963
        %v996 = vunpack.c.l.bf16 %v964
        %v997 = vunpack.c.l.bf16 %v965
        %v998 = vunpack.c.l.bf16 %v966
        %v999 = vunpack.c.l.bf16 %v967
        %v1000 = vunpack.c.l.bf16 %v968
        %v1001 = vunpack.c.l.bf16 %v969
        %v1002 = vunpack.c.l.bf16 %v970
        %v1003 = vunpack.c.l.bf16 %v971
        %v1004 = vunpack.c.l.bf16 %v972
        %v1005 = vmul.f32 %v973, %v878
        %v1006 = vmul.f32 %v974, %v880
        %v1007 = vmul.f32 %v975, %v882
        %v1008 = vmul.f32 %v976, %v884
        %v1009 = vmul.f32 %v977, %v886
        %v1010 = vmul.f32 %v978, %v888
        %v1011 = vmul.f32 %v979, %v890
        %v1012 = vmul.f32 %v980, %v892
        %v1013 = vmul.f32 %v981, %v894
        %v1014 = vmul.f32 %v982, %v896
        %v1015 = vmul.f32 %v983, %v898
        %v1016 = vmul.f32 %v984, %v900
        %v1017 = vmul.f32 %v985, %v902
        %v1018 = vmul.f32 %v986, %v904
        %v1019 = vmul.f32 %v987, %v906
        %v1020 = vmul.f32 %v988, %v908
        %v1021 = vmul.f32 %v989, %v910
        %v1022 = vmul.f32 %v990, %v912
        %v1023 = vmul.f32 %v991, %v914
        %v1024 = vmul.f32 %v992, %v916
        %v1025 = vmul.f32 %v993, %v918
        %v1026 = vmul.f32 %v994, %v920
        %v1027 = vmul.f32 %v995, %v922
        %v1028 = vmul.f32 %v996, %v924
        %v1029 = vmul.f32 %v997, %v926
        %v1030 = vmul.f32 %v998, %v928
        %v1031 = vmul.f32 %v999, %v930
        %v1032 = vmul.f32 %v1000, %v932
        %v1033 = vmul.f32 %v1001, %v934
        %v1034 = vmul.f32 %v1002, %v936
        %v1035 = vmul.f32 %v1003, %v938
        %v1036 = vmul.f32 %v1004, %v940
        %v1037 = vld [vmem:[%s316] sm:$0xff]
        %v1038 = vld [vmem:[%s316 + $0x8] sm:$0xff]
        %v1039 = vld [vmem:[%s316 + $0x10] sm:$0xff]
        %v1040 = vld [vmem:[%s316 + $0x18] sm:$0xff]
        %v1041 = vld [vmem:[%s316 + $0x20] sm:$0xff]
        %v1042 = vld [vmem:[%s316 + $0x28] sm:$0xff]
        %v1043 = vld [vmem:[%s316 + $0x30] sm:$0xff]
        %v1044 = vld [vmem:[%s316 + $0x38] sm:$0xff]
        %v1045 = vld [vmem:[%s316 + $0x40] sm:$0xff]
        %v1046 = vld [vmem:[%s316 + $0x48] sm:$0xff]
        %v1047 = vld [vmem:[%s316 + $0x50] sm:$0xff]
        %v1048 = vld [vmem:[%s316 + $0x58] sm:$0xff]
        %v1049 = vld [vmem:[%s316 + $0x60] sm:$0xff]
        %v1050 = vld [vmem:[%s316 + $0x68] sm:$0xff]
        %v1051 = vld [vmem:[%s316 + $0x70] sm:$0xff]
        %v1052 = vld [vmem:[%s316 + $0x78] sm:$0xff]
        %v1053 = vld [vmem:[%s316 + $0x80] sm:$0xff]
        %v1054 = vld [vmem:[%s316 + $0x88] sm:$0xff]
        %v1055 = vld [vmem:[%s316 + $0x90] sm:$0xff]
        %v1056 = vld [vmem:[%s316 + $0x98] sm:$0xff]
        %v1057 = vld [vmem:[%s316 + $0xa0] sm:$0xff]
        %v1058 = vld [vmem:[%s316 + $0xa8] sm:$0xff]
        %v1059 = vld [vmem:[%s316 + $0xb0] sm:$0xff]
        %v1060 = vld [vmem:[%s316 + $0xb8] sm:$0xff]
        %v1061 = vld [vmem:[%s316 + $0xc0] sm:$0xff]
        %v1062 = vld [vmem:[%s316 + $0xc8] sm:$0xff]
        %v1063 = vld [vmem:[%s316 + $0xd0] sm:$0xff]
        %v1064 = vld [vmem:[%s316 + $0xd8] sm:$0xff]
        %v1065 = vld [vmem:[%s316 + $0xe0] sm:$0xff]
        %v1066 = vld [vmem:[%s316 + $0xe8] sm:$0xff]
        %v1067 = vld [vmem:[%s316 + $0xf0] sm:$0xff]
        %v1068 = vld [vmem:[%s316 + $0xf8] sm:$0xff]
        %v1069 = vadd.f32 %v1005, %v1037
        %v1070 = vadd.f32 %v1006, %v1038
        %v1071 = vadd.f32 %v1007, %v1039
        %v1072 = vadd.f32 %v1008, %v1040
        %v1073 = vadd.f32 %v1009, %v1041
        %v1074 = vadd.f32 %v1010, %v1042
        %v1075 = vadd.f32 %v1011, %v1043
        %v1076 = vadd.f32 %v1012, %v1044
        %v1077 = vadd.f32 %v1013, %v1045
        %v1078 = vadd.f32 %v1014, %v1046
        %v1079 = vadd.f32 %v1015, %v1047
        %v1080 = vadd.f32 %v1016, %v1048
        %v1081 = vadd.f32 %v1017, %v1049
        %v1082 = vadd.f32 %v1018, %v1050
        %v1083 = vadd.f32 %v1019, %v1051
        %v1084 = vadd.f32 %v1020, %v1052
        %v1085 = vadd.f32 %v1021, %v1053
        %v1086 = vadd.f32 %v1022, %v1054
        %v1087 = vadd.f32 %v1023, %v1055
        %v1088 = vadd.f32 %v1024, %v1056
        %v1089 = vadd.f32 %v1025, %v1057
        %v1090 = vadd.f32 %v1026, %v1058
        %v1091 = vadd.f32 %v1027, %v1059
        %v1092 = vadd.f32 %v1028, %v1060
        %v1093 = vadd.f32 %v1029, %v1061
        %v1094 = vadd.f32 %v1030, %v1062
        %v1095 = vadd.f32 %v1031, %v1063
        %v1096 = vadd.f32 %v1032, %v1064
        %v1097 = vadd.f32 %v1033, %v1065
        %v1098 = vadd.f32 %v1034, %v1066
        %v1099 = vadd.f32 %v1035, %v1067
        %v1100 = vadd.f32 %v1036, %v1068
        %vm1101 = vcmask 130048
        %1102 = vst.msk [vmem:[%s293] sm:$0xff] %vm1101, %v1069
        %1103 = vst.msk [vmem:[%s293 + $0x8] sm:$0xff] %vm1101, %v1070
        %1104 = vst.msk [vmem:[%s293 + $0x10] sm:$0xff] %vm1101, %v1071
        %1105 = vst.msk [vmem:[%s293 + $0x18] sm:$0xff] %vm1101, %v1072
        %1106 = vst.msk [vmem:[%s293 + $0x20] sm:$0xff] %vm1101, %v1073
        %1107 = vst.msk [vmem:[%s293 + $0x28] sm:$0xff] %vm1101, %v1074
        %1108 = vst.msk [vmem:[%s293 + $0x30] sm:$0xff] %vm1101, %v1075
        %1109 = vst.msk [vmem:[%s293 + $0x38] sm:$0xff] %vm1101, %v1076
        %1110 = vst.msk [vmem:[%s293 + $0x40] sm:$0xff] %vm1101, %v1077
        %1111 = vst.msk [vmem:[%s293 + $0x48] sm:$0xff] %vm1101, %v1078
        %1112 = vst.msk [vmem:[%s293 + $0x50] sm:$0xff] %vm1101, %v1079
        %1113 = vst.msk [vmem:[%s293 + $0x58] sm:$0xff] %vm1101, %v1080
        %1114 = vst.msk [vmem:[%s293 + $0x60] sm:$0xff] %vm1101, %v1081
        %1115 = vst.msk [vmem:[%s293 + $0x68] sm:$0xff] %vm1101, %v1082
        %1116 = vst.msk [vmem:[%s293 + $0x70] sm:$0xff] %vm1101, %v1083
        %1117 = vst.msk [vmem:[%s293 + $0x78] sm:$0xff] %vm1101, %v1084
        %1118 = vst.msk [vmem:[%s293 + $0x80] sm:$0xff] %vm1101, %v1085
        %1119 = vst.msk [vmem:[%s293 + $0x88] sm:$0xff] %vm1101, %v1086
        %1120 = vst.msk [vmem:[%s293 + $0x90] sm:$0xff] %vm1101, %v1087
        %1121 = vst.msk [vmem:[%s293 + $0x98] sm:$0xff] %vm1101, %v1088
        %1122 = vst.msk [vmem:[%s293 + $0xa0] sm:$0xff] %vm1101, %v1089
        %1123 = vst.msk [vmem:[%s293 + $0xa8] sm:$0xff] %vm1101, %v1090
        %1124 = vst.msk [vmem:[%s293 + $0xb0] sm:$0xff] %vm1101, %v1091
        %1125 = vst.msk [vmem:[%s293 + $0xb8] sm:$0xff] %vm1101, %v1092
        %1126 = vst.msk [vmem:[%s293 + $0xc0] sm:$0xff] %vm1101, %v1093
        %1127 = vst.msk [vmem:[%s293 + $0xc8] sm:$0xff] %vm1101, %v1094
        %1128 = vst.msk [vmem:[%s293 + $0xd0] sm:$0xff] %vm1101, %v1095
        %1129 = vst.msk [vmem:[%s293 + $0xd8] sm:$0xff] %vm1101, %v1096
        %1130 = vst.msk [vmem:[%s293 + $0xe0] sm:$0xff] %vm1101, %v1097
        %1131 = vst.msk [vmem:[%s293 + $0xe8] sm:$0xff] %vm1101, %v1098
        %1132 = vst.msk [vmem:[%s293 + $0xf0] sm:$0xff] %vm1101, %v1099
        %1133 = vst.msk [vmem:[%s293 + $0xf8] sm:$0xff] %vm1101, %v1100
        %s1134 = sand.u32 %s174, 1
        %s1135 = scalar_lea.sflag [#allocation3], %s1134
        %s1136 = sand.u32 %s174, 1
        %s1137 = smul.addr %s1136, 256
        %s1138 = scalar_lea.vmem [#allocation2], %s1137
        // Predicated region
        $region45: #{efdb_forward.13} parent=43 // pred_check
          %p1139 = pneg %p184
        $region46: #{efdb_forward.13} parent=43 // pred_check_branch
          %1141 = sbr.rel (%p1139) target = $region48
        $region47: #{efdb_forward.13} parent=43 // pred_region
          %s1142 = smul.u32 32, %s20
          %s1144 = ssub.s32 4096, 4096
          %1145 = vsyncadd %s1135, %s1144
          %s1146 = smul.addr %s1142, 128
          %s1147 = scalar_lea.hbm %s6, %s1146
          %s1148 = sshll.u32 %s1138, 4
          %s1149 = int_to_ptr.vmem [resolvable:$true] %s1148
          %1154 = dma.vmem_to_hbm [thread:$0]  %s1149, 4096, %s1147, %s1135, 128, 128, 8
        $region48: #{efdb_forward.13} parent=43 // pred_fallthru
          _
      $region44: #{efdb_forward.13} parent=5 // pred_fallthru
        _
      %p1155 = scmp.le.s32.totalorder 2, %s15
      // Predicated region
      $region49: #{efdb_forward.13} parent=5 // pred_check
        %p1156 = pneg %p1155
      $region50: #{efdb_forward.13} parent=5 // pred_check_branch
        %1158 = sbr.rel (%p1156) target = $region52
      $region51: #{efdb_forward.13} parent=5 // pred_region
        %s1159 = ssub.s32 %s15, 2
        // Predicated region
        $region53: #{efdb_forward.13} parent=51 // pred_check
          %p1160 = pneg %p190
        $region54: #{efdb_forward.13} parent=51 // pred_check_branch
          %1162 = sbr.rel (%p1160) target = $region56
        $region55: #{efdb_forward.13} parent=51 // pred_region
          %s1163 = sand.u32 %s175, 1
          %s1164 = scalar_lea.sflag [#allocation3], %s1163
          %s1165 = sand.u32 %s175, 1
          %s1166 = smul.addr %s1165, 256
          %s1167 = scalar_lea.vmem [#allocation2], %s1166
          %1168 = dma.done %s1164, 4096
        $region56: #{efdb_forward.13} parent=51 // pred_fallthru
          _
      $region52: #{efdb_forward.13} parent=5 // pred_fallthru
        _
    $region6: #{efdb_forward.13} parent=1 // loop_footer
      %s19 = sadd.s32 1, %s15
    $region7: #{efdb_forward.13} parent=1 // loop_footer_branch
      %14 = sbr.rel target = $region3
    $region8: #{efdb_forward.13} parent=1 // loop_exit
      _
    %1169 = vsyncpa [#allocation3], 1
    %s1170 = scalar_lea.sflag [#allocation3], 1
    %1171 = vsyncpa %s1170, 1

</llo_original>
